<compile_context>
chip_gen: v5e
topology: v5e:2x2
jax: 0.10.0
libtpu: 0.0.40
codegen_flags: <defaults>
</compile_context>

<pallas_src>
import functools

import numpy as np
import jax
import jax.numpy as jnp
from jax.experimental import pallas as pl
from jax.experimental.pallas import tpu as pltpu


# ----------------------------------------------------------------------------
# Small static helpers (all resolved at prep/trace time)
# ----------------------------------------------------------------------------
def _round_up(x, m):
    return ((x + m - 1) // m) * m


def _conv_out(size, k, s):
    return (size - k) // s + 1


def _m_tiling(m, tm_max=256):
    """(tm, m_pad): largest multiple-of-16 divisor of m (<= tm_max) -> zero pad
    rows; otherwise a single 16-aligned padded tile."""
    cap = min(tm_max, m)
    for tm in range(cap - cap % 16, 0, -16):
        if m % tm == 0:
            return tm, m
    m_pad = _round_up(m, 16)
    return m_pad, m_pad


# ----------------------------------------------------------------------------
# Pallas kernels
# ----------------------------------------------------------------------------
def _conv_mm_kernel(a_ref, w_ref, b_ref, o_ref):
    # (tm, Kp) @ (Kp, Np) : bf16 operands, f32 accumulate, bias + ReLU epilogue.
    acc = jnp.dot(a_ref[...], w_ref[...], preferred_element_type=jnp.float32)
    o_ref[...] = jnp.maximum(acc + b_ref[...], 0.0).astype(o_ref.dtype)


def _fc_head_kernel(a_ref, wq_ref, sc_ref, bf_ref, wh_ref, bh_ref, o_ref):
    # Fused fc (K=3200 -> 512, int8 weight + per-column f32 scale, ReLU) and
    # policy/value head (512 -> A+1, bf16) in a single grid step; the fc
    # activation tile stays in VMEM/vregs and never round-trips to HBM.
    w_fc = wq_ref[...].astype(jnp.bfloat16)          # int8 -> bf16 (lossless)
    fc = jnp.dot(a_ref[...], w_fc, preferred_element_type=jnp.float32)
    fc = jnp.maximum(fc * sc_ref[...] + bf_ref[...], 0.0)
    head = jnp.dot(fc.astype(jnp.bfloat16), wh_ref[...],
                   preferred_element_type=jnp.float32)
    o_ref[...] = (head + bh_ref[...]).astype(o_ref.dtype)


# ----------------------------------------------------------------------------
# Pallas-call wrappers
# ----------------------------------------------------------------------------
def _conv_matmul(a, layer):
    m_pad, k_pad = a.shape
    n_pad, tm = layer["n_pad"], layer["tm"]
    return pl.pallas_call(
        _conv_mm_kernel,
        out_shape=jax.ShapeDtypeStruct((m_pad, n_pad), jnp.bfloat16),
        grid=(m_pad // tm,),
        in_specs=[
            pl.BlockSpec((tm, k_pad), lambda i: (i, 0)),     # A row-tile, full K
            pl.BlockSpec((k_pad, n_pad), lambda i: (0, 0)),  # full weight, resident
            pl.BlockSpec((1, n_pad), lambda i: (0, 0)),      # bias, resident
        ],
        out_specs=pl.BlockSpec((tm, n_pad), lambda i: (i, 0)),
        # TODO(synk): on v7x, pltpu.CORE_PARALLEL on this axis would put conv1's
        # 5 row-tiles on both TensorCores; plain "parallel" does not split TCs.
        compiler_params=pltpu.CompilerParams(
            dimension_semantics=("parallel",)),
    )(a, layer["w"], layer["b"])


def conv2d_pallas(x, layer):
    """x: (B, H, W, C_in) bf16 -> (B, OH, OW, C_out) bf16 (NHWC end-to-end)."""
    B = x.shape[0]
    # Single XLA op; patch feature order is (C_in, kh, kw), matching the
    # PyTorch weight flattening used in prepare_params (w.reshape(C_out,-1).T).
    patches = jax.lax.conv_general_dilated_patches(
        x, (layer["kh"], layer["kw"]), (layer["stride"], layer["stride"]),
        "VALID", dimension_numbers=("NHWC", "HWIO", "NHWC"))
    _, OH, OW, K = patches.shape
    a = patches.reshape(B * OH * OW, K)
    m, m_pad, k_pad = layer["m"], layer["m_pad"], layer["k_pad"]
    if (m_pad, k_pad) != (m, K):
        # Explicit zero pad (K padding must stay zeros -- see header note).
        a = jnp.pad(a, ((0, m_pad - m), (0, k_pad - K)))
    out = _conv_matmul(a, layer)
    return out[:m, :layer["n"]].reshape(B, OH, OW, layer["n"])


def fc_head_pallas(a, fc, head):
    """a: (B, conv_out) -> (B, n_head_pad) f32; fused fc+ReLU+policy/value head."""
    B, K = a.shape
    m_pad, k_pad = fc["m_pad"], fc["k_pad"]
    a = jnp.pad(a.astype(jnp.bfloat16), ((0, m_pad - B), (0, k_pad - K)))
    n_fc, n_hp = fc["n"], head["n_pad"]
    out = pl.pallas_call(
        _fc_head_kernel,
        out_shape=jax.ShapeDtypeStruct((m_pad, n_hp), jnp.float32),
        grid=(1,),
        in_specs=[
            pl.BlockSpec((m_pad, k_pad), lambda i: (0, 0)),  # activations
            pl.BlockSpec((k_pad, n_fc), lambda i: (0, 0)),   # fc weight (int8)
            pl.BlockSpec((1, n_fc), lambda i: (0, 0)),       # fc dequant scale
            pl.BlockSpec((1, n_fc), lambda i: (0, 0)),       # fc bias
            pl.BlockSpec((n_fc, n_hp), lambda i: (0, 0)),    # head weight (bf16)
            pl.BlockSpec((1, n_hp), lambda i: (0, 0)),       # head bias
        ],
        out_specs=pl.BlockSpec((m_pad, n_hp), lambda i: (0, 0)),
        compiler_params=pltpu.CompilerParams(
            dimension_semantics=("arbitrary",)),
    )(a, fc["wq"], fc["scale"], fc["b"], head["w"], head["b"])
    return out[:B]


# ----------------------------------------------------------------------------
# Parameters: synthetic PyTorch-layout init + one-time Pallas-friendly prep
# ----------------------------------------------------------------------------
def init_params(key, in_channels, num_actions):
    ks = jax.random.split(key, 6)

    def dense(k, fan_in, shape):
        return jax.random.normal(k, shape, jnp.float32) / np.sqrt(fan_in)

    p = {}
    p["w1"] = dense(ks[0], in_channels * 8 * 8, (32, in_channels, 8, 8))
    p["b1"] = jnp.zeros((32,), jnp.float32)
    p["w2"] = dense(ks[1], 32 * 4 * 4, (64, 32, 4, 4))
    p["b2"] = jnp.zeros((64,), jnp.float32)
    p["w3"] = dense(ks[2], 64 * 3 * 3, (64, 64, 3, 3))
    p["b3"] = jnp.zeros((64,), jnp.float32)
    conv_out_size = 64 * 7 * 7                     # 84 -> 20 -> 9 -> 7 spatial
    p["wfc"] = dense(ks[3], conv_out_size, (conv_out_size, 512))   # (in, out)
    p["bfc"] = jnp.zeros((512,), jnp.float32)
    p["wp"] = dense(ks[4], 512, (512, num_actions))
    p["bp"] = jnp.zeros((num_actions,), jnp.float32)
    p["wv"] = dense(ks[5], 512, (512, 1))
    p["bv"] = jnp.zeros((1,), jnp.float32)
    return p


def _adaptive_avg_matrix(in_size, out_size):
    """Exact PyTorch AdaptiveAvgPool2d binning as an averaging matrix."""
    A = np.zeros((out_size, in_size), np.float32)
    for i in range(out_size):
        s = (i * in_size) // out_size
        e = -((-(i + 1) * in_size) // out_size)          # ceil((i+1)*in/out)
        A[i, s:e] = 1.0 / (e - s)
    return A


def prepare_params(p, num_actions, batch, in_hw):
    """One-time prep: all reshape/transpose/pad/cast/quantize work plus the
    per-layer static M tiling (batch is known), so the hot path never touches
    weight layout and only pads where strictly required."""

    def conv_layer(w, b, stride, out_size):
        c_out, c_in, kh, kw = w.shape
        k = c_in * kh * kw
        k_pad, n_pad = _round_up(k, 128), _round_up(c_out, 128)
        w2d = jnp.asarray(w, jnp.float32).reshape(c_out, k).T   # (K, C_out), (C_in,kh,kw) rows
        w2d = jnp.pad(w2d, ((0, k_pad - k), (0, n_pad - c_out))).astype(jnp.bfloat16)
        b2d = jnp.pad(jnp.asarray(b, jnp.float32).reshape(1, c_out),
                      ((0, 0), (0, n_pad - c_out)))
        m = batch * out_size * out_size
        tm, m_pad = _m_tiling(m)
        return dict(w=w2d, b=b2d, kh=kh, kw=kw, stride=stride, n=c_out,
                    n_pad=n_pad, k_pad=k_pad, m=m, m_pad=m_pad, tm=tm)

    h1 = _conv_out(84, 8, 4)      # 20
    h2 = _conv_out(h1, 4, 2)      # 9
    h3 = _conv_out(h2, 3, 1)      # 7
    prepared = {
        "conv1": conv_layer(p["w1"], p["b1"], 4, h1),   # M=800 -> tm=160, 5 steps
        "conv2": conv_layer(p["w2"], p["b2"], 2, h2),   # M=162 -> one 176-row tile
        "conv3": conv_layer(p["w3"], p["b3"], 1, h3),   # M= 98 -> one 112-row tile
    }

    # FC: rows indexed by PyTorch's NCHW flatten (C, H, W); activations are NHWC,
    # so permute rows once to (H, W, C).  Pad K with zeros, then quantize to int8
    # with a per-output-column f32 scale (FC weight dominates HBM traffic).
    c3 = p["w3"].shape[0]
    wfc = jnp.asarray(p["wfc"], jnp.float32).reshape(c3, h3, h3, -1)
    wfc = wfc.transpose(1, 2, 0, 3).reshape(c3 * h3 * h3, -1)
    k, n = wfc.shape
    k_pad = _round_up(k, 128)
    wfc = jnp.pad(wfc, ((0, k_pad - k), (0, 0)))
    amax = jnp.max(jnp.abs(wfc), axis=0, keepdims=True)
    scale = jnp.where(amax > 0.0, amax / 127.0, 1.0).astype(jnp.float32)
    wq = jnp.clip(jnp.round(wfc / scale), -127, 127).astype(jnp.int8)
    prepared["fc"] = dict(wq=wq, scale=scale,
                          b=jnp.asarray(p["bfc"], jnp.float32).reshape(1, n),
                          n=n, k=k, k_pad=k_pad,
                          m=batch, m_pad=_round_up(batch, 16))

    # Fused policy + value head: one (512, A+1) matmul, padded to 128 columns.
    wh = jnp.concatenate([p["wp"], p["wv"]], axis=1).astype(jnp.float32)
    bh = jnp.concatenate([p["bp"], p["bv"]], axis=0).astype(jnp.float32)
    nh = wh.shape[1]
    nh_pad = _round_up(nh, 128)
    prepared["head"] = dict(
        w=jnp.pad(wh, ((0, 0), (0, nh_pad - nh))).astype(jnp.bfloat16),
        b=jnp.pad(bh.reshape(1, nh), ((0, 0), (0, nh_pad - nh))),
        n=nh, n_pad=nh_pad)

    # Exact AdaptiveAvgPool2d((84, 84)) as two averaging matrices, with the
    # 1/255 input scale folded into the H matrix (removes a pass over the input).
    in_h, in_w = in_hw
    prepared["pool_h"] = jnp.asarray(_adaptive_avg_matrix(in_h, 84) / 255.0)
    prepared["pool_w"] = jnp.asarray(_adaptive_avg_matrix(in_w, 84))
    prepared["num_actions"] = num_actions
    return prepared


# ----------------------------------------------------------------------------
# Forward pass (matches the PyTorch module)
# ----------------------------------------------------------------------------
def agent_forward(x, params):
    # x: (B, S1, H, W, S4) -- same 5-D input as the PyTorch module.
    B, S1, H, W, S4 = x.shape
    # torch .view(B, S1*S4, H, W) is a raw row-major reshape -> jnp.reshape.
    x = x.reshape(B, S1 * S4, H, W).astype(jnp.float32)
    # /255 (folded into pool_h) + AdaptiveAvgPool2d(84,84) + NCHW->NHWC fused
    # into one einsum; result cast to bf16 for the MXU.
    x = jnp.einsum("ih,bchw,jw->bijc", params["pool_h"], x, params["pool_w"])
    x = x.astype(jnp.bfloat16)                               # (B, 84, 84, C)

    x = conv2d_pallas(x, params["conv1"])                    # (B, 20, 20, 32)
    x = conv2d_pallas(x, params["conv2"])                    # (B,  9,  9, 64)
    x = conv2d_pallas(x, params["conv3"])                    # (B,  7,  7, 64)

    conv_out = x.reshape(B, -1)                              # NHWC flatten (FC rows pre-permuted)
    head = fc_head_pallas(conv_out, params["fc"], params["head"])  # (B, 128) f32
    na = params["num_actions"]
    return head[:, :na], head[:, na:na + 1]


if __name__ == "__main__":
    key = jax.random.PRNGKey(0)
    k_x, k_p = jax.random.split(key)

    # Small 5-D observation: (batch=2, frames=4, H=16, W=16, channels=1)
    # -> in_channels = 4 after the view (matches input_shape[-1] = 4).
    batch, frames, H, W, ch = 2, 4, 16, 16, 1
    num_actions = 6
    x = jax.random.uniform(k_x, (batch, frames, H, W, ch), jnp.float32, 0.0, 255.0)

    raw = init_params(k_p, in_channels=frames * ch, num_actions=num_actions)
    prepared = prepare_params(raw, num_actions=num_actions,
                              batch=batch, in_hw=(H, W))      # one-time weight prep

    forward = jax.jit(functools.partial(agent_forward, params=prepared))
    policy, value = forward(x)
    jax.block_until_ready((policy, value))

    assert policy.shape == (batch, num_actions) and value.shape == (batch, 1)
    assert bool(jnp.all(jnp.isfinite(policy))) and bool(jnp.all(jnp.isfinite(value)))
    print("KERNEL_OK")
</pallas_src>

<mosaic_0001>
module attributes {stable_mosaic.version = 11 : i64} {
  func.func @_conv_mm_kernel(%arg0: i32, %arg1: memref<160x256xbf16, #tpu.memory_space<vmem>>, %arg2: memref<256x128xbf16, #tpu.memory_space<vmem>>, %arg3: memref<1x128xf32, #tpu.memory_space<vmem>>, %arg4: memref<160x128xbf16, #tpu.memory_space<vmem>>) attributes {dimension_semantics = [#tpu.dimension_semantics<parallel>], iteration_bounds = array<i64: 5>, scalar_prefetch = 0 : i64, scratch_operands = 0 : i64, tpu.core_type = #tpu.core_type<tc>, window_params = [{transform_indices = @transform_0, window_bounds = array<i64: 160, 256>}, {pipeline_mode = #tpu.pipeline_mode<synchronous>, transform_indices = @transform_1, window_bounds = array<i64: 256, 128>}, {pipeline_mode = #tpu.pipeline_mode<synchronous>, transform_indices = @transform_2, window_bounds = array<i64: 1, 128>}, {transform_indices = @transform_3, window_bounds = array<i64: 160, 128>}]} {
    %c0 = arith.constant 0 : index
    %c0_0 = arith.constant 0 : index
    %0 = vector.load %arg1[%c0, %c0_0] : memref<160x256xbf16, #tpu.memory_space<vmem>>, vector<160x256xbf16>
    %c0_1 = arith.constant 0 : index
    %c0_2 = arith.constant 0 : index
    %1 = vector.load %arg2[%c0_1, %c0_2] : memref<256x128xbf16, #tpu.memory_space<vmem>>, vector<256x128xbf16>
    %cst = arith.constant dense<0.000000e+00> : vector<160x128xf32>
    %2 = tpu.matmul %0, %1, %cst {dimension_numbers = #tpu.dot_dimension_numbers<[1], [0], [0], [1], [0, 0, 1, 1], [], []>} : vector<160x256xbf16>, vector<256x128xbf16>, vector<160x128xf32> -> vector<160x128xf32>
    %c0_3 = arith.constant 0 : index
    %c0_4 = arith.constant 0 : index
    %3 = vector.load %arg3[%c0_3, %c0_4] : memref<1x128xf32, #tpu.memory_space<vmem>>, vector<1x128xf32>
    %4 = vector.broadcast %3 : vector<1x128xf32> to vector<160x128xf32>
    %5 = arith.addf %2, %4 : vector<160x128xf32>
    %cst_5 = arith.constant 0.000000e+00 : f32
    %6 = vector.broadcast %cst_5 : f32 to vector<160x128xf32>
    %7 = arith.maximumf %5, %6 : vector<160x128xf32>
    %8 = arith.truncf %7 : vector<160x128xf32> to vector<160x128xbf16>
    %c0_6 = arith.constant 0 : index
    %c0_7 = arith.constant 0 : index
    %9 = vector.load %arg4[%c0_6, %c0_7] : memref<160x128xbf16, #tpu.memory_space<vmem>>, vector<160x128xbf16>
    tpu.vector_store %arg4[%c0_6, %c0_7], %8 {strides = array<i32>} : memref<160x128xbf16, #tpu.memory_space<vmem>>, vector<160x128xbf16>,
    return
  }
  func.func @transform_0(%arg0: i32) -> (i32, i32) {
    %c0_i32 = arith.constant 0 : i32
    %c0_i32_0 = arith.constant 0 : i32
    return %arg0, %c0_i32 : i32, i32
  }
  func.func @transform_1(%arg0: i32) -> (i32, i32) {
    %c0_i32 = arith.constant 0 : i32
    %c0_i32_0 = arith.constant 0 : i32
    %c0_i32_1 = arith.constant 0 : i32
    return %c0_i32, %c0_i32_0 : i32, i32
  }
  func.func @transform_2(%arg0: i32) -> (i32, i32) {
    %c0_i32 = arith.constant 0 : i32
    %c0_i32_0 = arith.constant 0 : i32
    %c0_i32_1 = arith.constant 0 : i32
    return %c0_i32, %c0_i32_0 : i32, i32
  }
  func.func @transform_3(%arg0: i32) -> (i32, i32) {
    %c0_i32 = arith.constant 0 : i32
    %c0_i32_0 = arith.constant 0 : i32
    return %arg0, %c0_i32 : i32, i32
  }
}

module attributes {stable_mosaic.version = 11 : i64} {
  func.func @_conv_mm_kernel(%arg0: i32, %arg1: memref<176x512xbf16, #tpu.memory_space<vmem>>, %arg2: memref<512x128xbf16, #tpu.memory_space<vmem>>, %arg3: memref<1x128xf32, #tpu.memory_space<vmem>>, %arg4: memref<176x128xbf16, #tpu.memory_space<vmem>>) attributes {dimension_semantics = [#tpu.dimension_semantics<parallel>], iteration_bounds = array<i64: 1>, scalar_prefetch = 0 : i64, scratch_operands = 0 : i64, tpu.core_type = #tpu.core_type<tc>, window_params = [{transform_indices = @transform_0, window_bounds = array<i64: 176, 512>}, {pipeline_mode = #tpu.pipeline_mode<synchronous>, transform_indices = @transform_1, window_bounds = array<i64: 512, 128>}, {pipeline_mode = #tpu.pipeline_mode<synchronous>, transform_indices = @transform_2, window_bounds = array<i64: 1, 128>}, {transform_indices = @transform_3, window_bounds = array<i64: 176, 128>}]} {
    %c0 = arith.constant 0 : index
    %c0_0 = arith.constant 0 : index
    %0 = vector.load %arg1[%c0, %c0_0] : memref<176x512xbf16, #tpu.memory_space<vmem>>, vector<176x512xbf16>
    %c0_1 = arith.constant 0 : index
    %c0_2 = arith.constant 0 : index
    %1 = vector.load %arg2[%c0_1, %c0_2] : memref<512x128xbf16, #tpu.memory_space<vmem>>, vector<512x128xbf16>
    %cst = arith.constant dense<0.000000e+00> : vector<176x128xf32>
    %2 = tpu.matmul %0, %1, %cst {dimension_numbers = #tpu.dot_dimension_numbers<[1], [0], [0], [1], [0, 0, 1, 1], [], []>} : vector<176x512xbf16>, vector<512x128xbf16>, vector<176x128xf32> -> vector<176x128xf32>
    %c0_3 = arith.constant 0 : index
    %c0_4 = arith.constant 0 : index
    %3 = vector.load %arg3[%c0_3, %c0_4] : memref<1x128xf32, #tpu.memory_space<vmem>>, vector<1x128xf32>
    %4 = vector.broadcast %3 : vector<1x128xf32> to vector<176x128xf32>
    %5 = arith.addf %2, %4 : vector<176x128xf32>
    %cst_5 = arith.constant 0.000000e+00 : f32
    %6 = vector.broadcast %cst_5 : f32 to vector<176x128xf32>
    %7 = arith.maximumf %5, %6 : vector<176x128xf32>
    %8 = arith.truncf %7 : vector<176x128xf32> to vector<176x128xbf16>
    %c0_6 = arith.constant 0 : index
    %c0_7 = arith.constant 0 : index
    %9 = vector.load %arg4[%c0_6, %c0_7] : memref<176x128xbf16, #tpu.memory_space<vmem>>, vector<176x128xbf16>
    tpu.vector_store %arg4[%c0_6, %c0_7], %8 {strides = array<i32>} : memref<176x128xbf16, #tpu.memory_space<vmem>>, vector<176x128xbf16>,
    return
  }
  func.func @transform_0(%arg0: i32) -> (i32, i32) {
    %c0_i32 = arith.constant 0 : i32
    %c0_i32_0 = arith.constant 0 : i32
    return %arg0, %c0_i32 : i32, i32
  }
  func.func @transform_1(%arg0: i32) -> (i32, i32) {
    %c0_i32 = arith.constant 0 : i32
    %c0_i32_0 = arith.constant 0 : i32
    %c0_i32_1 = arith.constant 0 : i32
    return %c0_i32, %c0_i32_0 : i32, i32
  }
  func.func @transform_2(%arg0: i32) -> (i32, i32) {
    %c0_i32 = arith.constant 0 : i32
    %c0_i32_0 = arith.constant 0 : i32
    %c0_i32_1 = arith.constant 0 : i32
    return %c0_i32, %c0_i32_0 : i32, i32
  }
  func.func @transform_3(%arg0: i32) -> (i32, i32) {
    %c0_i32 = arith.constant 0 : i32
    %c0_i32_0 = arith.constant 0 : i32
    return %arg0, %c0_i32 : i32, i32
  }
}

module attributes {stable_mosaic.version = 11 : i64} {
  func.func @_conv_mm_kernel(%arg0: i32, %arg1: memref<112x640xbf16, #tpu.memory_space<vmem>>, %arg2: memref<640x128xbf16, #tpu.memory_space<vmem>>, %arg3: memref<1x128xf32, #tpu.memory_space<vmem>>, %arg4: memref<112x128xbf16, #tpu.memory_space<vmem>>) attributes {dimension_semantics = [#tpu.dimension_semantics<parallel>], iteration_bounds = array<i64: 1>, scalar_prefetch = 0 : i64, scratch_operands = 0 : i64, tpu.core_type = #tpu.core_type<tc>, window_params = [{transform_indices = @transform_0, window_bounds = array<i64: 112, 640>}, {pipeline_mode = #tpu.pipeline_mode<synchronous>, transform_indices = @transform_1, window_bounds = array<i64: 640, 128>}, {pipeline_mode = #tpu.pipeline_mode<synchronous>, transform_indices = @transform_2, window_bounds = array<i64: 1, 128>}, {transform_indices = @transform_3, window_bounds = array<i64: 112, 128>}]} {
    %c0 = arith.constant 0 : index
    %c0_0 = arith.constant 0 : index
    %0 = vector.load %arg1[%c0, %c0_0] : memref<112x640xbf16, #tpu.memory_space<vmem>>, vector<112x640xbf16>
    %c0_1 = arith.constant 0 : index
    %c0_2 = arith.constant 0 : index
    %1 = vector.load %arg2[%c0_1, %c0_2] : memref<640x128xbf16, #tpu.memory_space<vmem>>, vector<640x128xbf16>
    %cst = arith.constant dense<0.000000e+00> : vector<112x128xf32>
    %2 = tpu.matmul %0, %1, %cst {dimension_numbers = #tpu.dot_dimension_numbers<[1], [0], [0], [1], [0, 0, 1, 1], [], []>} : vector<112x640xbf16>, vector<640x128xbf16>, vector<112x128xf32> -> vector<112x128xf32>
    %c0_3 = arith.constant 0 : index
    %c0_4 = arith.constant 0 : index
    %3 = vector.load %arg3[%c0_3, %c0_4] : memref<1x128xf32, #tpu.memory_space<vmem>>, vector<1x128xf32>
    %4 = vector.broadcast %3 : vector<1x128xf32> to vector<112x128xf32>
    %5 = arith.addf %2, %4 : vector<112x128xf32>
    %cst_5 = arith.constant 0.000000e+00 : f32
    %6 = vector.broadcast %cst_5 : f32 to vector<112x128xf32>
    %7 = arith.maximumf %5, %6 : vector<112x128xf32>
    %8 = arith.truncf %7 : vector<112x128xf32> to vector<112x128xbf16>
    %c0_6 = arith.constant 0 : index
    %c0_7 = arith.constant 0 : index
    %9 = vector.load %arg4[%c0_6, %c0_7] : memref<112x128xbf16, #tpu.memory_space<vmem>>, vector<112x128xbf16>
    tpu.vector_store %arg4[%c0_6, %c0_7], %8 {strides = array<i32>} : memref<112x128xbf16, #tpu.memory_space<vmem>>, vector<112x128xbf16>,
    return
  }
  func.func @transform_0(%arg0: i32) -> (i32, i32) {
    %c0_i32 = arith.constant 0 : i32
    %c0_i32_0 = arith.constant 0 : i32
    return %arg0, %c0_i32 : i32, i32
  }
  func.func @transform_1(%arg0: i32) -> (i32, i32) {
    %c0_i32 = arith.constant 0 : i32
    %c0_i32_0 = arith.constant 0 : i32
    %c0_i32_1 = arith.constant 0 : i32
    return %c0_i32, %c0_i32_0 : i32, i32
  }
  func.func @transform_2(%arg0: i32) -> (i32, i32) {
    %c0_i32 = arith.constant 0 : i32
    %c0_i32_0 = arith.constant 0 : i32
    %c0_i32_1 = arith.constant 0 : i32
    return %c0_i32, %c0_i32_0 : i32, i32
  }
  func.func @transform_3(%arg0: i32) -> (i32, i32) {
    %c0_i32 = arith.constant 0 : i32
    %c0_i32_0 = arith.constant 0 : i32
    return %arg0, %c0_i32 : i32, i32
  }
}

module attributes {stable_mosaic.version = 11 : i64} {
  func.func @_fc_head_kernel(%arg0: i32, %arg1: memref<16x3200xbf16, #tpu.memory_space<vmem>>, %arg2: memref<3200x512xi8, #tpu.memory_space<vmem>>, %arg3: memref<1x512xf32, #tpu.memory_space<vmem>>, %arg4: memref<1x512xf32, #tpu.memory_space<vmem>>, %arg5: memref<512x128xbf16, #tpu.memory_space<vmem>>, %arg6: memref<1x128xf32, #tpu.memory_space<vmem>>, %arg7: memref<16x128xf32, #tpu.memory_space<vmem>>) attributes {dimension_semantics = [#tpu.dimension_semantics<arbitrary>], iteration_bounds = array<i64: 1>, scalar_prefetch = 0 : i64, scratch_operands = 0 : i64, tpu.core_type = #tpu.core_type<tc>, window_params = [{pipeline_mode = #tpu.pipeline_mode<synchronous>, transform_indices = @transform_0, window_bounds = array<i64: 16, 3200>}, {pipeline_mode = #tpu.pipeline_mode<synchronous>, transform_indices = @transform_1, window_bounds = array<i64: 3200, 512>}, {pipeline_mode = #tpu.pipeline_mode<synchronous>, transform_indices = @transform_2, window_bounds = array<i64: 1, 512>}, {pipeline_mode = #tpu.pipeline_mode<synchronous>, transform_indices = @transform_3, window_bounds = array<i64: 1, 512>}, {pipeline_mode = #tpu.pipeline_mode<synchronous>, transform_indices = @transform_4, window_bounds = array<i64: 512, 128>}, {pipeline_mode = #tpu.pipeline_mode<synchronous>, transform_indices = @transform_5, window_bounds = array<i64: 1, 128>}, {pipeline_mode = #tpu.pipeline_mode<synchronous>, transform_indices = @transform_6, window_bounds = array<i64: 16, 128>}]} {
    %c0 = arith.constant 0 : index
    %c0_0 = arith.constant 0 : index
    %0 = vector.load %arg2[%c0, %c0_0] : memref<3200x512xi8, #tpu.memory_space<vmem>>, vector<3200x512xi8>
    %1 = arith.sitofp %0 : vector<3200x512xi8> to vector<3200x512xbf16>
    %c0_1 = arith.constant 0 : index
    %c0_2 = arith.constant 0 : index
    %2 = vector.load %arg1[%c0_1, %c0_2] : memref<16x3200xbf16, #tpu.memory_space<vmem>>, vector<16x3200xbf16>
    %cst = arith.constant dense<0.000000e+00> : vector<16x512xf32>
    %3 = tpu.matmul %2, %1, %cst {dimension_numbers = #tpu.dot_dimension_numbers<[1], [0], [0], [1], [0, 0, 1, 1], [], []>} : vector<16x3200xbf16>, vector<3200x512xbf16>, vector<16x512xf32> -> vector<16x512xf32>
    %c0_3 = arith.constant 0 : index
    %c0_4 = arith.constant 0 : index
    %4 = vector.load %arg3[%c0_3, %c0_4] : memref<1x512xf32, #tpu.memory_space<vmem>>, vector<1x512xf32>
    %5 = vector.broadcast %4 : vector<1x512xf32> to vector<16x512xf32>
    %6 = arith.mulf %3, %5 : vector<16x512xf32>
    %c0_5 = arith.constant 0 : index
    %c0_6 = arith.constant 0 : index
    %7 = vector.load %arg4[%c0_5, %c0_6] : memref<1x512xf32, #tpu.memory_space<vmem>>, vector<1x512xf32>
    %8 = vector.broadcast %7 : vector<1x512xf32> to vector<16x512xf32>
    %9 = arith.addf %6, %8 : vector<16x512xf32>
    %cst_7 = arith.constant 0.000000e+00 : f32
    %10 = vector.broadcast %cst_7 : f32 to vector<16x512xf32>
    %11 = arith.maximumf %9, %10 : vector<16x512xf32>
    %12 = arith.truncf %11 : vector<16x512xf32> to vector<16x512xbf16>
    %c0_8 = arith.constant 0 : index
    %c0_9 = arith.constant 0 : index
    %13 = vector.load %arg5[%c0_8, %c0_9] : memref<512x128xbf16, #tpu.memory_space<vmem>>, vector<512x128xbf16>
    %cst_10 = arith.constant dense<0.000000e+00> : vector<16x128xf32>
    %14 = tpu.matmul %12, %13, %cst_10 {dimension_numbers = #tpu.dot_dimension_numbers<[1], [0], [0], [1], [0, 0, 1, 1], [], []>} : vector<16x512xbf16>, vector<512x128xbf16>, vector<16x128xf32> -> vector<16x128xf32>
    %c0_11 = arith.constant 0 : index
    %c0_12 = arith.constant 0 : index
    %15 = vector.load %arg6[%c0_11, %c0_12] : memref<1x128xf32, #tpu.memory_space<vmem>>, vector<1x128xf32>
    %16 = vector.broadcast %15 : vector<1x128xf32> to vector<16x128xf32>
    %17 = arith.addf %14, %16 : vector<16x128xf32>
    %c0_13 = arith.constant 0 : index
    %c0_14 = arith.constant 0 : index
    %18 = vector.load %arg7[%c0_13, %c0_14] : memref<16x128xf32, #tpu.memory_space<vmem>>, vector<16x128xf32>
    tpu.vector_store %arg7[%c0_13, %c0_14], %17 {strides = array<i32>} : memref<16x128xf32, #tpu.memory_space<vmem>>, vector<16x128xf32>,
    return
  }
  func.func @transform_0(%arg0: i32) -> (i32, i32) {
    %c0_i32 = arith.constant 0 : i32
    %c0_i32_0 = arith.constant 0 : i32
    %c0_i32_1 = arith.constant 0 : i32
    return %c0_i32, %c0_i32_0 : i32, i32
  }
  func.func @transform_1(%arg0: i32) -> (i32, i32) {
    %c0_i32 = arith.constant 0 : i32
    %c0_i32_0 = arith.constant 0 : i32
    %c0_i32_1 = arith.constant 0 : i32
    return %c0_i32, %c0_i32_0 : i32, i32
  }
  func.func @transform_2(%arg0: i32) -> (i32, i32) {
    %c0_i32 = arith.constant 0 : i32
    %c0_i32_0 = arith.constant 0 : i32
    %c0_i32_1 = arith.constant 0 : i32
    return %c0_i32, %c0_i32_0 : i32, i32
  }
  func.func @transform_3(%arg0: i32) -> (i32, i32) {
    %c0_i32 = arith.constant 0 : i32
    %c0_i32_0 = arith.constant 0 : i32
    %c0_i32_1 = arith.constant 0 : i32
    return %c0_i32, %c0_i32_0 : i32, i32
  }
  func.func @transform_4(%arg0: i32) -> (i32, i32) {
    %c0_i32 = arith.constant 0 : i32
    %c0_i32_0 = arith.constant 0 : i32
    %c0_i32_1 = arith.constant 0 : i32
    return %c0_i32, %c0_i32_0 : i32, i32
  }
  func.func @transform_5(%arg0: i32) -> (i32, i32) {
    %c0_i32 = arith.constant 0 : i32
    %c0_i32_0 = arith.constant 0 : i32
    %c0_i32_1 = arith.constant 0 : i32
    return %c0_i32, %c0_i32_0 : i32, i32
  }
  func.func @transform_6(%arg0: i32) -> (i32, i32) {
    %c0_i32 = arith.constant 0 : i32
    %c0_i32_0 = arith.constant 0 : i32
    %c0_i32_1 = arith.constant 0 : i32
    return %c0_i32, %c0_i32_0 : i32, i32
  }
}

</mosaic_0001>

<llo_original>
// kernel: agent_forward.4
$region0: #{agent_forward.4}
  #allocation0 [shape = 'u32[]', space=smem, size = 0x4, offset = 0x4, fixed_abs, tag = 'smem constant byte address 0x4 - core index']
  #allocation1 [shape = 'u32[72,128]{1,0:T(1,128)}', space=vmem, size = 0x9000, scoped, tag = 'internal scratch']
  %s0 = inlined_call_operand.vmem [shape: bf16[800,256], index: 0, kind: input, shape index: {}]
  %s1 = inlined_call_operand.vmem [shape: bf16[256,128], index: 1, kind: input, shape index: {}]
  %s2 = inlined_call_operand.vmem [shape: f32[1,128], index: 2, kind: input, shape index: {}]
  %s3 = inlined_call_operand.vmem [shape: bf16[800,128], index: 3, kind: output, shape index: {}]
  %s4 = sld [smem:[#allocation0]]
  $region45: #{agent_forward.4} parent=0
    _
  %s6 = ssub.s32 1, %s4
  %s7 = scalar_select 0, %s6, %s4
  loop: start=0, step=1, limit=7
  $region2: #{agent_forward.4} parent=0 // loop_pre_header
    _
  $region3: #{agent_forward.4} parent=0 // loop_header
    %s9 = sphi 0, %s13
    %p10 = scmp.ge.s32.totalorder %s9, 7
    %s19 = sphi 0, %s21
    %s22 = sphi 0, %s19
    %s23 = sphi 0, %s22
    %s39 = sphi 0, %s23
    %s43 = sphi 0, %s43
    %s45 = sphi 0, %s43
    %s46 = sphi 0, %s45
    %s60 = sphi 0, %s46
    %s64 = sphi 0, %s64
    %s66 = sphi 0, %s64
    %s67 = sphi 0, %s66
    %s81 = sphi 0, %s67
    %s87 = sphi 0, %s89
    %s90 = sphi 0, %s87
    %s91 = sphi 0, %s90
    %s107 = sphi 0, %s91
  $region4: #{agent_forward.4} parent=0 // loop_header_branch
    %12 = sbr.rel (%p10) target = $region8
  $region5: #{agent_forward.4} parent=0 // loop_body
    %s14 = ssub.s32 %s9, 1
    %s15 = ssub.s32 %s9, 2
    %s16 = sadd.s32 %s9, 1
    %s17 = ssub.s32 %s9, %s16
    %p18 = scmp.eq.s32.totalorder %s17, 0
    %s20 = sadd.s32 %s19, 1
    %s21 = scalar_select %p18, %s19, %s20
    %p24 = pneg %p18
    %p25 = scmp.eq.s32.totalorder %s9, 4
    %p26 = por %p24, %p25
    %p27 = scmp.ne.s32.totalorder %s19, %s22
    %p28 = scmp.eq.s32.totalorder %s9, 0
    %p29 = por %p27, %p28
    %p30 = scmp.ne.s32.totalorder %s19, %s22
    %p31 = scmp.eq.s32.totalorder %s14, 4
    %p32 = por %p30, %p31
    %p33 = scmp.ne.s32.totalorder %s22, %s23
    %p34 = scmp.eq.s32.totalorder %s14, 0
    %p35 = por %p33, %p34
    %p36 = scmp.ne.s32.totalorder %s22, %s23
    %p37 = scmp.eq.s32.totalorder %s15, 4
    %p38 = por %p36, %p37
    %p40 = scmp.ne.s32.totalorder %s23, %s39
    %p41 = scmp.eq.s32.totalorder %s15, 0
    %p42 = por %p40, %p41
    %s44 = sadd.s32 %s43, 1
    %p47 = scmp.eq.s32.totalorder %s9, 4
    %p48 = scmp.ne.s32.totalorder %s43, %s45
    %p49 = scmp.eq.s32.totalorder %s9, 0
    %p50 = por %p48, %p49
    %p51 = scmp.ne.s32.totalorder %s43, %s45
    %p52 = scmp.eq.s32.totalorder %s14, 4
    %p53 = por %p51, %p52
    %p54 = scmp.ne.s32.totalorder %s45, %s46
    %p55 = scmp.eq.s32.totalorder %s14, 0
    %p56 = por %p54, %p55
    %p57 = scmp.ne.s32.totalorder %s45, %s46
    %p58 = scmp.eq.s32.totalorder %s15, 4
    %p59 = por %p57, %p58
    %p61 = scmp.ne.s32.totalorder %s46, %s60
    %p62 = scmp.eq.s32.totalorder %s15, 0
    %p63 = por %p61, %p62
    %s65 = sadd.s32 %s64, 1
    %p68 = scmp.eq.s32.totalorder %s9, 4
    %p69 = scmp.ne.s32.totalorder %s64, %s66
    %p70 = scmp.eq.s32.totalorder %s9, 0
    %p71 = por %p69, %p70
    %p72 = scmp.ne.s32.totalorder %s64, %s66
    %p73 = scmp.eq.s32.totalorder %s14, 4
    %p74 = por %p72, %p73
    %p75 = scmp.ne.s32.totalorder %s66, %s67
    %p76 = scmp.eq.s32.totalorder %s14, 0
    %p77 = por %p75, %p76
    %p78 = scmp.ne.s32.totalorder %s66, %s67
    %p79 = scmp.eq.s32.totalorder %s15, 4
    %p80 = por %p78, %p79
    %p82 = scmp.ne.s32.totalorder %s67, %s81
    %p83 = scmp.eq.s32.totalorder %s15, 0
    %p84 = por %p82, %p83
    %s85 = ssub.s32 %s9, %s16
    %p86 = scmp.eq.s32.totalorder %s85, 0
    %s88 = sadd.s32 %s87, 1
    %s89 = scalar_select %p86, %s87, %s88
    %p92 = pneg %p86
    %p93 = scmp.eq.s32.totalorder %s9, 4
    %p94 = por %p92, %p93
    %p95 = scmp.ne.s32.totalorder %s87, %s90
    %p96 = scmp.eq.s32.totalorder %s9, 0
    %p97 = por %p95, %p96
    %p98 = scmp.ne.s32.totalorder %s87, %s90
    %p99 = scmp.eq.s32.totalorder %s14, 4
    %p100 = por %p98, %p99
    %p101 = scmp.ne.s32.totalorder %s90, %s91
    %p102 = scmp.eq.s32.totalorder %s14, 0
    %p103 = por %p101, %p102
    %p104 = scmp.ne.s32.totalorder %s90, %s91
    %p105 = scmp.eq.s32.totalorder %s15, 4
    %p106 = por %p104, %p105
    %p108 = scmp.ne.s32.totalorder %s91, %s107
    %p109 = scmp.eq.s32.totalorder %s15, 0
    %p110 = por %p108, %p109
    %p111 = scmp.le.s32.totalorder 1, %s9
    %p112 = scmp.lt.s32.totalorder %s9, 6
    %p113 = pnand %p111, %p112
    %p114 = pneg %p113
    // Predicated region
    $region9: #{agent_forward.4} parent=5 // pred_check
      _
    $region10: #{agent_forward.4} parent=5 // pred_check_branch
      %116 = sbr.rel (%p113) target = $region12
    $region11: #{agent_forward.4} parent=5 // pred_region
      %s117 = ssub.s32 %s9, 1
      // Predicated region
      $region13: #{agent_forward.4} parent=11 // pred_check
        %p118 = pneg %p56
      $region14: #{agent_forward.4} parent=11 // pred_check_branch
        %120 = sbr.rel (%p118) target = $region16
      $region15: #{agent_forward.4} parent=11 // pred_region
        _
      $region16: #{agent_forward.4} parent=11 // pred_fallthru
        _
      // Predicated region
      $region17: #{agent_forward.4} parent=11 // pred_check
        %p121 = pneg %p77
      $region18: #{agent_forward.4} parent=11 // pred_check_branch
        %123 = sbr.rel (%p121) target = $region20
      $region19: #{agent_forward.4} parent=11 // pred_region
        _
      $region20: #{agent_forward.4} parent=11 // pred_fallthru
        _
    $region12: #{agent_forward.4} parent=5 // pred_fallthru
      _
    %p124 = scmp.lt.s32.totalorder %s9, 5
    // Predicated region
    $region21: #{agent_forward.4} parent=5 // pred_check
      %p125 = pneg %p124
    $region22: #{agent_forward.4} parent=5 // pred_check_branch
      %127 = sbr.rel (%p125) target = $region24
    $region23: #{agent_forward.4} parent=5 // pred_region
      // Predicated region
      $region25: #{agent_forward.4} parent=23 // pred_check
        %p128 = pneg %p29
      $region26: #{agent_forward.4} parent=23 // pred_check_branch
        %130 = sbr.rel (%p128) target = $region28
      $region27: #{agent_forward.4} parent=23 // pred_region
        %s131 = smul.u32 20, %s9
        %p132 = scmp.lt.s32.totalorder %s131, 99
        %s133 = scalar_select %p132, %s131, 99
        %s134 = smul.addr %s133, 2
        %s135 = smul.addr %s134, 4
        %s136 = scalar_lea.vmem %s0, %s135
        %s137 = smul.u32 20, %s9
      $region28: #{agent_forward.4} parent=23 // pred_fallthru
        _
    $region24: #{agent_forward.4} parent=5 // pred_fallthru
      _
    %p138 = scmp.le.s32.totalorder 1, %s9
    %p139 = scmp.lt.s32.totalorder %s9, 6
    %p140 = pnand %p138, %p139
    %p141 = pneg %p140
    // Predicated region
    $region29: #{agent_forward.4} parent=5 // pred_check
      _
    $region30: #{agent_forward.4} parent=5 // pred_check_branch
      %143 = sbr.rel (%p140) target = $region32
    $region31: #{agent_forward.4} parent=5 // pred_region
      %s144 = ssub.s32 %s9, 1
      %s145 = smul.u32 20, %s14
      %p146 = scmp.lt.s32.totalorder %s145, 99
      %s147 = scalar_select %p146, %s145, 99
      %s148 = smul.addr %s147, 2
      %s149 = smul.addr %s148, 4
      %s150 = scalar_lea.vmem %s0, %s149
      %p151 = pneg %p35
      %p152 = pneg %p32
      %p153 = pneg %p56
      %p154 = pneg %p53
      %p155 = pneg %p77
      %p156 = pneg %p74
      %p157 = pneg %p103
      %p158 = pneg %p100
      %s159 = smul.u32 20, %s14
      %p160 = scmp.lt.s32.totalorder %s159, 99
      %s161 = scalar_select %p160, %s159, 99
      %s162 = smul.addr %s161, 4
      %s163 = scalar_lea.vmem %s3, %s162
      %s164 = smul.u32 20, %s14
      %p165 = scmp.lt.s32.totalorder %s164, 99
      %s166 = scalar_select %p165, %s164, 99
      %s167 = smul.addr %s166, 2
      %s168 = smul.addr %s167, 4
      %s169 = scalar_lea.vmem %s0, %s168
      %s170 = smul.u32 20, %s14
      %s171 = smul.u32 20, %s14
      %p172 = scmp.lt.s32.totalorder %s171, 99
      %s173 = scalar_select %p172, %s171, 99
      %s174 = smul.addr %s173, 4
      %s175 = scalar_lea.vmem %s3, %s174
      %s176 = smul.u32 20, %s14
      %v177 = vld [vmem:[%s169] sm:$0xff]
      %v178 = vld [vmem:[%s169 + $0x8] sm:$0xff]
      %v179 = vld [vmem:[%s169 + $0x10] sm:$0xff]
      %v180 = vld [vmem:[%s169 + $0x18] sm:$0xff]
      %v181 = vld [vmem:[%s169 + $0x20] sm:$0xff]
      %v182 = vld [vmem:[%s169 + $0x28] sm:$0xff]
      %v183 = vld [vmem:[%s169 + $0x30] sm:$0xff]
      %v184 = vld [vmem:[%s169 + $0x38] sm:$0xff]
      %v185 = vld [vmem:[%s169 + $0x40] sm:$0xff]
      %v186 = vld [vmem:[%s169 + $0x48] sm:$0xff]
      %v187 = vld [vmem:[%s169 + $0x50] sm:$0xff]
      %v188 = vld [vmem:[%s169 + $0x58] sm:$0xff]
      %v189 = vld [vmem:[%s169 + $0x60] sm:$0xff]
      %v190 = vld [vmem:[%s169 + $0x68] sm:$0xff]
      %v191 = vld [vmem:[%s169 + $0x70] sm:$0xff]
      %v192 = vld [vmem:[%s169 + $0x78] sm:$0xff]
      %v193 = vld [vmem:[%s169 + $0x80] sm:$0xff]
      %v194 = vld [vmem:[%s169 + $0x88] sm:$0xff]
      %v195 = vld [vmem:[%s169 + $0x90] sm:$0xff]
      %v196 = vld [vmem:[%s169 + $0x98] sm:$0xff]
      %v197 = vld [vmem:[%s1] sm:$0xf]
      %v198 = vld [vmem:[%s1 + $0x4] sm:$0xf]
      %v199 = vld [vmem:[%s1 + $0x8] sm:$0xf]
      %v200 = vld [vmem:[%s1 + $0xc] sm:$0xf]
      %v201 = vld [vmem:[%s1 + $0x10] sm:$0xf]
      %v202 = vld [vmem:[%s1 + $0x14] sm:$0xf]
      %v203 = vld [vmem:[%s1 + $0x18] sm:$0xf]
      %v204 = vld [vmem:[%s1 + $0x1c] sm:$0xf]
      %v205 = vld [vmem:[%s1 + $0x20] sm:$0xf]
      %v206 = vld [vmem:[%s1 + $0x24] sm:$0xf]
      %v207 = vld [vmem:[%s1 + $0x28] sm:$0xf]
      %v208 = vld [vmem:[%s1 + $0x2c] sm:$0xf]
      %v209 = vld [vmem:[%s1 + $0x30] sm:$0xf]
      %v210 = vld [vmem:[%s1 + $0x34] sm:$0xf]
      %v211 = vld [vmem:[%s1 + $0x38] sm:$0xf]
      %v212 = vld [vmem:[%s1 + $0x3c] sm:$0xf]
      %v213 = vld [vmem:[%s1 + $0x40] sm:$0xf]
      %v214 = vld [vmem:[%s1 + $0x44] sm:$0xf]
      %v215 = vld [vmem:[%s1 + $0x48] sm:$0xf]
      %v216 = vld [vmem:[%s1 + $0x4c] sm:$0xf]
      %v217 = vld [vmem:[%s1 + $0x50] sm:$0xf]
      %v218 = vld [vmem:[%s1 + $0x54] sm:$0xf]
      %v219 = vld [vmem:[%s1 + $0x58] sm:$0xf]
      %v220 = vld [vmem:[%s1 + $0x5c] sm:$0xf]
      %v221 = vld [vmem:[%s1 + $0x60] sm:$0xf]
      %v222 = vld [vmem:[%s1 + $0x64] sm:$0xf]
      %v223 = vld [vmem:[%s1 + $0x68] sm:$0xf]
      %v224 = vld [vmem:[%s1 + $0x6c] sm:$0xf]
      %v225 = vld [vmem:[%s1 + $0x70] sm:$0xf]
      %v226 = vld [vmem:[%s1 + $0x74] sm:$0xf]
      %v227 = vld [vmem:[%s1 + $0x78] sm:$0xf]
      %v228 = vld [vmem:[%s1 + $0x7c] sm:$0xf]
      %v229 = vld [vmem:[%s2] sm:$0x1]
      %v231 = vperm.slane %v229, 0
      %v253 = vunpack.c.l.b16 %v177
      %v254 = vunpack.c.h.b16 %v177
      %v255 = vunpack.c.l.b16 %v178
      %v256 = vunpack.c.h.b16 %v178
      %v257 = vunpack.c.l.b16 %v179
      %v258 = vunpack.c.h.b16 %v179
      %v259 = vunpack.c.l.b16 %v180
      %v260 = vunpack.c.h.b16 %v180
      %v261 = vunpack.c.l.b16 %v181
      %v262 = vunpack.c.h.b16 %v181
      %v263 = vunpack.c.l.b16 %v182
      %v264 = vunpack.c.h.b16 %v182
      %v265 = vunpack.c.l.b16 %v183
      %v266 = vunpack.c.h.b16 %v183
      %v267 = vunpack.c.l.b16 %v184
      %v268 = vunpack.c.h.b16 %v184
      %v269 = vunpack.c.l.b16 %v185
      %v270 = vunpack.c.h.b16 %v185
      %v271 = vunpack.c.l.b16 %v186
      %v272 = vunpack.c.h.b16 %v186
      %v273 = vunpack.c.l.b16 %v187
      %v274 = vunpack.c.h.b16 %v187
      %v275 = vunpack.c.l.b16 %v188
      %v276 = vunpack.c.h.b16 %v188
      %v277 = vunpack.c.l.b16 %v189
      %v278 = vunpack.c.h.b16 %v189
      %v279 = vunpack.c.l.b16 %v190
      %v280 = vunpack.c.h.b16 %v190
      %v281 = vunpack.c.l.b16 %v191
      %v282 = vunpack.c.h.b16 %v191
      %v283 = vunpack.c.l.b16 %v192
      %v284 = vunpack.c.h.b16 %v192
      %v285 = vunpack.c.l.b16 %v193
      %v286 = vunpack.c.h.b16 %v193
      %v287 = vunpack.c.l.b16 %v194
      %v288 = vunpack.c.h.b16 %v194
      %v289 = vunpack.c.l.b16 %v195
      %v290 = vunpack.c.h.b16 %v195
      %v291 = vunpack.c.l.b16 %v196
      %v292 = vunpack.c.h.b16 %v196
      %v293 = vpack.c.b16 %v255, %v253
      %v294 = vpack.c.b16 %v256, %v254
      %v295 = vpack.c.b16 %v259, %v257
      %v296 = vpack.c.b16 %v260, %v258
      %v297 = vpack.c.b16 %v263, %v261
      %v298 = vpack.c.b16 %v264, %v262
      %v299 = vpack.c.b16 %v267, %v265
      %v300 = vpack.c.b16 %v268, %v266
      %v301 = vpack.c.b16 %v271, %v269
      %v302 = vpack.c.b16 %v272, %v270
      %v303 = vpack.c.b16 %v275, %v273
      %v304 = vpack.c.b16 %v276, %v274
      %v305 = vpack.c.b16 %v279, %v277
      %v306 = vpack.c.b16 %v280, %v278
      %v307 = vpack.c.b16 %v283, %v281
      %v308 = vpack.c.b16 %v284, %v282
      %v309 = vpack.c.b16 %v287, %v285
      %v310 = vpack.c.b16 %v288, %v286
      %v311 = vpack.c.b16 %v291, %v289
      %v312 = vpack.c.b16 %v292, %v290
      %v365 = vunpack.c.l.b16 %v197
      %v366 = vunpack.c.l.b16 %v198
      %v367 = vunpack.c.l.b16 %v199
      %v368 = vunpack.c.l.b16 %v200
      %v369 = vunpack.c.l.b16 %v201
      %v370 = vunpack.c.l.b16 %v202
      %v371 = vunpack.c.l.b16 %v203
      %v372 = vunpack.c.l.b16 %v204
      %v373 = vunpack.c.l.b16 %v205
      %v374 = vunpack.c.l.b16 %v206
      %v375 = vunpack.c.l.b16 %v207
      %v376 = vunpack.c.l.b16 %v208
      %v377 = vunpack.c.l.b16 %v209
      %v378 = vunpack.c.l.b16 %v210
      %v379 = vunpack.c.l.b16 %v211
      %v380 = vunpack.c.l.b16 %v212
      %v381 = vunpack.c.l.b16 %v213
      %v382 = vunpack.c.l.b16 %v214
      %v383 = vunpack.c.l.b16 %v215
      %v384 = vunpack.c.l.b16 %v216
      %v385 = vunpack.c.l.b16 %v217
      %v386 = vunpack.c.l.b16 %v218
      %v387 = vunpack.c.l.b16 %v219
      %v388 = vunpack.c.l.b16 %v220
      %v389 = vunpack.c.l.b16 %v221
      %v390 = vunpack.c.l.b16 %v222
      %v391 = vunpack.c.l.b16 %v223
      %v392 = vunpack.c.l.b16 %v224
      %v393 = vunpack.c.l.b16 %v225
      %v394 = vunpack.c.l.b16 %v226
      %v395 = vunpack.c.l.b16 %v227
      %v396 = vunpack.c.l.b16 %v228
      %v397 = vpack.c.b16 %v366, %v365
      %v398 = vpack.c.b16 %v368, %v367
      %v399 = vpack.c.b16 %v370, %v369
      %v400 = vpack.c.b16 %v372, %v371
      %v401 = vpack.c.b16 %v374, %v373
      %v402 = vpack.c.b16 %v376, %v375
      %v403 = vpack.c.b16 %v378, %v377
      %v404 = vpack.c.b16 %v380, %v379
      %v405 = vpack.c.b16 %v382, %v381
      %v406 = vpack.c.b16 %v384, %v383
      %v407 = vpack.c.b16 %v386, %v385
      %v408 = vpack.c.b16 %v388, %v387
      %v409 = vpack.c.b16 %v390, %v389
      %v410 = vpack.c.b16 %v392, %v391
      %v411 = vpack.c.b16 %v394, %v393
      %v412 = vpack.c.b16 %v396, %v395
      %429 = vmatpush.bf16.msra.mxu0 %v404
      %430 = vmatpush.bf16.msra.mxu0 %v403
      %431 = vmatpush.bf16.msra.mxu0 %v402
      %432 = vmatpush.bf16.msra.mxu0 %v401
      %433 = vmatpush.bf16.msra.mxu0 %v400
      %434 = vmatpush.bf16.msra.mxu0 %v399
      %435 = vmatpush.bf16.msra.mxu0 %v398
      %436 = vmatpush.bf16.msra.mxu0 %v397
      %437 = vmatmul.bf16.gmra.mxu0 %v293
      %v438 = vpop.f32.mrf.mxu0
      %v439 = vadd.f32 %v231, %v438
      %v440 = vpop.f32.mrf.mxu0
      %v441 = vadd.f32 %v231, %v440
      %442 = vmatmul.bf16.gmra.mxu0 %v295
      %v443 = vpop.f32.mrf.mxu0
      %v444 = vadd.f32 %v231, %v443
      %v445 = vpop.f32.mrf.mxu0
      %v446 = vadd.f32 %v231, %v445
      %447 = vmatmul.bf16.gmra.mxu0 %v297
      %v448 = vpop.f32.mrf.mxu0
      %v449 = vadd.f32 %v231, %v448
      %v450 = vpop.f32.mrf.mxu0
      %v451 = vadd.f32 %v231, %v450
      %452 = vmatmul.bf16.gmra.mxu0 %v299
      %v453 = vpop.f32.mrf.mxu0
      %v454 = vadd.f32 %v231, %v453
      %v455 = vpop.f32.mrf.mxu0
      %v456 = vadd.f32 %v231, %v455
      %457 = vmatmul.bf16.gmra.mxu0 %v301
      %v458 = vpop.f32.mrf.mxu0
      %v459 = vadd.f32 %v231, %v458
      %v460 = vpop.f32.mrf.mxu0
      %v461 = vadd.f32 %v231, %v460
      %462 = vmatmul.bf16.gmra.mxu0 %v303
      %v463 = vpop.f32.mrf.mxu0
      %v464 = vadd.f32 %v231, %v463
      %v465 = vpop.f32.mrf.mxu0
      %v466 = vadd.f32 %v231, %v465
      %467 = vmatmul.bf16.gmra.mxu0 %v305
      %v468 = vpop.f32.mrf.mxu0
      %v469 = vadd.f32 %v231, %v468
      %v470 = vpop.f32.mrf.mxu0
      %v471 = vadd.f32 %v231, %v470
      %472 = vmatmul.bf16.gmra.mxu0 %v307
      %v473 = vpop.f32.mrf.mxu0
      %v474 = vadd.f32 %v231, %v473
      %v475 = vpop.f32.mrf.mxu0
      %v476 = vadd.f32 %v231, %v475
      %477 = vmatmul.bf16.gmra.mxu0 %v309
      %v478 = vpop.f32.mrf.mxu0
      %v479 = vadd.f32 %v231, %v478
      %v480 = vpop.f32.mrf.mxu0
      %v481 = vadd.f32 %v231, %v480
      %482 = vmatmul.bf16.gmra.mxu0 %v311
      %v483 = vpop.f32.mrf.mxu0
      %v484 = vadd.f32 %v231, %v483
      %v485 = vpop.f32.mrf.mxu0
      %v486 = vadd.f32 %v231, %v485
      %487 = vdwg.mxu0
      %488 = vmatpush.bf16.msra.mxu0 %v412
      %489 = vmatpush.bf16.msra.mxu0 %v411
      %490 = vmatpush.bf16.msra.mxu0 %v410
      %491 = vmatpush.bf16.msra.mxu0 %v409
      %492 = vmatpush.bf16.msra.mxu0 %v408
      %493 = vmatpush.bf16.msra.mxu0 %v407
      %494 = vmatpush.bf16.msra.mxu0 %v406
      %495 = vmatpush.bf16.msra.mxu0 %v405
      %496 = vmatmul.bf16.gmra.mxu0 %v294
      %v497 = vpop.f32.mrf.mxu0
      %v498 = vadd.f32 %v439, %v497
      %v499 = vpop.f32.mrf.mxu0
      %v500 = vadd.f32 %v441, %v499
      %501 = vmatmul.bf16.gmra.mxu0 %v296
      %v502 = vpop.f32.mrf.mxu0
      %v503 = vadd.f32 %v444, %v502
      %v504 = vpop.f32.mrf.mxu0
      %v505 = vadd.f32 %v446, %v504
      %506 = vmatmul.bf16.gmra.mxu0 %v298
      %v507 = vpop.f32.mrf.mxu0
      %v508 = vadd.f32 %v449, %v507
      %v509 = vpop.f32.mrf.mxu0
      %v510 = vadd.f32 %v451, %v509
      %511 = vmatmul.bf16.gmra.mxu0 %v300
      %v512 = vpop.f32.mrf.mxu0
      %v513 = vadd.f32 %v454, %v512
      %v514 = vpop.f32.mrf.mxu0
      %v515 = vadd.f32 %v456, %v514
      %516 = vmatmul.bf16.gmra.mxu0 %v302
      %v517 = vpop.f32.mrf.mxu0
      %v518 = vadd.f32 %v459, %v517
      %v519 = vpop.f32.mrf.mxu0
      %v520 = vadd.f32 %v461, %v519
      %521 = vmatmul.bf16.gmra.mxu0 %v304
      %v522 = vpop.f32.mrf.mxu0
      %v523 = vadd.f32 %v464, %v522
      %v524 = vpop.f32.mrf.mxu0
      %v525 = vadd.f32 %v466, %v524
      %526 = vmatmul.bf16.gmra.mxu0 %v306
      %v527 = vpop.f32.mrf.mxu0
      %v528 = vadd.f32 %v469, %v527
      %v529 = vpop.f32.mrf.mxu0
      %v530 = vadd.f32 %v471, %v529
      %531 = vmatmul.bf16.gmra.mxu0 %v308
      %v532 = vpop.f32.mrf.mxu0
      %v533 = vadd.f32 %v474, %v532
      %v534 = vpop.f32.mrf.mxu0
      %v535 = vadd.f32 %v476, %v534
      %536 = vmatmul.bf16.gmra.mxu0 %v310
      %v537 = vpop.f32.mrf.mxu0
      %v538 = vadd.f32 %v479, %v537
      %v539 = vpop.f32.mrf.mxu0
      %v540 = vadd.f32 %v481, %v539
      %541 = vmatmul.bf16.gmra.mxu0 %v312
      %v542 = vpop.f32.mrf.mxu0
      %v543 = vadd.f32 %v484, %v542
      %v544 = vpop.f32.mrf.mxu0
      %v545 = vadd.f32 %v486, %v544
      %546 = vdwg.mxu0
      %v547 = vmax.f32 %v498, 0.0
      %v548 = vmax.f32 %v500, 0.0
      %v549 = vmax.f32 %v503, 0.0
      %v550 = vmax.f32 %v505, 0.0
      %v551 = vmax.f32 %v508, 0.0
      %v552 = vmax.f32 %v510, 0.0
      %v553 = vmax.f32 %v513, 0.0
      %v554 = vmax.f32 %v515, 0.0
      %v555 = vmax.f32 %v518, 0.0
      %v556 = vmax.f32 %v520, 0.0
      %v557 = vmax.f32 %v523, 0.0
      %v558 = vmax.f32 %v525, 0.0
      %v559 = vmax.f32 %v528, 0.0
      %v560 = vmax.f32 %v530, 0.0
      %v561 = vmax.f32 %v533, 0.0
      %v562 = vmax.f32 %v535, 0.0
      %v563 = vmax.f32 %v538, 0.0
      %v564 = vmax.f32 %v540, 0.0
      %v565 = vmax.f32 %v543, 0.0
      %v566 = vmax.f32 %v545, 0.0
      %v567 = vpack.c.bf16 %v547, %v547
      %v568 = vpack.c.bf16 %v548, %v548
      %v569 = vpack.c.bf16 %v549, %v549
      %v570 = vpack.c.bf16 %v550, %v550
      %v571 = vpack.c.bf16 %v551, %v551
      %v572 = vpack.c.bf16 %v552, %v552
      %v573 = vpack.c.bf16 %v553, %v553
      %v574 = vpack.c.bf16 %v554, %v554
      %v575 = vpack.c.bf16 %v555, %v555
      %v576 = vpack.c.bf16 %v556, %v556
      %v577 = vpack.c.bf16 %v557, %v557
      %v578 = vpack.c.bf16 %v558, %v558
      %v579 = vpack.c.bf16 %v559, %v559
      %v580 = vpack.c.bf16 %v560, %v560
      %v581 = vpack.c.bf16 %v561, %v561
      %v582 = vpack.c.bf16 %v562, %v562
      %v583 = vpack.c.bf16 %v563, %v563
      %v584 = vpack.c.bf16 %v564, %v564
      %v585 = vpack.c.bf16 %v565, %v565
      %v586 = vpack.c.bf16 %v566, %v566
      %587 = vst [vmem:[%s175] sm:$0xf] %v567
      %588 = vst [vmem:[%s175 + $0x4] sm:$0xf] %v568
      %589 = vst [vmem:[%s175 + $0x8] sm:$0xf] %v569
      %590 = vst [vmem:[%s175 + $0xc] sm:$0xf] %v570
      %591 = vst [vmem:[%s175 + $0x10] sm:$0xf] %v571
      %592 = vst [vmem:[%s175 + $0x14] sm:$0xf] %v572
      %593 = vst [vmem:[%s175 + $0x18] sm:$0xf] %v573
      %594 = vst [vmem:[%s175 + $0x1c] sm:$0xf] %v574
      %595 = vst [vmem:[%s175 + $0x20] sm:$0xf] %v575
      %596 = vst [vmem:[%s175 + $0x24] sm:$0xf] %v576
      %597 = vst [vmem:[%s175 + $0x28] sm:$0xf] %v577
      %598 = vst [vmem:[%s175 + $0x2c] sm:$0xf] %v578
      %599 = vst [vmem:[%s175 + $0x30] sm:$0xf] %v579
      %600 = vst [vmem:[%s175 + $0x34] sm:$0xf] %v580
      %601 = vst [vmem:[%s175 + $0x38] sm:$0xf] %v581
      %602 = vst [vmem:[%s175 + $0x3c] sm:$0xf] %v582
      %603 = vst [vmem:[%s175 + $0x40] sm:$0xf] %v583
      %604 = vst [vmem:[%s175 + $0x44] sm:$0xf] %v584
      %605 = vst [vmem:[%s175 + $0x48] sm:$0xf] %v585
      %606 = vst [vmem:[%s175 + $0x4c] sm:$0xf] %v586
      %s607 = smul.u32 20, %s14
      %p608 = scmp.lt.s32.totalorder %s607, 99
      %s609 = scalar_select %p608, %s607, 99
      %s610 = smul.addr %s609, 4
      %s611 = scalar_lea.vmem %s3, %s610
      // Predicated region
      $region33: #{agent_forward.4} parent=31 // pred_check
        %p612 = pneg %p100
      $region34: #{agent_forward.4} parent=31 // pred_check_branch
        %614 = sbr.rel (%p612) target = $region36
      $region35: #{agent_forward.4} parent=31 // pred_region
        %s615 = smul.u32 20, %s14
      $region36: #{agent_forward.4} parent=31 // pred_fallthru
        _
    $region32: #{agent_forward.4} parent=5 // pred_fallthru
      _
    %p616 = scmp.le.s32.totalorder 2, %s9
    // Predicated region
    $region37: #{agent_forward.4} parent=5 // pred_check
      %p617 = pneg %p616
    $region38: #{agent_forward.4} parent=5 // pred_check_branch
      %619 = sbr.rel (%p617) target = $region40
    $region39: #{agent_forward.4} parent=5 // pred_region
      %s620 = ssub.s32 %s9, 2
      // Predicated region
      $region41: #{agent_forward.4} parent=39 // pred_check
        %p621 = pneg %p106
      $region42: #{agent_forward.4} parent=39 // pred_check_branch
        %623 = sbr.rel (%p621) target = $region44
      $region43: #{agent_forward.4} parent=39 // pred_region
        %s624 = smul.u32 20, %s15
        %p625 = scmp.lt.s32.totalorder %s624, 99
        %s626 = scalar_select %p625, %s624, 99
        %s627 = smul.addr %s626, 4
        %s628 = scalar_lea.vmem %s3, %s627
      $region44: #{agent_forward.4} parent=39 // pred_fallthru
        _
    $region40: #{agent_forward.4} parent=5 // pred_fallthru
      _
  $region6: #{agent_forward.4} parent=0 // loop_footer
    %s13 = sadd.s32 1, %s9
  $region7: #{agent_forward.4} parent=0 // loop_footer_branch
    %8 = sbr.rel target = $region3
  $region8: #{agent_forward.4} parent=0 // loop_exit
    _

// kernel: agent_forward.5
$region0: #{agent_forward.5}
  #allocation0 [shape = 'u32[]', space=smem, size = 0x4, offset = 0x4, fixed_abs, tag = 'smem constant byte address 0x4 - core index']
  #allocation1 [shape = 'u32[72,128]{1,0:T(1,128)}', space=vmem, size = 0x9000, scoped, tag = 'internal scratch']
  %s0 = inlined_call_operand.vmem [shape: bf16[176,512], index: 0, kind: input, shape index: {}]
  %s1 = inlined_call_operand.vmem [shape: bf16[512,128], index: 1, kind: input, shape index: {}]
  %s2 = inlined_call_operand.vmem [shape: f32[1,128], index: 2, kind: input, shape index: {}]
  %s3 = inlined_call_operand.vmem [shape: bf16[176,128], index: 3, kind: output, shape index: {}]
  %s4 = sld [smem:[#allocation0]]
  $region22: #{agent_forward.5} parent=0
    _
  %s6 = ssub.s32 1, %s4
  %s7 = scalar_select 0, %s6, %s4
  // Predicated region
  $region2: #{agent_forward.5} parent=0 // pred_check
    _
  $region3: #{agent_forward.5} parent=0 // pred_check_branch
    %9 = sbr.rel (0) target = $region5
  $region4: #{agent_forward.5} parent=0 // pred_region
    _
  $region5: #{agent_forward.5} parent=0 // pred_fallthru
    _
  // Predicated region
  $region6: #{agent_forward.5} parent=0 // pred_check
    _
  $region7: #{agent_forward.5} parent=0 // pred_check_branch
    %11 = sbr.rel (0) target = $region9
  $region8: #{agent_forward.5} parent=0 // pred_region
    _
  $region9: #{agent_forward.5} parent=0 // pred_fallthru
    _
  // Predicated region
  $region10: #{agent_forward.5} parent=0 // pred_check
    _
  $region11: #{agent_forward.5} parent=0 // pred_check_branch
    %13 = sbr.rel (0) target = $region13
  $region12: #{agent_forward.5} parent=0 // pred_region
    _
  $region13: #{agent_forward.5} parent=0 // pred_fallthru
    _
  %v14 = vld [vmem:[%s0] sm:$0xff]
  %v15 = vld [vmem:[%s0 + $0x8] sm:$0xff]
  %v16 = vld [vmem:[%s0 + $0x10] sm:$0xff]
  %v17 = vld [vmem:[%s0 + $0x18] sm:$0xff]
  %v18 = vld [vmem:[%s0 + $0x20] sm:$0xff]
  %v19 = vld [vmem:[%s0 + $0x28] sm:$0xff]
  %v20 = vld [vmem:[%s0 + $0x30] sm:$0xff]
  %v21 = vld [vmem:[%s0 + $0x38] sm:$0xff]
  %v22 = vld [vmem:[%s0 + $0x40] sm:$0xff]
  %v23 = vld [vmem:[%s0 + $0x48] sm:$0xff]
  %v24 = vld [vmem:[%s0 + $0x50] sm:$0xff]
  %v25 = vld [vmem:[%s0 + $0x58] sm:$0xff]
  %v26 = vld [vmem:[%s0 + $0x60] sm:$0xff]
  %v27 = vld [vmem:[%s0 + $0x68] sm:$0xff]
  %v28 = vld [vmem:[%s0 + $0x70] sm:$0xff]
  %v29 = vld [vmem:[%s0 + $0x78] sm:$0xff]
  %v30 = vld [vmem:[%s0 + $0x80] sm:$0xff]
  %v31 = vld [vmem:[%s0 + $0x88] sm:$0xff]
  %v32 = vld [vmem:[%s0 + $0x90] sm:$0xff]
  %v33 = vld [vmem:[%s0 + $0x98] sm:$0xff]
  %v34 = vld [vmem:[%s0 + $0xa0] sm:$0xff]
  %v35 = vld [vmem:[%s0 + $0xa8] sm:$0xff]
  %v36 = vld [vmem:[%s0 + $0xb0] sm:$0xff]
  %v37 = vld [vmem:[%s0 + $0xb8] sm:$0xff]
  %v38 = vld [vmem:[%s0 + $0xc0] sm:$0xff]
  %v39 = vld [vmem:[%s0 + $0xc8] sm:$0xff]
  %v40 = vld [vmem:[%s0 + $0xd0] sm:$0xff]
  %v41 = vld [vmem:[%s0 + $0xd8] sm:$0xff]
  %v42 = vld [vmem:[%s0 + $0xe0] sm:$0xff]
  %v43 = vld [vmem:[%s0 + $0xe8] sm:$0xff]
  %v44 = vld [vmem:[%s0 + $0xf0] sm:$0xff]
  %v45 = vld [vmem:[%s0 + $0xf8] sm:$0xff]
  %v46 = vld [vmem:[%s0 + $0x100] sm:$0xff]
  %v47 = vld [vmem:[%s0 + $0x108] sm:$0xff]
  %v48 = vld [vmem:[%s0 + $0x110] sm:$0xff]
  %v49 = vld [vmem:[%s0 + $0x118] sm:$0xff]
  %v50 = vld [vmem:[%s0 + $0x120] sm:$0xff]
  %v51 = vld [vmem:[%s0 + $0x128] sm:$0xff]
  %v52 = vld [vmem:[%s0 + $0x130] sm:$0xff]
  %v53 = vld [vmem:[%s0 + $0x138] sm:$0xff]
  %v54 = vld [vmem:[%s0 + $0x140] sm:$0xff]
  %v55 = vld [vmem:[%s0 + $0x148] sm:$0xff]
  %v56 = vld [vmem:[%s0 + $0x150] sm:$0xff]
  %v57 = vld [vmem:[%s0 + $0x158] sm:$0xff]
  %v58 = vld [vmem:[%s1] sm:$0xf]
  %v59 = vld [vmem:[%s1 + $0x4] sm:$0xf]
  %v60 = vld [vmem:[%s1 + $0x8] sm:$0xf]
  %v61 = vld [vmem:[%s1 + $0xc] sm:$0xf]
  %v62 = vld [vmem:[%s1 + $0x10] sm:$0xf]
  %v63 = vld [vmem:[%s1 + $0x14] sm:$0xf]
  %v64 = vld [vmem:[%s1 + $0x18] sm:$0xf]
  %v65 = vld [vmem:[%s1 + $0x1c] sm:$0xf]
  %v66 = vld [vmem:[%s1 + $0x20] sm:$0xf]
  %v67 = vld [vmem:[%s1 + $0x24] sm:$0xf]
  %v68 = vld [vmem:[%s1 + $0x28] sm:$0xf]
  %v69 = vld [vmem:[%s1 + $0x2c] sm:$0xf]
  %v70 = vld [vmem:[%s1 + $0x30] sm:$0xf]
  %v71 = vld [vmem:[%s1 + $0x34] sm:$0xf]
  %v72 = vld [vmem:[%s1 + $0x38] sm:$0xf]
  %v73 = vld [vmem:[%s1 + $0x3c] sm:$0xf]
  %v74 = vld [vmem:[%s1 + $0x40] sm:$0xf]
  %v75 = vld [vmem:[%s1 + $0x44] sm:$0xf]
  %v76 = vld [vmem:[%s1 + $0x48] sm:$0xf]
  %v77 = vld [vmem:[%s1 + $0x4c] sm:$0xf]
  %v78 = vld [vmem:[%s1 + $0x50] sm:$0xf]
  %v79 = vld [vmem:[%s1 + $0x54] sm:$0xf]
  %v80 = vld [vmem:[%s1 + $0x58] sm:$0xf]
  %v81 = vld [vmem:[%s1 + $0x5c] sm:$0xf]
  %v82 = vld [vmem:[%s1 + $0x60] sm:$0xf]
  %v83 = vld [vmem:[%s1 + $0x64] sm:$0xf]
  %v84 = vld [vmem:[%s1 + $0x68] sm:$0xf]
  %v85 = vld [vmem:[%s1 + $0x6c] sm:$0xf]
  %v86 = vld [vmem:[%s1 + $0x70] sm:$0xf]
  %v87 = vld [vmem:[%s1 + $0x74] sm:$0xf]
  %v88 = vld [vmem:[%s1 + $0x78] sm:$0xf]
  %v89 = vld [vmem:[%s1 + $0x7c] sm:$0xf]
  %v90 = vld [vmem:[%s1 + $0x80] sm:$0xf]
  %v91 = vld [vmem:[%s1 + $0x84] sm:$0xf]
  %v92 = vld [vmem:[%s1 + $0x88] sm:$0xf]
  %v93 = vld [vmem:[%s1 + $0x8c] sm:$0xf]
  %v94 = vld [vmem:[%s1 + $0x90] sm:$0xf]
  %v95 = vld [vmem:[%s1 + $0x94] sm:$0xf]
  %v96 = vld [vmem:[%s1 + $0x98] sm:$0xf]
  %v97 = vld [vmem:[%s1 + $0x9c] sm:$0xf]
  %v98 = vld [vmem:[%s1 + $0xa0] sm:$0xf]
  %v99 = vld [vmem:[%s1 + $0xa4] sm:$0xf]
  %v100 = vld [vmem:[%s1 + $0xa8] sm:$0xf]
  %v101 = vld [vmem:[%s1 + $0xac] sm:$0xf]
  %v102 = vld [vmem:[%s1 + $0xb0] sm:$0xf]
  %v103 = vld [vmem:[%s1 + $0xb4] sm:$0xf]
  %v104 = vld [vmem:[%s1 + $0xb8] sm:$0xf]
  %v105 = vld [vmem:[%s1 + $0xbc] sm:$0xf]
  %v106 = vld [vmem:[%s1 + $0xc0] sm:$0xf]
  %v107 = vld [vmem:[%s1 + $0xc4] sm:$0xf]
  %v108 = vld [vmem:[%s1 + $0xc8] sm:$0xf]
  %v109 = vld [vmem:[%s1 + $0xcc] sm:$0xf]
  %v110 = vld [vmem:[%s1 + $0xd0] sm:$0xf]
  %v111 = vld [vmem:[%s1 + $0xd4] sm:$0xf]
  %v112 = vld [vmem:[%s1 + $0xd8] sm:$0xf]
  %v113 = vld [vmem:[%s1 + $0xdc] sm:$0xf]
  %v114 = vld [vmem:[%s1 + $0xe0] sm:$0xf]
  %v115 = vld [vmem:[%s1 + $0xe4] sm:$0xf]
  %v116 = vld [vmem:[%s1 + $0xe8] sm:$0xf]
  %v117 = vld [vmem:[%s1 + $0xec] sm:$0xf]
  %v118 = vld [vmem:[%s1 + $0xf0] sm:$0xf]
  %v119 = vld [vmem:[%s1 + $0xf4] sm:$0xf]
  %v120 = vld [vmem:[%s1 + $0xf8] sm:$0xf]
  %v121 = vld [vmem:[%s1 + $0xfc] sm:$0xf]
  %v122 = vld [vmem:[%s2] sm:$0x1]
  %v124 = vperm.slane %v122, 0
  %v170 = vunpack.c.l.b16 %v14
  %v171 = vunpack.c.h.b16 %v14
  %v172 = vunpack.c.l.b16 %v15
  %v173 = vunpack.c.h.b16 %v15
  %v174 = vunpack.c.l.b16 %v16
  %v175 = vunpack.c.h.b16 %v16
  %v176 = vunpack.c.l.b16 %v17
  %v177 = vunpack.c.h.b16 %v17
  %v178 = vunpack.c.l.b16 %v18
  %v179 = vunpack.c.h.b16 %v18
  %v180 = vunpack.c.l.b16 %v19
  %v181 = vunpack.c.h.b16 %v19
  %v182 = vunpack.c.l.b16 %v20
  %v183 = vunpack.c.h.b16 %v20
  %v184 = vunpack.c.l.b16 %v21
  %v185 = vunpack.c.h.b16 %v21
  %v186 = vunpack.c.l.b16 %v22
  %v187 = vunpack.c.h.b16 %v22
  %v188 = vunpack.c.l.b16 %v23
  %v189 = vunpack.c.h.b16 %v23
  %v190 = vunpack.c.l.b16 %v24
  %v191 = vunpack.c.h.b16 %v24
  %v192 = vunpack.c.l.b16 %v25
  %v193 = vunpack.c.h.b16 %v25
  %v194 = vunpack.c.l.b16 %v26
  %v195 = vunpack.c.h.b16 %v26
  %v196 = vunpack.c.l.b16 %v27
  %v197 = vunpack.c.h.b16 %v27
  %v198 = vunpack.c.l.b16 %v28
  %v199 = vunpack.c.h.b16 %v28
  %v200 = vunpack.c.l.b16 %v29
  %v201 = vunpack.c.h.b16 %v29
  %v202 = vunpack.c.l.b16 %v30
  %v203 = vunpack.c.h.b16 %v30
  %v204 = vunpack.c.l.b16 %v31
  %v205 = vunpack.c.h.b16 %v31
  %v206 = vunpack.c.l.b16 %v32
  %v207 = vunpack.c.h.b16 %v32
  %v208 = vunpack.c.l.b16 %v33
  %v209 = vunpack.c.h.b16 %v33
  %v210 = vunpack.c.l.b16 %v34
  %v211 = vunpack.c.h.b16 %v34
  %v212 = vunpack.c.l.b16 %v35
  %v213 = vunpack.c.h.b16 %v35
  %v214 = vunpack.c.l.b16 %v36
  %v215 = vunpack.c.h.b16 %v36
  %v216 = vunpack.c.l.b16 %v37
  %v217 = vunpack.c.h.b16 %v37
  %v218 = vunpack.c.l.b16 %v38
  %v219 = vunpack.c.h.b16 %v38
  %v220 = vunpack.c.l.b16 %v39
  %v221 = vunpack.c.h.b16 %v39
  %v222 = vunpack.c.l.b16 %v40
  %v223 = vunpack.c.h.b16 %v40
  %v224 = vunpack.c.l.b16 %v41
  %v225 = vunpack.c.h.b16 %v41
  %v226 = vunpack.c.l.b16 %v42
  %v227 = vunpack.c.h.b16 %v42
  %v228 = vunpack.c.l.b16 %v43
  %v229 = vunpack.c.h.b16 %v43
  %v230 = vunpack.c.l.b16 %v44
  %v231 = vunpack.c.h.b16 %v44
  %v232 = vunpack.c.l.b16 %v45
  %v233 = vunpack.c.h.b16 %v45
  %v234 = vunpack.c.l.b16 %v46
  %v235 = vunpack.c.h.b16 %v46
  %v236 = vunpack.c.l.b16 %v47
  %v237 = vunpack.c.h.b16 %v47
  %v238 = vunpack.c.l.b16 %v48
  %v239 = vunpack.c.h.b16 %v48
  %v240 = vunpack.c.l.b16 %v49
  %v241 = vunpack.c.h.b16 %v49
  %v242 = vunpack.c.l.b16 %v50
  %v243 = vunpack.c.h.b16 %v50
  %v244 = vunpack.c.l.b16 %v51
  %v245 = vunpack.c.h.b16 %v51
  %v246 = vunpack.c.l.b16 %v52
  %v247 = vunpack.c.h.b16 %v52
  %v248 = vunpack.c.l.b16 %v53
  %v249 = vunpack.c.h.b16 %v53
  %v250 = vunpack.c.l.b16 %v54
  %v251 = vunpack.c.h.b16 %v54
  %v252 = vunpack.c.l.b16 %v55
  %v253 = vunpack.c.h.b16 %v55
  %v254 = vunpack.c.l.b16 %v56
  %v255 = vunpack.c.h.b16 %v56
  %v256 = vunpack.c.l.b16 %v57
  %v257 = vunpack.c.h.b16 %v57
  %v258 = vpack.c.b16 %v174, %v170
  %v259 = vpack.c.b16 %v175, %v171
  %v260 = vpack.c.b16 %v176, %v172
  %v261 = vpack.c.b16 %v177, %v173
  %v262 = vpack.c.b16 %v182, %v178
  %v263 = vpack.c.b16 %v183, %v179
  %v264 = vpack.c.b16 %v184, %v180
  %v265 = vpack.c.b16 %v185, %v181
  %v266 = vpack.c.b16 %v190, %v186
  %v267 = vpack.c.b16 %v191, %v187
  %v268 = vpack.c.b16 %v192, %v188
  %v269 = vpack.c.b16 %v193, %v189
  %v270 = vpack.c.b16 %v198, %v194
  %v271 = vpack.c.b16 %v199, %v195
  %v272 = vpack.c.b16 %v200, %v196
  %v273 = vpack.c.b16 %v201, %v197
  %v274 = vpack.c.b16 %v206, %v202
  %v275 = vpack.c.b16 %v207, %v203
  %v276 = vpack.c.b16 %v208, %v204
  %v277 = vpack.c.b16 %v209, %v205
  %v278 = vpack.c.b16 %v214, %v210
  %v279 = vpack.c.b16 %v215, %v211
  %v280 = vpack.c.b16 %v216, %v212
  %v281 = vpack.c.b16 %v217, %v213
  %v282 = vpack.c.b16 %v222, %v218
  %v283 = vpack.c.b16 %v223, %v219
  %v284 = vpack.c.b16 %v224, %v220
  %v285 = vpack.c.b16 %v225, %v221
  %v286 = vpack.c.b16 %v230, %v226
  %v287 = vpack.c.b16 %v231, %v227
  %v288 = vpack.c.b16 %v232, %v228
  %v289 = vpack.c.b16 %v233, %v229
  %v290 = vpack.c.b16 %v238, %v234
  %v291 = vpack.c.b16 %v239, %v235
  %v292 = vpack.c.b16 %v240, %v236
  %v293 = vpack.c.b16 %v241, %v237
  %v294 = vpack.c.b16 %v246, %v242
  %v295 = vpack.c.b16 %v247, %v243
  %v296 = vpack.c.b16 %v248, %v244
  %v297 = vpack.c.b16 %v249, %v245
  %v298 = vpack.c.b16 %v254, %v250
  %v299 = vpack.c.b16 %v255, %v251
  %v300 = vpack.c.b16 %v256, %v252
  %v301 = vpack.c.b16 %v257, %v253
  %v410 = vunpack.c.l.b16 %v58
  %v411 = vunpack.c.l.b16 %v59
  %v412 = vunpack.c.l.b16 %v60
  %v413 = vunpack.c.l.b16 %v61
  %v414 = vunpack.c.l.b16 %v62
  %v415 = vunpack.c.l.b16 %v63
  %v416 = vunpack.c.l.b16 %v64
  %v417 = vunpack.c.l.b16 %v65
  %v418 = vunpack.c.l.b16 %v66
  %v419 = vunpack.c.l.b16 %v67
  %v420 = vunpack.c.l.b16 %v68
  %v421 = vunpack.c.l.b16 %v69
  %v422 = vunpack.c.l.b16 %v70
  %v423 = vunpack.c.l.b16 %v71
  %v424 = vunpack.c.l.b16 %v72
  %v425 = vunpack.c.l.b16 %v73
  %v426 = vunpack.c.l.b16 %v74
  %v427 = vunpack.c.l.b16 %v75
  %v428 = vunpack.c.l.b16 %v76
  %v429 = vunpack.c.l.b16 %v77
  %v430 = vunpack.c.l.b16 %v78
  %v431 = vunpack.c.l.b16 %v79
  %v432 = vunpack.c.l.b16 %v80
  %v433 = vunpack.c.l.b16 %v81
  %v434 = vunpack.c.l.b16 %v82
  %v435 = vunpack.c.l.b16 %v83
  %v436 = vunpack.c.l.b16 %v84
  %v437 = vunpack.c.l.b16 %v85
  %v438 = vunpack.c.l.b16 %v86
  %v439 = vunpack.c.l.b16 %v87
  %v440 = vunpack.c.l.b16 %v88
  %v441 = vunpack.c.l.b16 %v89
  %v442 = vunpack.c.l.b16 %v90
  %v443 = vunpack.c.l.b16 %v91
  %v444 = vunpack.c.l.b16 %v92
  %v445 = vunpack.c.l.b16 %v93
  %v446 = vunpack.c.l.b16 %v94
  %v447 = vunpack.c.l.b16 %v95
  %v448 = vunpack.c.l.b16 %v96
  %v449 = vunpack.c.l.b16 %v97
  %v450 = vunpack.c.l.b16 %v98
  %v451 = vunpack.c.l.b16 %v99
  %v452 = vunpack.c.l.b16 %v100
  %v453 = vunpack.c.l.b16 %v101
  %v454 = vunpack.c.l.b16 %v102
  %v455 = vunpack.c.l.b16 %v103
  %v456 = vunpack.c.l.b16 %v104
  %v457 = vunpack.c.l.b16 %v105
  %v458 = vunpack.c.l.b16 %v106
  %v459 = vunpack.c.l.b16 %v107
  %v460 = vunpack.c.l.b16 %v108
  %v461 = vunpack.c.l.b16 %v109
  %v462 = vunpack.c.l.b16 %v110
  %v463 = vunpack.c.l.b16 %v111
  %v464 = vunpack.c.l.b16 %v112
  %v465 = vunpack.c.l.b16 %v113
  %v466 = vunpack.c.l.b16 %v114
  %v467 = vunpack.c.l.b16 %v115
  %v468 = vunpack.c.l.b16 %v116
  %v469 = vunpack.c.l.b16 %v117
  %v470 = vunpack.c.l.b16 %v118
  %v471 = vunpack.c.l.b16 %v119
  %v472 = vunpack.c.l.b16 %v120
  %v473 = vunpack.c.l.b16 %v121
  %v474 = vpack.c.b16 %v411, %v410
  %v475 = vpack.c.b16 %v413, %v412
  %v476 = vpack.c.b16 %v415, %v414
  %v477 = vpack.c.b16 %v417, %v416
  %v478 = vpack.c.b16 %v419, %v418
  %v479 = vpack.c.b16 %v421, %v420
  %v480 = vpack.c.b16 %v423, %v422
  %v481 = vpack.c.b16 %v425, %v424
  %v482 = vpack.c.b16 %v427, %v426
  %v483 = vpack.c.b16 %v429, %v428
  %v484 = vpack.c.b16 %v431, %v430
  %v485 = vpack.c.b16 %v433, %v432
  %v486 = vpack.c.b16 %v435, %v434
  %v487 = vpack.c.b16 %v437, %v436
  %v488 = vpack.c.b16 %v439, %v438
  %v489 = vpack.c.b16 %v441, %v440
  %v490 = vpack.c.b16 %v443, %v442
  %v491 = vpack.c.b16 %v445, %v444
  %v492 = vpack.c.b16 %v447, %v446
  %v493 = vpack.c.b16 %v449, %v448
  %v494 = vpack.c.b16 %v451, %v450
  %v495 = vpack.c.b16 %v453, %v452
  %v496 = vpack.c.b16 %v455, %v454
  %v497 = vpack.c.b16 %v457, %v456
  %v498 = vpack.c.b16 %v459, %v458
  %v499 = vpack.c.b16 %v461, %v460
  %v500 = vpack.c.b16 %v463, %v462
  %v501 = vpack.c.b16 %v465, %v464
  %v502 = vpack.c.b16 %v467, %v466
  %v503 = vpack.c.b16 %v469, %v468
  %v504 = vpack.c.b16 %v471, %v470
  %v505 = vpack.c.b16 %v473, %v472
  %538 = vmatpush.bf16.msra.mxu0 %v481
  %539 = vmatpush.bf16.msra.mxu0 %v480
  %540 = vmatpush.bf16.msra.mxu0 %v479
  %541 = vmatpush.bf16.msra.mxu0 %v478
  %542 = vmatpush.bf16.msra.mxu0 %v477
  %543 = vmatpush.bf16.msra.mxu0 %v476
  %544 = vmatpush.bf16.msra.mxu0 %v475
  %545 = vmatpush.bf16.msra.mxu0 %v474
  %546 = vmatmul.bf16.gmra.mxu0 %v258
  %v547 = vpop.f32.mrf.mxu0
  %v548 = vadd.f32 %v124, %v547
  %v549 = vpop.f32.mrf.mxu0
  %v550 = vadd.f32 %v124, %v549
  %551 = vmatmul.bf16.gmra.mxu0 %v262
  %v552 = vpop.f32.mrf.mxu0
  %v553 = vadd.f32 %v124, %v552
  %v554 = vpop.f32.mrf.mxu0
  %v555 = vadd.f32 %v124, %v554
  %556 = vmatmul.bf16.gmra.mxu0 %v266
  %v557 = vpop.f32.mrf.mxu0
  %v558 = vadd.f32 %v124, %v557
  %v559 = vpop.f32.mrf.mxu0
  %v560 = vadd.f32 %v124, %v559
  %561 = vmatmul.bf16.gmra.mxu0 %v270
  %v562 = vpop.f32.mrf.mxu0
  %v563 = vadd.f32 %v124, %v562
  %v564 = vpop.f32.mrf.mxu0
  %v565 = vadd.f32 %v124, %v564
  %566 = vmatmul.bf16.gmra.mxu0 %v274
  %v567 = vpop.f32.mrf.mxu0
  %v568 = vadd.f32 %v124, %v567
  %v569 = vpop.f32.mrf.mxu0
  %v570 = vadd.f32 %v124, %v569
  %571 = vmatmul.bf16.gmra.mxu0 %v278
  %v572 = vpop.f32.mrf.mxu0
  %v573 = vadd.f32 %v124, %v572
  %v574 = vpop.f32.mrf.mxu0
  %v575 = vadd.f32 %v124, %v574
  %576 = vmatmul.bf16.gmra.mxu0 %v282
  %v577 = vpop.f32.mrf.mxu0
  %v578 = vadd.f32 %v124, %v577
  %v579 = vpop.f32.mrf.mxu0
  %v580 = vadd.f32 %v124, %v579
  %581 = vmatmul.bf16.gmra.mxu0 %v286
  %v582 = vpop.f32.mrf.mxu0
  %v583 = vadd.f32 %v124, %v582
  %v584 = vpop.f32.mrf.mxu0
  %v585 = vadd.f32 %v124, %v584
  %586 = vmatmul.bf16.gmra.mxu0 %v290
  %v587 = vpop.f32.mrf.mxu0
  %v588 = vadd.f32 %v124, %v587
  %v589 = vpop.f32.mrf.mxu0
  %v590 = vadd.f32 %v124, %v589
  %591 = vmatmul.bf16.gmra.mxu0 %v294
  %v592 = vpop.f32.mrf.mxu0
  %v593 = vadd.f32 %v124, %v592
  %v594 = vpop.f32.mrf.mxu0
  %v595 = vadd.f32 %v124, %v594
  %596 = vmatmul.bf16.gmra.mxu0 %v298
  %v597 = vpop.f32.mrf.mxu0
  %v598 = vadd.f32 %v124, %v597
  %v599 = vpop.f32.mrf.mxu0
  %v600 = vadd.f32 %v124, %v599
  %601 = vdwg.mxu0
  %602 = vmatpush.bf16.msra.mxu0 %v489
  %603 = vmatpush.bf16.msra.mxu0 %v488
  %604 = vmatpush.bf16.msra.mxu0 %v487
  %605 = vmatpush.bf16.msra.mxu0 %v486
  %606 = vmatpush.bf16.msra.mxu0 %v485
  %607 = vmatpush.bf16.msra.mxu0 %v484
  %608 = vmatpush.bf16.msra.mxu0 %v483
  %609 = vmatpush.bf16.msra.mxu0 %v482
  %610 = vmatmul.bf16.gmra.mxu0 %v259
  %v611 = vpop.f32.mrf.mxu0
  %v612 = vadd.f32 %v548, %v611
  %v613 = vpop.f32.mrf.mxu0
  %v614 = vadd.f32 %v550, %v613
  %615 = vmatmul.bf16.gmra.mxu0 %v263
  %v616 = vpop.f32.mrf.mxu0
  %v617 = vadd.f32 %v553, %v616
  %v618 = vpop.f32.mrf.mxu0
  %v619 = vadd.f32 %v555, %v618
  %620 = vmatmul.bf16.gmra.mxu0 %v267
  %v621 = vpop.f32.mrf.mxu0
  %v622 = vadd.f32 %v558, %v621
  %v623 = vpop.f32.mrf.mxu0
  %v624 = vadd.f32 %v560, %v623
  %625 = vmatmul.bf16.gmra.mxu0 %v271
  %v626 = vpop.f32.mrf.mxu0
  %v627 = vadd.f32 %v563, %v626
  %v628 = vpop.f32.mrf.mxu0
  %v629 = vadd.f32 %v565, %v628
  %630 = vmatmul.bf16.gmra.mxu0 %v275
  %v631 = vpop.f32.mrf.mxu0
  %v632 = vadd.f32 %v568, %v631
  %v633 = vpop.f32.mrf.mxu0
  %v634 = vadd.f32 %v570, %v633
  %635 = vmatmul.bf16.gmra.mxu0 %v279
  %v636 = vpop.f32.mrf.mxu0
  %v637 = vadd.f32 %v573, %v636
  %v638 = vpop.f32.mrf.mxu0
  %v639 = vadd.f32 %v575, %v638
  %640 = vmatmul.bf16.gmra.mxu0 %v283
  %v641 = vpop.f32.mrf.mxu0
  %v642 = vadd.f32 %v578, %v641
  %v643 = vpop.f32.mrf.mxu0
  %v644 = vadd.f32 %v580, %v643
  %645 = vmatmul.bf16.gmra.mxu0 %v287
  %v646 = vpop.f32.mrf.mxu0
  %v647 = vadd.f32 %v583, %v646
  %v648 = vpop.f32.mrf.mxu0
  %v649 = vadd.f32 %v585, %v648
  %650 = vmatmul.bf16.gmra.mxu0 %v291
  %v651 = vpop.f32.mrf.mxu0
  %v652 = vadd.f32 %v588, %v651
  %v653 = vpop.f32.mrf.mxu0
  %v654 = vadd.f32 %v590, %v653
  %655 = vmatmul.bf16.gmra.mxu0 %v295
  %v656 = vpop.f32.mrf.mxu0
  %v657 = vadd.f32 %v593, %v656
  %v658 = vpop.f32.mrf.mxu0
  %v659 = vadd.f32 %v595, %v658
  %660 = vmatmul.bf16.gmra.mxu0 %v299
  %v661 = vpop.f32.mrf.mxu0
  %v662 = vadd.f32 %v598, %v661
  %v663 = vpop.f32.mrf.mxu0
  %v664 = vadd.f32 %v600, %v663
  %665 = vdwg.mxu0
  %666 = vmatpush.bf16.msra.mxu0 %v497
  %667 = vmatpush.bf16.msra.mxu0 %v496
  %668 = vmatpush.bf16.msra.mxu0 %v495
  %669 = vmatpush.bf16.msra.mxu0 %v494
  %670 = vmatpush.bf16.msra.mxu0 %v493
  %671 = vmatpush.bf16.msra.mxu0 %v492
  %672 = vmatpush.bf16.msra.mxu0 %v491
  %673 = vmatpush.bf16.msra.mxu0 %v490
  %674 = vmatmul.bf16.gmra.mxu0 %v260
  %v675 = vpop.f32.mrf.mxu0
  %v676 = vadd.f32 %v612, %v675
  %v677 = vpop.f32.mrf.mxu0
  %v678 = vadd.f32 %v614, %v677
  %679 = vmatmul.bf16.gmra.mxu0 %v264
  %v680 = vpop.f32.mrf.mxu0
  %v681 = vadd.f32 %v617, %v680
  %v682 = vpop.f32.mrf.mxu0
  %v683 = vadd.f32 %v619, %v682
  %684 = vmatmul.bf16.gmra.mxu0 %v268
  %v685 = vpop.f32.mrf.mxu0
  %v686 = vadd.f32 %v622, %v685
  %v687 = vpop.f32.mrf.mxu0
  %v688 = vadd.f32 %v624, %v687
  %689 = vmatmul.bf16.gmra.mxu0 %v272
  %v690 = vpop.f32.mrf.mxu0
  %v691 = vadd.f32 %v627, %v690
  %v692 = vpop.f32.mrf.mxu0
  %v693 = vadd.f32 %v629, %v692
  %694 = vmatmul.bf16.gmra.mxu0 %v276
  %v695 = vpop.f32.mrf.mxu0
  %v696 = vadd.f32 %v632, %v695
  %v697 = vpop.f32.mrf.mxu0
  %v698 = vadd.f32 %v634, %v697
  %699 = vmatmul.bf16.gmra.mxu0 %v280
  %v700 = vpop.f32.mrf.mxu0
  %v701 = vadd.f32 %v637, %v700
  %v702 = vpop.f32.mrf.mxu0
  %v703 = vadd.f32 %v639, %v702
  %704 = vmatmul.bf16.gmra.mxu0 %v284
  %v705 = vpop.f32.mrf.mxu0
  %v706 = vadd.f32 %v642, %v705
  %v707 = vpop.f32.mrf.mxu0
  %v708 = vadd.f32 %v644, %v707
  %709 = vmatmul.bf16.gmra.mxu0 %v288
  %v710 = vpop.f32.mrf.mxu0
  %v711 = vadd.f32 %v647, %v710
  %v712 = vpop.f32.mrf.mxu0
  %v713 = vadd.f32 %v649, %v712
  %714 = vmatmul.bf16.gmra.mxu0 %v292
  %v715 = vpop.f32.mrf.mxu0
  %v716 = vadd.f32 %v652, %v715
  %v717 = vpop.f32.mrf.mxu0
  %v718 = vadd.f32 %v654, %v717
  %719 = vmatmul.bf16.gmra.mxu0 %v296
  %v720 = vpop.f32.mrf.mxu0
  %v721 = vadd.f32 %v657, %v720
  %v722 = vpop.f32.mrf.mxu0
  %v723 = vadd.f32 %v659, %v722
  %724 = vmatmul.bf16.gmra.mxu0 %v300
  %v725 = vpop.f32.mrf.mxu0
  %v726 = vadd.f32 %v662, %v725
  %v727 = vpop.f32.mrf.mxu0
  %v728 = vadd.f32 %v664, %v727
  %729 = vdwg.mxu0
  %730 = vmatpush.bf16.msra.mxu0 %v505
  %731 = vmatpush.bf16.msra.mxu0 %v504
  %732 = vmatpush.bf16.msra.mxu0 %v503
  %733 = vmatpush.bf16.msra.mxu0 %v502
  %734 = vmatpush.bf16.msra.mxu0 %v501
  %735 = vmatpush.bf16.msra.mxu0 %v500
  %736 = vmatpush.bf16.msra.mxu0 %v499
  %737 = vmatpush.bf16.msra.mxu0 %v498
  %738 = vmatmul.bf16.gmra.mxu0 %v261
  %v739 = vpop.f32.mrf.mxu0
  %v740 = vadd.f32 %v676, %v739
  %v741 = vpop.f32.mrf.mxu0
  %v742 = vadd.f32 %v678, %v741
  %743 = vmatmul.bf16.gmra.mxu0 %v265
  %v744 = vpop.f32.mrf.mxu0
  %v745 = vadd.f32 %v681, %v744
  %v746 = vpop.f32.mrf.mxu0
  %v747 = vadd.f32 %v683, %v746
  %748 = vmatmul.bf16.gmra.mxu0 %v269
  %v749 = vpop.f32.mrf.mxu0
  %v750 = vadd.f32 %v686, %v749
  %v751 = vpop.f32.mrf.mxu0
  %v752 = vadd.f32 %v688, %v751
  %753 = vmatmul.bf16.gmra.mxu0 %v273
  %v754 = vpop.f32.mrf.mxu0
  %v755 = vadd.f32 %v691, %v754
  %v756 = vpop.f32.mrf.mxu0
  %v757 = vadd.f32 %v693, %v756
  %758 = vmatmul.bf16.gmra.mxu0 %v277
  %v759 = vpop.f32.mrf.mxu0
  %v760 = vadd.f32 %v696, %v759
  %v761 = vpop.f32.mrf.mxu0
  %v762 = vadd.f32 %v698, %v761
  %763 = vmatmul.bf16.gmra.mxu0 %v281
  %v764 = vpop.f32.mrf.mxu0
  %v765 = vadd.f32 %v701, %v764
  %v766 = vpop.f32.mrf.mxu0
  %v767 = vadd.f32 %v703, %v766
  %768 = vmatmul.bf16.gmra.mxu0 %v285
  %v769 = vpop.f32.mrf.mxu0
  %v770 = vadd.f32 %v706, %v769
  %v771 = vpop.f32.mrf.mxu0
  %v772 = vadd.f32 %v708, %v771
  %773 = vmatmul.bf16.gmra.mxu0 %v289
  %v774 = vpop.f32.mrf.mxu0
  %v775 = vadd.f32 %v711, %v774
  %v776 = vpop.f32.mrf.mxu0
  %v777 = vadd.f32 %v713, %v776
  %778 = vmatmul.bf16.gmra.mxu0 %v293
  %v779 = vpop.f32.mrf.mxu0
  %v780 = vadd.f32 %v716, %v779
  %v781 = vpop.f32.mrf.mxu0
  %v782 = vadd.f32 %v718, %v781
  %783 = vmatmul.bf16.gmra.mxu0 %v297
  %v784 = vpop.f32.mrf.mxu0
  %v785 = vadd.f32 %v721, %v784
  %v786 = vpop.f32.mrf.mxu0
  %v787 = vadd.f32 %v723, %v786
  %788 = vmatmul.bf16.gmra.mxu0 %v301
  %v789 = vpop.f32.mrf.mxu0
  %v790 = vadd.f32 %v726, %v789
  %v791 = vpop.f32.mrf.mxu0
  %v792 = vadd.f32 %v728, %v791
  %793 = vdwg.mxu0
  %v794 = vmax.f32 %v740, 0.0
  %v795 = vmax.f32 %v742, 0.0
  %v796 = vmax.f32 %v745, 0.0
  %v797 = vmax.f32 %v747, 0.0
  %v798 = vmax.f32 %v750, 0.0
  %v799 = vmax.f32 %v752, 0.0
  %v800 = vmax.f32 %v755, 0.0
  %v801 = vmax.f32 %v757, 0.0
  %v802 = vmax.f32 %v760, 0.0
  %v803 = vmax.f32 %v762, 0.0
  %v804 = vmax.f32 %v765, 0.0
  %v805 = vmax.f32 %v767, 0.0
  %v806 = vmax.f32 %v770, 0.0
  %v807 = vmax.f32 %v772, 0.0
  %v808 = vmax.f32 %v775, 0.0
  %v809 = vmax.f32 %v777, 0.0
  %v810 = vmax.f32 %v780, 0.0
  %v811 = vmax.f32 %v782, 0.0
  %v812 = vmax.f32 %v785, 0.0
  %v813 = vmax.f32 %v787, 0.0
  %v814 = vmax.f32 %v790, 0.0
  %v815 = vmax.f32 %v792, 0.0
  %v816 = vpack.c.bf16 %v794, %v794
  %v817 = vpack.c.bf16 %v795, %v795
  %v818 = vpack.c.bf16 %v796, %v796
  %v819 = vpack.c.bf16 %v797, %v797
  %v820 = vpack.c.bf16 %v798, %v798
  %v821 = vpack.c.bf16 %v799, %v799
  %v822 = vpack.c.bf16 %v800, %v800
  %v823 = vpack.c.bf16 %v801, %v801
  %v824 = vpack.c.bf16 %v802, %v802
  %v825 = vpack.c.bf16 %v803, %v803
  %v826 = vpack.c.bf16 %v804, %v804
  %v827 = vpack.c.bf16 %v805, %v805
  %v828 = vpack.c.bf16 %v806, %v806
  %v829 = vpack.c.bf16 %v807, %v807
  %v830 = vpack.c.bf16 %v808, %v808
  %v831 = vpack.c.bf16 %v809, %v809
  %v832 = vpack.c.bf16 %v810, %v810
  %v833 = vpack.c.bf16 %v811, %v811
  %v834 = vpack.c.bf16 %v812, %v812
  %v835 = vpack.c.bf16 %v813, %v813
  %v836 = vpack.c.bf16 %v814, %v814
  %v837 = vpack.c.bf16 %v815, %v815
  %838 = vst [vmem:[%s3] sm:$0xf] %v816
  %839 = vst [vmem:[%s3 + $0x4] sm:$0xf] %v817
  %840 = vst [vmem:[%s3 + $0x8] sm:$0xf] %v818
  %841 = vst [vmem:[%s3 + $0xc] sm:$0xf] %v819
  %842 = vst [vmem:[%s3 + $0x10] sm:$0xf] %v820
  %843 = vst [vmem:[%s3 + $0x14] sm:$0xf] %v821
  %844 = vst [vmem:[%s3 + $0x18] sm:$0xf] %v822
  %845 = vst [vmem:[%s3 + $0x1c] sm:$0xf] %v823
  %846 = vst [vmem:[%s3 + $0x20] sm:$0xf] %v824
  %847 = vst [vmem:[%s3 + $0x24] sm:$0xf] %v825
  %848 = vst [vmem:[%s3 + $0x28] sm:$0xf] %v826
  %849 = vst [vmem:[%s3 + $0x2c] sm:$0xf] %v827
  %850 = vst [vmem:[%s3 + $0x30] sm:$0xf] %v828
  %851 = vst [vmem:[%s3 + $0x34] sm:$0xf] %v829
  %852 = vst [vmem:[%s3 + $0x38] sm:$0xf] %v830
  %853 = vst [vmem:[%s3 + $0x3c] sm:$0xf] %v831
  %854 = vst [vmem:[%s3 + $0x40] sm:$0xf] %v832
  %855 = vst [vmem:[%s3 + $0x44] sm:$0xf] %v833
  %856 = vst [vmem:[%s3 + $0x48] sm:$0xf] %v834
  %857 = vst [vmem:[%s3 + $0x4c] sm:$0xf] %v835
  %858 = vst [vmem:[%s3 + $0x50] sm:$0xf] %v836
  %859 = vst [vmem:[%s3 + $0x54] sm:$0xf] %v837
  // Predicated region
  $region14: #{agent_forward.5} parent=0 // pred_check
    _
  $region15: #{agent_forward.5} parent=0 // pred_check_branch
    %861 = sbr.rel (0) target = $region17
  $region16: #{agent_forward.5} parent=0 // pred_region
    _
  $region17: #{agent_forward.5} parent=0 // pred_fallthru
    _
  // Predicated region
  $region18: #{agent_forward.5} parent=0 // pred_check
    _
  $region19: #{agent_forward.5} parent=0 // pred_check_branch
    %863 = sbr.rel (0) target = $region21
  $region20: #{agent_forward.5} parent=0 // pred_region
    _
  $region21: #{agent_forward.5} parent=0 // pred_fallthru
    _

// kernel: agent_forward.6
$region0: #{agent_forward.6}
  #allocation0 [shape = 'u32[]', space=smem, size = 0x4, offset = 0x4, fixed_abs, tag = 'smem constant byte address 0x4 - core index']
  #allocation1 [shape = 'u32[72,128]{1,0:T(1,128)}', space=vmem, size = 0x9000, scoped, tag = 'internal scratch']
  %s0 = inlined_call_operand.vmem [shape: bf16[112,640], index: 0, kind: input, shape index: {}]
  %s1 = inlined_call_operand.vmem [shape: bf16[640,128], index: 1, kind: input, shape index: {}]
  %s2 = inlined_call_operand.vmem [shape: f32[1,128], index: 2, kind: input, shape index: {}]
  %s3 = inlined_call_operand.vmem [shape: bf16[112,128], index: 3, kind: output, shape index: {}]
  %s4 = sld [smem:[#allocation0]]
  $region22: #{agent_forward.6} parent=0
    _
  %s6 = ssub.s32 1, %s4
  %s7 = scalar_select 0, %s6, %s4
  // Predicated region
  $region2: #{agent_forward.6} parent=0 // pred_check
    _
  $region3: #{agent_forward.6} parent=0 // pred_check_branch
    %9 = sbr.rel (0) target = $region5
  $region4: #{agent_forward.6} parent=0 // pred_region
    _
  $region5: #{agent_forward.6} parent=0 // pred_fallthru
    _
  // Predicated region
  $region6: #{agent_forward.6} parent=0 // pred_check
    _
  $region7: #{agent_forward.6} parent=0 // pred_check_branch
    %11 = sbr.rel (0) target = $region9
  $region8: #{agent_forward.6} parent=0 // pred_region
    _
  $region9: #{agent_forward.6} parent=0 // pred_fallthru
    _
  // Predicated region
  $region10: #{agent_forward.6} parent=0 // pred_check
    _
  $region11: #{agent_forward.6} parent=0 // pred_check_branch
    %13 = sbr.rel (0) target = $region13
  $region12: #{agent_forward.6} parent=0 // pred_region
    _
  $region13: #{agent_forward.6} parent=0 // pred_fallthru
    _
  %v14 = vld [vmem:[%s0] sm:$0xff]
  %v15 = vld [vmem:[%s0 + $0x8] sm:$0xff]
  %v16 = vld [vmem:[%s0 + $0x10] sm:$0xf]
  %v17 = vld [vmem:[%s0 + $0x14] sm:$0xff]
  %v18 = vld [vmem:[%s0 + $0x1c] sm:$0xff]
  %v19 = vld [vmem:[%s0 + $0x24] sm:$0xf]
  %v20 = vld [vmem:[%s0 + $0x28] sm:$0xff]
  %v21 = vld [vmem:[%s0 + $0x30] sm:$0xff]
  %v22 = vld [vmem:[%s0 + $0x38] sm:$0xf]
  %v23 = vld [vmem:[%s0 + $0x3c] sm:$0xff]
  %v24 = vld [vmem:[%s0 + $0x44] sm:$0xff]
  %v25 = vld [vmem:[%s0 + $0x4c] sm:$0xf]
  %v26 = vld [vmem:[%s0 + $0x50] sm:$0xff]
  %v27 = vld [vmem:[%s0 + $0x58] sm:$0xff]
  %v28 = vld [vmem:[%s0 + $0x60] sm:$0xf]
  %v29 = vld [vmem:[%s0 + $0x64] sm:$0xff]
  %v30 = vld [vmem:[%s0 + $0x6c] sm:$0xff]
  %v31 = vld [vmem:[%s0 + $0x74] sm:$0xf]
  %v32 = vld [vmem:[%s0 + $0x78] sm:$0xff]
  %v33 = vld [vmem:[%s0 + $0x80] sm:$0xff]
  %v34 = vld [vmem:[%s0 + $0x88] sm:$0xf]
  %v35 = vld [vmem:[%s0 + $0x8c] sm:$0xff]
  %v36 = vld [vmem:[%s0 + $0x94] sm:$0xff]
  %v37 = vld [vmem:[%s0 + $0x9c] sm:$0xf]
  %v38 = vld [vmem:[%s0 + $0xa0] sm:$0xff]
  %v39 = vld [vmem:[%s0 + $0xa8] sm:$0xff]
  %v40 = vld [vmem:[%s0 + $0xb0] sm:$0xf]
  %v41 = vld [vmem:[%s0 + $0xb4] sm:$0xff]
  %v42 = vld [vmem:[%s0 + $0xbc] sm:$0xff]
  %v43 = vld [vmem:[%s0 + $0xc4] sm:$0xf]
  %v44 = vld [vmem:[%s0 + $0xc8] sm:$0xff]
  %v45 = vld [vmem:[%s0 + $0xd0] sm:$0xff]
  %v46 = vld [vmem:[%s0 + $0xd8] sm:$0xf]
  %v47 = vld [vmem:[%s0 + $0xdc] sm:$0xff]
  %v48 = vld [vmem:[%s0 + $0xe4] sm:$0xff]
  %v49 = vld [vmem:[%s0 + $0xec] sm:$0xf]
  %v50 = vld [vmem:[%s0 + $0xf0] sm:$0xff]
  %v51 = vld [vmem:[%s0 + $0xf8] sm:$0xff]
  %v52 = vld [vmem:[%s0 + $0x100] sm:$0xf]
  %v53 = vld [vmem:[%s0 + $0x104] sm:$0xff]
  %v54 = vld [vmem:[%s0 + $0x10c] sm:$0xff]
  %v55 = vld [vmem:[%s0 + $0x114] sm:$0xf]
  %v56 = vld [vmem:[%s1] sm:$0xf]
  %v57 = vld [vmem:[%s1 + $0x4] sm:$0xf]
  %v58 = vld [vmem:[%s1 + $0x8] sm:$0xf]
  %v59 = vld [vmem:[%s1 + $0xc] sm:$0xf]
  %v60 = vld [vmem:[%s1 + $0x10] sm:$0xf]
  %v61 = vld [vmem:[%s1 + $0x14] sm:$0xf]
  %v62 = vld [vmem:[%s1 + $0x18] sm:$0xf]
  %v63 = vld [vmem:[%s1 + $0x1c] sm:$0xf]
  %v64 = vld [vmem:[%s1 + $0x20] sm:$0xf]
  %v65 = vld [vmem:[%s1 + $0x24] sm:$0xf]
  %v66 = vld [vmem:[%s1 + $0x28] sm:$0xf]
  %v67 = vld [vmem:[%s1 + $0x2c] sm:$0xf]
  %v68 = vld [vmem:[%s1 + $0x30] sm:$0xf]
  %v69 = vld [vmem:[%s1 + $0x34] sm:$0xf]
  %v70 = vld [vmem:[%s1 + $0x38] sm:$0xf]
  %v71 = vld [vmem:[%s1 + $0x3c] sm:$0xf]
  %v72 = vld [vmem:[%s1 + $0x40] sm:$0xf]
  %v73 = vld [vmem:[%s1 + $0x44] sm:$0xf]
  %v74 = vld [vmem:[%s1 + $0x48] sm:$0xf]
  %v75 = vld [vmem:[%s1 + $0x4c] sm:$0xf]
  %v76 = vld [vmem:[%s1 + $0x50] sm:$0xf]
  %v77 = vld [vmem:[%s1 + $0x54] sm:$0xf]
  %v78 = vld [vmem:[%s1 + $0x58] sm:$0xf]
  %v79 = vld [vmem:[%s1 + $0x5c] sm:$0xf]
  %v80 = vld [vmem:[%s1 + $0x60] sm:$0xf]
  %v81 = vld [vmem:[%s1 + $0x64] sm:$0xf]
  %v82 = vld [vmem:[%s1 + $0x68] sm:$0xf]
  %v83 = vld [vmem:[%s1 + $0x6c] sm:$0xf]
  %v84 = vld [vmem:[%s1 + $0x70] sm:$0xf]
  %v85 = vld [vmem:[%s1 + $0x74] sm:$0xf]
  %v86 = vld [vmem:[%s1 + $0x78] sm:$0xf]
  %v87 = vld [vmem:[%s1 + $0x7c] sm:$0xf]
  %v88 = vld [vmem:[%s1 + $0x80] sm:$0xf]
  %v89 = vld [vmem:[%s1 + $0x84] sm:$0xf]
  %v90 = vld [vmem:[%s1 + $0x88] sm:$0xf]
  %v91 = vld [vmem:[%s1 + $0x8c] sm:$0xf]
  %v92 = vld [vmem:[%s1 + $0x90] sm:$0xf]
  %v93 = vld [vmem:[%s1 + $0x94] sm:$0xf]
  %v94 = vld [vmem:[%s1 + $0x98] sm:$0xf]
  %v95 = vld [vmem:[%s1 + $0x9c] sm:$0xf]
  %v96 = vld [vmem:[%s1 + $0xa0] sm:$0xf]
  %v97 = vld [vmem:[%s1 + $0xa4] sm:$0xf]
  %v98 = vld [vmem:[%s1 + $0xa8] sm:$0xf]
  %v99 = vld [vmem:[%s1 + $0xac] sm:$0xf]
  %v100 = vld [vmem:[%s1 + $0xb0] sm:$0xf]
  %v101 = vld [vmem:[%s1 + $0xb4] sm:$0xf]
  %v102 = vld [vmem:[%s1 + $0xb8] sm:$0xf]
  %v103 = vld [vmem:[%s1 + $0xbc] sm:$0xf]
  %v104 = vld [vmem:[%s1 + $0xc0] sm:$0xf]
  %v105 = vld [vmem:[%s1 + $0xc4] sm:$0xf]
  %v106 = vld [vmem:[%s1 + $0xc8] sm:$0xf]
  %v107 = vld [vmem:[%s1 + $0xcc] sm:$0xf]
  %v108 = vld [vmem:[%s1 + $0xd0] sm:$0xf]
  %v109 = vld [vmem:[%s1 + $0xd4] sm:$0xf]
  %v110 = vld [vmem:[%s1 + $0xd8] sm:$0xf]
  %v111 = vld [vmem:[%s1 + $0xdc] sm:$0xf]
  %v112 = vld [vmem:[%s1 + $0xe0] sm:$0xf]
  %v113 = vld [vmem:[%s1 + $0xe4] sm:$0xf]
  %v114 = vld [vmem:[%s1 + $0xe8] sm:$0xf]
  %v115 = vld [vmem:[%s1 + $0xec] sm:$0xf]
  %v116 = vld [vmem:[%s1 + $0xf0] sm:$0xf]
  %v117 = vld [vmem:[%s1 + $0xf4] sm:$0xf]
  %v118 = vld [vmem:[%s1 + $0xf8] sm:$0xf]
  %v119 = vld [vmem:[%s1 + $0xfc] sm:$0xf]
  %v120 = vld [vmem:[%s1 + $0x100] sm:$0xf]
  %v121 = vld [vmem:[%s1 + $0x104] sm:$0xf]
  %v122 = vld [vmem:[%s1 + $0x108] sm:$0xf]
  %v123 = vld [vmem:[%s1 + $0x10c] sm:$0xf]
  %v124 = vld [vmem:[%s1 + $0x110] sm:$0xf]
  %v125 = vld [vmem:[%s1 + $0x114] sm:$0xf]
  %v126 = vld [vmem:[%s1 + $0x118] sm:$0xf]
  %v127 = vld [vmem:[%s1 + $0x11c] sm:$0xf]
  %v128 = vld [vmem:[%s1 + $0x120] sm:$0xf]
  %v129 = vld [vmem:[%s1 + $0x124] sm:$0xf]
  %v130 = vld [vmem:[%s1 + $0x128] sm:$0xf]
  %v131 = vld [vmem:[%s1 + $0x12c] sm:$0xf]
  %v132 = vld [vmem:[%s1 + $0x130] sm:$0xf]
  %v133 = vld [vmem:[%s1 + $0x134] sm:$0xf]
  %v134 = vld [vmem:[%s1 + $0x138] sm:$0xf]
  %v135 = vld [vmem:[%s1 + $0x13c] sm:$0xf]
  %v136 = vld [vmem:[%s2] sm:$0x1]
  %v138 = vperm.slane %v136, 0
  %v182 = vunpack.c.l.b16 %v14
  %v183 = vunpack.c.h.b16 %v14
  %v184 = vunpack.c.l.b16 %v15
  %v185 = vunpack.c.h.b16 %v15
  %v186 = vunpack.c.l.b16 %v16
  %v187 = vunpack.c.l.b16 %v17
  %v188 = vunpack.c.h.b16 %v17
  %v189 = vunpack.c.l.b16 %v18
  %v190 = vunpack.c.h.b16 %v18
  %v191 = vunpack.c.l.b16 %v19
  %v192 = vunpack.c.l.b16 %v20
  %v193 = vunpack.c.h.b16 %v20
  %v194 = vunpack.c.l.b16 %v21
  %v195 = vunpack.c.h.b16 %v21
  %v196 = vunpack.c.l.b16 %v22
  %v197 = vunpack.c.l.b16 %v23
  %v198 = vunpack.c.h.b16 %v23
  %v199 = vunpack.c.l.b16 %v24
  %v200 = vunpack.c.h.b16 %v24
  %v201 = vunpack.c.l.b16 %v25
  %v202 = vunpack.c.l.b16 %v26
  %v203 = vunpack.c.h.b16 %v26
  %v204 = vunpack.c.l.b16 %v27
  %v205 = vunpack.c.h.b16 %v27
  %v206 = vunpack.c.l.b16 %v28
  %v207 = vunpack.c.l.b16 %v29
  %v208 = vunpack.c.h.b16 %v29
  %v209 = vunpack.c.l.b16 %v30
  %v210 = vunpack.c.h.b16 %v30
  %v211 = vunpack.c.l.b16 %v31
  %v212 = vunpack.c.l.b16 %v32
  %v213 = vunpack.c.h.b16 %v32
  %v214 = vunpack.c.l.b16 %v33
  %v215 = vunpack.c.h.b16 %v33
  %v216 = vunpack.c.l.b16 %v34
  %v217 = vunpack.c.l.b16 %v35
  %v218 = vunpack.c.h.b16 %v35
  %v219 = vunpack.c.l.b16 %v36
  %v220 = vunpack.c.h.b16 %v36
  %v221 = vunpack.c.l.b16 %v37
  %v222 = vunpack.c.l.b16 %v38
  %v223 = vunpack.c.h.b16 %v38
  %v224 = vunpack.c.l.b16 %v39
  %v225 = vunpack.c.h.b16 %v39
  %v226 = vunpack.c.l.b16 %v40
  %v227 = vunpack.c.l.b16 %v41
  %v228 = vunpack.c.h.b16 %v41
  %v229 = vunpack.c.l.b16 %v42
  %v230 = vunpack.c.h.b16 %v42
  %v231 = vunpack.c.l.b16 %v43
  %v232 = vunpack.c.l.b16 %v44
  %v233 = vunpack.c.h.b16 %v44
  %v234 = vunpack.c.l.b16 %v45
  %v235 = vunpack.c.h.b16 %v45
  %v236 = vunpack.c.l.b16 %v46
  %v237 = vunpack.c.l.b16 %v47
  %v238 = vunpack.c.h.b16 %v47
  %v239 = vunpack.c.l.b16 %v48
  %v240 = vunpack.c.h.b16 %v48
  %v241 = vunpack.c.l.b16 %v49
  %v242 = vunpack.c.l.b16 %v50
  %v243 = vunpack.c.h.b16 %v50
  %v244 = vunpack.c.l.b16 %v51
  %v245 = vunpack.c.h.b16 %v51
  %v246 = vunpack.c.l.b16 %v52
  %v247 = vunpack.c.l.b16 %v53
  %v248 = vunpack.c.h.b16 %v53
  %v249 = vunpack.c.l.b16 %v54
  %v250 = vunpack.c.h.b16 %v54
  %v251 = vunpack.c.l.b16 %v55
  %v252 = vpack.c.b16 %v187, %v182
  %v253 = vpack.c.b16 %v188, %v183
  %v254 = vpack.c.b16 %v189, %v184
  %v255 = vpack.c.b16 %v190, %v185
  %v256 = vpack.c.b16 %v191, %v186
  %v257 = vpack.c.b16 %v197, %v192
  %v258 = vpack.c.b16 %v198, %v193
  %v259 = vpack.c.b16 %v199, %v194
  %v260 = vpack.c.b16 %v200, %v195
  %v261 = vpack.c.b16 %v201, %v196
  %v262 = vpack.c.b16 %v207, %v202
  %v263 = vpack.c.b16 %v208, %v203
  %v264 = vpack.c.b16 %v209, %v204
  %v265 = vpack.c.b16 %v210, %v205
  %v266 = vpack.c.b16 %v211, %v206
  %v267 = vpack.c.b16 %v217, %v212
  %v268 = vpack.c.b16 %v218, %v213
  %v269 = vpack.c.b16 %v219, %v214
  %v270 = vpack.c.b16 %v220, %v215
  %v271 = vpack.c.b16 %v221, %v216
  %v272 = vpack.c.b16 %v227, %v222
  %v273 = vpack.c.b16 %v228, %v223
  %v274 = vpack.c.b16 %v229, %v224
  %v275 = vpack.c.b16 %v230, %v225
  %v276 = vpack.c.b16 %v231, %v226
  %v277 = vpack.c.b16 %v237, %v232
  %v278 = vpack.c.b16 %v238, %v233
  %v279 = vpack.c.b16 %v239, %v234
  %v280 = vpack.c.b16 %v240, %v235
  %v281 = vpack.c.b16 %v241, %v236
  %v282 = vpack.c.b16 %v247, %v242
  %v283 = vpack.c.b16 %v248, %v243
  %v284 = vpack.c.b16 %v249, %v244
  %v285 = vpack.c.b16 %v250, %v245
  %v286 = vpack.c.b16 %v251, %v246
  %v402 = vunpack.c.l.b16 %v56
  %v403 = vunpack.c.l.b16 %v57
  %v404 = vunpack.c.l.b16 %v58
  %v405 = vunpack.c.l.b16 %v59
  %v406 = vunpack.c.l.b16 %v60
  %v407 = vunpack.c.l.b16 %v61
  %v408 = vunpack.c.l.b16 %v62
  %v409 = vunpack.c.l.b16 %v63
  %v410 = vunpack.c.l.b16 %v64
  %v411 = vunpack.c.l.b16 %v65
  %v412 = vunpack.c.l.b16 %v66
  %v413 = vunpack.c.l.b16 %v67
  %v414 = vunpack.c.l.b16 %v68
  %v415 = vunpack.c.l.b16 %v69
  %v416 = vunpack.c.l.b16 %v70
  %v417 = vunpack.c.l.b16 %v71
  %v418 = vunpack.c.l.b16 %v72
  %v419 = vunpack.c.l.b16 %v73
  %v420 = vunpack.c.l.b16 %v74
  %v421 = vunpack.c.l.b16 %v75
  %v422 = vunpack.c.l.b16 %v76
  %v423 = vunpack.c.l.b16 %v77
  %v424 = vunpack.c.l.b16 %v78
  %v425 = vunpack.c.l.b16 %v79
  %v426 = vunpack.c.l.b16 %v80
  %v427 = vunpack.c.l.b16 %v81
  %v428 = vunpack.c.l.b16 %v82
  %v429 = vunpack.c.l.b16 %v83
  %v430 = vunpack.c.l.b16 %v84
  %v431 = vunpack.c.l.b16 %v85
  %v432 = vunpack.c.l.b16 %v86
  %v433 = vunpack.c.l.b16 %v87
  %v434 = vunpack.c.l.b16 %v88
  %v435 = vunpack.c.l.b16 %v89
  %v436 = vunpack.c.l.b16 %v90
  %v437 = vunpack.c.l.b16 %v91
  %v438 = vunpack.c.l.b16 %v92
  %v439 = vunpack.c.l.b16 %v93
  %v440 = vunpack.c.l.b16 %v94
  %v441 = vunpack.c.l.b16 %v95
  %v442 = vunpack.c.l.b16 %v96
  %v443 = vunpack.c.l.b16 %v97
  %v444 = vunpack.c.l.b16 %v98
  %v445 = vunpack.c.l.b16 %v99
  %v446 = vunpack.c.l.b16 %v100
  %v447 = vunpack.c.l.b16 %v101
  %v448 = vunpack.c.l.b16 %v102
  %v449 = vunpack.c.l.b16 %v103
  %v450 = vunpack.c.l.b16 %v104
  %v451 = vunpack.c.l.b16 %v105
  %v452 = vunpack.c.l.b16 %v106
  %v453 = vunpack.c.l.b16 %v107
  %v454 = vunpack.c.l.b16 %v108
  %v455 = vunpack.c.l.b16 %v109
  %v456 = vunpack.c.l.b16 %v110
  %v457 = vunpack.c.l.b16 %v111
  %v458 = vunpack.c.l.b16 %v112
  %v459 = vunpack.c.l.b16 %v113
  %v460 = vunpack.c.l.b16 %v114
  %v461 = vunpack.c.l.b16 %v115
  %v462 = vunpack.c.l.b16 %v116
  %v463 = vunpack.c.l.b16 %v117
  %v464 = vunpack.c.l.b16 %v118
  %v465 = vunpack.c.l.b16 %v119
  %v466 = vunpack.c.l.b16 %v120
  %v467 = vunpack.c.l.b16 %v121
  %v468 = vunpack.c.l.b16 %v122
  %v469 = vunpack.c.l.b16 %v123
  %v470 = vunpack.c.l.b16 %v124
  %v471 = vunpack.c.l.b16 %v125
  %v472 = vunpack.c.l.b16 %v126
  %v473 = vunpack.c.l.b16 %v127
  %v474 = vunpack.c.l.b16 %v128
  %v475 = vunpack.c.l.b16 %v129
  %v476 = vunpack.c.l.b16 %v130
  %v477 = vunpack.c.l.b16 %v131
  %v478 = vunpack.c.l.b16 %v132
  %v479 = vunpack.c.l.b16 %v133
  %v480 = vunpack.c.l.b16 %v134
  %v481 = vunpack.c.l.b16 %v135
  %v482 = vpack.c.b16 %v403, %v402
  %v483 = vpack.c.b16 %v405, %v404
  %v484 = vpack.c.b16 %v407, %v406
  %v485 = vpack.c.b16 %v409, %v408
  %v486 = vpack.c.b16 %v411, %v410
  %v487 = vpack.c.b16 %v413, %v412
  %v488 = vpack.c.b16 %v415, %v414
  %v489 = vpack.c.b16 %v417, %v416
  %v490 = vpack.c.b16 %v419, %v418
  %v491 = vpack.c.b16 %v421, %v420
  %v492 = vpack.c.b16 %v423, %v422
  %v493 = vpack.c.b16 %v425, %v424
  %v494 = vpack.c.b16 %v427, %v426
  %v495 = vpack.c.b16 %v429, %v428
  %v496 = vpack.c.b16 %v431, %v430
  %v497 = vpack.c.b16 %v433, %v432
  %v498 = vpack.c.b16 %v435, %v434
  %v499 = vpack.c.b16 %v437, %v436
  %v500 = vpack.c.b16 %v439, %v438
  %v501 = vpack.c.b16 %v441, %v440
  %v502 = vpack.c.b16 %v443, %v442
  %v503 = vpack.c.b16 %v445, %v444
  %v504 = vpack.c.b16 %v447, %v446
  %v505 = vpack.c.b16 %v449, %v448
  %v506 = vpack.c.b16 %v451, %v450
  %v507 = vpack.c.b16 %v453, %v452
  %v508 = vpack.c.b16 %v455, %v454
  %v509 = vpack.c.b16 %v457, %v456
  %v510 = vpack.c.b16 %v459, %v458
  %v511 = vpack.c.b16 %v461, %v460
  %v512 = vpack.c.b16 %v463, %v462
  %v513 = vpack.c.b16 %v465, %v464
  %v514 = vpack.c.b16 %v467, %v466
  %v515 = vpack.c.b16 %v469, %v468
  %v516 = vpack.c.b16 %v471, %v470
  %v517 = vpack.c.b16 %v473, %v472
  %v518 = vpack.c.b16 %v475, %v474
  %v519 = vpack.c.b16 %v477, %v476
  %v520 = vpack.c.b16 %v479, %v478
  %v521 = vpack.c.b16 %v481, %v480
  %562 = vmatpush.bf16.msra.mxu0 %v489
  %563 = vmatpush.bf16.msra.mxu0 %v488
  %564 = vmatpush.bf16.msra.mxu0 %v487
  %565 = vmatpush.bf16.msra.mxu0 %v486
  %566 = vmatpush.bf16.msra.mxu0 %v485
  %567 = vmatpush.bf16.msra.mxu0 %v484
  %568 = vmatpush.bf16.msra.mxu0 %v483
  %569 = vmatpush.bf16.msra.mxu0 %v482
  %570 = vmatmul.bf16.gmra.mxu0 %v252
  %v571 = vpop.f32.mrf.mxu0
  %v572 = vadd.f32 %v138, %v571
  %v573 = vpop.f32.mrf.mxu0
  %v574 = vadd.f32 %v138, %v573
  %575 = vmatmul.bf16.gmra.mxu0 %v257
  %v576 = vpop.f32.mrf.mxu0
  %v577 = vadd.f32 %v138, %v576
  %v578 = vpop.f32.mrf.mxu0
  %v579 = vadd.f32 %v138, %v578
  %580 = vmatmul.bf16.gmra.mxu0 %v262
  %v581 = vpop.f32.mrf.mxu0
  %v582 = vadd.f32 %v138, %v581
  %v583 = vpop.f32.mrf.mxu0
  %v584 = vadd.f32 %v138, %v583
  %585 = vmatmul.bf16.gmra.mxu0 %v267
  %v586 = vpop.f32.mrf.mxu0
  %v587 = vadd.f32 %v138, %v586
  %v588 = vpop.f32.mrf.mxu0
  %v589 = vadd.f32 %v138, %v588
  %590 = vmatmul.bf16.gmra.mxu0 %v272
  %v591 = vpop.f32.mrf.mxu0
  %v592 = vadd.f32 %v138, %v591
  %v593 = vpop.f32.mrf.mxu0
  %v594 = vadd.f32 %v138, %v593
  %595 = vmatmul.bf16.gmra.mxu0 %v277
  %v596 = vpop.f32.mrf.mxu0
  %v597 = vadd.f32 %v138, %v596
  %v598 = vpop.f32.mrf.mxu0
  %v599 = vadd.f32 %v138, %v598
  %600 = vmatmul.bf16.gmra.mxu0 %v282
  %v601 = vpop.f32.mrf.mxu0
  %v602 = vadd.f32 %v138, %v601
  %v603 = vpop.f32.mrf.mxu0
  %v604 = vadd.f32 %v138, %v603
  %605 = vdwg.mxu0
  %606 = vmatpush.bf16.msra.mxu0 %v497
  %607 = vmatpush.bf16.msra.mxu0 %v496
  %608 = vmatpush.bf16.msra.mxu0 %v495
  %609 = vmatpush.bf16.msra.mxu0 %v494
  %610 = vmatpush.bf16.msra.mxu0 %v493
  %611 = vmatpush.bf16.msra.mxu0 %v492
  %612 = vmatpush.bf16.msra.mxu0 %v491
  %613 = vmatpush.bf16.msra.mxu0 %v490
  %614 = vmatmul.bf16.gmra.mxu0 %v253
  %v615 = vpop.f32.mrf.mxu0
  %v616 = vadd.f32 %v572, %v615
  %v617 = vpop.f32.mrf.mxu0
  %v618 = vadd.f32 %v574, %v617
  %619 = vmatmul.bf16.gmra.mxu0 %v258
  %v620 = vpop.f32.mrf.mxu0
  %v621 = vadd.f32 %v577, %v620
  %v622 = vpop.f32.mrf.mxu0
  %v623 = vadd.f32 %v579, %v622
  %624 = vmatmul.bf16.gmra.mxu0 %v263
  %v625 = vpop.f32.mrf.mxu0
  %v626 = vadd.f32 %v582, %v625
  %v627 = vpop.f32.mrf.mxu0
  %v628 = vadd.f32 %v584, %v627
  %629 = vmatmul.bf16.gmra.mxu0 %v268
  %v630 = vpop.f32.mrf.mxu0
  %v631 = vadd.f32 %v587, %v630
  %v632 = vpop.f32.mrf.mxu0
  %v633 = vadd.f32 %v589, %v632
  %634 = vmatmul.bf16.gmra.mxu0 %v273
  %v635 = vpop.f32.mrf.mxu0
  %v636 = vadd.f32 %v592, %v635
  %v637 = vpop.f32.mrf.mxu0
  %v638 = vadd.f32 %v594, %v637
  %639 = vmatmul.bf16.gmra.mxu0 %v278
  %v640 = vpop.f32.mrf.mxu0
  %v641 = vadd.f32 %v597, %v640
  %v642 = vpop.f32.mrf.mxu0
  %v643 = vadd.f32 %v599, %v642
  %644 = vmatmul.bf16.gmra.mxu0 %v283
  %v645 = vpop.f32.mrf.mxu0
  %v646 = vadd.f32 %v602, %v645
  %v647 = vpop.f32.mrf.mxu0
  %v648 = vadd.f32 %v604, %v647
  %649 = vdwg.mxu0
  %650 = vmatpush.bf16.msra.mxu0 %v505
  %651 = vmatpush.bf16.msra.mxu0 %v504
  %652 = vmatpush.bf16.msra.mxu0 %v503
  %653 = vmatpush.bf16.msra.mxu0 %v502
  %654 = vmatpush.bf16.msra.mxu0 %v501
  %655 = vmatpush.bf16.msra.mxu0 %v500
  %656 = vmatpush.bf16.msra.mxu0 %v499
  %657 = vmatpush.bf16.msra.mxu0 %v498
  %658 = vmatmul.bf16.gmra.mxu0 %v254
  %v659 = vpop.f32.mrf.mxu0
  %v660 = vadd.f32 %v616, %v659
  %v661 = vpop.f32.mrf.mxu0
  %v662 = vadd.f32 %v618, %v661
  %663 = vmatmul.bf16.gmra.mxu0 %v259
  %v664 = vpop.f32.mrf.mxu0
  %v665 = vadd.f32 %v621, %v664
  %v666 = vpop.f32.mrf.mxu0
  %v667 = vadd.f32 %v623, %v666
  %668 = vmatmul.bf16.gmra.mxu0 %v264
  %v669 = vpop.f32.mrf.mxu0
  %v670 = vadd.f32 %v626, %v669
  %v671 = vpop.f32.mrf.mxu0
  %v672 = vadd.f32 %v628, %v671
  %673 = vmatmul.bf16.gmra.mxu0 %v269
  %v674 = vpop.f32.mrf.mxu0
  %v675 = vadd.f32 %v631, %v674
  %v676 = vpop.f32.mrf.mxu0
  %v677 = vadd.f32 %v633, %v676
  %678 = vmatmul.bf16.gmra.mxu0 %v274
  %v679 = vpop.f32.mrf.mxu0
  %v680 = vadd.f32 %v636, %v679
  %v681 = vpop.f32.mrf.mxu0
  %v682 = vadd.f32 %v638, %v681
  %683 = vmatmul.bf16.gmra.mxu0 %v279
  %v684 = vpop.f32.mrf.mxu0
  %v685 = vadd.f32 %v641, %v684
  %v686 = vpop.f32.mrf.mxu0
  %v687 = vadd.f32 %v643, %v686
  %688 = vmatmul.bf16.gmra.mxu0 %v284
  %v689 = vpop.f32.mrf.mxu0
  %v690 = vadd.f32 %v646, %v689
  %v691 = vpop.f32.mrf.mxu0
  %v692 = vadd.f32 %v648, %v691
  %693 = vdwg.mxu0
  %694 = vmatpush.bf16.msra.mxu0 %v513
  %695 = vmatpush.bf16.msra.mxu0 %v512
  %696 = vmatpush.bf16.msra.mxu0 %v511
  %697 = vmatpush.bf16.msra.mxu0 %v510
  %698 = vmatpush.bf16.msra.mxu0 %v509
  %699 = vmatpush.bf16.msra.mxu0 %v508
  %700 = vmatpush.bf16.msra.mxu0 %v507
  %701 = vmatpush.bf16.msra.mxu0 %v506
  %702 = vmatmul.bf16.gmra.mxu0 %v255
  %v703 = vpop.f32.mrf.mxu0
  %v704 = vadd.f32 %v660, %v703
  %v705 = vpop.f32.mrf.mxu0
  %v706 = vadd.f32 %v662, %v705
  %707 = vmatmul.bf16.gmra.mxu0 %v260
  %v708 = vpop.f32.mrf.mxu0
  %v709 = vadd.f32 %v665, %v708
  %v710 = vpop.f32.mrf.mxu0
  %v711 = vadd.f32 %v667, %v710
  %712 = vmatmul.bf16.gmra.mxu0 %v265
  %v713 = vpop.f32.mrf.mxu0
  %v714 = vadd.f32 %v670, %v713
  %v715 = vpop.f32.mrf.mxu0
  %v716 = vadd.f32 %v672, %v715
  %717 = vmatmul.bf16.gmra.mxu0 %v270
  %v718 = vpop.f32.mrf.mxu0
  %v719 = vadd.f32 %v675, %v718
  %v720 = vpop.f32.mrf.mxu0
  %v721 = vadd.f32 %v677, %v720
  %722 = vmatmul.bf16.gmra.mxu0 %v275
  %v723 = vpop.f32.mrf.mxu0
  %v724 = vadd.f32 %v680, %v723
  %v725 = vpop.f32.mrf.mxu0
  %v726 = vadd.f32 %v682, %v725
  %727 = vmatmul.bf16.gmra.mxu0 %v280
  %v728 = vpop.f32.mrf.mxu0
  %v729 = vadd.f32 %v685, %v728
  %v730 = vpop.f32.mrf.mxu0
  %v731 = vadd.f32 %v687, %v730
  %732 = vmatmul.bf16.gmra.mxu0 %v285
  %v733 = vpop.f32.mrf.mxu0
  %v734 = vadd.f32 %v690, %v733
  %v735 = vpop.f32.mrf.mxu0
  %v736 = vadd.f32 %v692, %v735
  %737 = vdwg.mxu0
  %738 = vmatpush.bf16.msra.mxu0 %v521
  %739 = vmatpush.bf16.msra.mxu0 %v520
  %740 = vmatpush.bf16.msra.mxu0 %v519
  %741 = vmatpush.bf16.msra.mxu0 %v518
  %742 = vmatpush.bf16.msra.mxu0 %v517
  %743 = vmatpush.bf16.msra.mxu0 %v516
  %744 = vmatpush.bf16.msra.mxu0 %v515
  %745 = vmatpush.bf16.msra.mxu0 %v514
  %746 = vmatmul.bf16.gmra.mxu0 %v256
  %v747 = vpop.f32.mrf.mxu0
  %v748 = vadd.f32 %v704, %v747
  %v749 = vpop.f32.mrf.mxu0
  %v750 = vadd.f32 %v706, %v749
  %751 = vmatmul.bf16.gmra.mxu0 %v261
  %v752 = vpop.f32.mrf.mxu0
  %v753 = vadd.f32 %v709, %v752
  %v754 = vpop.f32.mrf.mxu0
  %v755 = vadd.f32 %v711, %v754
  %756 = vmatmul.bf16.gmra.mxu0 %v266
  %v757 = vpop.f32.mrf.mxu0
  %v758 = vadd.f32 %v714, %v757
  %v759 = vpop.f32.mrf.mxu0
  %v760 = vadd.f32 %v716, %v759
  %761 = vmatmul.bf16.gmra.mxu0 %v271
  %v762 = vpop.f32.mrf.mxu0
  %v763 = vadd.f32 %v719, %v762
  %v764 = vpop.f32.mrf.mxu0
  %v765 = vadd.f32 %v721, %v764
  %766 = vmatmul.bf16.gmra.mxu0 %v276
  %v767 = vpop.f32.mrf.mxu0
  %v768 = vadd.f32 %v724, %v767
  %v769 = vpop.f32.mrf.mxu0
  %v770 = vadd.f32 %v726, %v769
  %771 = vmatmul.bf16.gmra.mxu0 %v281
  %v772 = vpop.f32.mrf.mxu0
  %v773 = vadd.f32 %v729, %v772
  %v774 = vpop.f32.mrf.mxu0
  %v775 = vadd.f32 %v731, %v774
  %776 = vmatmul.bf16.gmra.mxu0 %v286
  %v777 = vpop.f32.mrf.mxu0
  %v778 = vadd.f32 %v734, %v777
  %v779 = vpop.f32.mrf.mxu0
  %v780 = vadd.f32 %v736, %v779
  %781 = vdwg.mxu0
  %v782 = vmax.f32 %v748, 0.0
  %v783 = vmax.f32 %v750, 0.0
  %v784 = vmax.f32 %v753, 0.0
  %v785 = vmax.f32 %v755, 0.0
  %v786 = vmax.f32 %v758, 0.0
  %v787 = vmax.f32 %v760, 0.0
  %v788 = vmax.f32 %v763, 0.0
  %v789 = vmax.f32 %v765, 0.0
  %v790 = vmax.f32 %v768, 0.0
  %v791 = vmax.f32 %v770, 0.0
  %v792 = vmax.f32 %v773, 0.0
  %v793 = vmax.f32 %v775, 0.0
  %v794 = vmax.f32 %v778, 0.0
  %v795 = vmax.f32 %v780, 0.0
  %v796 = vpack.c.bf16 %v782, %v782
  %v797 = vpack.c.bf16 %v783, %v783
  %v798 = vpack.c.bf16 %v784, %v784
  %v799 = vpack.c.bf16 %v785, %v785
  %v800 = vpack.c.bf16 %v786, %v786
  %v801 = vpack.c.bf16 %v787, %v787
  %v802 = vpack.c.bf16 %v788, %v788
  %v803 = vpack.c.bf16 %v789, %v789
  %v804 = vpack.c.bf16 %v790, %v790
  %v805 = vpack.c.bf16 %v791, %v791
  %v806 = vpack.c.bf16 %v792, %v792
  %v807 = vpack.c.bf16 %v793, %v793
  %v808 = vpack.c.bf16 %v794, %v794
  %v809 = vpack.c.bf16 %v795, %v795
  %810 = vst [vmem:[%s3] sm:$0xf] %v796
  %811 = vst [vmem:[%s3 + $0x4] sm:$0xf] %v797
  %812 = vst [vmem:[%s3 + $0x8] sm:$0xf] %v798
  %813 = vst [vmem:[%s3 + $0xc] sm:$0xf] %v799
  %814 = vst [vmem:[%s3 + $0x10] sm:$0xf] %v800
  %815 = vst [vmem:[%s3 + $0x14] sm:$0xf] %v801
  %816 = vst [vmem:[%s3 + $0x18] sm:$0xf] %v802
  %817 = vst [vmem:[%s3 + $0x1c] sm:$0xf] %v803
  %818 = vst [vmem:[%s3 + $0x20] sm:$0xf] %v804
  %819 = vst [vmem:[%s3 + $0x24] sm:$0xf] %v805
  %820 = vst [vmem:[%s3 + $0x28] sm:$0xf] %v806
  %821 = vst [vmem:[%s3 + $0x2c] sm:$0xf] %v807
  %822 = vst [vmem:[%s3 + $0x30] sm:$0xf] %v808
  %823 = vst [vmem:[%s3 + $0x34] sm:$0xf] %v809
  // Predicated region
  $region14: #{agent_forward.6} parent=0 // pred_check
    _
  $region15: #{agent_forward.6} parent=0 // pred_check_branch
    %825 = sbr.rel (0) target = $region17
  $region16: #{agent_forward.6} parent=0 // pred_region
    _
  $region17: #{agent_forward.6} parent=0 // pred_fallthru
    _
  // Predicated region
  $region18: #{agent_forward.6} parent=0 // pred_check
    _
  $region19: #{agent_forward.6} parent=0 // pred_check_branch
    %827 = sbr.rel (0) target = $region21
  $region20: #{agent_forward.6} parent=0 // pred_region
    _
  $region21: #{agent_forward.6} parent=0 // pred_fallthru
    _

// kernel: agent_forward.7
$region0: #{agent_forward.7}
  #allocation0 [shape = 'u32[]', space=smem, size = 0x4, offset = 0x4, fixed_abs, tag = 'smem constant byte address 0x4 - core index']
  #allocation1 [shape = 'u32[72,128]{1,0:T(1,128)}', space=vmem, size = 0x9000, scoped, tag = 'internal scratch']
  %s0 = inlined_call_operand.vmem [shape: bf16[16,3200], index: 0, kind: input, shape index: {}]
  %s1 = inlined_call_operand.vmem [shape: s8[3200,512], index: 1, kind: input, shape index: {}]
  %s2 = inlined_call_operand.vmem [shape: f32[1,512], index: 2, kind: input, shape index: {}]
  %s3 = inlined_call_operand.vmem [shape: f32[1,512], index: 3, kind: input, shape index: {}]
  %s4 = inlined_call_operand.vmem [shape: bf16[512,128], index: 4, kind: input, shape index: {}]
  %s5 = inlined_call_operand.vmem [shape: f32[1,128], index: 5, kind: input, shape index: {}]
  %s6 = inlined_call_operand.vmem [shape: f32[16,128], index: 6, kind: output, shape index: {}]
  %s7 = sld [smem:[#allocation0]]
  $region34: #{agent_forward.7} parent=0
    _
  %s9 = ssub.s32 1, %s7
  %s10 = scalar_select 0, %s9, %s7
  // Predicated region
  $region2: #{agent_forward.7} parent=0 // pred_check
    _
  $region3: #{agent_forward.7} parent=0 // pred_check_branch
    %12 = sbr.rel (0) target = $region5
  $region4: #{agent_forward.7} parent=0 // pred_region
    _
  $region5: #{agent_forward.7} parent=0 // pred_fallthru
    _
  // Predicated region
  $region6: #{agent_forward.7} parent=0 // pred_check
    _
  $region7: #{agent_forward.7} parent=0 // pred_check_branch
    %14 = sbr.rel (0) target = $region9
  $region8: #{agent_forward.7} parent=0 // pred_region
    _
  $region9: #{agent_forward.7} parent=0 // pred_fallthru
    _
  // Predicated region
  $region10: #{agent_forward.7} parent=0 // pred_check
    _
  $region11: #{agent_forward.7} parent=0 // pred_check_branch
    %16 = sbr.rel (0) target = $region13
  $region12: #{agent_forward.7} parent=0 // pred_region
    _
  $region13: #{agent_forward.7} parent=0 // pred_fallthru
    _
  // Predicated region
  $region14: #{agent_forward.7} parent=0 // pred_check
    _
  $region15: #{agent_forward.7} parent=0 // pred_check_branch
    %18 = sbr.rel (0) target = $region17
  $region16: #{agent_forward.7} parent=0 // pred_region
    _
  $region17: #{agent_forward.7} parent=0 // pred_fallthru
    _
  // Predicated region
  $region18: #{agent_forward.7} parent=0 // pred_check
    _
  $region19: #{agent_forward.7} parent=0 // pred_check_branch
    %20 = sbr.rel (0) target = $region21
  $region20: #{agent_forward.7} parent=0 // pred_region
    _
  $region21: #{agent_forward.7} parent=0 // pred_fallthru
    _
  // Predicated region
  $region22: #{agent_forward.7} parent=0 // pred_check
    _
  $region23: #{agent_forward.7} parent=0 // pred_check_branch
    %22 = sbr.rel (0) target = $region25
  $region24: #{agent_forward.7} parent=0 // pred_region
    _
  $region25: #{agent_forward.7} parent=0 // pred_fallthru
    _
  %v23 = vld [vmem:[%s1] sm:$0xff]
  %v24 = vld [vmem:[%s1 + $0x8] sm:$0xff]
  %v25 = vld [vmem:[%s1 + $0x10] sm:$0xff]
  %v26 = vld [vmem:[%s1 + $0x18] sm:$0xff]
  %v27 = vld [vmem:[%s1 + $0x20] sm:$0xff]
  %v28 = vld [vmem:[%s1 + $0x28] sm:$0xff]
  %v29 = vld [vmem:[%s1 + $0x30] sm:$0xff]
  %v30 = vld [vmem:[%s1 + $0x38] sm:$0xff]
  %v31 = vld [vmem:[%s1 + $0x40] sm:$0xff]
  %v32 = vld [vmem:[%s1 + $0x48] sm:$0xff]
  %v33 = vld [vmem:[%s1 + $0x50] sm:$0xff]
  %v34 = vld [vmem:[%s1 + $0x58] sm:$0xff]
  %v35 = vld [vmem:[%s1 + $0x60] sm:$0xff]
  %v36 = vld [vmem:[%s1 + $0x68] sm:$0xff]
  %v37 = vld [vmem:[%s1 + $0x70] sm:$0xff]
  %v38 = vld [vmem:[%s1 + $0x78] sm:$0xff]
  %v39 = vld [vmem:[%s1 + $0x80] sm:$0xff]
  %v40 = vld [vmem:[%s1 + $0x88] sm:$0xff]
  %v41 = vld [vmem:[%s1 + $0x90] sm:$0xff]
  %v42 = vld [vmem:[%s1 + $0x98] sm:$0xff]
  %v43 = vld [vmem:[%s1 + $0xa0] sm:$0xff]
  %v44 = vld [vmem:[%s1 + $0xa8] sm:$0xff]
  %v45 = vld [vmem:[%s1 + $0xb0] sm:$0xff]
  %v46 = vld [vmem:[%s1 + $0xb8] sm:$0xff]
  %v47 = vld [vmem:[%s1 + $0xc0] sm:$0xff]
  %v48 = vld [vmem:[%s1 + $0xc8] sm:$0xff]
  %v49 = vld [vmem:[%s1 + $0xd0] sm:$0xff]
  %v50 = vld [vmem:[%s1 + $0xd8] sm:$0xff]
  %v51 = vld [vmem:[%s1 + $0xe0] sm:$0xff]
  %v52 = vld [vmem:[%s1 + $0xe8] sm:$0xff]
  %v53 = vld [vmem:[%s1 + $0xf0] sm:$0xff]
  %v54 = vld [vmem:[%s1 + $0xf8] sm:$0xff]
  %v55 = vld [vmem:[%s1 + $0x100] sm:$0xff]
  %v56 = vld [vmem:[%s1 + $0x108] sm:$0xff]
  %v57 = vld [vmem:[%s1 + $0x110] sm:$0xff]
  %v58 = vld [vmem:[%s1 + $0x118] sm:$0xff]
  %v59 = vld [vmem:[%s1 + $0x120] sm:$0xff]
  %v60 = vld [vmem:[%s1 + $0x128] sm:$0xff]
  %v61 = vld [vmem:[%s1 + $0x130] sm:$0xff]
  %v62 = vld [vmem:[%s1 + $0x138] sm:$0xff]
  %v63 = vld [vmem:[%s1 + $0x140] sm:$0xff]
  %v64 = vld [vmem:[%s1 + $0x148] sm:$0xff]
  %v65 = vld [vmem:[%s1 + $0x150] sm:$0xff]
  %v66 = vld [vmem:[%s1 + $0x158] sm:$0xff]
  %v67 = vld [vmem:[%s1 + $0x160] sm:$0xff]
  %v68 = vld [vmem:[%s1 + $0x168] sm:$0xff]
  %v69 = vld [vmem:[%s1 + $0x170] sm:$0xff]
  %v70 = vld [vmem:[%s1 + $0x178] sm:$0xff]
  %v71 = vld [vmem:[%s1 + $0x180] sm:$0xff]
  %v72 = vld [vmem:[%s1 + $0x188] sm:$0xff]
  %v73 = vld [vmem:[%s1 + $0x190] sm:$0xff]
  %v74 = vld [vmem:[%s1 + $0x198] sm:$0xff]
  %v75 = vld [vmem:[%s1 + $0x1a0] sm:$0xff]
  %v76 = vld [vmem:[%s1 + $0x1a8] sm:$0xff]
  %v77 = vld [vmem:[%s1 + $0x1b0] sm:$0xff]
  %v78 = vld [vmem:[%s1 + $0x1b8] sm:$0xff]
  %v79 = vld [vmem:[%s1 + $0x1c0] sm:$0xff]
  %v80 = vld [vmem:[%s1 + $0x1c8] sm:$0xff]
  %v81 = vld [vmem:[%s1 + $0x1d0] sm:$0xff]
  %v82 = vld [vmem:[%s1 + $0x1d8] sm:$0xff]
  %v83 = vld [vmem:[%s1 + $0x1e0] sm:$0xff]
  %v84 = vld [vmem:[%s1 + $0x1e8] sm:$0xff]
  %v85 = vld [vmem:[%s1 + $0x1f0] sm:$0xff]
  %v86 = vld [vmem:[%s1 + $0x1f8] sm:$0xff]
  %v87 = vld [vmem:[%s1 + $0x200] sm:$0xff]
  %v88 = vld [vmem:[%s1 + $0x208] sm:$0xff]
  %v89 = vld [vmem:[%s1 + $0x210] sm:$0xff]
  %v90 = vld [vmem:[%s1 + $0x218] sm:$0xff]
  %v91 = vld [vmem:[%s1 + $0x220] sm:$0xff]
  %v92 = vld [vmem:[%s1 + $0x228] sm:$0xff]
  %v93 = vld [vmem:[%s1 + $0x230] sm:$0xff]
  %v94 = vld [vmem:[%s1 + $0x238] sm:$0xff]
  %v95 = vld [vmem:[%s1 + $0x240] sm:$0xff]
  %v96 = vld [vmem:[%s1 + $0x248] sm:$0xff]
  %v97 = vld [vmem:[%s1 + $0x250] sm:$0xff]
  %v98 = vld [vmem:[%s1 + $0x258] sm:$0xff]
  %v99 = vld [vmem:[%s1 + $0x260] sm:$0xff]
  %v100 = vld [vmem:[%s1 + $0x268] sm:$0xff]
  %v101 = vld [vmem:[%s1 + $0x270] sm:$0xff]
  %v102 = vld [vmem:[%s1 + $0x278] sm:$0xff]
  %v103 = vld [vmem:[%s1 + $0x280] sm:$0xff]
  %v104 = vld [vmem:[%s1 + $0x288] sm:$0xff]
  %v105 = vld [vmem:[%s1 + $0x290] sm:$0xff]
  %v106 = vld [vmem:[%s1 + $0x298] sm:$0xff]
  %v107 = vld [vmem:[%s1 + $0x2a0] sm:$0xff]
  %v108 = vld [vmem:[%s1 + $0x2a8] sm:$0xff]
  %v109 = vld [vmem:[%s1 + $0x2b0] sm:$0xff]
  %v110 = vld [vmem:[%s1 + $0x2b8] sm:$0xff]
  %v111 = vld [vmem:[%s1 + $0x2c0] sm:$0xff]
  %v112 = vld [vmem:[%s1 + $0x2c8] sm:$0xff]
  %v113 = vld [vmem:[%s1 + $0x2d0] sm:$0xff]
  %v114 = vld [vmem:[%s1 + $0x2d8] sm:$0xff]
  %v115 = vld [vmem:[%s1 + $0x2e0] sm:$0xff]
  %v116 = vld [vmem:[%s1 + $0x2e8] sm:$0xff]
  %v117 = vld [vmem:[%s1 + $0x2f0] sm:$0xff]
  %v118 = vld [vmem:[%s1 + $0x2f8] sm:$0xff]
  %v119 = vld [vmem:[%s1 + $0x300] sm:$0xff]
  %v120 = vld [vmem:[%s1 + $0x308] sm:$0xff]
  %v121 = vld [vmem:[%s1 + $0x310] sm:$0xff]
  %v122 = vld [vmem:[%s1 + $0x318] sm:$0xff]
  %v123 = vld [vmem:[%s1 + $0x320] sm:$0xff]
  %v124 = vld [vmem:[%s1 + $0x328] sm:$0xff]
  %v125 = vld [vmem:[%s1 + $0x330] sm:$0xff]
  %v126 = vld [vmem:[%s1 + $0x338] sm:$0xff]
  %v127 = vld [vmem:[%s1 + $0x340] sm:$0xff]
  %v128 = vld [vmem:[%s1 + $0x348] sm:$0xff]
  %v129 = vld [vmem:[%s1 + $0x350] sm:$0xff]
  %v130 = vld [vmem:[%s1 + $0x358] sm:$0xff]
  %v131 = vld [vmem:[%s1 + $0x360] sm:$0xff]
  %v132 = vld [vmem:[%s1 + $0x368] sm:$0xff]
  %v133 = vld [vmem:[%s1 + $0x370] sm:$0xff]
  %v134 = vld [vmem:[%s1 + $0x378] sm:$0xff]
  %v135 = vld [vmem:[%s1 + $0x380] sm:$0xff]
  %v136 = vld [vmem:[%s1 + $0x388] sm:$0xff]
  %v137 = vld [vmem:[%s1 + $0x390] sm:$0xff]
  %v138 = vld [vmem:[%s1 + $0x398] sm:$0xff]
  %v139 = vld [vmem:[%s1 + $0x3a0] sm:$0xff]
  %v140 = vld [vmem:[%s1 + $0x3a8] sm:$0xff]
  %v141 = vld [vmem:[%s1 + $0x3b0] sm:$0xff]
  %v142 = vld [vmem:[%s1 + $0x3b8] sm:$0xff]
  %v143 = vld [vmem:[%s1 + $0x3c0] sm:$0xff]
  %v144 = vld [vmem:[%s1 + $0x3c8] sm:$0xff]
  %v145 = vld [vmem:[%s1 + $0x3d0] sm:$0xff]
  %v146 = vld [vmem:[%s1 + $0x3d8] sm:$0xff]
  %v147 = vld [vmem:[%s1 + $0x3e0] sm:$0xff]
  %v148 = vld [vmem:[%s1 + $0x3e8] sm:$0xff]
  %v149 = vld [vmem:[%s1 + $0x3f0] sm:$0xff]
  %v150 = vld [vmem:[%s1 + $0x3f8] sm:$0xff]
  %v151 = vld [vmem:[%s1 + $0x400] sm:$0xff]
  %v152 = vld [vmem:[%s1 + $0x408] sm:$0xff]
  %v153 = vld [vmem:[%s1 + $0x410] sm:$0xff]
  %v154 = vld [vmem:[%s1 + $0x418] sm:$0xff]
  %v155 = vld [vmem:[%s1 + $0x420] sm:$0xff]
  %v156 = vld [vmem:[%s1 + $0x428] sm:$0xff]
  %v157 = vld [vmem:[%s1 + $0x430] sm:$0xff]
  %v158 = vld [vmem:[%s1 + $0x438] sm:$0xff]
  %v159 = vld [vmem:[%s1 + $0x440] sm:$0xff]
  %v160 = vld [vmem:[%s1 + $0x448] sm:$0xff]
  %v161 = vld [vmem:[%s1 + $0x450] sm:$0xff]
  %v162 = vld [vmem:[%s1 + $0x458] sm:$0xff]
  %v163 = vld [vmem:[%s1 + $0x460] sm:$0xff]
  %v164 = vld [vmem:[%s1 + $0x468] sm:$0xff]
  %v165 = vld [vmem:[%s1 + $0x470] sm:$0xff]
  %v166 = vld [vmem:[%s1 + $0x478] sm:$0xff]
  %v167 = vld [vmem:[%s1 + $0x480] sm:$0xff]
  %v168 = vld [vmem:[%s1 + $0x488] sm:$0xff]
  %v169 = vld [vmem:[%s1 + $0x490] sm:$0xff]
  %v170 = vld [vmem:[%s1 + $0x498] sm:$0xff]
  %v171 = vld [vmem:[%s1 + $0x4a0] sm:$0xff]
  %v172 = vld [vmem:[%s1 + $0x4a8] sm:$0xff]
  %v173 = vld [vmem:[%s1 + $0x4b0] sm:$0xff]
  %v174 = vld [vmem:[%s1 + $0x4b8] sm:$0xff]
  %v175 = vld [vmem:[%s1 + $0x4c0] sm:$0xff]
  %v176 = vld [vmem:[%s1 + $0x4c8] sm:$0xff]
  %v177 = vld [vmem:[%s1 + $0x4d0] sm:$0xff]
  %v178 = vld [vmem:[%s1 + $0x4d8] sm:$0xff]
  %v179 = vld [vmem:[%s1 + $0x4e0] sm:$0xff]
  %v180 = vld [vmem:[%s1 + $0x4e8] sm:$0xff]
  %v181 = vld [vmem:[%s1 + $0x4f0] sm:$0xff]
  %v182 = vld [vmem:[%s1 + $0x4f8] sm:$0xff]
  %v183 = vld [vmem:[%s1 + $0x500] sm:$0xff]
  %v184 = vld [vmem:[%s1 + $0x508] sm:$0xff]
  %v185 = vld [vmem:[%s1 + $0x510] sm:$0xff]
  %v186 = vld [vmem:[%s1 + $0x518] sm:$0xff]
  %v187 = vld [vmem:[%s1 + $0x520] sm:$0xff]
  %v188 = vld [vmem:[%s1 + $0x528] sm:$0xff]
  %v189 = vld [vmem:[%s1 + $0x530] sm:$0xff]
  %v190 = vld [vmem:[%s1 + $0x538] sm:$0xff]
  %v191 = vld [vmem:[%s1 + $0x540] sm:$0xff]
  %v192 = vld [vmem:[%s1 + $0x548] sm:$0xff]
  %v193 = vld [vmem:[%s1 + $0x550] sm:$0xff]
  %v194 = vld [vmem:[%s1 + $0x558] sm:$0xff]
  %v195 = vld [vmem:[%s1 + $0x560] sm:$0xff]
  %v196 = vld [vmem:[%s1 + $0x568] sm:$0xff]
  %v197 = vld [vmem:[%s1 + $0x570] sm:$0xff]
  %v198 = vld [vmem:[%s1 + $0x578] sm:$0xff]
  %v199 = vld [vmem:[%s1 + $0x580] sm:$0xff]
  %v200 = vld [vmem:[%s1 + $0x588] sm:$0xff]
  %v201 = vld [vmem:[%s1 + $0x590] sm:$0xff]
  %v202 = vld [vmem:[%s1 + $0x598] sm:$0xff]
  %v203 = vld [vmem:[%s1 + $0x5a0] sm:$0xff]
  %v204 = vld [vmem:[%s1 + $0x5a8] sm:$0xff]
  %v205 = vld [vmem:[%s1 + $0x5b0] sm:$0xff]
  %v206 = vld [vmem:[%s1 + $0x5b8] sm:$0xff]
  %v207 = vld [vmem:[%s1 + $0x5c0] sm:$0xff]
  %v208 = vld [vmem:[%s1 + $0x5c8] sm:$0xff]
  %v209 = vld [vmem:[%s1 + $0x5d0] sm:$0xff]
  %v210 = vld [vmem:[%s1 + $0x5d8] sm:$0xff]
  %v211 = vld [vmem:[%s1 + $0x5e0] sm:$0xff]
  %v212 = vld [vmem:[%s1 + $0x5e8] sm:$0xff]
  %v213 = vld [vmem:[%s1 + $0x5f0] sm:$0xff]
  %v214 = vld [vmem:[%s1 + $0x5f8] sm:$0xff]
  %v215 = vld [vmem:[%s1 + $0x600] sm:$0xff]
  %v216 = vld [vmem:[%s1 + $0x608] sm:$0xff]
  %v217 = vld [vmem:[%s1 + $0x610] sm:$0xff]
  %v218 = vld [vmem:[%s1 + $0x618] sm:$0xff]
  %v219 = vld [vmem:[%s1 + $0x620] sm:$0xff]
  %v220 = vld [vmem:[%s1 + $0x628] sm:$0xff]
  %v221 = vld [vmem:[%s1 + $0x630] sm:$0xff]
  %v222 = vld [vmem:[%s1 + $0x638] sm:$0xff]
  %v223 = vld [vmem:[%s1 + $0x640] sm:$0xff]
  %v224 = vld [vmem:[%s1 + $0x648] sm:$0xff]
  %v225 = vld [vmem:[%s1 + $0x650] sm:$0xff]
  %v226 = vld [vmem:[%s1 + $0x658] sm:$0xff]
  %v227 = vld [vmem:[%s1 + $0x660] sm:$0xff]
  %v228 = vld [vmem:[%s1 + $0x668] sm:$0xff]
  %v229 = vld [vmem:[%s1 + $0x670] sm:$0xff]
  %v230 = vld [vmem:[%s1 + $0x678] sm:$0xff]
  %v231 = vld [vmem:[%s1 + $0x680] sm:$0xff]
  %v232 = vld [vmem:[%s1 + $0x688] sm:$0xff]
  %v233 = vld [vmem:[%s1 + $0x690] sm:$0xff]
  %v234 = vld [vmem:[%s1 + $0x698] sm:$0xff]
  %v235 = vld [vmem:[%s1 + $0x6a0] sm:$0xff]
  %v236 = vld [vmem:[%s1 + $0x6a8] sm:$0xff]
  %v237 = vld [vmem:[%s1 + $0x6b0] sm:$0xff]
  %v238 = vld [vmem:[%s1 + $0x6b8] sm:$0xff]
  %v239 = vld [vmem:[%s1 + $0x6c0] sm:$0xff]
  %v240 = vld [vmem:[%s1 + $0x6c8] sm:$0xff]
  %v241 = vld [vmem:[%s1 + $0x6d0] sm:$0xff]
  %v242 = vld [vmem:[%s1 + $0x6d8] sm:$0xff]
  %v243 = vld [vmem:[%s1 + $0x6e0] sm:$0xff]
  %v244 = vld [vmem:[%s1 + $0x6e8] sm:$0xff]
  %v245 = vld [vmem:[%s1 + $0x6f0] sm:$0xff]
  %v246 = vld [vmem:[%s1 + $0x6f8] sm:$0xff]
  %v247 = vld [vmem:[%s1 + $0x700] sm:$0xff]
  %v248 = vld [vmem:[%s1 + $0x708] sm:$0xff]
  %v249 = vld [vmem:[%s1 + $0x710] sm:$0xff]
  %v250 = vld [vmem:[%s1 + $0x718] sm:$0xff]
  %v251 = vld [vmem:[%s1 + $0x720] sm:$0xff]
  %v252 = vld [vmem:[%s1 + $0x728] sm:$0xff]
  %v253 = vld [vmem:[%s1 + $0x730] sm:$0xff]
  %v254 = vld [vmem:[%s1 + $0x738] sm:$0xff]
  %v255 = vld [vmem:[%s1 + $0x740] sm:$0xff]
  %v256 = vld [vmem:[%s1 + $0x748] sm:$0xff]
  %v257 = vld [vmem:[%s1 + $0x750] sm:$0xff]
  %v258 = vld [vmem:[%s1 + $0x758] sm:$0xff]
  %v259 = vld [vmem:[%s1 + $0x760] sm:$0xff]
  %v260 = vld [vmem:[%s1 + $0x768] sm:$0xff]
  %v261 = vld [vmem:[%s1 + $0x770] sm:$0xff]
  %v262 = vld [vmem:[%s1 + $0x778] sm:$0xff]
  %v263 = vld [vmem:[%s1 + $0x780] sm:$0xff]
  %v264 = vld [vmem:[%s1 + $0x788] sm:$0xff]
  %v265 = vld [vmem:[%s1 + $0x790] sm:$0xff]
  %v266 = vld [vmem:[%s1 + $0x798] sm:$0xff]
  %v267 = vld [vmem:[%s1 + $0x7a0] sm:$0xff]
  %v268 = vld [vmem:[%s1 + $0x7a8] sm:$0xff]
  %v269 = vld [vmem:[%s1 + $0x7b0] sm:$0xff]
  %v270 = vld [vmem:[%s1 + $0x7b8] sm:$0xff]
  %v271 = vld [vmem:[%s1 + $0x7c0] sm:$0xff]
  %v272 = vld [vmem:[%s1 + $0x7c8] sm:$0xff]
  %v273 = vld [vmem:[%s1 + $0x7d0] sm:$0xff]
  %v274 = vld [vmem:[%s1 + $0x7d8] sm:$0xff]
  %v275 = vld [vmem:[%s1 + $0x7e0] sm:$0xff]
  %v276 = vld [vmem:[%s1 + $0x7e8] sm:$0xff]
  %v277 = vld [vmem:[%s1 + $0x7f0] sm:$0xff]
  %v278 = vld [vmem:[%s1 + $0x7f8] sm:$0xff]
  %v279 = vld [vmem:[%s1 + $0x800] sm:$0xff]
  %v280 = vld [vmem:[%s1 + $0x808] sm:$0xff]
  %v281 = vld [vmem:[%s1 + $0x810] sm:$0xff]
  %v282 = vld [vmem:[%s1 + $0x818] sm:$0xff]
  %v283 = vld [vmem:[%s1 + $0x820] sm:$0xff]
  %v284 = vld [vmem:[%s1 + $0x828] sm:$0xff]
  %v285 = vld [vmem:[%s1 + $0x830] sm:$0xff]
  %v286 = vld [vmem:[%s1 + $0x838] sm:$0xff]
  %v287 = vld [vmem:[%s1 + $0x840] sm:$0xff]
  %v288 = vld [vmem:[%s1 + $0x848] sm:$0xff]
  %v289 = vld [vmem:[%s1 + $0x850] sm:$0xff]
  %v290 = vld [vmem:[%s1 + $0x858] sm:$0xff]
  %v291 = vld [vmem:[%s1 + $0x860] sm:$0xff]
  %v292 = vld [vmem:[%s1 + $0x868] sm:$0xff]
  %v293 = vld [vmem:[%s1 + $0x870] sm:$0xff]
  %v294 = vld [vmem:[%s1 + $0x878] sm:$0xff]
  %v295 = vld [vmem:[%s1 + $0x880] sm:$0xff]
  %v296 = vld [vmem:[%s1 + $0x888] sm:$0xff]
  %v297 = vld [vmem:[%s1 + $0x890] sm:$0xff]
  %v298 = vld [vmem:[%s1 + $0x898] sm:$0xff]
  %v299 = vld [vmem:[%s1 + $0x8a0] sm:$0xff]
  %v300 = vld [vmem:[%s1 + $0x8a8] sm:$0xff]
  %v301 = vld [vmem:[%s1 + $0x8b0] sm:$0xff]
  %v302 = vld [vmem:[%s1 + $0x8b8] sm:$0xff]
  %v303 = vld [vmem:[%s1 + $0x8c0] sm:$0xff]
  %v304 = vld [vmem:[%s1 + $0x8c8] sm:$0xff]
  %v305 = vld [vmem:[%s1 + $0x8d0] sm:$0xff]
  %v306 = vld [vmem:[%s1 + $0x8d8] sm:$0xff]
  %v307 = vld [vmem:[%s1 + $0x8e0] sm:$0xff]
  %v308 = vld [vmem:[%s1 + $0x8e8] sm:$0xff]
  %v309 = vld [vmem:[%s1 + $0x8f0] sm:$0xff]
  %v310 = vld [vmem:[%s1 + $0x8f8] sm:$0xff]
  %v311 = vld [vmem:[%s1 + $0x900] sm:$0xff]
  %v312 = vld [vmem:[%s1 + $0x908] sm:$0xff]
  %v313 = vld [vmem:[%s1 + $0x910] sm:$0xff]
  %v314 = vld [vmem:[%s1 + $0x918] sm:$0xff]
  %v315 = vld [vmem:[%s1 + $0x920] sm:$0xff]
  %v316 = vld [vmem:[%s1 + $0x928] sm:$0xff]
  %v317 = vld [vmem:[%s1 + $0x930] sm:$0xff]
  %v318 = vld [vmem:[%s1 + $0x938] sm:$0xff]
  %v319 = vld [vmem:[%s1 + $0x940] sm:$0xff]
  %v320 = vld [vmem:[%s1 + $0x948] sm:$0xff]
  %v321 = vld [vmem:[%s1 + $0x950] sm:$0xff]
  %v322 = vld [vmem:[%s1 + $0x958] sm:$0xff]
  %v323 = vld [vmem:[%s1 + $0x960] sm:$0xff]
  %v324 = vld [vmem:[%s1 + $0x968] sm:$0xff]
  %v325 = vld [vmem:[%s1 + $0x970] sm:$0xff]
  %v326 = vld [vmem:[%s1 + $0x978] sm:$0xff]
  %v327 = vld [vmem:[%s1 + $0x980] sm:$0xff]
  %v328 = vld [vmem:[%s1 + $0x988] sm:$0xff]
  %v329 = vld [vmem:[%s1 + $0x990] sm:$0xff]
  %v330 = vld [vmem:[%s1 + $0x998] sm:$0xff]
  %v331 = vld [vmem:[%s1 + $0x9a0] sm:$0xff]
  %v332 = vld [vmem:[%s1 + $0x9a8] sm:$0xff]
  %v333 = vld [vmem:[%s1 + $0x9b0] sm:$0xff]
  %v334 = vld [vmem:[%s1 + $0x9b8] sm:$0xff]
  %v335 = vld [vmem:[%s1 + $0x9c0] sm:$0xff]
  %v336 = vld [vmem:[%s1 + $0x9c8] sm:$0xff]
  %v337 = vld [vmem:[%s1 + $0x9d0] sm:$0xff]
  %v338 = vld [vmem:[%s1 + $0x9d8] sm:$0xff]
  %v339 = vld [vmem:[%s1 + $0x9e0] sm:$0xff]
  %v340 = vld [vmem:[%s1 + $0x9e8] sm:$0xff]
  %v341 = vld [vmem:[%s1 + $0x9f0] sm:$0xff]
  %v342 = vld [vmem:[%s1 + $0x9f8] sm:$0xff]
  %v343 = vld [vmem:[%s1 + $0xa00] sm:$0xff]
  %v344 = vld [vmem:[%s1 + $0xa08] sm:$0xff]
  %v345 = vld [vmem:[%s1 + $0xa10] sm:$0xff]
  %v346 = vld [vmem:[%s1 + $0xa18] sm:$0xff]
  %v347 = vld [vmem:[%s1 + $0xa20] sm:$0xff]
  %v348 = vld [vmem:[%s1 + $0xa28] sm:$0xff]
  %v349 = vld [vmem:[%s1 + $0xa30] sm:$0xff]
  %v350 = vld [vmem:[%s1 + $0xa38] sm:$0xff]
  %v351 = vld [vmem:[%s1 + $0xa40] sm:$0xff]
  %v352 = vld [vmem:[%s1 + $0xa48] sm:$0xff]
  %v353 = vld [vmem:[%s1 + $0xa50] sm:$0xff]
  %v354 = vld [vmem:[%s1 + $0xa58] sm:$0xff]
  %v355 = vld [vmem:[%s1 + $0xa60] sm:$0xff]
  %v356 = vld [vmem:[%s1 + $0xa68] sm:$0xff]
  %v357 = vld [vmem:[%s1 + $0xa70] sm:$0xff]
  %v358 = vld [vmem:[%s1 + $0xa78] sm:$0xff]
  %v359 = vld [vmem:[%s1 + $0xa80] sm:$0xff]
  %v360 = vld [vmem:[%s1 + $0xa88] sm:$0xff]
  %v361 = vld [vmem:[%s1 + $0xa90] sm:$0xff]
  %v362 = vld [vmem:[%s1 + $0xa98] sm:$0xff]
  %v363 = vld [vmem:[%s1 + $0xaa0] sm:$0xff]
  %v364 = vld [vmem:[%s1 + $0xaa8] sm:$0xff]
  %v365 = vld [vmem:[%s1 + $0xab0] sm:$0xff]
  %v366 = vld [vmem:[%s1 + $0xab8] sm:$0xff]
  %v367 = vld [vmem:[%s1 + $0xac0] sm:$0xff]
  %v368 = vld [vmem:[%s1 + $0xac8] sm:$0xff]
  %v369 = vld [vmem:[%s1 + $0xad0] sm:$0xff]
  %v370 = vld [vmem:[%s1 + $0xad8] sm:$0xff]
  %v371 = vld [vmem:[%s1 + $0xae0] sm:$0xff]
  %v372 = vld [vmem:[%s1 + $0xae8] sm:$0xff]
  %v373 = vld [vmem:[%s1 + $0xaf0] sm:$0xff]
  %v374 = vld [vmem:[%s1 + $0xaf8] sm:$0xff]
  %v375 = vld [vmem:[%s1 + $0xb00] sm:$0xff]
  %v376 = vld [vmem:[%s1 + $0xb08] sm:$0xff]
  %v377 = vld [vmem:[%s1 + $0xb10] sm:$0xff]
  %v378 = vld [vmem:[%s1 + $0xb18] sm:$0xff]
  %v379 = vld [vmem:[%s1 + $0xb20] sm:$0xff]
  %v380 = vld [vmem:[%s1 + $0xb28] sm:$0xff]
  %v381 = vld [vmem:[%s1 + $0xb30] sm:$0xff]
  %v382 = vld [vmem:[%s1 + $0xb38] sm:$0xff]
  %v383 = vld [vmem:[%s1 + $0xb40] sm:$0xff]
  %v384 = vld [vmem:[%s1 + $0xb48] sm:$0xff]
  %v385 = vld [vmem:[%s1 + $0xb50] sm:$0xff]
  %v386 = vld [vmem:[%s1 + $0xb58] sm:$0xff]
  %v387 = vld [vmem:[%s1 + $0xb60] sm:$0xff]
  %v388 = vld [vmem:[%s1 + $0xb68] sm:$0xff]
  %v389 = vld [vmem:[%s1 + $0xb70] sm:$0xff]
  %v390 = vld [vmem:[%s1 + $0xb78] sm:$0xff]
  %v391 = vld [vmem:[%s1 + $0xb80] sm:$0xff]
  %v392 = vld [vmem:[%s1 + $0xb88] sm:$0xff]
  %v393 = vld [vmem:[%s1 + $0xb90] sm:$0xff]
  %v394 = vld [vmem:[%s1 + $0xb98] sm:$0xff]
  %v395 = vld [vmem:[%s1 + $0xba0] sm:$0xff]
  %v396 = vld [vmem:[%s1 + $0xba8] sm:$0xff]
  %v397 = vld [vmem:[%s1 + $0xbb0] sm:$0xff]
  %v398 = vld [vmem:[%s1 + $0xbb8] sm:$0xff]
  %v399 = vld [vmem:[%s1 + $0xbc0] sm:$0xff]
  %v400 = vld [vmem:[%s1 + $0xbc8] sm:$0xff]
  %v401 = vld [vmem:[%s1 + $0xbd0] sm:$0xff]
  %v402 = vld [vmem:[%s1 + $0xbd8] sm:$0xff]
  %v403 = vld [vmem:[%s1 + $0xbe0] sm:$0xff]
  %v404 = vld [vmem:[%s1 + $0xbe8] sm:$0xff]
  %v405 = vld [vmem:[%s1 + $0xbf0] sm:$0xff]
  %v406 = vld [vmem:[%s1 + $0xbf8] sm:$0xff]
  %v407 = vld [vmem:[%s1 + $0xc00] sm:$0xff]
  %v408 = vld [vmem:[%s1 + $0xc08] sm:$0xff]
  %v409 = vld [vmem:[%s1 + $0xc10] sm:$0xff]
  %v410 = vld [vmem:[%s1 + $0xc18] sm:$0xff]
  %v411 = vld [vmem:[%s1 + $0xc20] sm:$0xff]
  %v412 = vld [vmem:[%s1 + $0xc28] sm:$0xff]
  %v413 = vld [vmem:[%s1 + $0xc30] sm:$0xff]
  %v414 = vld [vmem:[%s1 + $0xc38] sm:$0xff]
  %v415 = vld [vmem:[%s1 + $0xc40] sm:$0xff]
  %v416 = vld [vmem:[%s1 + $0xc48] sm:$0xff]
  %v417 = vld [vmem:[%s1 + $0xc50] sm:$0xff]
  %v418 = vld [vmem:[%s1 + $0xc58] sm:$0xff]
  %v419 = vld [vmem:[%s1 + $0xc60] sm:$0xff]
  %v420 = vld [vmem:[%s1 + $0xc68] sm:$0xff]
  %v421 = vld [vmem:[%s1 + $0xc70] sm:$0xff]
  %v422 = vld [vmem:[%s1 + $0xc78] sm:$0xff]
  %v423 = vunpack.c.0.s8 %v23
  %v424 = vunpack.c.0.s8 %v24
  %v425 = vunpack.c.0.s8 %v25
  %v426 = vunpack.c.0.s8 %v26
  %v427 = vunpack.c.1.s8 %v23
  %v428 = vunpack.c.1.s8 %v24
  %v429 = vunpack.c.1.s8 %v25
  %v430 = vunpack.c.1.s8 %v26
  %v431 = vunpack.c.2.s8 %v23
  %v432 = vunpack.c.2.s8 %v24
  %v433 = vunpack.c.2.s8 %v25
  %v434 = vunpack.c.2.s8 %v26
  %v435 = vunpack.c.3.s8 %v23
  %v436 = vunpack.c.3.s8 %v24
  %v437 = vunpack.c.3.s8 %v25
  %v438 = vunpack.c.3.s8 %v26
  %v439 = vunpack.c.0.s8 %v27
  %v440 = vunpack.c.0.s8 %v28
  %v441 = vunpack.c.0.s8 %v29
  %v442 = vunpack.c.0.s8 %v30
  %v443 = vunpack.c.1.s8 %v27
  %v444 = vunpack.c.1.s8 %v28
  %v445 = vunpack.c.1.s8 %v29
  %v446 = vunpack.c.1.s8 %v30
  %v447 = vunpack.c.2.s8 %v27
  %v448 = vunpack.c.2.s8 %v28
  %v449 = vunpack.c.2.s8 %v29
  %v450 = vunpack.c.2.s8 %v30
  %v451 = vunpack.c.3.s8 %v27
  %v452 = vunpack.c.3.s8 %v28
  %v453 = vunpack.c.3.s8 %v29
  %v454 = vunpack.c.3.s8 %v30
  %v455 = vunpack.c.0.s8 %v31
  %v456 = vunpack.c.0.s8 %v32
  %v457 = vunpack.c.0.s8 %v33
  %v458 = vunpack.c.0.s8 %v34
  %v459 = vunpack.c.1.s8 %v31
  %v460 = vunpack.c.1.s8 %v32
  %v461 = vunpack.c.1.s8 %v33
  %v462 = vunpack.c.1.s8 %v34
  %v463 = vunpack.c.2.s8 %v31
  %v464 = vunpack.c.2.s8 %v32
  %v465 = vunpack.c.2.s8 %v33
  %v466 = vunpack.c.2.s8 %v34
  %v467 = vunpack.c.3.s8 %v31
  %v468 = vunpack.c.3.s8 %v32
  %v469 = vunpack.c.3.s8 %v33
  %v470 = vunpack.c.3.s8 %v34
  %v471 = vunpack.c.0.s8 %v35
  %v472 = vunpack.c.0.s8 %v36
  %v473 = vunpack.c.0.s8 %v37
  %v474 = vunpack.c.0.s8 %v38
  %v475 = vunpack.c.1.s8 %v35
  %v476 = vunpack.c.1.s8 %v36
  %v477 = vunpack.c.1.s8 %v37
  %v478 = vunpack.c.1.s8 %v38
  %v479 = vunpack.c.2.s8 %v35
  %v480 = vunpack.c.2.s8 %v36
  %v481 = vunpack.c.2.s8 %v37
  %v482 = vunpack.c.2.s8 %v38
  %v483 = vunpack.c.3.s8 %v35
  %v484 = vunpack.c.3.s8 %v36
  %v485 = vunpack.c.3.s8 %v37
  %v486 = vunpack.c.3.s8 %v38
  %v487 = vunpack.c.0.s8 %v39
  %v488 = vunpack.c.0.s8 %v40
  %v489 = vunpack.c.0.s8 %v41
  %v490 = vunpack.c.0.s8 %v42
  %v491 = vunpack.c.1.s8 %v39
  %v492 = vunpack.c.1.s8 %v40
  %v493 = vunpack.c.1.s8 %v41
  %v494 = vunpack.c.1.s8 %v42
  %v495 = vunpack.c.2.s8 %v39
  %v496 = vunpack.c.2.s8 %v40
  %v497 = vunpack.c.2.s8 %v41
  %v498 = vunpack.c.2.s8 %v42
  %v499 = vunpack.c.3.s8 %v39
  %v500 = vunpack.c.3.s8 %v40
  %v501 = vunpack.c.3.s8 %v41
  %v502 = vunpack.c.3.s8 %v42
  %v503 = vunpack.c.0.s8 %v43
  %v504 = vunpack.c.0.s8 %v44
  %v505 = vunpack.c.0.s8 %v45
  %v506 = vunpack.c.0.s8 %v46
  %v507 = vunpack.c.1.s8 %v43
  %v508 = vunpack.c.1.s8 %v44
  %v509 = vunpack.c.1.s8 %v45
  %v510 = vunpack.c.1.s8 %v46
  %v511 = vunpack.c.2.s8 %v43
  %v512 = vunpack.c.2.s8 %v44
  %v513 = vunpack.c.2.s8 %v45
  %v514 = vunpack.c.2.s8 %v46
  %v515 = vunpack.c.3.s8 %v43
  %v516 = vunpack.c.3.s8 %v44
  %v517 = vunpack.c.3.s8 %v45
  %v518 = vunpack.c.3.s8 %v46
  %v519 = vunpack.c.0.s8 %v47
  %v520 = vunpack.c.0.s8 %v48
  %v521 = vunpack.c.0.s8 %v49
  %v522 = vunpack.c.0.s8 %v50
  %v523 = vunpack.c.1.s8 %v47
  %v524 = vunpack.c.1.s8 %v48
  %v525 = vunpack.c.1.s8 %v49
  %v526 = vunpack.c.1.s8 %v50
  %v527 = vunpack.c.2.s8 %v47
  %v528 = vunpack.c.2.s8 %v48
  %v529 = vunpack.c.2.s8 %v49
  %v530 = vunpack.c.2.s8 %v50
  %v531 = vunpack.c.3.s8 %v47
  %v532 = vunpack.c.3.s8 %v48
  %v533 = vunpack.c.3.s8 %v49
  %v534 = vunpack.c.3.s8 %v50
  %v535 = vunpack.c.0.s8 %v51
  %v536 = vunpack.c.0.s8 %v52
  %v537 = vunpack.c.0.s8 %v53
  %v538 = vunpack.c.0.s8 %v54
  %v539 = vunpack.c.1.s8 %v51
  %v540 = vunpack.c.1.s8 %v52
  %v541 = vunpack.c.1.s8 %v53
  %v542 = vunpack.c.1.s8 %v54
  %v543 = vunpack.c.2.s8 %v51
  %v544 = vunpack.c.2.s8 %v52
  %v545 = vunpack.c.2.s8 %v53
  %v546 = vunpack.c.2.s8 %v54
  %v547 = vunpack.c.3.s8 %v51
  %v548 = vunpack.c.3.s8 %v52
  %v549 = vunpack.c.3.s8 %v53
  %v550 = vunpack.c.3.s8 %v54
  %v551 = vunpack.c.0.s8 %v55
  %v552 = vunpack.c.0.s8 %v56
  %v553 = vunpack.c.0.s8 %v57
  %v554 = vunpack.c.0.s8 %v58
  %v555 = vunpack.c.1.s8 %v55
  %v556 = vunpack.c.1.s8 %v56
  %v557 = vunpack.c.1.s8 %v57
  %v558 = vunpack.c.1.s8 %v58
  %v559 = vunpack.c.2.s8 %v55
  %v560 = vunpack.c.2.s8 %v56
  %v561 = vunpack.c.2.s8 %v57
  %v562 = vunpack.c.2.s8 %v58
  %v563 = vunpack.c.3.s8 %v55
  %v564 = vunpack.c.3.s8 %v56
  %v565 = vunpack.c.3.s8 %v57
  %v566 = vunpack.c.3.s8 %v58
  %v567 = vunpack.c.0.s8 %v59
  %v568 = vunpack.c.0.s8 %v60
  %v569 = vunpack.c.0.s8 %v61
  %v570 = vunpack.c.0.s8 %v62
  %v571 = vunpack.c.1.s8 %v59
  %v572 = vunpack.c.1.s8 %v60
  %v573 = vunpack.c.1.s8 %v61
  %v574 = vunpack.c.1.s8 %v62
  %v575 = vunpack.c.2.s8 %v59
  %v576 = vunpack.c.2.s8 %v60
  %v577 = vunpack.c.2.s8 %v61
  %v578 = vunpack.c.2.s8 %v62
  %v579 = vunpack.c.3.s8 %v59
  %v580 = vunpack.c.3.s8 %v60
  %v581 = vunpack.c.3.s8 %v61
  %v582 = vunpack.c.3.s8 %v62
  %v583 = vunpack.c.0.s8 %v63
  %v584 = vunpack.c.0.s8 %v64
  %v585 = vunpack.c.0.s8 %v65
  %v586 = vunpack.c.0.s8 %v66
  %v587 = vunpack.c.1.s8 %v63
  %v588 = vunpack.c.1.s8 %v64
  %v589 = vunpack.c.1.s8 %v65
  %v590 = vunpack.c.1.s8 %v66
  %v591 = vunpack.c.2.s8 %v63
  %v592 = vunpack.c.2.s8 %v64
  %v593 = vunpack.c.2.s8 %v65
  %v594 = vunpack.c.2.s8 %v66
  %v595 = vunpack.c.3.s8 %v63
  %v596 = vunpack.c.3.s8 %v64
  %v597 = vunpack.c.3.s8 %v65
  %v598 = vunpack.c.3.s8 %v66
  %v599 = vunpack.c.0.s8 %v67
  %v600 = vunpack.c.0.s8 %v68
  %v601 = vunpack.c.0.s8 %v69
  %v602 = vunpack.c.0.s8 %v70
  %v603 = vunpack.c.1.s8 %v67
  %v604 = vunpack.c.1.s8 %v68
  %v605 = vunpack.c.1.s8 %v69
  %v606 = vunpack.c.1.s8 %v70
  %v607 = vunpack.c.2.s8 %v67
  %v608 = vunpack.c.2.s8 %v68
  %v609 = vunpack.c.2.s8 %v69
  %v610 = vunpack.c.2.s8 %v70
  %v611 = vunpack.c.3.s8 %v67
  %v612 = vunpack.c.3.s8 %v68
  %v613 = vunpack.c.3.s8 %v69
  %v614 = vunpack.c.3.s8 %v70
  %v615 = vunpack.c.0.s8 %v71
  %v616 = vunpack.c.0.s8 %v72
  %v617 = vunpack.c.0.s8 %v73
  %v618 = vunpack.c.0.s8 %v74
  %v619 = vunpack.c.1.s8 %v71
  %v620 = vunpack.c.1.s8 %v72
  %v621 = vunpack.c.1.s8 %v73
  %v622 = vunpack.c.1.s8 %v74
  %v623 = vunpack.c.2.s8 %v71
  %v624 = vunpack.c.2.s8 %v72
  %v625 = vunpack.c.2.s8 %v73
  %v626 = vunpack.c.2.s8 %v74
  %v627 = vunpack.c.3.s8 %v71
  %v628 = vunpack.c.3.s8 %v72
  %v629 = vunpack.c.3.s8 %v73
  %v630 = vunpack.c.3.s8 %v74
  %v631 = vunpack.c.0.s8 %v75
  %v632 = vunpack.c.0.s8 %v76
  %v633 = vunpack.c.0.s8 %v77
  %v634 = vunpack.c.0.s8 %v78
  %v635 = vunpack.c.1.s8 %v75
  %v636 = vunpack.c.1.s8 %v76
  %v637 = vunpack.c.1.s8 %v77
  %v638 = vunpack.c.1.s8 %v78
  %v639 = vunpack.c.2.s8 %v75
  %v640 = vunpack.c.2.s8 %v76
  %v641 = vunpack.c.2.s8 %v77
  %v642 = vunpack.c.2.s8 %v78
  %v643 = vunpack.c.3.s8 %v75
  %v644 = vunpack.c.3.s8 %v76
  %v645 = vunpack.c.3.s8 %v77
  %v646 = vunpack.c.3.s8 %v78
  %v647 = vunpack.c.0.s8 %v79
  %v648 = vunpack.c.0.s8 %v80
  %v649 = vunpack.c.0.s8 %v81
  %v650 = vunpack.c.0.s8 %v82
  %v651 = vunpack.c.1.s8 %v79
  %v652 = vunpack.c.1.s8 %v80
  %v653 = vunpack.c.1.s8 %v81
  %v654 = vunpack.c.1.s8 %v82
  %v655 = vunpack.c.2.s8 %v79
  %v656 = vunpack.c.2.s8 %v80
  %v657 = vunpack.c.2.s8 %v81
  %v658 = vunpack.c.2.s8 %v82
  %v659 = vunpack.c.3.s8 %v79
  %v660 = vunpack.c.3.s8 %v80
  %v661 = vunpack.c.3.s8 %v81
  %v662 = vunpack.c.3.s8 %v82
  %v663 = vunpack.c.0.s8 %v83
  %v664 = vunpack.c.0.s8 %v84
  %v665 = vunpack.c.0.s8 %v85
  %v666 = vunpack.c.0.s8 %v86
  %v667 = vunpack.c.1.s8 %v83
  %v668 = vunpack.c.1.s8 %v84
  %v669 = vunpack.c.1.s8 %v85
  %v670 = vunpack.c.1.s8 %v86
  %v671 = vunpack.c.2.s8 %v83
  %v672 = vunpack.c.2.s8 %v84
  %v673 = vunpack.c.2.s8 %v85
  %v674 = vunpack.c.2.s8 %v86
  %v675 = vunpack.c.3.s8 %v83
  %v676 = vunpack.c.3.s8 %v84
  %v677 = vunpack.c.3.s8 %v85
  %v678 = vunpack.c.3.s8 %v86
  %v679 = vunpack.c.0.s8 %v87
  %v680 = vunpack.c.0.s8 %v88
  %v681 = vunpack.c.0.s8 %v89
  %v682 = vunpack.c.0.s8 %v90
  %v683 = vunpack.c.1.s8 %v87
  %v684 = vunpack.c.1.s8 %v88
  %v685 = vunpack.c.1.s8 %v89
  %v686 = vunpack.c.1.s8 %v90
  %v687 = vunpack.c.2.s8 %v87
  %v688 = vunpack.c.2.s8 %v88
  %v689 = vunpack.c.2.s8 %v89
  %v690 = vunpack.c.2.s8 %v90
  %v691 = vunpack.c.3.s8 %v87
  %v692 = vunpack.c.3.s8 %v88
  %v693 = vunpack.c.3.s8 %v89
  %v694 = vunpack.c.3.s8 %v90
  %v695 = vunpack.c.0.s8 %v91
  %v696 = vunpack.c.0.s8 %v92
  %v697 = vunpack.c.0.s8 %v93
  %v698 = vunpack.c.0.s8 %v94
  %v699 = vunpack.c.1.s8 %v91
  %v700 = vunpack.c.1.s8 %v92
  %v701 = vunpack.c.1.s8 %v93
  %v702 = vunpack.c.1.s8 %v94
  %v703 = vunpack.c.2.s8 %v91
  %v704 = vunpack.c.2.s8 %v92
  %v705 = vunpack.c.2.s8 %v93
  %v706 = vunpack.c.2.s8 %v94
  %v707 = vunpack.c.3.s8 %v91
  %v708 = vunpack.c.3.s8 %v92
  %v709 = vunpack.c.3.s8 %v93
  %v710 = vunpack.c.3.s8 %v94
  %v711 = vunpack.c.0.s8 %v95
  %v712 = vunpack.c.0.s8 %v96
  %v713 = vunpack.c.0.s8 %v97
  %v714 = vunpack.c.0.s8 %v98
  %v715 = vunpack.c.1.s8 %v95
  %v716 = vunpack.c.1.s8 %v96
  %v717 = vunpack.c.1.s8 %v97
  %v718 = vunpack.c.1.s8 %v98
  %v719 = vunpack.c.2.s8 %v95
  %v720 = vunpack.c.2.s8 %v96
  %v721 = vunpack.c.2.s8 %v97
  %v722 = vunpack.c.2.s8 %v98
  %v723 = vunpack.c.3.s8 %v95
  %v724 = vunpack.c.3.s8 %v96
  %v725 = vunpack.c.3.s8 %v97
  %v726 = vunpack.c.3.s8 %v98
  %v727 = vunpack.c.0.s8 %v99
  %v728 = vunpack.c.0.s8 %v100
  %v729 = vunpack.c.0.s8 %v101
  %v730 = vunpack.c.0.s8 %v102
  %v731 = vunpack.c.1.s8 %v99
  %v732 = vunpack.c.1.s8 %v100
  %v733 = vunpack.c.1.s8 %v101
  %v734 = vunpack.c.1.s8 %v102
  %v735 = vunpack.c.2.s8 %v99
  %v736 = vunpack.c.2.s8 %v100
  %v737 = vunpack.c.2.s8 %v101
  %v738 = vunpack.c.2.s8 %v102
  %v739 = vunpack.c.3.s8 %v99
  %v740 = vunpack.c.3.s8 %v100
  %v741 = vunpack.c.3.s8 %v101
  %v742 = vunpack.c.3.s8 %v102
  %v743 = vunpack.c.0.s8 %v103
  %v744 = vunpack.c.0.s8 %v104
  %v745 = vunpack.c.0.s8 %v105
  %v746 = vunpack.c.0.s8 %v106
  %v747 = vunpack.c.1.s8 %v103
  %v748 = vunpack.c.1.s8 %v104
  %v749 = vunpack.c.1.s8 %v105
  %v750 = vunpack.c.1.s8 %v106
  %v751 = vunpack.c.2.s8 %v103
  %v752 = vunpack.c.2.s8 %v104
  %v753 = vunpack.c.2.s8 %v105
  %v754 = vunpack.c.2.s8 %v106
  %v755 = vunpack.c.3.s8 %v103
  %v756 = vunpack.c.3.s8 %v104
  %v757 = vunpack.c.3.s8 %v105
  %v758 = vunpack.c.3.s8 %v106
  %v759 = vunpack.c.0.s8 %v107
  %v760 = vunpack.c.0.s8 %v108
  %v761 = vunpack.c.0.s8 %v109
  %v762 = vunpack.c.0.s8 %v110
  %v763 = vunpack.c.1.s8 %v107
  %v764 = vunpack.c.1.s8 %v108
  %v765 = vunpack.c.1.s8 %v109
  %v766 = vunpack.c.1.s8 %v110
  %v767 = vunpack.c.2.s8 %v107
  %v768 = vunpack.c.2.s8 %v108
  %v769 = vunpack.c.2.s8 %v109
  %v770 = vunpack.c.2.s8 %v110
  %v771 = vunpack.c.3.s8 %v107
  %v772 = vunpack.c.3.s8 %v108
  %v773 = vunpack.c.3.s8 %v109
  %v774 = vunpack.c.3.s8 %v110
  %v775 = vunpack.c.0.s8 %v111
  %v776 = vunpack.c.0.s8 %v112
  %v777 = vunpack.c.0.s8 %v113
  %v778 = vunpack.c.0.s8 %v114
  %v779 = vunpack.c.1.s8 %v111
  %v780 = vunpack.c.1.s8 %v112
  %v781 = vunpack.c.1.s8 %v113
  %v782 = vunpack.c.1.s8 %v114
  %v783 = vunpack.c.2.s8 %v111
  %v784 = vunpack.c.2.s8 %v112
  %v785 = vunpack.c.2.s8 %v113
  %v786 = vunpack.c.2.s8 %v114
  %v787 = vunpack.c.3.s8 %v111
  %v788 = vunpack.c.3.s8 %v112
  %v789 = vunpack.c.3.s8 %v113
  %v790 = vunpack.c.3.s8 %v114
  %v791 = vunpack.c.0.s8 %v115
  %v792 = vunpack.c.0.s8 %v116
  %v793 = vunpack.c.0.s8 %v117
  %v794 = vunpack.c.0.s8 %v118
  %v795 = vunpack.c.1.s8 %v115
  %v796 = vunpack.c.1.s8 %v116
  %v797 = vunpack.c.1.s8 %v117
  %v798 = vunpack.c.1.s8 %v118
  %v799 = vunpack.c.2.s8 %v115
  %v800 = vunpack.c.2.s8 %v116
  %v801 = vunpack.c.2.s8 %v117
  %v802 = vunpack.c.2.s8 %v118
  %v803 = vunpack.c.3.s8 %v115
  %v804 = vunpack.c.3.s8 %v116
  %v805 = vunpack.c.3.s8 %v117
  %v806 = vunpack.c.3.s8 %v118
  %v807 = vunpack.c.0.s8 %v119
  %v808 = vunpack.c.0.s8 %v120
  %v809 = vunpack.c.0.s8 %v121
  %v810 = vunpack.c.0.s8 %v122
  %v811 = vunpack.c.1.s8 %v119
  %v812 = vunpack.c.1.s8 %v120
  %v813 = vunpack.c.1.s8 %v121
  %v814 = vunpack.c.1.s8 %v122
  %v815 = vunpack.c.2.s8 %v119
  %v816 = vunpack.c.2.s8 %v120
  %v817 = vunpack.c.2.s8 %v121
  %v818 = vunpack.c.2.s8 %v122
  %v819 = vunpack.c.3.s8 %v119
  %v820 = vunpack.c.3.s8 %v120
  %v821 = vunpack.c.3.s8 %v121
  %v822 = vunpack.c.3.s8 %v122
  %v823 = vunpack.c.0.s8 %v123
  %v824 = vunpack.c.0.s8 %v124
  %v825 = vunpack.c.0.s8 %v125
  %v826 = vunpack.c.0.s8 %v126
  %v827 = vunpack.c.1.s8 %v123
  %v828 = vunpack.c.1.s8 %v124
  %v829 = vunpack.c.1.s8 %v125
  %v830 = vunpack.c.1.s8 %v126
  %v831 = vunpack.c.2.s8 %v123
  %v832 = vunpack.c.2.s8 %v124
  %v833 = vunpack.c.2.s8 %v125
  %v834 = vunpack.c.2.s8 %v126
  %v835 = vunpack.c.3.s8 %v123
  %v836 = vunpack.c.3.s8 %v124
  %v837 = vunpack.c.3.s8 %v125
  %v838 = vunpack.c.3.s8 %v126
  %v839 = vunpack.c.0.s8 %v127
  %v840 = vunpack.c.0.s8 %v128
  %v841 = vunpack.c.0.s8 %v129
  %v842 = vunpack.c.0.s8 %v130
  %v843 = vunpack.c.1.s8 %v127
  %v844 = vunpack.c.1.s8 %v128
  %v845 = vunpack.c.1.s8 %v129
  %v846 = vunpack.c.1.s8 %v130
  %v847 = vunpack.c.2.s8 %v127
  %v848 = vunpack.c.2.s8 %v128
  %v849 = vunpack.c.2.s8 %v129
  %v850 = vunpack.c.2.s8 %v130
  %v851 = vunpack.c.3.s8 %v127
  %v852 = vunpack.c.3.s8 %v128
  %v853 = vunpack.c.3.s8 %v129
  %v854 = vunpack.c.3.s8 %v130
  %v855 = vunpack.c.0.s8 %v131
  %v856 = vunpack.c.0.s8 %v132
  %v857 = vunpack.c.0.s8 %v133
  %v858 = vunpack.c.0.s8 %v134
  %v859 = vunpack.c.1.s8 %v131
  %v860 = vunpack.c.1.s8 %v132
  %v861 = vunpack.c.1.s8 %v133
  %v862 = vunpack.c.1.s8 %v134
  %v863 = vunpack.c.2.s8 %v131
  %v864 = vunpack.c.2.s8 %v132
  %v865 = vunpack.c.2.s8 %v133
  %v866 = vunpack.c.2.s8 %v134
  %v867 = vunpack.c.3.s8 %v131
  %v868 = vunpack.c.3.s8 %v132
  %v869 = vunpack.c.3.s8 %v133
  %v870 = vunpack.c.3.s8 %v134
  %v871 = vunpack.c.0.s8 %v135
  %v872 = vunpack.c.0.s8 %v136
  %v873 = vunpack.c.0.s8 %v137
  %v874 = vunpack.c.0.s8 %v138
  %v875 = vunpack.c.1.s8 %v135
  %v876 = vunpack.c.1.s8 %v136
  %v877 = vunpack.c.1.s8 %v137
  %v878 = vunpack.c.1.s8 %v138
  %v879 = vunpack.c.2.s8 %v135
  %v880 = vunpack.c.2.s8 %v136
  %v881 = vunpack.c.2.s8 %v137
  %v882 = vunpack.c.2.s8 %v138
  %v883 = vunpack.c.3.s8 %v135
  %v884 = vunpack.c.3.s8 %v136
  %v885 = vunpack.c.3.s8 %v137
  %v886 = vunpack.c.3.s8 %v138
  %v887 = vunpack.c.0.s8 %v139
  %v888 = vunpack.c.0.s8 %v140
  %v889 = vunpack.c.0.s8 %v141
  %v890 = vunpack.c.0.s8 %v142
  %v891 = vunpack.c.1.s8 %v139
  %v892 = vunpack.c.1.s8 %v140
  %v893 = vunpack.c.1.s8 %v141
  %v894 = vunpack.c.1.s8 %v142
  %v895 = vunpack.c.2.s8 %v139
  %v896 = vunpack.c.2.s8 %v140
  %v897 = vunpack.c.2.s8 %v141
  %v898 = vunpack.c.2.s8 %v142
  %v899 = vunpack.c.3.s8 %v139
  %v900 = vunpack.c.3.s8 %v140
  %v901 = vunpack.c.3.s8 %v141
  %v902 = vunpack.c.3.s8 %v142
  %v903 = vunpack.c.0.s8 %v143
  %v904 = vunpack.c.0.s8 %v144
  %v905 = vunpack.c.0.s8 %v145
  %v906 = vunpack.c.0.s8 %v146
  %v907 = vunpack.c.1.s8 %v143
  %v908 = vunpack.c.1.s8 %v144
  %v909 = vunpack.c.1.s8 %v145
  %v910 = vunpack.c.1.s8 %v146
  %v911 = vunpack.c.2.s8 %v143
  %v912 = vunpack.c.2.s8 %v144
  %v913 = vunpack.c.2.s8 %v145
  %v914 = vunpack.c.2.s8 %v146
  %v915 = vunpack.c.3.s8 %v143
  %v916 = vunpack.c.3.s8 %v144
  %v917 = vunpack.c.3.s8 %v145
  %v918 = vunpack.c.3.s8 %v146
  %v919 = vunpack.c.0.s8 %v147
  %v920 = vunpack.c.0.s8 %v148
  %v921 = vunpack.c.0.s8 %v149
  %v922 = vunpack.c.0.s8 %v150
  %v923 = vunpack.c.1.s8 %v147
  %v924 = vunpack.c.1.s8 %v148
  %v925 = vunpack.c.1.s8 %v149
  %v926 = vunpack.c.1.s8 %v150
  %v927 = vunpack.c.2.s8 %v147
  %v928 = vunpack.c.2.s8 %v148
  %v929 = vunpack.c.2.s8 %v149
  %v930 = vunpack.c.2.s8 %v150
  %v931 = vunpack.c.3.s8 %v147
  %v932 = vunpack.c.3.s8 %v148
  %v933 = vunpack.c.3.s8 %v149
  %v934 = vunpack.c.3.s8 %v150
  %v935 = vunpack.c.0.s8 %v151
  %v936 = vunpack.c.0.s8 %v152
  %v937 = vunpack.c.0.s8 %v153
  %v938 = vunpack.c.0.s8 %v154
  %v939 = vunpack.c.1.s8 %v151
  %v940 = vunpack.c.1.s8 %v152
  %v941 = vunpack.c.1.s8 %v153
  %v942 = vunpack.c.1.s8 %v154
  %v943 = vunpack.c.2.s8 %v151
  %v944 = vunpack.c.2.s8 %v152
  %v945 = vunpack.c.2.s8 %v153
  %v946 = vunpack.c.2.s8 %v154
  %v947 = vunpack.c.3.s8 %v151
  %v948 = vunpack.c.3.s8 %v152
  %v949 = vunpack.c.3.s8 %v153
  %v950 = vunpack.c.3.s8 %v154
  %v951 = vunpack.c.0.s8 %v155
  %v952 = vunpack.c.0.s8 %v156
  %v953 = vunpack.c.0.s8 %v157
  %v954 = vunpack.c.0.s8 %v158
  %v955 = vunpack.c.1.s8 %v155
  %v956 = vunpack.c.1.s8 %v156
  %v957 = vunpack.c.1.s8 %v157
  %v958 = vunpack.c.1.s8 %v158
  %v959 = vunpack.c.2.s8 %v155
  %v960 = vunpack.c.2.s8 %v156
  %v961 = vunpack.c.2.s8 %v157
  %v962 = vunpack.c.2.s8 %v158
  %v963 = vunpack.c.3.s8 %v155
  %v964 = vunpack.c.3.s8 %v156
  %v965 = vunpack.c.3.s8 %v157
  %v966 = vunpack.c.3.s8 %v158
  %v967 = vunpack.c.0.s8 %v159
  %v968 = vunpack.c.0.s8 %v160
  %v969 = vunpack.c.0.s8 %v161
  %v970 = vunpack.c.0.s8 %v162
  %v971 = vunpack.c.1.s8 %v159
  %v972 = vunpack.c.1.s8 %v160
  %v973 = vunpack.c.1.s8 %v161
  %v974 = vunpack.c.1.s8 %v162
  %v975 = vunpack.c.2.s8 %v159
  %v976 = vunpack.c.2.s8 %v160
  %v977 = vunpack.c.2.s8 %v161
  %v978 = vunpack.c.2.s8 %v162
  %v979 = vunpack.c.3.s8 %v159
  %v980 = vunpack.c.3.s8 %v160
  %v981 = vunpack.c.3.s8 %v161
  %v982 = vunpack.c.3.s8 %v162
  %v983 = vunpack.c.0.s8 %v163
  %v984 = vunpack.c.0.s8 %v164
  %v985 = vunpack.c.0.s8 %v165
  %v986 = vunpack.c.0.s8 %v166
  %v987 = vunpack.c.1.s8 %v163
  %v988 = vunpack.c.1.s8 %v164
  %v989 = vunpack.c.1.s8 %v165
  %v990 = vunpack.c.1.s8 %v166
  %v991 = vunpack.c.2.s8 %v163
  %v992 = vunpack.c.2.s8 %v164
  %v993 = vunpack.c.2.s8 %v165
  %v994 = vunpack.c.2.s8 %v166
  %v995 = vunpack.c.3.s8 %v163
  %v996 = vunpack.c.3.s8 %v164
  %v997 = vunpack.c.3.s8 %v165
  %v998 = vunpack.c.3.s8 %v166
  %v999 = vunpack.c.0.s8 %v167
  %v1000 = vunpack.c.0.s8 %v168
  %v1001 = vunpack.c.0.s8 %v169
  %v1002 = vunpack.c.0.s8 %v170
  %v1003 = vunpack.c.1.s8 %v167
  %v1004 = vunpack.c.1.s8 %v168
  %v1005 = vunpack.c.1.s8 %v169
  %v1006 = vunpack.c.1.s8 %v170
  %v1007 = vunpack.c.2.s8 %v167
  %v1008 = vunpack.c.2.s8 %v168
  %v1009 = vunpack.c.2.s8 %v169
  %v1010 = vunpack.c.2.s8 %v170
  %v1011 = vunpack.c.3.s8 %v167
  %v1012 = vunpack.c.3.s8 %v168
  %v1013 = vunpack.c.3.s8 %v169
  %v1014 = vunpack.c.3.s8 %v170
  %v1015 = vunpack.c.0.s8 %v171
  %v1016 = vunpack.c.0.s8 %v172
  %v1017 = vunpack.c.0.s8 %v173
  %v1018 = vunpack.c.0.s8 %v174
  %v1019 = vunpack.c.1.s8 %v171
  %v1020 = vunpack.c.1.s8 %v172
  %v1021 = vunpack.c.1.s8 %v173
  %v1022 = vunpack.c.1.s8 %v174
  %v1023 = vunpack.c.2.s8 %v171
  %v1024 = vunpack.c.2.s8 %v172
  %v1025 = vunpack.c.2.s8 %v173
  %v1026 = vunpack.c.2.s8 %v174
  %v1027 = vunpack.c.3.s8 %v171
  %v1028 = vunpack.c.3.s8 %v172
  %v1029 = vunpack.c.3.s8 %v173
  %v1030 = vunpack.c.3.s8 %v174
  %v1031 = vunpack.c.0.s8 %v175
  %v1032 = vunpack.c.0.s8 %v176
  %v1033 = vunpack.c.0.s8 %v177
  %v1034 = vunpack.c.0.s8 %v178
  %v1035 = vunpack.c.1.s8 %v175
  %v1036 = vunpack.c.1.s8 %v176
  %v1037 = vunpack.c.1.s8 %v177
  %v1038 = vunpack.c.1.s8 %v178
  %v1039 = vunpack.c.2.s8 %v175
  %v1040 = vunpack.c.2.s8 %v176
  %v1041 = vunpack.c.2.s8 %v177
  %v1042 = vunpack.c.2.s8 %v178
  %v1043 = vunpack.c.3.s8 %v175
  %v1044 = vunpack.c.3.s8 %v176
  %v1045 = vunpack.c.3.s8 %v177
  %v1046 = vunpack.c.3.s8 %v178
  %v1047 = vunpack.c.0.s8 %v179
  %v1048 = vunpack.c.0.s8 %v180
  %v1049 = vunpack.c.0.s8 %v181
  %v1050 = vunpack.c.0.s8 %v182
  %v1051 = vunpack.c.1.s8 %v179
  %v1052 = vunpack.c.1.s8 %v180
  %v1053 = vunpack.c.1.s8 %v181
  %v1054 = vunpack.c.1.s8 %v182
  %v1055 = vunpack.c.2.s8 %v179
  %v1056 = vunpack.c.2.s8 %v180
  %v1057 = vunpack.c.2.s8 %v181
  %v1058 = vunpack.c.2.s8 %v182
  %v1059 = vunpack.c.3.s8 %v179
  %v1060 = vunpack.c.3.s8 %v180
  %v1061 = vunpack.c.3.s8 %v181
  %v1062 = vunpack.c.3.s8 %v182
  %v1063 = vunpack.c.0.s8 %v183
  %v1064 = vunpack.c.0.s8 %v184
  %v1065 = vunpack.c.0.s8 %v185
  %v1066 = vunpack.c.0.s8 %v186
  %v1067 = vunpack.c.1.s8 %v183
  %v1068 = vunpack.c.1.s8 %v184
  %v1069 = vunpack.c.1.s8 %v185
  %v1070 = vunpack.c.1.s8 %v186
  %v1071 = vunpack.c.2.s8 %v183
  %v1072 = vunpack.c.2.s8 %v184
  %v1073 = vunpack.c.2.s8 %v185
  %v1074 = vunpack.c.2.s8 %v186
  %v1075 = vunpack.c.3.s8 %v183
  %v1076 = vunpack.c.3.s8 %v184
  %v1077 = vunpack.c.3.s8 %v185
  %v1078 = vunpack.c.3.s8 %v186
  %v1079 = vunpack.c.0.s8 %v187
  %v1080 = vunpack.c.0.s8 %v188
  %v1081 = vunpack.c.0.s8 %v189
  %v1082 = vunpack.c.0.s8 %v190
  %v1083 = vunpack.c.1.s8 %v187
  %v1084 = vunpack.c.1.s8 %v188
  %v1085 = vunpack.c.1.s8 %v189
  %v1086 = vunpack.c.1.s8 %v190
  %v1087 = vunpack.c.2.s8 %v187
  %v1088 = vunpack.c.2.s8 %v188
  %v1089 = vunpack.c.2.s8 %v189
  %v1090 = vunpack.c.2.s8 %v190
  %v1091 = vunpack.c.3.s8 %v187
  %v1092 = vunpack.c.3.s8 %v188
  %v1093 = vunpack.c.3.s8 %v189
  %v1094 = vunpack.c.3.s8 %v190
  %v1095 = vunpack.c.0.s8 %v191
  %v1096 = vunpack.c.0.s8 %v192
  %v1097 = vunpack.c.0.s8 %v193
  %v1098 = vunpack.c.0.s8 %v194
  %v1099 = vunpack.c.1.s8 %v191
  %v1100 = vunpack.c.1.s8 %v192
  %v1101 = vunpack.c.1.s8 %v193
  %v1102 = vunpack.c.1.s8 %v194
  %v1103 = vunpack.c.2.s8 %v191
  %v1104 = vunpack.c.2.s8 %v192
  %v1105 = vunpack.c.2.s8 %v193
  %v1106 = vunpack.c.2.s8 %v194
  %v1107 = vunpack.c.3.s8 %v191
  %v1108 = vunpack.c.3.s8 %v192
  %v1109 = vunpack.c.3.s8 %v193
  %v1110 = vunpack.c.3.s8 %v194
  %v1111 = vunpack.c.0.s8 %v195
  %v1112 = vunpack.c.0.s8 %v196
  %v1113 = vunpack.c.0.s8 %v197
  %v1114 = vunpack.c.0.s8 %v198
  %v1115 = vunpack.c.1.s8 %v195
  %v1116 = vunpack.c.1.s8 %v196
  %v1117 = vunpack.c.1.s8 %v197
  %v1118 = vunpack.c.1.s8 %v198
  %v1119 = vunpack.c.2.s8 %v195
  %v1120 = vunpack.c.2.s8 %v196
  %v1121 = vunpack.c.2.s8 %v197
  %v1122 = vunpack.c.2.s8 %v198
  %v1123 = vunpack.c.3.s8 %v195
  %v1124 = vunpack.c.3.s8 %v196
  %v1125 = vunpack.c.3.s8 %v197
  %v1126 = vunpack.c.3.s8 %v198
  %v1127 = vunpack.c.0.s8 %v199
  %v1128 = vunpack.c.0.s8 %v200
  %v1129 = vunpack.c.0.s8 %v201
  %v1130 = vunpack.c.0.s8 %v202
  %v1131 = vunpack.c.1.s8 %v199
  %v1132 = vunpack.c.1.s8 %v200
  %v1133 = vunpack.c.1.s8 %v201
  %v1134 = vunpack.c.1.s8 %v202
  %v1135 = vunpack.c.2.s8 %v199
  %v1136 = vunpack.c.2.s8 %v200
  %v1137 = vunpack.c.2.s8 %v201
  %v1138 = vunpack.c.2.s8 %v202
  %v1139 = vunpack.c.3.s8 %v199
  %v1140 = vunpack.c.3.s8 %v200
  %v1141 = vunpack.c.3.s8 %v201
  %v1142 = vunpack.c.3.s8 %v202
  %v1143 = vunpack.c.0.s8 %v203
  %v1144 = vunpack.c.0.s8 %v204
  %v1145 = vunpack.c.0.s8 %v205
  %v1146 = vunpack.c.0.s8 %v206
  %v1147 = vunpack.c.1.s8 %v203
  %v1148 = vunpack.c.1.s8 %v204
  %v1149 = vunpack.c.1.s8 %v205
  %v1150 = vunpack.c.1.s8 %v206
  %v1151 = vunpack.c.2.s8 %v203
  %v1152 = vunpack.c.2.s8 %v204
  %v1153 = vunpack.c.2.s8 %v205
  %v1154 = vunpack.c.2.s8 %v206
  %v1155 = vunpack.c.3.s8 %v203
  %v1156 = vunpack.c.3.s8 %v204
  %v1157 = vunpack.c.3.s8 %v205
  %v1158 = vunpack.c.3.s8 %v206
  %v1159 = vunpack.c.0.s8 %v207
  %v1160 = vunpack.c.0.s8 %v208
  %v1161 = vunpack.c.0.s8 %v209
  %v1162 = vunpack.c.0.s8 %v210
  %v1163 = vunpack.c.1.s8 %v207
  %v1164 = vunpack.c.1.s8 %v208
  %v1165 = vunpack.c.1.s8 %v209
  %v1166 = vunpack.c.1.s8 %v210
  %v1167 = vunpack.c.2.s8 %v207
  %v1168 = vunpack.c.2.s8 %v208
  %v1169 = vunpack.c.2.s8 %v209
  %v1170 = vunpack.c.2.s8 %v210
  %v1171 = vunpack.c.3.s8 %v207
  %v1172 = vunpack.c.3.s8 %v208
  %v1173 = vunpack.c.3.s8 %v209
  %v1174 = vunpack.c.3.s8 %v210
  %v1175 = vunpack.c.0.s8 %v211
  %v1176 = vunpack.c.0.s8 %v212
  %v1177 = vunpack.c.0.s8 %v213
  %v1178 = vunpack.c.0.s8 %v214
  %v1179 = vunpack.c.1.s8 %v211
  %v1180 = vunpack.c.1.s8 %v212
  %v1181 = vunpack.c.1.s8 %v213
  %v1182 = vunpack.c.1.s8 %v214
  %v1183 = vunpack.c.2.s8 %v211
  %v1184 = vunpack.c.2.s8 %v212
  %v1185 = vunpack.c.2.s8 %v213
  %v1186 = vunpack.c.2.s8 %v214
  %v1187 = vunpack.c.3.s8 %v211
  %v1188 = vunpack.c.3.s8 %v212
  %v1189 = vunpack.c.3.s8 %v213
  %v1190 = vunpack.c.3.s8 %v214
  %v1191 = vunpack.c.0.s8 %v215
  %v1192 = vunpack.c.0.s8 %v216
  %v1193 = vunpack.c.0.s8 %v217
  %v1194 = vunpack.c.0.s8 %v218
  %v1195 = vunpack.c.1.s8 %v215
  %v1196 = vunpack.c.1.s8 %v216
  %v1197 = vunpack.c.1.s8 %v217
  %v1198 = vunpack.c.1.s8 %v218
  %v1199 = vunpack.c.2.s8 %v215
  %v1200 = vunpack.c.2.s8 %v216
  %v1201 = vunpack.c.2.s8 %v217
  %v1202 = vunpack.c.2.s8 %v218
  %v1203 = vunpack.c.3.s8 %v215
  %v1204 = vunpack.c.3.s8 %v216
  %v1205 = vunpack.c.3.s8 %v217
  %v1206 = vunpack.c.3.s8 %v218
  %v1207 = vunpack.c.0.s8 %v219
  %v1208 = vunpack.c.0.s8 %v220
  %v1209 = vunpack.c.0.s8 %v221
  %v1210 = vunpack.c.0.s8 %v222
  %v1211 = vunpack.c.1.s8 %v219
  %v1212 = vunpack.c.1.s8 %v220
  %v1213 = vunpack.c.1.s8 %v221
  %v1214 = vunpack.c.1.s8 %v222
  %v1215 = vunpack.c.2.s8 %v219
  %v1216 = vunpack.c.2.s8 %v220
  %v1217 = vunpack.c.2.s8 %v221
  %v1218 = vunpack.c.2.s8 %v222
  %v1219 = vunpack.c.3.s8 %v219
  %v1220 = vunpack.c.3.s8 %v220
  %v1221 = vunpack.c.3.s8 %v221
  %v1222 = vunpack.c.3.s8 %v222
  %v1223 = vunpack.c.0.s8 %v223
  %v1224 = vunpack.c.0.s8 %v224
  %v1225 = vunpack.c.0.s8 %v225
  %v1226 = vunpack.c.0.s8 %v226
  %v1227 = vunpack.c.1.s8 %v223
  %v1228 = vunpack.c.1.s8 %v224
  %v1229 = vunpack.c.1.s8 %v225
  %v1230 = vunpack.c.1.s8 %v226
  %v1231 = vunpack.c.2.s8 %v223
  %v1232 = vunpack.c.2.s8 %v224
  %v1233 = vunpack.c.2.s8 %v225
  %v1234 = vunpack.c.2.s8 %v226
  %v1235 = vunpack.c.3.s8 %v223
  %v1236 = vunpack.c.3.s8 %v224
  %v1237 = vunpack.c.3.s8 %v225
  %v1238 = vunpack.c.3.s8 %v226
  %v1239 = vunpack.c.0.s8 %v227
  %v1240 = vunpack.c.0.s8 %v228
  %v1241 = vunpack.c.0.s8 %v229
  %v1242 = vunpack.c.0.s8 %v230
  %v1243 = vunpack.c.1.s8 %v227
  %v1244 = vunpack.c.1.s8 %v228
  %v1245 = vunpack.c.1.s8 %v229
  %v1246 = vunpack.c.1.s8 %v230
  %v1247 = vunpack.c.2.s8 %v227
  %v1248 = vunpack.c.2.s8 %v228
  %v1249 = vunpack.c.2.s8 %v229
  %v1250 = vunpack.c.2.s8 %v230
  %v1251 = vunpack.c.3.s8 %v227
  %v1252 = vunpack.c.3.s8 %v228
  %v1253 = vunpack.c.3.s8 %v229
  %v1254 = vunpack.c.3.s8 %v230
  %v1255 = vunpack.c.0.s8 %v231
  %v1256 = vunpack.c.0.s8 %v232
  %v1257 = vunpack.c.0.s8 %v233
  %v1258 = vunpack.c.0.s8 %v234
  %v1259 = vunpack.c.1.s8 %v231
  %v1260 = vunpack.c.1.s8 %v232
  %v1261 = vunpack.c.1.s8 %v233
  %v1262 = vunpack.c.1.s8 %v234
  %v1263 = vunpack.c.2.s8 %v231
  %v1264 = vunpack.c.2.s8 %v232
  %v1265 = vunpack.c.2.s8 %v233
  %v1266 = vunpack.c.2.s8 %v234
  %v1267 = vunpack.c.3.s8 %v231
  %v1268 = vunpack.c.3.s8 %v232
  %v1269 = vunpack.c.3.s8 %v233
  %v1270 = vunpack.c.3.s8 %v234
  %v1271 = vunpack.c.0.s8 %v235
  %v1272 = vunpack.c.0.s8 %v236
  %v1273 = vunpack.c.0.s8 %v237
  %v1274 = vunpack.c.0.s8 %v238
  %v1275 = vunpack.c.1.s8 %v235
  %v1276 = vunpack.c.1.s8 %v236
  %v1277 = vunpack.c.1.s8 %v237
  %v1278 = vunpack.c.1.s8 %v238
  %v1279 = vunpack.c.2.s8 %v235
  %v1280 = vunpack.c.2.s8 %v236
  %v1281 = vunpack.c.2.s8 %v237
  %v1282 = vunpack.c.2.s8 %v238
  %v1283 = vunpack.c.3.s8 %v235
  %v1284 = vunpack.c.3.s8 %v236
  %v1285 = vunpack.c.3.s8 %v237
  %v1286 = vunpack.c.3.s8 %v238
  %v1287 = vunpack.c.0.s8 %v239
  %v1288 = vunpack.c.0.s8 %v240
  %v1289 = vunpack.c.0.s8 %v241
  %v1290 = vunpack.c.0.s8 %v242
  %v1291 = vunpack.c.1.s8 %v239
  %v1292 = vunpack.c.1.s8 %v240
  %v1293 = vunpack.c.1.s8 %v241
  %v1294 = vunpack.c.1.s8 %v242
  %v1295 = vunpack.c.2.s8 %v239
  %v1296 = vunpack.c.2.s8 %v240
  %v1297 = vunpack.c.2.s8 %v241
  %v1298 = vunpack.c.2.s8 %v242
  %v1299 = vunpack.c.3.s8 %v239
  %v1300 = vunpack.c.3.s8 %v240
  %v1301 = vunpack.c.3.s8 %v241
  %v1302 = vunpack.c.3.s8 %v242
  %v1303 = vunpack.c.0.s8 %v243
  %v1304 = vunpack.c.0.s8 %v244
  %v1305 = vunpack.c.0.s8 %v245
  %v1306 = vunpack.c.0.s8 %v246
  %v1307 = vunpack.c.1.s8 %v243
  %v1308 = vunpack.c.1.s8 %v244
  %v1309 = vunpack.c.1.s8 %v245
  %v1310 = vunpack.c.1.s8 %v246
  %v1311 = vunpack.c.2.s8 %v243
  %v1312 = vunpack.c.2.s8 %v244
  %v1313 = vunpack.c.2.s8 %v245
  %v1314 = vunpack.c.2.s8 %v246
  %v1315 = vunpack.c.3.s8 %v243
  %v1316 = vunpack.c.3.s8 %v244
  %v1317 = vunpack.c.3.s8 %v245
  %v1318 = vunpack.c.3.s8 %v246
  %v1319 = vunpack.c.0.s8 %v247
  %v1320 = vunpack.c.0.s8 %v248
  %v1321 = vunpack.c.0.s8 %v249
  %v1322 = vunpack.c.0.s8 %v250
  %v1323 = vunpack.c.1.s8 %v247
  %v1324 = vunpack.c.1.s8 %v248
  %v1325 = vunpack.c.1.s8 %v249
  %v1326 = vunpack.c.1.s8 %v250
  %v1327 = vunpack.c.2.s8 %v247
  %v1328 = vunpack.c.2.s8 %v248
  %v1329 = vunpack.c.2.s8 %v249
  %v1330 = vunpack.c.2.s8 %v250
  %v1331 = vunpack.c.3.s8 %v247
  %v1332 = vunpack.c.3.s8 %v248
  %v1333 = vunpack.c.3.s8 %v249
  %v1334 = vunpack.c.3.s8 %v250
  %v1335 = vunpack.c.0.s8 %v251
  %v1336 = vunpack.c.0.s8 %v252
  %v1337 = vunpack.c.0.s8 %v253
  %v1338 = vunpack.c.0.s8 %v254
  %v1339 = vunpack.c.1.s8 %v251
  %v1340 = vunpack.c.1.s8 %v252
  %v1341 = vunpack.c.1.s8 %v253
  %v1342 = vunpack.c.1.s8 %v254
  %v1343 = vunpack.c.2.s8 %v251
  %v1344 = vunpack.c.2.s8 %v252
  %v1345 = vunpack.c.2.s8 %v253
  %v1346 = vunpack.c.2.s8 %v254
  %v1347 = vunpack.c.3.s8 %v251
  %v1348 = vunpack.c.3.s8 %v252
  %v1349 = vunpack.c.3.s8 %v253
  %v1350 = vunpack.c.3.s8 %v254
  %v1351 = vunpack.c.0.s8 %v255
  %v1352 = vunpack.c.0.s8 %v256
  %v1353 = vunpack.c.0.s8 %v257
  %v1354 = vunpack.c.0.s8 %v258
  %v1355 = vunpack.c.1.s8 %v255
  %v1356 = vunpack.c.1.s8 %v256
  %v1357 = vunpack.c.1.s8 %v257
  %v1358 = vunpack.c.1.s8 %v258
  %v1359 = vunpack.c.2.s8 %v255
  %v1360 = vunpack.c.2.s8 %v256
  %v1361 = vunpack.c.2.s8 %v257
  %v1362 = vunpack.c.2.s8 %v258
  %v1363 = vunpack.c.3.s8 %v255
  %v1364 = vunpack.c.3.s8 %v256
  %v1365 = vunpack.c.3.s8 %v257
  %v1366 = vunpack.c.3.s8 %v258
  %v1367 = vunpack.c.0.s8 %v259
  %v1368 = vunpack.c.0.s8 %v260
  %v1369 = vunpack.c.0.s8 %v261
  %v1370 = vunpack.c.0.s8 %v262
  %v1371 = vunpack.c.1.s8 %v259
  %v1372 = vunpack.c.1.s8 %v260
  %v1373 = vunpack.c.1.s8 %v261
  %v1374 = vunpack.c.1.s8 %v262
  %v1375 = vunpack.c.2.s8 %v259
  %v1376 = vunpack.c.2.s8 %v260
  %v1377 = vunpack.c.2.s8 %v261
  %v1378 = vunpack.c.2.s8 %v262
  %v1379 = vunpack.c.3.s8 %v259
  %v1380 = vunpack.c.3.s8 %v260
  %v1381 = vunpack.c.3.s8 %v261
  %v1382 = vunpack.c.3.s8 %v262
  %v1383 = vunpack.c.0.s8 %v263
  %v1384 = vunpack.c.0.s8 %v264
  %v1385 = vunpack.c.0.s8 %v265
  %v1386 = vunpack.c.0.s8 %v266
  %v1387 = vunpack.c.1.s8 %v263
  %v1388 = vunpack.c.1.s8 %v264
  %v1389 = vunpack.c.1.s8 %v265
  %v1390 = vunpack.c.1.s8 %v266
  %v1391 = vunpack.c.2.s8 %v263
  %v1392 = vunpack.c.2.s8 %v264
  %v1393 = vunpack.c.2.s8 %v265
  %v1394 = vunpack.c.2.s8 %v266
  %v1395 = vunpack.c.3.s8 %v263
  %v1396 = vunpack.c.3.s8 %v264
  %v1397 = vunpack.c.3.s8 %v265
  %v1398 = vunpack.c.3.s8 %v266
  %v1399 = vunpack.c.0.s8 %v267
  %v1400 = vunpack.c.0.s8 %v268
  %v1401 = vunpack.c.0.s8 %v269
  %v1402 = vunpack.c.0.s8 %v270
  %v1403 = vunpack.c.1.s8 %v267
  %v1404 = vunpack.c.1.s8 %v268
  %v1405 = vunpack.c.1.s8 %v269
  %v1406 = vunpack.c.1.s8 %v270
  %v1407 = vunpack.c.2.s8 %v267
  %v1408 = vunpack.c.2.s8 %v268
  %v1409 = vunpack.c.2.s8 %v269
  %v1410 = vunpack.c.2.s8 %v270
  %v1411 = vunpack.c.3.s8 %v267
  %v1412 = vunpack.c.3.s8 %v268
  %v1413 = vunpack.c.3.s8 %v269
  %v1414 = vunpack.c.3.s8 %v270
  %v1415 = vunpack.c.0.s8 %v271
  %v1416 = vunpack.c.0.s8 %v272
  %v1417 = vunpack.c.0.s8 %v273
  %v1418 = vunpack.c.0.s8 %v274
  %v1419 = vunpack.c.1.s8 %v271
  %v1420 = vunpack.c.1.s8 %v272
  %v1421 = vunpack.c.1.s8 %v273
  %v1422 = vunpack.c.1.s8 %v274
  %v1423 = vunpack.c.2.s8 %v271
  %v1424 = vunpack.c.2.s8 %v272
  %v1425 = vunpack.c.2.s8 %v273
  %v1426 = vunpack.c.2.s8 %v274
  %v1427 = vunpack.c.3.s8 %v271
  %v1428 = vunpack.c.3.s8 %v272
  %v1429 = vunpack.c.3.s8 %v273
  %v1430 = vunpack.c.3.s8 %v274
  %v1431 = vunpack.c.0.s8 %v275
  %v1432 = vunpack.c.0.s8 %v276
  %v1433 = vunpack.c.0.s8 %v277
  %v1434 = vunpack.c.0.s8 %v278
  %v1435 = vunpack.c.1.s8 %v275
  %v1436 = vunpack.c.1.s8 %v276
  %v1437 = vunpack.c.1.s8 %v277
  %v1438 = vunpack.c.1.s8 %v278
  %v1439 = vunpack.c.2.s8 %v275
  %v1440 = vunpack.c.2.s8 %v276
  %v1441 = vunpack.c.2.s8 %v277
  %v1442 = vunpack.c.2.s8 %v278
  %v1443 = vunpack.c.3.s8 %v275
  %v1444 = vunpack.c.3.s8 %v276
  %v1445 = vunpack.c.3.s8 %v277
  %v1446 = vunpack.c.3.s8 %v278
  %v1447 = vunpack.c.0.s8 %v279
  %v1448 = vunpack.c.0.s8 %v280
  %v1449 = vunpack.c.0.s8 %v281
  %v1450 = vunpack.c.0.s8 %v282
  %v1451 = vunpack.c.1.s8 %v279
  %v1452 = vunpack.c.1.s8 %v280
  %v1453 = vunpack.c.1.s8 %v281
  %v1454 = vunpack.c.1.s8 %v282
  %v1455 = vunpack.c.2.s8 %v279
  %v1456 = vunpack.c.2.s8 %v280
  %v1457 = vunpack.c.2.s8 %v281
  %v1458 = vunpack.c.2.s8 %v282
  %v1459 = vunpack.c.3.s8 %v279
  %v1460 = vunpack.c.3.s8 %v280
  %v1461 = vunpack.c.3.s8 %v281
  %v1462 = vunpack.c.3.s8 %v282
  %v1463 = vunpack.c.0.s8 %v283
  %v1464 = vunpack.c.0.s8 %v284
  %v1465 = vunpack.c.0.s8 %v285
  %v1466 = vunpack.c.0.s8 %v286
  %v1467 = vunpack.c.1.s8 %v283
  %v1468 = vunpack.c.1.s8 %v284
  %v1469 = vunpack.c.1.s8 %v285
  %v1470 = vunpack.c.1.s8 %v286
  %v1471 = vunpack.c.2.s8 %v283
  %v1472 = vunpack.c.2.s8 %v284
  %v1473 = vunpack.c.2.s8 %v285
  %v1474 = vunpack.c.2.s8 %v286
  %v1475 = vunpack.c.3.s8 %v283
  %v1476 = vunpack.c.3.s8 %v284
  %v1477 = vunpack.c.3.s8 %v285
  %v1478 = vunpack.c.3.s8 %v286
  %v1479 = vunpack.c.0.s8 %v287
  %v1480 = vunpack.c.0.s8 %v288
  %v1481 = vunpack.c.0.s8 %v289
  %v1482 = vunpack.c.0.s8 %v290
  %v1483 = vunpack.c.1.s8 %v287
  %v1484 = vunpack.c.1.s8 %v288
  %v1485 = vunpack.c.1.s8 %v289
  %v1486 = vunpack.c.1.s8 %v290
  %v1487 = vunpack.c.2.s8 %v287
  %v1488 = vunpack.c.2.s8 %v288
  %v1489 = vunpack.c.2.s8 %v289
  %v1490 = vunpack.c.2.s8 %v290
  %v1491 = vunpack.c.3.s8 %v287
  %v1492 = vunpack.c.3.s8 %v288
  %v1493 = vunpack.c.3.s8 %v289
  %v1494 = vunpack.c.3.s8 %v290
  %v1495 = vunpack.c.0.s8 %v291
  %v1496 = vunpack.c.0.s8 %v292
  %v1497 = vunpack.c.0.s8 %v293
  %v1498 = vunpack.c.0.s8 %v294
  %v1499 = vunpack.c.1.s8 %v291
  %v1500 = vunpack.c.1.s8 %v292
  %v1501 = vunpack.c.1.s8 %v293
  %v1502 = vunpack.c.1.s8 %v294
  %v1503 = vunpack.c.2.s8 %v291
  %v1504 = vunpack.c.2.s8 %v292
  %v1505 = vunpack.c.2.s8 %v293
  %v1506 = vunpack.c.2.s8 %v294
  %v1507 = vunpack.c.3.s8 %v291
  %v1508 = vunpack.c.3.s8 %v292
  %v1509 = vunpack.c.3.s8 %v293
  %v1510 = vunpack.c.3.s8 %v294
  %v1511 = vunpack.c.0.s8 %v295
  %v1512 = vunpack.c.0.s8 %v296
  %v1513 = vunpack.c.0.s8 %v297
  %v1514 = vunpack.c.0.s8 %v298
  %v1515 = vunpack.c.1.s8 %v295
  %v1516 = vunpack.c.1.s8 %v296
  %v1517 = vunpack.c.1.s8 %v297
  %v1518 = vunpack.c.1.s8 %v298
  %v1519 = vunpack.c.2.s8 %v295
  %v1520 = vunpack.c.2.s8 %v296
  %v1521 = vunpack.c.2.s8 %v297
  %v1522 = vunpack.c.2.s8 %v298
  %v1523 = vunpack.c.3.s8 %v295
  %v1524 = vunpack.c.3.s8 %v296
  %v1525 = vunpack.c.3.s8 %v297
  %v1526 = vunpack.c.3.s8 %v298
  %v1527 = vunpack.c.0.s8 %v299
  %v1528 = vunpack.c.0.s8 %v300
  %v1529 = vunpack.c.0.s8 %v301
  %v1530 = vunpack.c.0.s8 %v302
  %v1531 = vunpack.c.1.s8 %v299
  %v1532 = vunpack.c.1.s8 %v300
  %v1533 = vunpack.c.1.s8 %v301
  %v1534 = vunpack.c.1.s8 %v302
  %v1535 = vunpack.c.2.s8 %v299
  %v1536 = vunpack.c.2.s8 %v300
  %v1537 = vunpack.c.2.s8 %v301
  %v1538 = vunpack.c.2.s8 %v302
  %v1539 = vunpack.c.3.s8 %v299
  %v1540 = vunpack.c.3.s8 %v300
  %v1541 = vunpack.c.3.s8 %v301
  %v1542 = vunpack.c.3.s8 %v302
  %v1543 = vunpack.c.0.s8 %v303
  %v1544 = vunpack.c.0.s8 %v304
  %v1545 = vunpack.c.0.s8 %v305
  %v1546 = vunpack.c.0.s8 %v306
  %v1547 = vunpack.c.1.s8 %v303
  %v1548 = vunpack.c.1.s8 %v304
  %v1549 = vunpack.c.1.s8 %v305
  %v1550 = vunpack.c.1.s8 %v306
  %v1551 = vunpack.c.2.s8 %v303
  %v1552 = vunpack.c.2.s8 %v304
  %v1553 = vunpack.c.2.s8 %v305
  %v1554 = vunpack.c.2.s8 %v306
  %v1555 = vunpack.c.3.s8 %v303
  %v1556 = vunpack.c.3.s8 %v304
  %v1557 = vunpack.c.3.s8 %v305
  %v1558 = vunpack.c.3.s8 %v306
  %v1559 = vunpack.c.0.s8 %v307
  %v1560 = vunpack.c.0.s8 %v308
  %v1561 = vunpack.c.0.s8 %v309
  %v1562 = vunpack.c.0.s8 %v310
  %v1563 = vunpack.c.1.s8 %v307
  %v1564 = vunpack.c.1.s8 %v308
  %v1565 = vunpack.c.1.s8 %v309
  %v1566 = vunpack.c.1.s8 %v310
  %v1567 = vunpack.c.2.s8 %v307
  %v1568 = vunpack.c.2.s8 %v308
  %v1569 = vunpack.c.2.s8 %v309
  %v1570 = vunpack.c.2.s8 %v310
  %v1571 = vunpack.c.3.s8 %v307
  %v1572 = vunpack.c.3.s8 %v308
  %v1573 = vunpack.c.3.s8 %v309
  %v1574 = vunpack.c.3.s8 %v310
  %v1575 = vunpack.c.0.s8 %v311
  %v1576 = vunpack.c.0.s8 %v312
  %v1577 = vunpack.c.0.s8 %v313
  %v1578 = vunpack.c.0.s8 %v314
  %v1579 = vunpack.c.1.s8 %v311
  %v1580 = vunpack.c.1.s8 %v312
  %v1581 = vunpack.c.1.s8 %v313
  %v1582 = vunpack.c.1.s8 %v314
  %v1583 = vunpack.c.2.s8 %v311
  %v1584 = vunpack.c.2.s8 %v312
  %v1585 = vunpack.c.2.s8 %v313
  %v1586 = vunpack.c.2.s8 %v314
  %v1587 = vunpack.c.3.s8 %v311
  %v1588 = vunpack.c.3.s8 %v312
  %v1589 = vunpack.c.3.s8 %v313
  %v1590 = vunpack.c.3.s8 %v314
  %v1591 = vunpack.c.0.s8 %v315
  %v1592 = vunpack.c.0.s8 %v316
  %v1593 = vunpack.c.0.s8 %v317
  %v1594 = vunpack.c.0.s8 %v318
  %v1595 = vunpack.c.1.s8 %v315
  %v1596 = vunpack.c.1.s8 %v316
  %v1597 = vunpack.c.1.s8 %v317
  %v1598 = vunpack.c.1.s8 %v318
  %v1599 = vunpack.c.2.s8 %v315
  %v1600 = vunpack.c.2.s8 %v316
  %v1601 = vunpack.c.2.s8 %v317
  %v1602 = vunpack.c.2.s8 %v318
  %v1603 = vunpack.c.3.s8 %v315
  %v1604 = vunpack.c.3.s8 %v316
  %v1605 = vunpack.c.3.s8 %v317
  %v1606 = vunpack.c.3.s8 %v318
  %v1607 = vunpack.c.0.s8 %v319
  %v1608 = vunpack.c.0.s8 %v320
  %v1609 = vunpack.c.0.s8 %v321
  %v1610 = vunpack.c.0.s8 %v322
  %v1611 = vunpack.c.1.s8 %v319
  %v1612 = vunpack.c.1.s8 %v320
  %v1613 = vunpack.c.1.s8 %v321
  %v1614 = vunpack.c.1.s8 %v322
  %v1615 = vunpack.c.2.s8 %v319
  %v1616 = vunpack.c.2.s8 %v320
  %v1617 = vunpack.c.2.s8 %v321
  %v1618 = vunpack.c.2.s8 %v322
  %v1619 = vunpack.c.3.s8 %v319
  %v1620 = vunpack.c.3.s8 %v320
  %v1621 = vunpack.c.3.s8 %v321
  %v1622 = vunpack.c.3.s8 %v322
  %v1623 = vunpack.c.0.s8 %v323
  %v1624 = vunpack.c.0.s8 %v324
  %v1625 = vunpack.c.0.s8 %v325
  %v1626 = vunpack.c.0.s8 %v326
  %v1627 = vunpack.c.1.s8 %v323
  %v1628 = vunpack.c.1.s8 %v324
  %v1629 = vunpack.c.1.s8 %v325
  %v1630 = vunpack.c.1.s8 %v326
  %v1631 = vunpack.c.2.s8 %v323
  %v1632 = vunpack.c.2.s8 %v324
  %v1633 = vunpack.c.2.s8 %v325
  %v1634 = vunpack.c.2.s8 %v326
  %v1635 = vunpack.c.3.s8 %v323
  %v1636 = vunpack.c.3.s8 %v324
  %v1637 = vunpack.c.3.s8 %v325
  %v1638 = vunpack.c.3.s8 %v326
  %v1639 = vunpack.c.0.s8 %v327
  %v1640 = vunpack.c.0.s8 %v328
  %v1641 = vunpack.c.0.s8 %v329
  %v1642 = vunpack.c.0.s8 %v330
  %v1643 = vunpack.c.1.s8 %v327
  %v1644 = vunpack.c.1.s8 %v328
  %v1645 = vunpack.c.1.s8 %v329
  %v1646 = vunpack.c.1.s8 %v330
  %v1647 = vunpack.c.2.s8 %v327
  %v1648 = vunpack.c.2.s8 %v328
  %v1649 = vunpack.c.2.s8 %v329
  %v1650 = vunpack.c.2.s8 %v330
  %v1651 = vunpack.c.3.s8 %v327
  %v1652 = vunpack.c.3.s8 %v328
  %v1653 = vunpack.c.3.s8 %v329
  %v1654 = vunpack.c.3.s8 %v330
  %v1655 = vunpack.c.0.s8 %v331
  %v1656 = vunpack.c.0.s8 %v332
  %v1657 = vunpack.c.0.s8 %v333
  %v1658 = vunpack.c.0.s8 %v334
  %v1659 = vunpack.c.1.s8 %v331
  %v1660 = vunpack.c.1.s8 %v332
  %v1661 = vunpack.c.1.s8 %v333
  %v1662 = vunpack.c.1.s8 %v334
  %v1663 = vunpack.c.2.s8 %v331
  %v1664 = vunpack.c.2.s8 %v332
  %v1665 = vunpack.c.2.s8 %v333
  %v1666 = vunpack.c.2.s8 %v334
  %v1667 = vunpack.c.3.s8 %v331
  %v1668 = vunpack.c.3.s8 %v332
  %v1669 = vunpack.c.3.s8 %v333
  %v1670 = vunpack.c.3.s8 %v334
  %v1671 = vunpack.c.0.s8 %v335
  %v1672 = vunpack.c.0.s8 %v336
  %v1673 = vunpack.c.0.s8 %v337
  %v1674 = vunpack.c.0.s8 %v338
  %v1675 = vunpack.c.1.s8 %v335
  %v1676 = vunpack.c.1.s8 %v336
  %v1677 = vunpack.c.1.s8 %v337
  %v1678 = vunpack.c.1.s8 %v338
  %v1679 = vunpack.c.2.s8 %v335
  %v1680 = vunpack.c.2.s8 %v336
  %v1681 = vunpack.c.2.s8 %v337
  %v1682 = vunpack.c.2.s8 %v338
  %v1683 = vunpack.c.3.s8 %v335
  %v1684 = vunpack.c.3.s8 %v336
  %v1685 = vunpack.c.3.s8 %v337
  %v1686 = vunpack.c.3.s8 %v338
  %v1687 = vunpack.c.0.s8 %v339
  %v1688 = vunpack.c.0.s8 %v340
  %v1689 = vunpack.c.0.s8 %v341
  %v1690 = vunpack.c.0.s8 %v342
  %v1691 = vunpack.c.1.s8 %v339
  %v1692 = vunpack.c.1.s8 %v340
  %v1693 = vunpack.c.1.s8 %v341
  %v1694 = vunpack.c.1.s8 %v342
  %v1695 = vunpack.c.2.s8 %v339
  %v1696 = vunpack.c.2.s8 %v340
  %v1697 = vunpack.c.2.s8 %v341
  %v1698 = vunpack.c.2.s8 %v342
  %v1699 = vunpack.c.3.s8 %v339
  %v1700 = vunpack.c.3.s8 %v340
  %v1701 = vunpack.c.3.s8 %v341
  %v1702 = vunpack.c.3.s8 %v342
  %v1703 = vunpack.c.0.s8 %v343
  %v1704 = vunpack.c.0.s8 %v344
  %v1705 = vunpack.c.0.s8 %v345
  %v1706 = vunpack.c.0.s8 %v346
  %v1707 = vunpack.c.1.s8 %v343
  %v1708 = vunpack.c.1.s8 %v344
  %v1709 = vunpack.c.1.s8 %v345
  %v1710 = vunpack.c.1.s8 %v346
  %v1711 = vunpack.c.2.s8 %v343
  %v1712 = vunpack.c.2.s8 %v344
  %v1713 = vunpack.c.2.s8 %v345
  %v1714 = vunpack.c.2.s8 %v346
  %v1715 = vunpack.c.3.s8 %v343
  %v1716 = vunpack.c.3.s8 %v344
  %v1717 = vunpack.c.3.s8 %v345
  %v1718 = vunpack.c.3.s8 %v346
  %v1719 = vunpack.c.0.s8 %v347
  %v1720 = vunpack.c.0.s8 %v348
  %v1721 = vunpack.c.0.s8 %v349
  %v1722 = vunpack.c.0.s8 %v350
  %v1723 = vunpack.c.1.s8 %v347
  %v1724 = vunpack.c.1.s8 %v348
  %v1725 = vunpack.c.1.s8 %v349
  %v1726 = vunpack.c.1.s8 %v350
  %v1727 = vunpack.c.2.s8 %v347
  %v1728 = vunpack.c.2.s8 %v348
  %v1729 = vunpack.c.2.s8 %v349
  %v1730 = vunpack.c.2.s8 %v350
  %v1731 = vunpack.c.3.s8 %v347
  %v1732 = vunpack.c.3.s8 %v348
  %v1733 = vunpack.c.3.s8 %v349
  %v1734 = vunpack.c.3.s8 %v350
  %v1735 = vunpack.c.0.s8 %v351
  %v1736 = vunpack.c.0.s8 %v352
  %v1737 = vunpack.c.0.s8 %v353
  %v1738 = vunpack.c.0.s8 %v354
  %v1739 = vunpack.c.1.s8 %v351
  %v1740 = vunpack.c.1.s8 %v352
  %v1741 = vunpack.c.1.s8 %v353
  %v1742 = vunpack.c.1.s8 %v354
  %v1743 = vunpack.c.2.s8 %v351
  %v1744 = vunpack.c.2.s8 %v352
  %v1745 = vunpack.c.2.s8 %v353
  %v1746 = vunpack.c.2.s8 %v354
  %v1747 = vunpack.c.3.s8 %v351
  %v1748 = vunpack.c.3.s8 %v352
  %v1749 = vunpack.c.3.s8 %v353
  %v1750 = vunpack.c.3.s8 %v354
  %v1751 = vunpack.c.0.s8 %v355
  %v1752 = vunpack.c.0.s8 %v356
  %v1753 = vunpack.c.0.s8 %v357
  %v1754 = vunpack.c.0.s8 %v358
  %v1755 = vunpack.c.1.s8 %v355
  %v1756 = vunpack.c.1.s8 %v356
  %v1757 = vunpack.c.1.s8 %v357
  %v1758 = vunpack.c.1.s8 %v358
  %v1759 = vunpack.c.2.s8 %v355
  %v1760 = vunpack.c.2.s8 %v356
  %v1761 = vunpack.c.2.s8 %v357
  %v1762 = vunpack.c.2.s8 %v358
  %v1763 = vunpack.c.3.s8 %v355
  %v1764 = vunpack.c.3.s8 %v356
  %v1765 = vunpack.c.3.s8 %v357
  %v1766 = vunpack.c.3.s8 %v358
  %v1767 = vunpack.c.0.s8 %v359
  %v1768 = vunpack.c.0.s8 %v360
  %v1769 = vunpack.c.0.s8 %v361
  %v1770 = vunpack.c.0.s8 %v362
  %v1771 = vunpack.c.1.s8 %v359
  %v1772 = vunpack.c.1.s8 %v360
  %v1773 = vunpack.c.1.s8 %v361
  %v1774 = vunpack.c.1.s8 %v362
  %v1775 = vunpack.c.2.s8 %v359
  %v1776 = vunpack.c.2.s8 %v360
  %v1777 = vunpack.c.2.s8 %v361
  %v1778 = vunpack.c.2.s8 %v362
  %v1779 = vunpack.c.3.s8 %v359
  %v1780 = vunpack.c.3.s8 %v360
  %v1781 = vunpack.c.3.s8 %v361
  %v1782 = vunpack.c.3.s8 %v362
  %v1783 = vunpack.c.0.s8 %v363
  %v1784 = vunpack.c.0.s8 %v364
  %v1785 = vunpack.c.0.s8 %v365
  %v1786 = vunpack.c.0.s8 %v366
  %v1787 = vunpack.c.1.s8 %v363
  %v1788 = vunpack.c.1.s8 %v364
  %v1789 = vunpack.c.1.s8 %v365
  %v1790 = vunpack.c.1.s8 %v366
  %v1791 = vunpack.c.2.s8 %v363
  %v1792 = vunpack.c.2.s8 %v364
  %v1793 = vunpack.c.2.s8 %v365
  %v1794 = vunpack.c.2.s8 %v366
  %v1795 = vunpack.c.3.s8 %v363
  %v1796 = vunpack.c.3.s8 %v364
  %v1797 = vunpack.c.3.s8 %v365
  %v1798 = vunpack.c.3.s8 %v366
  %v1799 = vunpack.c.0.s8 %v367
  %v1800 = vunpack.c.0.s8 %v368
  %v1801 = vunpack.c.0.s8 %v369
  %v1802 = vunpack.c.0.s8 %v370
  %v1803 = vunpack.c.1.s8 %v367
  %v1804 = vunpack.c.1.s8 %v368
  %v1805 = vunpack.c.1.s8 %v369
  %v1806 = vunpack.c.1.s8 %v370
  %v1807 = vunpack.c.2.s8 %v367
  %v1808 = vunpack.c.2.s8 %v368
  %v1809 = vunpack.c.2.s8 %v369
  %v1810 = vunpack.c.2.s8 %v370
  %v1811 = vunpack.c.3.s8 %v367
  %v1812 = vunpack.c.3.s8 %v368
  %v1813 = vunpack.c.3.s8 %v369
  %v1814 = vunpack.c.3.s8 %v370
  %v1815 = vunpack.c.0.s8 %v371
  %v1816 = vunpack.c.0.s8 %v372
  %v1817 = vunpack.c.0.s8 %v373
  %v1818 = vunpack.c.0.s8 %v374
  %v1819 = vunpack.c.1.s8 %v371
  %v1820 = vunpack.c.1.s8 %v372
  %v1821 = vunpack.c.1.s8 %v373
  %v1822 = vunpack.c.1.s8 %v374
  %v1823 = vunpack.c.2.s8 %v371
  %v1824 = vunpack.c.2.s8 %v372
  %v1825 = vunpack.c.2.s8 %v373
  %v1826 = vunpack.c.2.s8 %v374
  %v1827 = vunpack.c.3.s8 %v371
  %v1828 = vunpack.c.3.s8 %v372
  %v1829 = vunpack.c.3.s8 %v373
  %v1830 = vunpack.c.3.s8 %v374
  %v1831 = vunpack.c.0.s8 %v375
  %v1832 = vunpack.c.0.s8 %v376
  %v1833 = vunpack.c.0.s8 %v377
  %v1834 = vunpack.c.0.s8 %v378
  %v1835 = vunpack.c.1.s8 %v375
  %v1836 = vunpack.c.1.s8 %v376
  %v1837 = vunpack.c.1.s8 %v377
  %v1838 = vunpack.c.1.s8 %v378
  %v1839 = vunpack.c.2.s8 %v375
  %v1840 = vunpack.c.2.s8 %v376
  %v1841 = vunpack.c.2.s8 %v377
  %v1842 = vunpack.c.2.s8 %v378
  %v1843 = vunpack.c.3.s8 %v375
  %v1844 = vunpack.c.3.s8 %v376
  %v1845 = vunpack.c.3.s8 %v377
  %v1846 = vunpack.c.3.s8 %v378
  %v1847 = vunpack.c.0.s8 %v379
  %v1848 = vunpack.c.0.s8 %v380
  %v1849 = vunpack.c.0.s8 %v381
  %v1850 = vunpack.c.0.s8 %v382
  %v1851 = vunpack.c.1.s8 %v379
  %v1852 = vunpack.c.1.s8 %v380
  %v1853 = vunpack.c.1.s8 %v381
  %v1854 = vunpack.c.1.s8 %v382
  %v1855 = vunpack.c.2.s8 %v379
  %v1856 = vunpack.c.2.s8 %v380
  %v1857 = vunpack.c.2.s8 %v381
  %v1858 = vunpack.c.2.s8 %v382
  %v1859 = vunpack.c.3.s8 %v379
  %v1860 = vunpack.c.3.s8 %v380
  %v1861 = vunpack.c.3.s8 %v381
  %v1862 = vunpack.c.3.s8 %v382
  %v1863 = vunpack.c.0.s8 %v383
  %v1864 = vunpack.c.0.s8 %v384
  %v1865 = vunpack.c.0.s8 %v385
  %v1866 = vunpack.c.0.s8 %v386
  %v1867 = vunpack.c.1.s8 %v383
  %v1868 = vunpack.c.1.s8 %v384
  %v1869 = vunpack.c.1.s8 %v385
  %v1870 = vunpack.c.1.s8 %v386
  %v1871 = vunpack.c.2.s8 %v383
  %v1872 = vunpack.c.2.s8 %v384
  %v1873 = vunpack.c.2.s8 %v385
  %v1874 = vunpack.c.2.s8 %v386
  %v1875 = vunpack.c.3.s8 %v383
  %v1876 = vunpack.c.3.s8 %v384
  %v1877 = vunpack.c.3.s8 %v385
  %v1878 = vunpack.c.3.s8 %v386
  %v1879 = vunpack.c.0.s8 %v387
  %v1880 = vunpack.c.0.s8 %v388
  %v1881 = vunpack.c.0.s8 %v389
  %v1882 = vunpack.c.0.s8 %v390
  %v1883 = vunpack.c.1.s8 %v387
  %v1884 = vunpack.c.1.s8 %v388
  %v1885 = vunpack.c.1.s8 %v389
  %v1886 = vunpack.c.1.s8 %v390
  %v1887 = vunpack.c.2.s8 %v387
  %v1888 = vunpack.c.2.s8 %v388
  %v1889 = vunpack.c.2.s8 %v389
  %v1890 = vunpack.c.2.s8 %v390
  %v1891 = vunpack.c.3.s8 %v387
  %v1892 = vunpack.c.3.s8 %v388
  %v1893 = vunpack.c.3.s8 %v389
  %v1894 = vunpack.c.3.s8 %v390
  %v1895 = vunpack.c.0.s8 %v391
  %v1896 = vunpack.c.0.s8 %v392
  %v1897 = vunpack.c.0.s8 %v393
  %v1898 = vunpack.c.0.s8 %v394
  %v1899 = vunpack.c.1.s8 %v391
  %v1900 = vunpack.c.1.s8 %v392
  %v1901 = vunpack.c.1.s8 %v393
  %v1902 = vunpack.c.1.s8 %v394
  %v1903 = vunpack.c.2.s8 %v391
  %v1904 = vunpack.c.2.s8 %v392
  %v1905 = vunpack.c.2.s8 %v393
  %v1906 = vunpack.c.2.s8 %v394
  %v1907 = vunpack.c.3.s8 %v391
  %v1908 = vunpack.c.3.s8 %v392
  %v1909 = vunpack.c.3.s8 %v393
  %v1910 = vunpack.c.3.s8 %v394
  %v1911 = vunpack.c.0.s8 %v395
  %v1912 = vunpack.c.0.s8 %v396
  %v1913 = vunpack.c.0.s8 %v397
  %v1914 = vunpack.c.0.s8 %v398
  %v1915 = vunpack.c.1.s8 %v395
  %v1916 = vunpack.c.1.s8 %v396
  %v1917 = vunpack.c.1.s8 %v397
  %v1918 = vunpack.c.1.s8 %v398
  %v1919 = vunpack.c.2.s8 %v395
  %v1920 = vunpack.c.2.s8 %v396
  %v1921 = vunpack.c.2.s8 %v397
  %v1922 = vunpack.c.2.s8 %v398
  %v1923 = vunpack.c.3.s8 %v395
  %v1924 = vunpack.c.3.s8 %v396
  %v1925 = vunpack.c.3.s8 %v397
  %v1926 = vunpack.c.3.s8 %v398
  %v1927 = vunpack.c.0.s8 %v399
  %v1928 = vunpack.c.0.s8 %v400
  %v1929 = vunpack.c.0.s8 %v401
  %v1930 = vunpack.c.0.s8 %v402
  %v1931 = vunpack.c.1.s8 %v399
  %v1932 = vunpack.c.1.s8 %v400
  %v1933 = vunpack.c.1.s8 %v401
  %v1934 = vunpack.c.1.s8 %v402
  %v1935 = vunpack.c.2.s8 %v399
  %v1936 = vunpack.c.2.s8 %v400
  %v1937 = vunpack.c.2.s8 %v401
  %v1938 = vunpack.c.2.s8 %v402
  %v1939 = vunpack.c.3.s8 %v399
  %v1940 = vunpack.c.3.s8 %v400
  %v1941 = vunpack.c.3.s8 %v401
  %v1942 = vunpack.c.3.s8 %v402
  %v1943 = vunpack.c.0.s8 %v403
  %v1944 = vunpack.c.0.s8 %v404
  %v1945 = vunpack.c.0.s8 %v405
  %v1946 = vunpack.c.0.s8 %v406
  %v1947 = vunpack.c.1.s8 %v403
  %v1948 = vunpack.c.1.s8 %v404
  %v1949 = vunpack.c.1.s8 %v405
  %v1950 = vunpack.c.1.s8 %v406
  %v1951 = vunpack.c.2.s8 %v403
  %v1952 = vunpack.c.2.s8 %v404
  %v1953 = vunpack.c.2.s8 %v405
  %v1954 = vunpack.c.2.s8 %v406
  %v1955 = vunpack.c.3.s8 %v403
  %v1956 = vunpack.c.3.s8 %v404
  %v1957 = vunpack.c.3.s8 %v405
  %v1958 = vunpack.c.3.s8 %v406
  %v1959 = vunpack.c.0.s8 %v407
  %v1960 = vunpack.c.0.s8 %v408
  %v1961 = vunpack.c.0.s8 %v409
  %v1962 = vunpack.c.0.s8 %v410
  %v1963 = vunpack.c.1.s8 %v407
  %v1964 = vunpack.c.1.s8 %v408
  %v1965 = vunpack.c.1.s8 %v409
  %v1966 = vunpack.c.1.s8 %v410
  %v1967 = vunpack.c.2.s8 %v407
  %v1968 = vunpack.c.2.s8 %v408
  %v1969 = vunpack.c.2.s8 %v409
  %v1970 = vunpack.c.2.s8 %v410
  %v1971 = vunpack.c.3.s8 %v407
  %v1972 = vunpack.c.3.s8 %v408
  %v1973 = vunpack.c.3.s8 %v409
  %v1974 = vunpack.c.3.s8 %v410
  %v1975 = vunpack.c.0.s8 %v411
  %v1976 = vunpack.c.0.s8 %v412
  %v1977 = vunpack.c.0.s8 %v413
  %v1978 = vunpack.c.0.s8 %v414
  %v1979 = vunpack.c.1.s8 %v411
  %v1980 = vunpack.c.1.s8 %v412
  %v1981 = vunpack.c.1.s8 %v413
  %v1982 = vunpack.c.1.s8 %v414
  %v1983 = vunpack.c.2.s8 %v411
  %v1984 = vunpack.c.2.s8 %v412
  %v1985 = vunpack.c.2.s8 %v413
  %v1986 = vunpack.c.2.s8 %v414
  %v1987 = vunpack.c.3.s8 %v411
  %v1988 = vunpack.c.3.s8 %v412
  %v1989 = vunpack.c.3.s8 %v413
  %v1990 = vunpack.c.3.s8 %v414
  %v1991 = vunpack.c.0.s8 %v415
  %v1992 = vunpack.c.0.s8 %v416
  %v1993 = vunpack.c.0.s8 %v417
  %v1994 = vunpack.c.0.s8 %v418
  %v1995 = vunpack.c.1.s8 %v415
  %v1996 = vunpack.c.1.s8 %v416
  %v1997 = vunpack.c.1.s8 %v417
  %v1998 = vunpack.c.1.s8 %v418
  %v1999 = vunpack.c.2.s8 %v415
  %v2000 = vunpack.c.2.s8 %v416
  %v2001 = vunpack.c.2.s8 %v417
  %v2002 = vunpack.c.2.s8 %v418
  %v2003 = vunpack.c.3.s8 %v415
  %v2004 = vunpack.c.3.s8 %v416
  %v2005 = vunpack.c.3.s8 %v417
  %v2006 = vunpack.c.3.s8 %v418
  %v2007 = vunpack.c.0.s8 %v419
  %v2008 = vunpack.c.0.s8 %v420
  %v2009 = vunpack.c.0.s8 %v421
  %v2010 = vunpack.c.0.s8 %v422
  %v2011 = vunpack.c.1.s8 %v419
  %v2012 = vunpack.c.1.s8 %v420
  %v2013 = vunpack.c.1.s8 %v421
  %v2014 = vunpack.c.1.s8 %v422
  %v2015 = vunpack.c.2.s8 %v419
  %v2016 = vunpack.c.2.s8 %v420
  %v2017 = vunpack.c.2.s8 %v421
  %v2018 = vunpack.c.2.s8 %v422
  %v2019 = vunpack.c.3.s8 %v419
  %v2020 = vunpack.c.3.s8 %v420
  %v2021 = vunpack.c.3.s8 %v421
  %v2022 = vunpack.c.3.s8 %v422
  %v2023 = vcvt.s32.f32 %v423
  %v2024 = vcvt.s32.f32 %v424
  %v2025 = vcvt.s32.f32 %v425
  %v2026 = vcvt.s32.f32 %v426
  %v2027 = vcvt.s32.f32 %v427
  %v2028 = vcvt.s32.f32 %v428
  %v2029 = vcvt.s32.f32 %v429
  %v2030 = vcvt.s32.f32 %v430
  %v2031 = vcvt.s32.f32 %v431
  %v2032 = vcvt.s32.f32 %v432
  %v2033 = vcvt.s32.f32 %v433
  %v2034 = vcvt.s32.f32 %v434
  %v2035 = vcvt.s32.f32 %v435
  %v2036 = vcvt.s32.f32 %v436
  %v2037 = vcvt.s32.f32 %v437
  %v2038 = vcvt.s32.f32 %v438
  %v2039 = vcvt.s32.f32 %v439
  %v2040 = vcvt.s32.f32 %v440
  %v2041 = vcvt.s32.f32 %v441
  %v2042 = vcvt.s32.f32 %v442
  %v2043 = vcvt.s32.f32 %v443
  %v2044 = vcvt.s32.f32 %v444
  %v2045 = vcvt.s32.f32 %v445
  %v2046 = vcvt.s32.f32 %v446
  %v2047 = vcvt.s32.f32 %v447
  %v2048 = vcvt.s32.f32 %v448
  %v2049 = vcvt.s32.f32 %v449
  %v2050 = vcvt.s32.f32 %v450
  %v2051 = vcvt.s32.f32 %v451
  %v2052 = vcvt.s32.f32 %v452
  %v2053 = vcvt.s32.f32 %v453
  %v2054 = vcvt.s32.f32 %v454
  %v2055 = vcvt.s32.f32 %v455
  %v2056 = vcvt.s32.f32 %v456
  %v2057 = vcvt.s32.f32 %v457
  %v2058 = vcvt.s32.f32 %v458
  %v2059 = vcvt.s32.f32 %v459
  %v2060 = vcvt.s32.f32 %v460
  %v2061 = vcvt.s32.f32 %v461
  %v2062 = vcvt.s32.f32 %v462
  %v2063 = vcvt.s32.f32 %v463
  %v2064 = vcvt.s32.f32 %v464
  %v2065 = vcvt.s32.f32 %v465
  %v2066 = vcvt.s32.f32 %v466
  %v2067 = vcvt.s32.f32 %v467
  %v2068 = vcvt.s32.f32 %v468
  %v2069 = vcvt.s32.f32 %v469
  %v2070 = vcvt.s32.f32 %v470
  %v2071 = vcvt.s32.f32 %v471
  %v2072 = vcvt.s32.f32 %v472
  %v2073 = vcvt.s32.f32 %v473
  %v2074 = vcvt.s32.f32 %v474
  %v2075 = vcvt.s32.f32 %v475
  %v2076 = vcvt.s32.f32 %v476
  %v2077 = vcvt.s32.f32 %v477
  %v2078 = vcvt.s32.f32 %v478
  %v2079 = vcvt.s32.f32 %v479
  %v2080 = vcvt.s32.f32 %v480
  %v2081 = vcvt.s32.f32 %v481
  %v2082 = vcvt.s32.f32 %v482
  %v2083 = vcvt.s32.f32 %v483
  %v2084 = vcvt.s32.f32 %v484
  %v2085 = vcvt.s32.f32 %v485
  %v2086 = vcvt.s32.f32 %v486
  %v2087 = vcvt.s32.f32 %v487
  %v2088 = vcvt.s32.f32 %v488
  %v2089 = vcvt.s32.f32 %v489
  %v2090 = vcvt.s32.f32 %v490
  %v2091 = vcvt.s32.f32 %v491
  %v2092 = vcvt.s32.f32 %v492
  %v2093 = vcvt.s32.f32 %v493
  %v2094 = vcvt.s32.f32 %v494
  %v2095 = vcvt.s32.f32 %v495
  %v2096 = vcvt.s32.f32 %v496
  %v2097 = vcvt.s32.f32 %v497
  %v2098 = vcvt.s32.f32 %v498
  %v2099 = vcvt.s32.f32 %v499
  %v2100 = vcvt.s32.f32 %v500
  %v2101 = vcvt.s32.f32 %v501
  %v2102 = vcvt.s32.f32 %v502
  %v2103 = vcvt.s32.f32 %v503
  %v2104 = vcvt.s32.f32 %v504
  %v2105 = vcvt.s32.f32 %v505
  %v2106 = vcvt.s32.f32 %v506
  %v2107 = vcvt.s32.f32 %v507
  %v2108 = vcvt.s32.f32 %v508
  %v2109 = vcvt.s32.f32 %v509
  %v2110 = vcvt.s32.f32 %v510
  %v2111 = vcvt.s32.f32 %v511
  %v2112 = vcvt.s32.f32 %v512
  %v2113 = vcvt.s32.f32 %v513
  %v2114 = vcvt.s32.f32 %v514
  %v2115 = vcvt.s32.f32 %v515
  %v2116 = vcvt.s32.f32 %v516
  %v2117 = vcvt.s32.f32 %v517
  %v2118 = vcvt.s32.f32 %v518
  %v2119 = vcvt.s32.f32 %v519
  %v2120 = vcvt.s32.f32 %v520
  %v2121 = vcvt.s32.f32 %v521
  %v2122 = vcvt.s32.f32 %v522
  %v2123 = vcvt.s32.f32 %v523
  %v2124 = vcvt.s32.f32 %v524
  %v2125 = vcvt.s32.f32 %v525
  %v2126 = vcvt.s32.f32 %v526
  %v2127 = vcvt.s32.f32 %v527
  %v2128 = vcvt.s32.f32 %v528
  %v2129 = vcvt.s32.f32 %v529
  %v2130 = vcvt.s32.f32 %v530
  %v2131 = vcvt.s32.f32 %v531
  %v2132 = vcvt.s32.f32 %v532
  %v2133 = vcvt.s32.f32 %v533
  %v2134 = vcvt.s32.f32 %v534
  %v2135 = vcvt.s32.f32 %v535
  %v2136 = vcvt.s32.f32 %v536
  %v2137 = vcvt.s32.f32 %v537
  %v2138 = vcvt.s32.f32 %v538
  %v2139 = vcvt.s32.f32 %v539
  %v2140 = vcvt.s32.f32 %v540
  %v2141 = vcvt.s32.f32 %v541
  %v2142 = vcvt.s32.f32 %v542
  %v2143 = vcvt.s32.f32 %v543
  %v2144 = vcvt.s32.f32 %v544
  %v2145 = vcvt.s32.f32 %v545
  %v2146 = vcvt.s32.f32 %v546
  %v2147 = vcvt.s32.f32 %v547
  %v2148 = vcvt.s32.f32 %v548
  %v2149 = vcvt.s32.f32 %v549
  %v2150 = vcvt.s32.f32 %v550
  %v2151 = vcvt.s32.f32 %v551
  %v2152 = vcvt.s32.f32 %v552
  %v2153 = vcvt.s32.f32 %v553
  %v2154 = vcvt.s32.f32 %v554
  %v2155 = vcvt.s32.f32 %v555
  %v2156 = vcvt.s32.f32 %v556
  %v2157 = vcvt.s32.f32 %v557
  %v2158 = vcvt.s32.f32 %v558
  %v2159 = vcvt.s32.f32 %v559
  %v2160 = vcvt.s32.f32 %v560
  %v2161 = vcvt.s32.f32 %v561
  %v2162 = vcvt.s32.f32 %v562
  %v2163 = vcvt.s32.f32 %v563
  %v2164 = vcvt.s32.f32 %v564
  %v2165 = vcvt.s32.f32 %v565
  %v2166 = vcvt.s32.f32 %v566
  %v2167 = vcvt.s32.f32 %v567
  %v2168 = vcvt.s32.f32 %v568
  %v2169 = vcvt.s32.f32 %v569
  %v2170 = vcvt.s32.f32 %v570
  %v2171 = vcvt.s32.f32 %v571
  %v2172 = vcvt.s32.f32 %v572
  %v2173 = vcvt.s32.f32 %v573
  %v2174 = vcvt.s32.f32 %v574
  %v2175 = vcvt.s32.f32 %v575
  %v2176 = vcvt.s32.f32 %v576
  %v2177 = vcvt.s32.f32 %v577
  %v2178 = vcvt.s32.f32 %v578
  %v2179 = vcvt.s32.f32 %v579
  %v2180 = vcvt.s32.f32 %v580
  %v2181 = vcvt.s32.f32 %v581
  %v2182 = vcvt.s32.f32 %v582
  %v2183 = vcvt.s32.f32 %v583
  %v2184 = vcvt.s32.f32 %v584
  %v2185 = vcvt.s32.f32 %v585
  %v2186 = vcvt.s32.f32 %v586
  %v2187 = vcvt.s32.f32 %v587
  %v2188 = vcvt.s32.f32 %v588
  %v2189 = vcvt.s32.f32 %v589
  %v2190 = vcvt.s32.f32 %v590
  %v2191 = vcvt.s32.f32 %v591
  %v2192 = vcvt.s32.f32 %v592
  %v2193 = vcvt.s32.f32 %v593
  %v2194 = vcvt.s32.f32 %v594
  %v2195 = vcvt.s32.f32 %v595
  %v2196 = vcvt.s32.f32 %v596
  %v2197 = vcvt.s32.f32 %v597
  %v2198 = vcvt.s32.f32 %v598
  %v2199 = vcvt.s32.f32 %v599
  %v2200 = vcvt.s32.f32 %v600
  %v2201 = vcvt.s32.f32 %v601
  %v2202 = vcvt.s32.f32 %v602
  %v2203 = vcvt.s32.f32 %v603
  %v2204 = vcvt.s32.f32 %v604
  %v2205 = vcvt.s32.f32 %v605
  %v2206 = vcvt.s32.f32 %v606
  %v2207 = vcvt.s32.f32 %v607
  %v2208 = vcvt.s32.f32 %v608
  %v2209 = vcvt.s32.f32 %v609
  %v2210 = vcvt.s32.f32 %v610
  %v2211 = vcvt.s32.f32 %v611
  %v2212 = vcvt.s32.f32 %v612
  %v2213 = vcvt.s32.f32 %v613
  %v2214 = vcvt.s32.f32 %v614
  %v2215 = vcvt.s32.f32 %v615
  %v2216 = vcvt.s32.f32 %v616
  %v2217 = vcvt.s32.f32 %v617
  %v2218 = vcvt.s32.f32 %v618
  %v2219 = vcvt.s32.f32 %v619
  %v2220 = vcvt.s32.f32 %v620
  %v2221 = vcvt.s32.f32 %v621
  %v2222 = vcvt.s32.f32 %v622
  %v2223 = vcvt.s32.f32 %v623
  %v2224 = vcvt.s32.f32 %v624
  %v2225 = vcvt.s32.f32 %v625
  %v2226 = vcvt.s32.f32 %v626
  %v2227 = vcvt.s32.f32 %v627
  %v2228 = vcvt.s32.f32 %v628
  %v2229 = vcvt.s32.f32 %v629
  %v2230 = vcvt.s32.f32 %v630
  %v2231 = vcvt.s32.f32 %v631
  %v2232 = vcvt.s32.f32 %v632
  %v2233 = vcvt.s32.f32 %v633
  %v2234 = vcvt.s32.f32 %v634
  %v2235 = vcvt.s32.f32 %v635
  %v2236 = vcvt.s32.f32 %v636
  %v2237 = vcvt.s32.f32 %v637
  %v2238 = vcvt.s32.f32 %v638
  %v2239 = vcvt.s32.f32 %v639
  %v2240 = vcvt.s32.f32 %v640
  %v2241 = vcvt.s32.f32 %v641
  %v2242 = vcvt.s32.f32 %v642
  %v2243 = vcvt.s32.f32 %v643
  %v2244 = vcvt.s32.f32 %v644
  %v2245 = vcvt.s32.f32 %v645
  %v2246 = vcvt.s32.f32 %v646
  %v2247 = vcvt.s32.f32 %v647
  %v2248 = vcvt.s32.f32 %v648
  %v2249 = vcvt.s32.f32 %v649
  %v2250 = vcvt.s32.f32 %v650
  %v2251 = vcvt.s32.f32 %v651
  %v2252 = vcvt.s32.f32 %v652
  %v2253 = vcvt.s32.f32 %v653
  %v2254 = vcvt.s32.f32 %v654
  %v2255 = vcvt.s32.f32 %v655
  %v2256 = vcvt.s32.f32 %v656
  %v2257 = vcvt.s32.f32 %v657
  %v2258 = vcvt.s32.f32 %v658
  %v2259 = vcvt.s32.f32 %v659
  %v2260 = vcvt.s32.f32 %v660
  %v2261 = vcvt.s32.f32 %v661
  %v2262 = vcvt.s32.f32 %v662
  %v2263 = vcvt.s32.f32 %v663
  %v2264 = vcvt.s32.f32 %v664
  %v2265 = vcvt.s32.f32 %v665
  %v2266 = vcvt.s32.f32 %v666
  %v2267 = vcvt.s32.f32 %v667
  %v2268 = vcvt.s32.f32 %v668
  %v2269 = vcvt.s32.f32 %v669
  %v2270 = vcvt.s32.f32 %v670
  %v2271 = vcvt.s32.f32 %v671
  %v2272 = vcvt.s32.f32 %v672
  %v2273 = vcvt.s32.f32 %v673
  %v2274 = vcvt.s32.f32 %v674
  %v2275 = vcvt.s32.f32 %v675
  %v2276 = vcvt.s32.f32 %v676
  %v2277 = vcvt.s32.f32 %v677
  %v2278 = vcvt.s32.f32 %v678
  %v2279 = vcvt.s32.f32 %v679
  %v2280 = vcvt.s32.f32 %v680
  %v2281 = vcvt.s32.f32 %v681
  %v2282 = vcvt.s32.f32 %v682
  %v2283 = vcvt.s32.f32 %v683
  %v2284 = vcvt.s32.f32 %v684
  %v2285 = vcvt.s32.f32 %v685
  %v2286 = vcvt.s32.f32 %v686
  %v2287 = vcvt.s32.f32 %v687
  %v2288 = vcvt.s32.f32 %v688
  %v2289 = vcvt.s32.f32 %v689
  %v2290 = vcvt.s32.f32 %v690
  %v2291 = vcvt.s32.f32 %v691
  %v2292 = vcvt.s32.f32 %v692
  %v2293 = vcvt.s32.f32 %v693
  %v2294 = vcvt.s32.f32 %v694
  %v2295 = vcvt.s32.f32 %v695
  %v2296 = vcvt.s32.f32 %v696
  %v2297 = vcvt.s32.f32 %v697
  %v2298 = vcvt.s32.f32 %v698
  %v2299 = vcvt.s32.f32 %v699
  %v2300 = vcvt.s32.f32 %v700
  %v2301 = vcvt.s32.f32 %v701
  %v2302 = vcvt.s32.f32 %v702
  %v2303 = vcvt.s32.f32 %v703
  %v2304 = vcvt.s32.f32 %v704
  %v2305 = vcvt.s32.f32 %v705
  %v2306 = vcvt.s32.f32 %v706
  %v2307 = vcvt.s32.f32 %v707
  %v2308 = vcvt.s32.f32 %v708
  %v2309 = vcvt.s32.f32 %v709
  %v2310 = vcvt.s32.f32 %v710
  %v2311 = vcvt.s32.f32 %v711
  %v2312 = vcvt.s32.f32 %v712
  %v2313 = vcvt.s32.f32 %v713
  %v2314 = vcvt.s32.f32 %v714
  %v2315 = vcvt.s32.f32 %v715
  %v2316 = vcvt.s32.f32 %v716
  %v2317 = vcvt.s32.f32 %v717
  %v2318 = vcvt.s32.f32 %v718
  %v2319 = vcvt.s32.f32 %v719
  %v2320 = vcvt.s32.f32 %v720
  %v2321 = vcvt.s32.f32 %v721
  %v2322 = vcvt.s32.f32 %v722
  %v2323 = vcvt.s32.f32 %v723
  %v2324 = vcvt.s32.f32 %v724
  %v2325 = vcvt.s32.f32 %v725
  %v2326 = vcvt.s32.f32 %v726
  %v2327 = vcvt.s32.f32 %v727
  %v2328 = vcvt.s32.f32 %v728
  %v2329 = vcvt.s32.f32 %v729
  %v2330 = vcvt.s32.f32 %v730
  %v2331 = vcvt.s32.f32 %v731
  %v2332 = vcvt.s32.f32 %v732
  %v2333 = vcvt.s32.f32 %v733
  %v2334 = vcvt.s32.f32 %v734
  %v2335 = vcvt.s32.f32 %v735
  %v2336 = vcvt.s32.f32 %v736
  %v2337 = vcvt.s32.f32 %v737
  %v2338 = vcvt.s32.f32 %v738
  %v2339 = vcvt.s32.f32 %v739
  %v2340 = vcvt.s32.f32 %v740
  %v2341 = vcvt.s32.f32 %v741
  %v2342 = vcvt.s32.f32 %v742
  %v2343 = vcvt.s32.f32 %v743
  %v2344 = vcvt.s32.f32 %v744
  %v2345 = vcvt.s32.f32 %v745
  %v2346 = vcvt.s32.f32 %v746
  %v2347 = vcvt.s32.f32 %v747
  %v2348 = vcvt.s32.f32 %v748
  %v2349 = vcvt.s32.f32 %v749
  %v2350 = vcvt.s32.f32 %v750
  %v2351 = vcvt.s32.f32 %v751
  %v2352 = vcvt.s32.f32 %v752
  %v2353 = vcvt.s32.f32 %v753
  %v2354 = vcvt.s32.f32 %v754
  %v2355 = vcvt.s32.f32 %v755
  %v2356 = vcvt.s32.f32 %v756
  %v2357 = vcvt.s32.f32 %v757
  %v2358 = vcvt.s32.f32 %v758
  %v2359 = vcvt.s32.f32 %v759
  %v2360 = vcvt.s32.f32 %v760
  %v2361 = vcvt.s32.f32 %v761
  %v2362 = vcvt.s32.f32 %v762
  %v2363 = vcvt.s32.f32 %v763
  %v2364 = vcvt.s32.f32 %v764
  %v2365 = vcvt.s32.f32 %v765
  %v2366 = vcvt.s32.f32 %v766
  %v2367 = vcvt.s32.f32 %v767
  %v2368 = vcvt.s32.f32 %v768
  %v2369 = vcvt.s32.f32 %v769
  %v2370 = vcvt.s32.f32 %v770
  %v2371 = vcvt.s32.f32 %v771
  %v2372 = vcvt.s32.f32 %v772
  %v2373 = vcvt.s32.f32 %v773
  %v2374 = vcvt.s32.f32 %v774
  %v2375 = vcvt.s32.f32 %v775
  %v2376 = vcvt.s32.f32 %v776
  %v2377 = vcvt.s32.f32 %v777
  %v2378 = vcvt.s32.f32 %v778
  %v2379 = vcvt.s32.f32 %v779
  %v2380 = vcvt.s32.f32 %v780
  %v2381 = vcvt.s32.f32 %v781
  %v2382 = vcvt.s32.f32 %v782
  %v2383 = vcvt.s32.f32 %v783
  %v2384 = vcvt.s32.f32 %v784
  %v2385 = vcvt.s32.f32 %v785
  %v2386 = vcvt.s32.f32 %v786
  %v2387 = vcvt.s32.f32 %v787
  %v2388 = vcvt.s32.f32 %v788
  %v2389 = vcvt.s32.f32 %v789
  %v2390 = vcvt.s32.f32 %v790
  %v2391 = vcvt.s32.f32 %v791
  %v2392 = vcvt.s32.f32 %v792
  %v2393 = vcvt.s32.f32 %v793
  %v2394 = vcvt.s32.f32 %v794
  %v2395 = vcvt.s32.f32 %v795
  %v2396 = vcvt.s32.f32 %v796
  %v2397 = vcvt.s32.f32 %v797
  %v2398 = vcvt.s32.f32 %v798
  %v2399 = vcvt.s32.f32 %v799
  %v2400 = vcvt.s32.f32 %v800
  %v2401 = vcvt.s32.f32 %v801
  %v2402 = vcvt.s32.f32 %v802
  %v2403 = vcvt.s32.f32 %v803
  %v2404 = vcvt.s32.f32 %v804
  %v2405 = vcvt.s32.f32 %v805
  %v2406 = vcvt.s32.f32 %v806
  %v2407 = vcvt.s32.f32 %v807
  %v2408 = vcvt.s32.f32 %v808
  %v2409 = vcvt.s32.f32 %v809
  %v2410 = vcvt.s32.f32 %v810
  %v2411 = vcvt.s32.f32 %v811
  %v2412 = vcvt.s32.f32 %v812
  %v2413 = vcvt.s32.f32 %v813
  %v2414 = vcvt.s32.f32 %v814
  %v2415 = vcvt.s32.f32 %v815
  %v2416 = vcvt.s32.f32 %v816
  %v2417 = vcvt.s32.f32 %v817
  %v2418 = vcvt.s32.f32 %v818
  %v2419 = vcvt.s32.f32 %v819
  %v2420 = vcvt.s32.f32 %v820
  %v2421 = vcvt.s32.f32 %v821
  %v2422 = vcvt.s32.f32 %v822
  %v2423 = vcvt.s32.f32 %v823
  %v2424 = vcvt.s32.f32 %v824
  %v2425 = vcvt.s32.f32 %v825
  %v2426 = vcvt.s32.f32 %v826
  %v2427 = vcvt.s32.f32 %v827
  %v2428 = vcvt.s32.f32 %v828
  %v2429 = vcvt.s32.f32 %v829
  %v2430 = vcvt.s32.f32 %v830
  %v2431 = vcvt.s32.f32 %v831
  %v2432 = vcvt.s32.f32 %v832
  %v2433 = vcvt.s32.f32 %v833
  %v2434 = vcvt.s32.f32 %v834
  %v2435 = vcvt.s32.f32 %v835
  %v2436 = vcvt.s32.f32 %v836
  %v2437 = vcvt.s32.f32 %v837
  %v2438 = vcvt.s32.f32 %v838
  %v2439 = vcvt.s32.f32 %v839
  %v2440 = vcvt.s32.f32 %v840
  %v2441 = vcvt.s32.f32 %v841
  %v2442 = vcvt.s32.f32 %v842
  %v2443 = vcvt.s32.f32 %v843
  %v2444 = vcvt.s32.f32 %v844
  %v2445 = vcvt.s32.f32 %v845
  %v2446 = vcvt.s32.f32 %v846
  %v2447 = vcvt.s32.f32 %v847
  %v2448 = vcvt.s32.f32 %v848
  %v2449 = vcvt.s32.f32 %v849
  %v2450 = vcvt.s32.f32 %v850
  %v2451 = vcvt.s32.f32 %v851
  %v2452 = vcvt.s32.f32 %v852
  %v2453 = vcvt.s32.f32 %v853
  %v2454 = vcvt.s32.f32 %v854
  %v2455 = vcvt.s32.f32 %v855
  %v2456 = vcvt.s32.f32 %v856
  %v2457 = vcvt.s32.f32 %v857
  %v2458 = vcvt.s32.f32 %v858
  %v2459 = vcvt.s32.f32 %v859
  %v2460 = vcvt.s32.f32 %v860
  %v2461 = vcvt.s32.f32 %v861
  %v2462 = vcvt.s32.f32 %v862
  %v2463 = vcvt.s32.f32 %v863
  %v2464 = vcvt.s32.f32 %v864
  %v2465 = vcvt.s32.f32 %v865
  %v2466 = vcvt.s32.f32 %v866
  %v2467 = vcvt.s32.f32 %v867
  %v2468 = vcvt.s32.f32 %v868
  %v2469 = vcvt.s32.f32 %v869
  %v2470 = vcvt.s32.f32 %v870
  %v2471 = vcvt.s32.f32 %v871
  %v2472 = vcvt.s32.f32 %v872
  %v2473 = vcvt.s32.f32 %v873
  %v2474 = vcvt.s32.f32 %v874
  %v2475 = vcvt.s32.f32 %v875
  %v2476 = vcvt.s32.f32 %v876
  %v2477 = vcvt.s32.f32 %v877
  %v2478 = vcvt.s32.f32 %v878
  %v2479 = vcvt.s32.f32 %v879
  %v2480 = vcvt.s32.f32 %v880
  %v2481 = vcvt.s32.f32 %v881
  %v2482 = vcvt.s32.f32 %v882
  %v2483 = vcvt.s32.f32 %v883
  %v2484 = vcvt.s32.f32 %v884
  %v2485 = vcvt.s32.f32 %v885
  %v2486 = vcvt.s32.f32 %v886
  %v2487 = vcvt.s32.f32 %v887
  %v2488 = vcvt.s32.f32 %v888
  %v2489 = vcvt.s32.f32 %v889
  %v2490 = vcvt.s32.f32 %v890
  %v2491 = vcvt.s32.f32 %v891
  %v2492 = vcvt.s32.f32 %v892
  %v2493 = vcvt.s32.f32 %v893
  %v2494 = vcvt.s32.f32 %v894
  %v2495 = vcvt.s32.f32 %v895
  %v2496 = vcvt.s32.f32 %v896
  %v2497 = vcvt.s32.f32 %v897
  %v2498 = vcvt.s32.f32 %v898
  %v2499 = vcvt.s32.f32 %v899
  %v2500 = vcvt.s32.f32 %v900
  %v2501 = vcvt.s32.f32 %v901
  %v2502 = vcvt.s32.f32 %v902
  %v2503 = vcvt.s32.f32 %v903
  %v2504 = vcvt.s32.f32 %v904
  %v2505 = vcvt.s32.f32 %v905
  %v2506 = vcvt.s32.f32 %v906
  %v2507 = vcvt.s32.f32 %v907
  %v2508 = vcvt.s32.f32 %v908
  %v2509 = vcvt.s32.f32 %v909
  %v2510 = vcvt.s32.f32 %v910
  %v2511 = vcvt.s32.f32 %v911
  %v2512 = vcvt.s32.f32 %v912
  %v2513 = vcvt.s32.f32 %v913
  %v2514 = vcvt.s32.f32 %v914
  %v2515 = vcvt.s32.f32 %v915
  %v2516 = vcvt.s32.f32 %v916
  %v2517 = vcvt.s32.f32 %v917
  %v2518 = vcvt.s32.f32 %v918
  %v2519 = vcvt.s32.f32 %v919
  %v2520 = vcvt.s32.f32 %v920
  %v2521 = vcvt.s32.f32 %v921
  %v2522 = vcvt.s32.f32 %v922
  %v2523 = vcvt.s32.f32 %v923
  %v2524 = vcvt.s32.f32 %v924
  %v2525 = vcvt.s32.f32 %v925
  %v2526 = vcvt.s32.f32 %v926
  %v2527 = vcvt.s32.f32 %v927
  %v2528 = vcvt.s32.f32 %v928
  %v2529 = vcvt.s32.f32 %v929
  %v2530 = vcvt.s32.f32 %v930
  %v2531 = vcvt.s32.f32 %v931
  %v2532 = vcvt.s32.f32 %v932
  %v2533 = vcvt.s32.f32 %v933
  %v2534 = vcvt.s32.f32 %v934
  %v2535 = vcvt.s32.f32 %v935
  %v2536 = vcvt.s32.f32 %v936
  %v2537 = vcvt.s32.f32 %v937
  %v2538 = vcvt.s32.f32 %v938
  %v2539 = vcvt.s32.f32 %v939
  %v2540 = vcvt.s32.f32 %v940
  %v2541 = vcvt.s32.f32 %v941
  %v2542 = vcvt.s32.f32 %v942
  %v2543 = vcvt.s32.f32 %v943
  %v2544 = vcvt.s32.f32 %v944
  %v2545 = vcvt.s32.f32 %v945
  %v2546 = vcvt.s32.f32 %v946
  %v2547 = vcvt.s32.f32 %v947
  %v2548 = vcvt.s32.f32 %v948
  %v2549 = vcvt.s32.f32 %v949
  %v2550 = vcvt.s32.f32 %v950
  %v2551 = vcvt.s32.f32 %v951
  %v2552 = vcvt.s32.f32 %v952
  %v2553 = vcvt.s32.f32 %v953
  %v2554 = vcvt.s32.f32 %v954
  %v2555 = vcvt.s32.f32 %v955
  %v2556 = vcvt.s32.f32 %v956
  %v2557 = vcvt.s32.f32 %v957
  %v2558 = vcvt.s32.f32 %v958
  %v2559 = vcvt.s32.f32 %v959
  %v2560 = vcvt.s32.f32 %v960
  %v2561 = vcvt.s32.f32 %v961
  %v2562 = vcvt.s32.f32 %v962
  %v2563 = vcvt.s32.f32 %v963
  %v2564 = vcvt.s32.f32 %v964
  %v2565 = vcvt.s32.f32 %v965
  %v2566 = vcvt.s32.f32 %v966
  %v2567 = vcvt.s32.f32 %v967
  %v2568 = vcvt.s32.f32 %v968
  %v2569 = vcvt.s32.f32 %v969
  %v2570 = vcvt.s32.f32 %v970
  %v2571 = vcvt.s32.f32 %v971
  %v2572 = vcvt.s32.f32 %v972
  %v2573 = vcvt.s32.f32 %v973
  %v2574 = vcvt.s32.f32 %v974
  %v2575 = vcvt.s32.f32 %v975
  %v2576 = vcvt.s32.f32 %v976
  %v2577 = vcvt.s32.f32 %v977
  %v2578 = vcvt.s32.f32 %v978
  %v2579 = vcvt.s32.f32 %v979
  %v2580 = vcvt.s32.f32 %v980
  %v2581 = vcvt.s32.f32 %v981
  %v2582 = vcvt.s32.f32 %v982
  %v2583 = vcvt.s32.f32 %v983
  %v2584 = vcvt.s32.f32 %v984
  %v2585 = vcvt.s32.f32 %v985
  %v2586 = vcvt.s32.f32 %v986
  %v2587 = vcvt.s32.f32 %v987
  %v2588 = vcvt.s32.f32 %v988
  %v2589 = vcvt.s32.f32 %v989
  %v2590 = vcvt.s32.f32 %v990
  %v2591 = vcvt.s32.f32 %v991
  %v2592 = vcvt.s32.f32 %v992
  %v2593 = vcvt.s32.f32 %v993
  %v2594 = vcvt.s32.f32 %v994
  %v2595 = vcvt.s32.f32 %v995
  %v2596 = vcvt.s32.f32 %v996
  %v2597 = vcvt.s32.f32 %v997
  %v2598 = vcvt.s32.f32 %v998
  %v2599 = vcvt.s32.f32 %v999
  %v2600 = vcvt.s32.f32 %v1000
  %v2601 = vcvt.s32.f32 %v1001
  %v2602 = vcvt.s32.f32 %v1002
  %v2603 = vcvt.s32.f32 %v1003
  %v2604 = vcvt.s32.f32 %v1004
  %v2605 = vcvt.s32.f32 %v1005
  %v2606 = vcvt.s32.f32 %v1006
  %v2607 = vcvt.s32.f32 %v1007
  %v2608 = vcvt.s32.f32 %v1008
  %v2609 = vcvt.s32.f32 %v1009
  %v2610 = vcvt.s32.f32 %v1010
  %v2611 = vcvt.s32.f32 %v1011
  %v2612 = vcvt.s32.f32 %v1012
  %v2613 = vcvt.s32.f32 %v1013
  %v2614 = vcvt.s32.f32 %v1014
  %v2615 = vcvt.s32.f32 %v1015
  %v2616 = vcvt.s32.f32 %v1016
  %v2617 = vcvt.s32.f32 %v1017
  %v2618 = vcvt.s32.f32 %v1018
  %v2619 = vcvt.s32.f32 %v1019
  %v2620 = vcvt.s32.f32 %v1020
  %v2621 = vcvt.s32.f32 %v1021
  %v2622 = vcvt.s32.f32 %v1022
  %v2623 = vcvt.s32.f32 %v1023
  %v2624 = vcvt.s32.f32 %v1024
  %v2625 = vcvt.s32.f32 %v1025
  %v2626 = vcvt.s32.f32 %v1026
  %v2627 = vcvt.s32.f32 %v1027
  %v2628 = vcvt.s32.f32 %v1028
  %v2629 = vcvt.s32.f32 %v1029
  %v2630 = vcvt.s32.f32 %v1030
  %v2631 = vcvt.s32.f32 %v1031
  %v2632 = vcvt.s32.f32 %v1032
  %v2633 = vcvt.s32.f32 %v1033
  %v2634 = vcvt.s32.f32 %v1034
  %v2635 = vcvt.s32.f32 %v1035
  %v2636 = vcvt.s32.f32 %v1036
  %v2637 = vcvt.s32.f32 %v1037
  %v2638 = vcvt.s32.f32 %v1038
  %v2639 = vcvt.s32.f32 %v1039
  %v2640 = vcvt.s32.f32 %v1040
  %v2641 = vcvt.s32.f32 %v1041
  %v2642 = vcvt.s32.f32 %v1042
  %v2643 = vcvt.s32.f32 %v1043
  %v2644 = vcvt.s32.f32 %v1044
  %v2645 = vcvt.s32.f32 %v1045
  %v2646 = vcvt.s32.f32 %v1046
  %v2647 = vcvt.s32.f32 %v1047
  %v2648 = vcvt.s32.f32 %v1048
  %v2649 = vcvt.s32.f32 %v1049
  %v2650 = vcvt.s32.f32 %v1050
  %v2651 = vcvt.s32.f32 %v1051
  %v2652 = vcvt.s32.f32 %v1052
  %v2653 = vcvt.s32.f32 %v1053
  %v2654 = vcvt.s32.f32 %v1054
  %v2655 = vcvt.s32.f32 %v1055
  %v2656 = vcvt.s32.f32 %v1056
  %v2657 = vcvt.s32.f32 %v1057
  %v2658 = vcvt.s32.f32 %v1058
  %v2659 = vcvt.s32.f32 %v1059
  %v2660 = vcvt.s32.f32 %v1060
  %v2661 = vcvt.s32.f32 %v1061
  %v2662 = vcvt.s32.f32 %v1062
  %v2663 = vcvt.s32.f32 %v1063
  %v2664 = vcvt.s32.f32 %v1064
  %v2665 = vcvt.s32.f32 %v1065
  %v2666 = vcvt.s32.f32 %v1066
  %v2667 = vcvt.s32.f32 %v1067
  %v2668 = vcvt.s32.f32 %v1068
  %v2669 = vcvt.s32.f32 %v1069
  %v2670 = vcvt.s32.f32 %v1070
  %v2671 = vcvt.s32.f32 %v1071
  %v2672 = vcvt.s32.f32 %v1072
  %v2673 = vcvt.s32.f32 %v1073
  %v2674 = vcvt.s32.f32 %v1074
  %v2675 = vcvt.s32.f32 %v1075
  %v2676 = vcvt.s32.f32 %v1076
  %v2677 = vcvt.s32.f32 %v1077
  %v2678 = vcvt.s32.f32 %v1078
  %v2679 = vcvt.s32.f32 %v1079
  %v2680 = vcvt.s32.f32 %v1080
  %v2681 = vcvt.s32.f32 %v1081
  %v2682 = vcvt.s32.f32 %v1082
  %v2683 = vcvt.s32.f32 %v1083
  %v2684 = vcvt.s32.f32 %v1084
  %v2685 = vcvt.s32.f32 %v1085
  %v2686 = vcvt.s32.f32 %v1086
  %v2687 = vcvt.s32.f32 %v1087
  %v2688 = vcvt.s32.f32 %v1088
  %v2689 = vcvt.s32.f32 %v1089
  %v2690 = vcvt.s32.f32 %v1090
  %v2691 = vcvt.s32.f32 %v1091
  %v2692 = vcvt.s32.f32 %v1092
  %v2693 = vcvt.s32.f32 %v1093
  %v2694 = vcvt.s32.f32 %v1094
  %v2695 = vcvt.s32.f32 %v1095
  %v2696 = vcvt.s32.f32 %v1096
  %v2697 = vcvt.s32.f32 %v1097
  %v2698 = vcvt.s32.f32 %v1098
  %v2699 = vcvt.s32.f32 %v1099
  %v2700 = vcvt.s32.f32 %v1100
  %v2701 = vcvt.s32.f32 %v1101
  %v2702 = vcvt.s32.f32 %v1102
  %v2703 = vcvt.s32.f32 %v1103
  %v2704 = vcvt.s32.f32 %v1104
  %v2705 = vcvt.s32.f32 %v1105
  %v2706 = vcvt.s32.f32 %v1106
  %v2707 = vcvt.s32.f32 %v1107
  %v2708 = vcvt.s32.f32 %v1108
  %v2709 = vcvt.s32.f32 %v1109
  %v2710 = vcvt.s32.f32 %v1110
  %v2711 = vcvt.s32.f32 %v1111
  %v2712 = vcvt.s32.f32 %v1112
  %v2713 = vcvt.s32.f32 %v1113
  %v2714 = vcvt.s32.f32 %v1114
  %v2715 = vcvt.s32.f32 %v1115
  %v2716 = vcvt.s32.f32 %v1116
  %v2717 = vcvt.s32.f32 %v1117
  %v2718 = vcvt.s32.f32 %v1118
  %v2719 = vcvt.s32.f32 %v1119
  %v2720 = vcvt.s32.f32 %v1120
  %v2721 = vcvt.s32.f32 %v1121
  %v2722 = vcvt.s32.f32 %v1122
  %v2723 = vcvt.s32.f32 %v1123
  %v2724 = vcvt.s32.f32 %v1124
  %v2725 = vcvt.s32.f32 %v1125
  %v2726 = vcvt.s32.f32 %v1126
  %v2727 = vcvt.s32.f32 %v1127
  %v2728 = vcvt.s32.f32 %v1128
  %v2729 = vcvt.s32.f32 %v1129
  %v2730 = vcvt.s32.f32 %v1130
  %v2731 = vcvt.s32.f32 %v1131
  %v2732 = vcvt.s32.f32 %v1132
  %v2733 = vcvt.s32.f32 %v1133
  %v2734 = vcvt.s32.f32 %v1134
  %v2735 = vcvt.s32.f32 %v1135
  %v2736 = vcvt.s32.f32 %v1136
  %v2737 = vcvt.s32.f32 %v1137
  %v2738 = vcvt.s32.f32 %v1138
  %v2739 = vcvt.s32.f32 %v1139
  %v2740 = vcvt.s32.f32 %v1140
  %v2741 = vcvt.s32.f32 %v1141
  %v2742 = vcvt.s32.f32 %v1142
  %v2743 = vcvt.s32.f32 %v1143
  %v2744 = vcvt.s32.f32 %v1144
  %v2745 = vcvt.s32.f32 %v1145
  %v2746 = vcvt.s32.f32 %v1146
  %v2747 = vcvt.s32.f32 %v1147
  %v2748 = vcvt.s32.f32 %v1148
  %v2749 = vcvt.s32.f32 %v1149
  %v2750 = vcvt.s32.f32 %v1150
  %v2751 = vcvt.s32.f32 %v1151
  %v2752 = vcvt.s32.f32 %v1152
  %v2753 = vcvt.s32.f32 %v1153
  %v2754 = vcvt.s32.f32 %v1154
  %v2755 = vcvt.s32.f32 %v1155
  %v2756 = vcvt.s32.f32 %v1156
  %v2757 = vcvt.s32.f32 %v1157
  %v2758 = vcvt.s32.f32 %v1158
  %v2759 = vcvt.s32.f32 %v1159
  %v2760 = vcvt.s32.f32 %v1160
  %v2761 = vcvt.s32.f32 %v1161
  %v2762 = vcvt.s32.f32 %v1162
  %v2763 = vcvt.s32.f32 %v1163
  %v2764 = vcvt.s32.f32 %v1164
  %v2765 = vcvt.s32.f32 %v1165
  %v2766 = vcvt.s32.f32 %v1166
  %v2767 = vcvt.s32.f32 %v1167
  %v2768 = vcvt.s32.f32 %v1168
  %v2769 = vcvt.s32.f32 %v1169
  %v2770 = vcvt.s32.f32 %v1170
  %v2771 = vcvt.s32.f32 %v1171
  %v2772 = vcvt.s32.f32 %v1172
  %v2773 = vcvt.s32.f32 %v1173
  %v2774 = vcvt.s32.f32 %v1174
  %v2775 = vcvt.s32.f32 %v1175
  %v2776 = vcvt.s32.f32 %v1176
  %v2777 = vcvt.s32.f32 %v1177
  %v2778 = vcvt.s32.f32 %v1178
  %v2779 = vcvt.s32.f32 %v1179
  %v2780 = vcvt.s32.f32 %v1180
  %v2781 = vcvt.s32.f32 %v1181
  %v2782 = vcvt.s32.f32 %v1182
  %v2783 = vcvt.s32.f32 %v1183
  %v2784 = vcvt.s32.f32 %v1184
  %v2785 = vcvt.s32.f32 %v1185
  %v2786 = vcvt.s32.f32 %v1186
  %v2787 = vcvt.s32.f32 %v1187
  %v2788 = vcvt.s32.f32 %v1188
  %v2789 = vcvt.s32.f32 %v1189
  %v2790 = vcvt.s32.f32 %v1190
  %v2791 = vcvt.s32.f32 %v1191
  %v2792 = vcvt.s32.f32 %v1192
  %v2793 = vcvt.s32.f32 %v1193
  %v2794 = vcvt.s32.f32 %v1194
  %v2795 = vcvt.s32.f32 %v1195
  %v2796 = vcvt.s32.f32 %v1196
  %v2797 = vcvt.s32.f32 %v1197
  %v2798 = vcvt.s32.f32 %v1198
  %v2799 = vcvt.s32.f32 %v1199
  %v2800 = vcvt.s32.f32 %v1200
  %v2801 = vcvt.s32.f32 %v1201
  %v2802 = vcvt.s32.f32 %v1202
  %v2803 = vcvt.s32.f32 %v1203
  %v2804 = vcvt.s32.f32 %v1204
  %v2805 = vcvt.s32.f32 %v1205
  %v2806 = vcvt.s32.f32 %v1206
  %v2807 = vcvt.s32.f32 %v1207
  %v2808 = vcvt.s32.f32 %v1208
  %v2809 = vcvt.s32.f32 %v1209
  %v2810 = vcvt.s32.f32 %v1210
  %v2811 = vcvt.s32.f32 %v1211
  %v2812 = vcvt.s32.f32 %v1212
  %v2813 = vcvt.s32.f32 %v1213
  %v2814 = vcvt.s32.f32 %v1214
  %v2815 = vcvt.s32.f32 %v1215
  %v2816 = vcvt.s32.f32 %v1216
  %v2817 = vcvt.s32.f32 %v1217
  %v2818 = vcvt.s32.f32 %v1218
  %v2819 = vcvt.s32.f32 %v1219
  %v2820 = vcvt.s32.f32 %v1220
  %v2821 = vcvt.s32.f32 %v1221
  %v2822 = vcvt.s32.f32 %v1222
  %v2823 = vcvt.s32.f32 %v1223
  %v2824 = vcvt.s32.f32 %v1224
  %v2825 = vcvt.s32.f32 %v1225
  %v2826 = vcvt.s32.f32 %v1226
  %v2827 = vcvt.s32.f32 %v1227
  %v2828 = vcvt.s32.f32 %v1228
  %v2829 = vcvt.s32.f32 %v1229
  %v2830 = vcvt.s32.f32 %v1230
  %v2831 = vcvt.s32.f32 %v1231
  %v2832 = vcvt.s32.f32 %v1232
  %v2833 = vcvt.s32.f32 %v1233
  %v2834 = vcvt.s32.f32 %v1234
  %v2835 = vcvt.s32.f32 %v1235
  %v2836 = vcvt.s32.f32 %v1236
  %v2837 = vcvt.s32.f32 %v1237
  %v2838 = vcvt.s32.f32 %v1238
  %v2839 = vcvt.s32.f32 %v1239
  %v2840 = vcvt.s32.f32 %v1240
  %v2841 = vcvt.s32.f32 %v1241
  %v2842 = vcvt.s32.f32 %v1242
  %v2843 = vcvt.s32.f32 %v1243
  %v2844 = vcvt.s32.f32 %v1244
  %v2845 = vcvt.s32.f32 %v1245
  %v2846 = vcvt.s32.f32 %v1246
  %v2847 = vcvt.s32.f32 %v1247
  %v2848 = vcvt.s32.f32 %v1248
  %v2849 = vcvt.s32.f32 %v1249
  %v2850 = vcvt.s32.f32 %v1250
  %v2851 = vcvt.s32.f32 %v1251
  %v2852 = vcvt.s32.f32 %v1252
  %v2853 = vcvt.s32.f32 %v1253
  %v2854 = vcvt.s32.f32 %v1254
  %v2855 = vcvt.s32.f32 %v1255
  %v2856 = vcvt.s32.f32 %v1256
  %v2857 = vcvt.s32.f32 %v1257
  %v2858 = vcvt.s32.f32 %v1258
  %v2859 = vcvt.s32.f32 %v1259
  %v2860 = vcvt.s32.f32 %v1260
  %v2861 = vcvt.s32.f32 %v1261
  %v2862 = vcvt.s32.f32 %v1262
  %v2863 = vcvt.s32.f32 %v1263
  %v2864 = vcvt.s32.f32 %v1264
  %v2865 = vcvt.s32.f32 %v1265
  %v2866 = vcvt.s32.f32 %v1266
  %v2867 = vcvt.s32.f32 %v1267
  %v2868 = vcvt.s32.f32 %v1268
  %v2869 = vcvt.s32.f32 %v1269
  %v2870 = vcvt.s32.f32 %v1270
  %v2871 = vcvt.s32.f32 %v1271
  %v2872 = vcvt.s32.f32 %v1272
  %v2873 = vcvt.s32.f32 %v1273
  %v2874 = vcvt.s32.f32 %v1274
  %v2875 = vcvt.s32.f32 %v1275
  %v2876 = vcvt.s32.f32 %v1276
  %v2877 = vcvt.s32.f32 %v1277
  %v2878 = vcvt.s32.f32 %v1278
  %v2879 = vcvt.s32.f32 %v1279
  %v2880 = vcvt.s32.f32 %v1280
  %v2881 = vcvt.s32.f32 %v1281
  %v2882 = vcvt.s32.f32 %v1282
  %v2883 = vcvt.s32.f32 %v1283
  %v2884 = vcvt.s32.f32 %v1284
  %v2885 = vcvt.s32.f32 %v1285
  %v2886 = vcvt.s32.f32 %v1286
  %v2887 = vcvt.s32.f32 %v1287
  %v2888 = vcvt.s32.f32 %v1288
  %v2889 = vcvt.s32.f32 %v1289
  %v2890 = vcvt.s32.f32 %v1290
  %v2891 = vcvt.s32.f32 %v1291
  %v2892 = vcvt.s32.f32 %v1292
  %v2893 = vcvt.s32.f32 %v1293
  %v2894 = vcvt.s32.f32 %v1294
  %v2895 = vcvt.s32.f32 %v1295
  %v2896 = vcvt.s32.f32 %v1296
  %v2897 = vcvt.s32.f32 %v1297
  %v2898 = vcvt.s32.f32 %v1298
  %v2899 = vcvt.s32.f32 %v1299
  %v2900 = vcvt.s32.f32 %v1300
  %v2901 = vcvt.s32.f32 %v1301
  %v2902 = vcvt.s32.f32 %v1302
  %v2903 = vcvt.s32.f32 %v1303
  %v2904 = vcvt.s32.f32 %v1304
  %v2905 = vcvt.s32.f32 %v1305
  %v2906 = vcvt.s32.f32 %v1306
  %v2907 = vcvt.s32.f32 %v1307
  %v2908 = vcvt.s32.f32 %v1308
  %v2909 = vcvt.s32.f32 %v1309
  %v2910 = vcvt.s32.f32 %v1310
  %v2911 = vcvt.s32.f32 %v1311
  %v2912 = vcvt.s32.f32 %v1312
  %v2913 = vcvt.s32.f32 %v1313
  %v2914 = vcvt.s32.f32 %v1314
  %v2915 = vcvt.s32.f32 %v1315
  %v2916 = vcvt.s32.f32 %v1316
  %v2917 = vcvt.s32.f32 %v1317
  %v2918 = vcvt.s32.f32 %v1318
  %v2919 = vcvt.s32.f32 %v1319
  %v2920 = vcvt.s32.f32 %v1320
  %v2921 = vcvt.s32.f32 %v1321
  %v2922 = vcvt.s32.f32 %v1322
  %v2923 = vcvt.s32.f32 %v1323
  %v2924 = vcvt.s32.f32 %v1324
  %v2925 = vcvt.s32.f32 %v1325
  %v2926 = vcvt.s32.f32 %v1326
  %v2927 = vcvt.s32.f32 %v1327
  %v2928 = vcvt.s32.f32 %v1328
  %v2929 = vcvt.s32.f32 %v1329
  %v2930 = vcvt.s32.f32 %v1330
  %v2931 = vcvt.s32.f32 %v1331
  %v2932 = vcvt.s32.f32 %v1332
  %v2933 = vcvt.s32.f32 %v1333
  %v2934 = vcvt.s32.f32 %v1334
  %v2935 = vcvt.s32.f32 %v1335
  %v2936 = vcvt.s32.f32 %v1336
  %v2937 = vcvt.s32.f32 %v1337
  %v2938 = vcvt.s32.f32 %v1338
  %v2939 = vcvt.s32.f32 %v1339
  %v2940 = vcvt.s32.f32 %v1340
  %v2941 = vcvt.s32.f32 %v1341
  %v2942 = vcvt.s32.f32 %v1342
  %v2943 = vcvt.s32.f32 %v1343
  %v2944 = vcvt.s32.f32 %v1344
  %v2945 = vcvt.s32.f32 %v1345
  %v2946 = vcvt.s32.f32 %v1346
  %v2947 = vcvt.s32.f32 %v1347
  %v2948 = vcvt.s32.f32 %v1348
  %v2949 = vcvt.s32.f32 %v1349
  %v2950 = vcvt.s32.f32 %v1350
  %v2951 = vcvt.s32.f32 %v1351
  %v2952 = vcvt.s32.f32 %v1352
  %v2953 = vcvt.s32.f32 %v1353
  %v2954 = vcvt.s32.f32 %v1354
  %v2955 = vcvt.s32.f32 %v1355
  %v2956 = vcvt.s32.f32 %v1356
  %v2957 = vcvt.s32.f32 %v1357
  %v2958 = vcvt.s32.f32 %v1358
  %v2959 = vcvt.s32.f32 %v1359
  %v2960 = vcvt.s32.f32 %v1360
  %v2961 = vcvt.s32.f32 %v1361
  %v2962 = vcvt.s32.f32 %v1362
  %v2963 = vcvt.s32.f32 %v1363
  %v2964 = vcvt.s32.f32 %v1364
  %v2965 = vcvt.s32.f32 %v1365
  %v2966 = vcvt.s32.f32 %v1366
  %v2967 = vcvt.s32.f32 %v1367
  %v2968 = vcvt.s32.f32 %v1368
  %v2969 = vcvt.s32.f32 %v1369
  %v2970 = vcvt.s32.f32 %v1370
  %v2971 = vcvt.s32.f32 %v1371
  %v2972 = vcvt.s32.f32 %v1372
  %v2973 = vcvt.s32.f32 %v1373
  %v2974 = vcvt.s32.f32 %v1374
  %v2975 = vcvt.s32.f32 %v1375
  %v2976 = vcvt.s32.f32 %v1376
  %v2977 = vcvt.s32.f32 %v1377
  %v2978 = vcvt.s32.f32 %v1378
  %v2979 = vcvt.s32.f32 %v1379
  %v2980 = vcvt.s32.f32 %v1380
  %v2981 = vcvt.s32.f32 %v1381
  %v2982 = vcvt.s32.f32 %v1382
  %v2983 = vcvt.s32.f32 %v1383
  %v2984 = vcvt.s32.f32 %v1384
  %v2985 = vcvt.s32.f32 %v1385
  %v2986 = vcvt.s32.f32 %v1386
  %v2987 = vcvt.s32.f32 %v1387
  %v2988 = vcvt.s32.f32 %v1388
  %v2989 = vcvt.s32.f32 %v1389
  %v2990 = vcvt.s32.f32 %v1390
  %v2991 = vcvt.s32.f32 %v1391
  %v2992 = vcvt.s32.f32 %v1392
  %v2993 = vcvt.s32.f32 %v1393
  %v2994 = vcvt.s32.f32 %v1394
  %v2995 = vcvt.s32.f32 %v1395
  %v2996 = vcvt.s32.f32 %v1396
  %v2997 = vcvt.s32.f32 %v1397
  %v2998 = vcvt.s32.f32 %v1398
  %v2999 = vcvt.s32.f32 %v1399
  %v3000 = vcvt.s32.f32 %v1400
  %v3001 = vcvt.s32.f32 %v1401
  %v3002 = vcvt.s32.f32 %v1402
  %v3003 = vcvt.s32.f32 %v1403
  %v3004 = vcvt.s32.f32 %v1404
  %v3005 = vcvt.s32.f32 %v1405
  %v3006 = vcvt.s32.f32 %v1406
  %v3007 = vcvt.s32.f32 %v1407
  %v3008 = vcvt.s32.f32 %v1408
  %v3009 = vcvt.s32.f32 %v1409
  %v3010 = vcvt.s32.f32 %v1410
  %v3011 = vcvt.s32.f32 %v1411
  %v3012 = vcvt.s32.f32 %v1412
  %v3013 = vcvt.s32.f32 %v1413
  %v3014 = vcvt.s32.f32 %v1414
  %v3015 = vcvt.s32.f32 %v1415
  %v3016 = vcvt.s32.f32 %v1416
  %v3017 = vcvt.s32.f32 %v1417
  %v3018 = vcvt.s32.f32 %v1418
  %v3019 = vcvt.s32.f32 %v1419
  %v3020 = vcvt.s32.f32 %v1420
  %v3021 = vcvt.s32.f32 %v1421
  %v3022 = vcvt.s32.f32 %v1422
  %v3023 = vcvt.s32.f32 %v1423
  %v3024 = vcvt.s32.f32 %v1424
  %v3025 = vcvt.s32.f32 %v1425
  %v3026 = vcvt.s32.f32 %v1426
  %v3027 = vcvt.s32.f32 %v1427
  %v3028 = vcvt.s32.f32 %v1428
  %v3029 = vcvt.s32.f32 %v1429
  %v3030 = vcvt.s32.f32 %v1430
  %v3031 = vcvt.s32.f32 %v1431
  %v3032 = vcvt.s32.f32 %v1432
  %v3033 = vcvt.s32.f32 %v1433
  %v3034 = vcvt.s32.f32 %v1434
  %v3035 = vcvt.s32.f32 %v1435
  %v3036 = vcvt.s32.f32 %v1436
  %v3037 = vcvt.s32.f32 %v1437
  %v3038 = vcvt.s32.f32 %v1438
  %v3039 = vcvt.s32.f32 %v1439
  %v3040 = vcvt.s32.f32 %v1440
  %v3041 = vcvt.s32.f32 %v1441
  %v3042 = vcvt.s32.f32 %v1442
  %v3043 = vcvt.s32.f32 %v1443
  %v3044 = vcvt.s32.f32 %v1444
  %v3045 = vcvt.s32.f32 %v1445
  %v3046 = vcvt.s32.f32 %v1446
  %v3047 = vcvt.s32.f32 %v1447
  %v3048 = vcvt.s32.f32 %v1448
  %v3049 = vcvt.s32.f32 %v1449
  %v3050 = vcvt.s32.f32 %v1450
  %v3051 = vcvt.s32.f32 %v1451
  %v3052 = vcvt.s32.f32 %v1452
  %v3053 = vcvt.s32.f32 %v1453
  %v3054 = vcvt.s32.f32 %v1454
  %v3055 = vcvt.s32.f32 %v1455
  %v3056 = vcvt.s32.f32 %v1456
  %v3057 = vcvt.s32.f32 %v1457
  %v3058 = vcvt.s32.f32 %v1458
  %v3059 = vcvt.s32.f32 %v1459
  %v3060 = vcvt.s32.f32 %v1460
  %v3061 = vcvt.s32.f32 %v1461
  %v3062 = vcvt.s32.f32 %v1462
  %v3063 = vcvt.s32.f32 %v1463
  %v3064 = vcvt.s32.f32 %v1464
  %v3065 = vcvt.s32.f32 %v1465
  %v3066 = vcvt.s32.f32 %v1466
  %v3067 = vcvt.s32.f32 %v1467
  %v3068 = vcvt.s32.f32 %v1468
  %v3069 = vcvt.s32.f32 %v1469
  %v3070 = vcvt.s32.f32 %v1470
  %v3071 = vcvt.s32.f32 %v1471
  %v3072 = vcvt.s32.f32 %v1472
  %v3073 = vcvt.s32.f32 %v1473
  %v3074 = vcvt.s32.f32 %v1474
  %v3075 = vcvt.s32.f32 %v1475
  %v3076 = vcvt.s32.f32 %v1476
  %v3077 = vcvt.s32.f32 %v1477
  %v3078 = vcvt.s32.f32 %v1478
  %v3079 = vcvt.s32.f32 %v1479
  %v3080 = vcvt.s32.f32 %v1480
  %v3081 = vcvt.s32.f32 %v1481
  %v3082 = vcvt.s32.f32 %v1482
  %v3083 = vcvt.s32.f32 %v1483
  %v3084 = vcvt.s32.f32 %v1484
  %v3085 = vcvt.s32.f32 %v1485
  %v3086 = vcvt.s32.f32 %v1486
  %v3087 = vcvt.s32.f32 %v1487
  %v3088 = vcvt.s32.f32 %v1488
  %v3089 = vcvt.s32.f32 %v1489
  %v3090 = vcvt.s32.f32 %v1490
  %v3091 = vcvt.s32.f32 %v1491
  %v3092 = vcvt.s32.f32 %v1492
  %v3093 = vcvt.s32.f32 %v1493
  %v3094 = vcvt.s32.f32 %v1494
  %v3095 = vcvt.s32.f32 %v1495
  %v3096 = vcvt.s32.f32 %v1496
  %v3097 = vcvt.s32.f32 %v1497
  %v3098 = vcvt.s32.f32 %v1498
  %v3099 = vcvt.s32.f32 %v1499
  %v3100 = vcvt.s32.f32 %v1500
  %v3101 = vcvt.s32.f32 %v1501
  %v3102 = vcvt.s32.f32 %v1502
  %v3103 = vcvt.s32.f32 %v1503
  %v3104 = vcvt.s32.f32 %v1504
  %v3105 = vcvt.s32.f32 %v1505
  %v3106 = vcvt.s32.f32 %v1506
  %v3107 = vcvt.s32.f32 %v1507
  %v3108 = vcvt.s32.f32 %v1508
  %v3109 = vcvt.s32.f32 %v1509
  %v3110 = vcvt.s32.f32 %v1510
  %v3111 = vcvt.s32.f32 %v1511
  %v3112 = vcvt.s32.f32 %v1512
  %v3113 = vcvt.s32.f32 %v1513
  %v3114 = vcvt.s32.f32 %v1514
  %v3115 = vcvt.s32.f32 %v1515
  %v3116 = vcvt.s32.f32 %v1516
  %v3117 = vcvt.s32.f32 %v1517
  %v3118 = vcvt.s32.f32 %v1518
  %v3119 = vcvt.s32.f32 %v1519
  %v3120 = vcvt.s32.f32 %v1520
  %v3121 = vcvt.s32.f32 %v1521
  %v3122 = vcvt.s32.f32 %v1522
  %v3123 = vcvt.s32.f32 %v1523
  %v3124 = vcvt.s32.f32 %v1524
  %v3125 = vcvt.s32.f32 %v1525
  %v3126 = vcvt.s32.f32 %v1526
  %v3127 = vcvt.s32.f32 %v1527
  %v3128 = vcvt.s32.f32 %v1528
  %v3129 = vcvt.s32.f32 %v1529
  %v3130 = vcvt.s32.f32 %v1530
  %v3131 = vcvt.s32.f32 %v1531
  %v3132 = vcvt.s32.f32 %v1532
  %v3133 = vcvt.s32.f32 %v1533
  %v3134 = vcvt.s32.f32 %v1534
  %v3135 = vcvt.s32.f32 %v1535
  %v3136 = vcvt.s32.f32 %v1536
  %v3137 = vcvt.s32.f32 %v1537
  %v3138 = vcvt.s32.f32 %v1538
  %v3139 = vcvt.s32.f32 %v1539
  %v3140 = vcvt.s32.f32 %v1540
  %v3141 = vcvt.s32.f32 %v1541
  %v3142 = vcvt.s32.f32 %v1542
  %v3143 = vcvt.s32.f32 %v1543
  %v3144 = vcvt.s32.f32 %v1544
  %v3145 = vcvt.s32.f32 %v1545
  %v3146 = vcvt.s32.f32 %v1546
  %v3147 = vcvt.s32.f32 %v1547
  %v3148 = vcvt.s32.f32 %v1548
  %v3149 = vcvt.s32.f32 %v1549
  %v3150 = vcvt.s32.f32 %v1550
  %v3151 = vcvt.s32.f32 %v1551
  %v3152 = vcvt.s32.f32 %v1552
  %v3153 = vcvt.s32.f32 %v1553
  %v3154 = vcvt.s32.f32 %v1554
  %v3155 = vcvt.s32.f32 %v1555
  %v3156 = vcvt.s32.f32 %v1556
  %v3157 = vcvt.s32.f32 %v1557
  %v3158 = vcvt.s32.f32 %v1558
  %v3159 = vcvt.s32.f32 %v1559
  %v3160 = vcvt.s32.f32 %v1560
  %v3161 = vcvt.s32.f32 %v1561
  %v3162 = vcvt.s32.f32 %v1562
  %v3163 = vcvt.s32.f32 %v1563
  %v3164 = vcvt.s32.f32 %v1564
  %v3165 = vcvt.s32.f32 %v1565
  %v3166 = vcvt.s32.f32 %v1566
  %v3167 = vcvt.s32.f32 %v1567
  %v3168 = vcvt.s32.f32 %v1568
  %v3169 = vcvt.s32.f32 %v1569
  %v3170 = vcvt.s32.f32 %v1570
  %v3171 = vcvt.s32.f32 %v1571
  %v3172 = vcvt.s32.f32 %v1572
  %v3173 = vcvt.s32.f32 %v1573
  %v3174 = vcvt.s32.f32 %v1574
  %v3175 = vcvt.s32.f32 %v1575
  %v3176 = vcvt.s32.f32 %v1576
  %v3177 = vcvt.s32.f32 %v1577
  %v3178 = vcvt.s32.f32 %v1578
  %v3179 = vcvt.s32.f32 %v1579
  %v3180 = vcvt.s32.f32 %v1580
  %v3181 = vcvt.s32.f32 %v1581
  %v3182 = vcvt.s32.f32 %v1582
  %v3183 = vcvt.s32.f32 %v1583
  %v3184 = vcvt.s32.f32 %v1584
  %v3185 = vcvt.s32.f32 %v1585
  %v3186 = vcvt.s32.f32 %v1586
  %v3187 = vcvt.s32.f32 %v1587
  %v3188 = vcvt.s32.f32 %v1588
  %v3189 = vcvt.s32.f32 %v1589
  %v3190 = vcvt.s32.f32 %v1590
  %v3191 = vcvt.s32.f32 %v1591
  %v3192 = vcvt.s32.f32 %v1592
  %v3193 = vcvt.s32.f32 %v1593
  %v3194 = vcvt.s32.f32 %v1594
  %v3195 = vcvt.s32.f32 %v1595
  %v3196 = vcvt.s32.f32 %v1596
  %v3197 = vcvt.s32.f32 %v1597
  %v3198 = vcvt.s32.f32 %v1598
  %v3199 = vcvt.s32.f32 %v1599
  %v3200 = vcvt.s32.f32 %v1600
  %v3201 = vcvt.s32.f32 %v1601
  %v3202 = vcvt.s32.f32 %v1602
  %v3203 = vcvt.s32.f32 %v1603
  %v3204 = vcvt.s32.f32 %v1604
  %v3205 = vcvt.s32.f32 %v1605
  %v3206 = vcvt.s32.f32 %v1606
  %v3207 = vcvt.s32.f32 %v1607
  %v3208 = vcvt.s32.f32 %v1608
  %v3209 = vcvt.s32.f32 %v1609
  %v3210 = vcvt.s32.f32 %v1610
  %v3211 = vcvt.s32.f32 %v1611
  %v3212 = vcvt.s32.f32 %v1612
  %v3213 = vcvt.s32.f32 %v1613
  %v3214 = vcvt.s32.f32 %v1614
  %v3215 = vcvt.s32.f32 %v1615
  %v3216 = vcvt.s32.f32 %v1616
  %v3217 = vcvt.s32.f32 %v1617
  %v3218 = vcvt.s32.f32 %v1618
  %v3219 = vcvt.s32.f32 %v1619
  %v3220 = vcvt.s32.f32 %v1620
  %v3221 = vcvt.s32.f32 %v1621
  %v3222 = vcvt.s32.f32 %v1622
  %v3223 = vcvt.s32.f32 %v1623
  %v3224 = vcvt.s32.f32 %v1624
  %v3225 = vcvt.s32.f32 %v1625
  %v3226 = vcvt.s32.f32 %v1626
  %v3227 = vcvt.s32.f32 %v1627
  %v3228 = vcvt.s32.f32 %v1628
  %v3229 = vcvt.s32.f32 %v1629
  %v3230 = vcvt.s32.f32 %v1630
  %v3231 = vcvt.s32.f32 %v1631
  %v3232 = vcvt.s32.f32 %v1632
  %v3233 = vcvt.s32.f32 %v1633
  %v3234 = vcvt.s32.f32 %v1634
  %v3235 = vcvt.s32.f32 %v1635
  %v3236 = vcvt.s32.f32 %v1636
  %v3237 = vcvt.s32.f32 %v1637
  %v3238 = vcvt.s32.f32 %v1638
  %v3239 = vcvt.s32.f32 %v1639
  %v3240 = vcvt.s32.f32 %v1640
  %v3241 = vcvt.s32.f32 %v1641
  %v3242 = vcvt.s32.f32 %v1642
  %v3243 = vcvt.s32.f32 %v1643
  %v3244 = vcvt.s32.f32 %v1644
  %v3245 = vcvt.s32.f32 %v1645
  %v3246 = vcvt.s32.f32 %v1646
  %v3247 = vcvt.s32.f32 %v1647
  %v3248 = vcvt.s32.f32 %v1648
  %v3249 = vcvt.s32.f32 %v1649
  %v3250 = vcvt.s32.f32 %v1650
  %v3251 = vcvt.s32.f32 %v1651
  %v3252 = vcvt.s32.f32 %v1652
  %v3253 = vcvt.s32.f32 %v1653
  %v3254 = vcvt.s32.f32 %v1654
  %v3255 = vcvt.s32.f32 %v1655
  %v3256 = vcvt.s32.f32 %v1656
  %v3257 = vcvt.s32.f32 %v1657
  %v3258 = vcvt.s32.f32 %v1658
  %v3259 = vcvt.s32.f32 %v1659
  %v3260 = vcvt.s32.f32 %v1660
  %v3261 = vcvt.s32.f32 %v1661
  %v3262 = vcvt.s32.f32 %v1662
  %v3263 = vcvt.s32.f32 %v1663
  %v3264 = vcvt.s32.f32 %v1664
  %v3265 = vcvt.s32.f32 %v1665
  %v3266 = vcvt.s32.f32 %v1666
  %v3267 = vcvt.s32.f32 %v1667
  %v3268 = vcvt.s32.f32 %v1668
  %v3269 = vcvt.s32.f32 %v1669
  %v3270 = vcvt.s32.f32 %v1670
  %v3271 = vcvt.s32.f32 %v1671
  %v3272 = vcvt.s32.f32 %v1672
  %v3273 = vcvt.s32.f32 %v1673
  %v3274 = vcvt.s32.f32 %v1674
  %v3275 = vcvt.s32.f32 %v1675
  %v3276 = vcvt.s32.f32 %v1676
  %v3277 = vcvt.s32.f32 %v1677
  %v3278 = vcvt.s32.f32 %v1678
  %v3279 = vcvt.s32.f32 %v1679
  %v3280 = vcvt.s32.f32 %v1680
  %v3281 = vcvt.s32.f32 %v1681
  %v3282 = vcvt.s32.f32 %v1682
  %v3283 = vcvt.s32.f32 %v1683
  %v3284 = vcvt.s32.f32 %v1684
  %v3285 = vcvt.s32.f32 %v1685
  %v3286 = vcvt.s32.f32 %v1686
  %v3287 = vcvt.s32.f32 %v1687
  %v3288 = vcvt.s32.f32 %v1688
  %v3289 = vcvt.s32.f32 %v1689
  %v3290 = vcvt.s32.f32 %v1690
  %v3291 = vcvt.s32.f32 %v1691
  %v3292 = vcvt.s32.f32 %v1692
  %v3293 = vcvt.s32.f32 %v1693
  %v3294 = vcvt.s32.f32 %v1694
  %v3295 = vcvt.s32.f32 %v1695
  %v3296 = vcvt.s32.f32 %v1696
  %v3297 = vcvt.s32.f32 %v1697
  %v3298 = vcvt.s32.f32 %v1698
  %v3299 = vcvt.s32.f32 %v1699
  %v3300 = vcvt.s32.f32 %v1700
  %v3301 = vcvt.s32.f32 %v1701
  %v3302 = vcvt.s32.f32 %v1702
  %v3303 = vcvt.s32.f32 %v1703
  %v3304 = vcvt.s32.f32 %v1704
  %v3305 = vcvt.s32.f32 %v1705
  %v3306 = vcvt.s32.f32 %v1706
  %v3307 = vcvt.s32.f32 %v1707
  %v3308 = vcvt.s32.f32 %v1708
  %v3309 = vcvt.s32.f32 %v1709
  %v3310 = vcvt.s32.f32 %v1710
  %v3311 = vcvt.s32.f32 %v1711
  %v3312 = vcvt.s32.f32 %v1712
  %v3313 = vcvt.s32.f32 %v1713
  %v3314 = vcvt.s32.f32 %v1714
  %v3315 = vcvt.s32.f32 %v1715
  %v3316 = vcvt.s32.f32 %v1716
  %v3317 = vcvt.s32.f32 %v1717
  %v3318 = vcvt.s32.f32 %v1718
  %v3319 = vcvt.s32.f32 %v1719
  %v3320 = vcvt.s32.f32 %v1720
  %v3321 = vcvt.s32.f32 %v1721
  %v3322 = vcvt.s32.f32 %v1722
  %v3323 = vcvt.s32.f32 %v1723
  %v3324 = vcvt.s32.f32 %v1724
  %v3325 = vcvt.s32.f32 %v1725
  %v3326 = vcvt.s32.f32 %v1726
  %v3327 = vcvt.s32.f32 %v1727
  %v3328 = vcvt.s32.f32 %v1728
  %v3329 = vcvt.s32.f32 %v1729
  %v3330 = vcvt.s32.f32 %v1730
  %v3331 = vcvt.s32.f32 %v1731
  %v3332 = vcvt.s32.f32 %v1732
  %v3333 = vcvt.s32.f32 %v1733
  %v3334 = vcvt.s32.f32 %v1734
  %v3335 = vcvt.s32.f32 %v1735
  %v3336 = vcvt.s32.f32 %v1736
  %v3337 = vcvt.s32.f32 %v1737
  %v3338 = vcvt.s32.f32 %v1738
  %v3339 = vcvt.s32.f32 %v1739
  %v3340 = vcvt.s32.f32 %v1740
  %v3341 = vcvt.s32.f32 %v1741
  %v3342 = vcvt.s32.f32 %v1742
  %v3343 = vcvt.s32.f32 %v1743
  %v3344 = vcvt.s32.f32 %v1744
  %v3345 = vcvt.s32.f32 %v1745
  %v3346 = vcvt.s32.f32 %v1746
  %v3347 = vcvt.s32.f32 %v1747
  %v3348 = vcvt.s32.f32 %v1748
  %v3349 = vcvt.s32.f32 %v1749
  %v3350 = vcvt.s32.f32 %v1750
  %v3351 = vcvt.s32.f32 %v1751
  %v3352 = vcvt.s32.f32 %v1752
  %v3353 = vcvt.s32.f32 %v1753
  %v3354 = vcvt.s32.f32 %v1754
  %v3355 = vcvt.s32.f32 %v1755
  %v3356 = vcvt.s32.f32 %v1756
  %v3357 = vcvt.s32.f32 %v1757
  %v3358 = vcvt.s32.f32 %v1758
  %v3359 = vcvt.s32.f32 %v1759
  %v3360 = vcvt.s32.f32 %v1760
  %v3361 = vcvt.s32.f32 %v1761
  %v3362 = vcvt.s32.f32 %v1762
  %v3363 = vcvt.s32.f32 %v1763
  %v3364 = vcvt.s32.f32 %v1764
  %v3365 = vcvt.s32.f32 %v1765
  %v3366 = vcvt.s32.f32 %v1766
  %v3367 = vcvt.s32.f32 %v1767
  %v3368 = vcvt.s32.f32 %v1768
  %v3369 = vcvt.s32.f32 %v1769
  %v3370 = vcvt.s32.f32 %v1770
  %v3371 = vcvt.s32.f32 %v1771
  %v3372 = vcvt.s32.f32 %v1772
  %v3373 = vcvt.s32.f32 %v1773
  %v3374 = vcvt.s32.f32 %v1774
  %v3375 = vcvt.s32.f32 %v1775
  %v3376 = vcvt.s32.f32 %v1776
  %v3377 = vcvt.s32.f32 %v1777
  %v3378 = vcvt.s32.f32 %v1778
  %v3379 = vcvt.s32.f32 %v1779
  %v3380 = vcvt.s32.f32 %v1780
  %v3381 = vcvt.s32.f32 %v1781
  %v3382 = vcvt.s32.f32 %v1782
  %v3383 = vcvt.s32.f32 %v1783
  %v3384 = vcvt.s32.f32 %v1784
  %v3385 = vcvt.s32.f32 %v1785
  %v3386 = vcvt.s32.f32 %v1786
  %v3387 = vcvt.s32.f32 %v1787
  %v3388 = vcvt.s32.f32 %v1788
  %v3389 = vcvt.s32.f32 %v1789
  %v3390 = vcvt.s32.f32 %v1790
  %v3391 = vcvt.s32.f32 %v1791
  %v3392 = vcvt.s32.f32 %v1792
  %v3393 = vcvt.s32.f32 %v1793
  %v3394 = vcvt.s32.f32 %v1794
  %v3395 = vcvt.s32.f32 %v1795
  %v3396 = vcvt.s32.f32 %v1796
  %v3397 = vcvt.s32.f32 %v1797
  %v3398 = vcvt.s32.f32 %v1798
  %v3399 = vcvt.s32.f32 %v1799
  %v3400 = vcvt.s32.f32 %v1800
  %v3401 = vcvt.s32.f32 %v1801
  %v3402 = vcvt.s32.f32 %v1802
  %v3403 = vcvt.s32.f32 %v1803
  %v3404 = vcvt.s32.f32 %v1804
  %v3405 = vcvt.s32.f32 %v1805
  %v3406 = vcvt.s32.f32 %v1806
  %v3407 = vcvt.s32.f32 %v1807
  %v3408 = vcvt.s32.f32 %v1808
  %v3409 = vcvt.s32.f32 %v1809
  %v3410 = vcvt.s32.f32 %v1810
  %v3411 = vcvt.s32.f32 %v1811
  %v3412 = vcvt.s32.f32 %v1812
  %v3413 = vcvt.s32.f32 %v1813
  %v3414 = vcvt.s32.f32 %v1814
  %v3415 = vcvt.s32.f32 %v1815
  %v3416 = vcvt.s32.f32 %v1816
  %v3417 = vcvt.s32.f32 %v1817
  %v3418 = vcvt.s32.f32 %v1818
  %v3419 = vcvt.s32.f32 %v1819
  %v3420 = vcvt.s32.f32 %v1820
  %v3421 = vcvt.s32.f32 %v1821
  %v3422 = vcvt.s32.f32 %v1822
  %v3423 = vcvt.s32.f32 %v1823
  %v3424 = vcvt.s32.f32 %v1824
  %v3425 = vcvt.s32.f32 %v1825
  %v3426 = vcvt.s32.f32 %v1826
  %v3427 = vcvt.s32.f32 %v1827
  %v3428 = vcvt.s32.f32 %v1828
  %v3429 = vcvt.s32.f32 %v1829
  %v3430 = vcvt.s32.f32 %v1830
  %v3431 = vcvt.s32.f32 %v1831
  %v3432 = vcvt.s32.f32 %v1832
  %v3433 = vcvt.s32.f32 %v1833
  %v3434 = vcvt.s32.f32 %v1834
  %v3435 = vcvt.s32.f32 %v1835
  %v3436 = vcvt.s32.f32 %v1836
  %v3437 = vcvt.s32.f32 %v1837
  %v3438 = vcvt.s32.f32 %v1838
  %v3439 = vcvt.s32.f32 %v1839
  %v3440 = vcvt.s32.f32 %v1840
  %v3441 = vcvt.s32.f32 %v1841
  %v3442 = vcvt.s32.f32 %v1842
  %v3443 = vcvt.s32.f32 %v1843
  %v3444 = vcvt.s32.f32 %v1844
  %v3445 = vcvt.s32.f32 %v1845
  %v3446 = vcvt.s32.f32 %v1846
  %v3447 = vcvt.s32.f32 %v1847
  %v3448 = vcvt.s32.f32 %v1848
  %v3449 = vcvt.s32.f32 %v1849
  %v3450 = vcvt.s32.f32 %v1850
  %v3451 = vcvt.s32.f32 %v1851
  %v3452 = vcvt.s32.f32 %v1852
  %v3453 = vcvt.s32.f32 %v1853
  %v3454 = vcvt.s32.f32 %v1854
  %v3455 = vcvt.s32.f32 %v1855
  %v3456 = vcvt.s32.f32 %v1856
  %v3457 = vcvt.s32.f32 %v1857
  %v3458 = vcvt.s32.f32 %v1858
  %v3459 = vcvt.s32.f32 %v1859
  %v3460 = vcvt.s32.f32 %v1860
  %v3461 = vcvt.s32.f32 %v1861
  %v3462 = vcvt.s32.f32 %v1862
  %v3463 = vcvt.s32.f32 %v1863
  %v3464 = vcvt.s32.f32 %v1864
  %v3465 = vcvt.s32.f32 %v1865
  %v3466 = vcvt.s32.f32 %v1866
  %v3467 = vcvt.s32.f32 %v1867
  %v3468 = vcvt.s32.f32 %v1868
  %v3469 = vcvt.s32.f32 %v1869
  %v3470 = vcvt.s32.f32 %v1870
  %v3471 = vcvt.s32.f32 %v1871
  %v3472 = vcvt.s32.f32 %v1872
  %v3473 = vcvt.s32.f32 %v1873
  %v3474 = vcvt.s32.f32 %v1874
  %v3475 = vcvt.s32.f32 %v1875
  %v3476 = vcvt.s32.f32 %v1876
  %v3477 = vcvt.s32.f32 %v1877
  %v3478 = vcvt.s32.f32 %v1878
  %v3479 = vcvt.s32.f32 %v1879
  %v3480 = vcvt.s32.f32 %v1880
  %v3481 = vcvt.s32.f32 %v1881
  %v3482 = vcvt.s32.f32 %v1882
  %v3483 = vcvt.s32.f32 %v1883
  %v3484 = vcvt.s32.f32 %v1884
  %v3485 = vcvt.s32.f32 %v1885
  %v3486 = vcvt.s32.f32 %v1886
  %v3487 = vcvt.s32.f32 %v1887
  %v3488 = vcvt.s32.f32 %v1888
  %v3489 = vcvt.s32.f32 %v1889
  %v3490 = vcvt.s32.f32 %v1890
  %v3491 = vcvt.s32.f32 %v1891
  %v3492 = vcvt.s32.f32 %v1892
  %v3493 = vcvt.s32.f32 %v1893
  %v3494 = vcvt.s32.f32 %v1894
  %v3495 = vcvt.s32.f32 %v1895
  %v3496 = vcvt.s32.f32 %v1896
  %v3497 = vcvt.s32.f32 %v1897
  %v3498 = vcvt.s32.f32 %v1898
  %v3499 = vcvt.s32.f32 %v1899
  %v3500 = vcvt.s32.f32 %v1900
  %v3501 = vcvt.s32.f32 %v1901
  %v3502 = vcvt.s32.f32 %v1902
  %v3503 = vcvt.s32.f32 %v1903
  %v3504 = vcvt.s32.f32 %v1904
  %v3505 = vcvt.s32.f32 %v1905
  %v3506 = vcvt.s32.f32 %v1906
  %v3507 = vcvt.s32.f32 %v1907
  %v3508 = vcvt.s32.f32 %v1908
  %v3509 = vcvt.s32.f32 %v1909
  %v3510 = vcvt.s32.f32 %v1910
  %v3511 = vcvt.s32.f32 %v1911
  %v3512 = vcvt.s32.f32 %v1912
  %v3513 = vcvt.s32.f32 %v1913
  %v3514 = vcvt.s32.f32 %v1914
  %v3515 = vcvt.s32.f32 %v1915
  %v3516 = vcvt.s32.f32 %v1916
  %v3517 = vcvt.s32.f32 %v1917
  %v3518 = vcvt.s32.f32 %v1918
  %v3519 = vcvt.s32.f32 %v1919
  %v3520 = vcvt.s32.f32 %v1920
  %v3521 = vcvt.s32.f32 %v1921
  %v3522 = vcvt.s32.f32 %v1922
  %v3523 = vcvt.s32.f32 %v1923
  %v3524 = vcvt.s32.f32 %v1924
  %v3525 = vcvt.s32.f32 %v1925
  %v3526 = vcvt.s32.f32 %v1926
  %v3527 = vcvt.s32.f32 %v1927
  %v3528 = vcvt.s32.f32 %v1928
  %v3529 = vcvt.s32.f32 %v1929
  %v3530 = vcvt.s32.f32 %v1930
  %v3531 = vcvt.s32.f32 %v1931
  %v3532 = vcvt.s32.f32 %v1932
  %v3533 = vcvt.s32.f32 %v1933
  %v3534 = vcvt.s32.f32 %v1934
  %v3535 = vcvt.s32.f32 %v1935
  %v3536 = vcvt.s32.f32 %v1936
  %v3537 = vcvt.s32.f32 %v1937
  %v3538 = vcvt.s32.f32 %v1938
  %v3539 = vcvt.s32.f32 %v1939
  %v3540 = vcvt.s32.f32 %v1940
  %v3541 = vcvt.s32.f32 %v1941
  %v3542 = vcvt.s32.f32 %v1942
  %v3543 = vcvt.s32.f32 %v1943
  %v3544 = vcvt.s32.f32 %v1944
  %v3545 = vcvt.s32.f32 %v1945
  %v3546 = vcvt.s32.f32 %v1946
  %v3547 = vcvt.s32.f32 %v1947
  %v3548 = vcvt.s32.f32 %v1948
  %v3549 = vcvt.s32.f32 %v1949
  %v3550 = vcvt.s32.f32 %v1950
  %v3551 = vcvt.s32.f32 %v1951
  %v3552 = vcvt.s32.f32 %v1952
  %v3553 = vcvt.s32.f32 %v1953
  %v3554 = vcvt.s32.f32 %v1954
  %v3555 = vcvt.s32.f32 %v1955
  %v3556 = vcvt.s32.f32 %v1956
  %v3557 = vcvt.s32.f32 %v1957
  %v3558 = vcvt.s32.f32 %v1958
  %v3559 = vcvt.s32.f32 %v1959
  %v3560 = vcvt.s32.f32 %v1960
  %v3561 = vcvt.s32.f32 %v1961
  %v3562 = vcvt.s32.f32 %v1962
  %v3563 = vcvt.s32.f32 %v1963
  %v3564 = vcvt.s32.f32 %v1964
  %v3565 = vcvt.s32.f32 %v1965
  %v3566 = vcvt.s32.f32 %v1966
  %v3567 = vcvt.s32.f32 %v1967
  %v3568 = vcvt.s32.f32 %v1968
  %v3569 = vcvt.s32.f32 %v1969
  %v3570 = vcvt.s32.f32 %v1970
  %v3571 = vcvt.s32.f32 %v1971
  %v3572 = vcvt.s32.f32 %v1972
  %v3573 = vcvt.s32.f32 %v1973
  %v3574 = vcvt.s32.f32 %v1974
  %v3575 = vcvt.s32.f32 %v1975
  %v3576 = vcvt.s32.f32 %v1976
  %v3577 = vcvt.s32.f32 %v1977
  %v3578 = vcvt.s32.f32 %v1978
  %v3579 = vcvt.s32.f32 %v1979
  %v3580 = vcvt.s32.f32 %v1980
  %v3581 = vcvt.s32.f32 %v1981
  %v3582 = vcvt.s32.f32 %v1982
  %v3583 = vcvt.s32.f32 %v1983
  %v3584 = vcvt.s32.f32 %v1984
  %v3585 = vcvt.s32.f32 %v1985
  %v3586 = vcvt.s32.f32 %v1986
  %v3587 = vcvt.s32.f32 %v1987
  %v3588 = vcvt.s32.f32 %v1988
  %v3589 = vcvt.s32.f32 %v1989
  %v3590 = vcvt.s32.f32 %v1990
  %v3591 = vcvt.s32.f32 %v1991
  %v3592 = vcvt.s32.f32 %v1992
  %v3593 = vcvt.s32.f32 %v1993
  %v3594 = vcvt.s32.f32 %v1994
  %v3595 = vcvt.s32.f32 %v1995
  %v3596 = vcvt.s32.f32 %v1996
  %v3597 = vcvt.s32.f32 %v1997
  %v3598 = vcvt.s32.f32 %v1998
  %v3599 = vcvt.s32.f32 %v1999
  %v3600 = vcvt.s32.f32 %v2000
  %v3601 = vcvt.s32.f32 %v2001
  %v3602 = vcvt.s32.f32 %v2002
  %v3603 = vcvt.s32.f32 %v2003
  %v3604 = vcvt.s32.f32 %v2004
  %v3605 = vcvt.s32.f32 %v2005
  %v3606 = vcvt.s32.f32 %v2006
  %v3607 = vcvt.s32.f32 %v2007
  %v3608 = vcvt.s32.f32 %v2008
  %v3609 = vcvt.s32.f32 %v2009
  %v3610 = vcvt.s32.f32 %v2010
  %v3611 = vcvt.s32.f32 %v2011
  %v3612 = vcvt.s32.f32 %v2012
  %v3613 = vcvt.s32.f32 %v2013
  %v3614 = vcvt.s32.f32 %v2014
  %v3615 = vcvt.s32.f32 %v2015
  %v3616 = vcvt.s32.f32 %v2016
  %v3617 = vcvt.s32.f32 %v2017
  %v3618 = vcvt.s32.f32 %v2018
  %v3619 = vcvt.s32.f32 %v2019
  %v3620 = vcvt.s32.f32 %v2020
  %v3621 = vcvt.s32.f32 %v2021
  %v3622 = vcvt.s32.f32 %v2022
  %v3623 = vpack.c.bf16 %v2027, %v2023
  %v3624 = vpack.c.bf16 %v2028, %v2024
  %v3625 = vpack.c.bf16 %v2029, %v2025
  %v3626 = vpack.c.bf16 %v2030, %v2026
  %v3627 = vpack.c.bf16 %v2035, %v2031
  %v3628 = vpack.c.bf16 %v2036, %v2032
  %v3629 = vpack.c.bf16 %v2037, %v2033
  %v3630 = vpack.c.bf16 %v2038, %v2034
  %v3631 = vpack.c.bf16 %v2043, %v2039
  %v3632 = vpack.c.bf16 %v2044, %v2040
  %v3633 = vpack.c.bf16 %v2045, %v2041
  %v3634 = vpack.c.bf16 %v2046, %v2042
  %v3635 = vpack.c.bf16 %v2051, %v2047
  %v3636 = vpack.c.bf16 %v2052, %v2048
  %v3637 = vpack.c.bf16 %v2053, %v2049
  %v3638 = vpack.c.bf16 %v2054, %v2050
  %v3639 = vpack.c.bf16 %v2059, %v2055
  %v3640 = vpack.c.bf16 %v2060, %v2056
  %v3641 = vpack.c.bf16 %v2061, %v2057
  %v3642 = vpack.c.bf16 %v2062, %v2058
  %v3643 = vpack.c.bf16 %v2067, %v2063
  %v3644 = vpack.c.bf16 %v2068, %v2064
  %v3645 = vpack.c.bf16 %v2069, %v2065
  %v3646 = vpack.c.bf16 %v2070, %v2066
  %v3647 = vpack.c.bf16 %v2075, %v2071
  %v3648 = vpack.c.bf16 %v2076, %v2072
  %v3649 = vpack.c.bf16 %v2077, %v2073
  %v3650 = vpack.c.bf16 %v2078, %v2074
  %v3651 = vpack.c.bf16 %v2083, %v2079
  %v3652 = vpack.c.bf16 %v2084, %v2080
  %v3653 = vpack.c.bf16 %v2085, %v2081
  %v3654 = vpack.c.bf16 %v2086, %v2082
  %v3655 = vpack.c.bf16 %v2091, %v2087
  %v3656 = vpack.c.bf16 %v2092, %v2088
  %v3657 = vpack.c.bf16 %v2093, %v2089
  %v3658 = vpack.c.bf16 %v2094, %v2090
  %v3659 = vpack.c.bf16 %v2099, %v2095
  %v3660 = vpack.c.bf16 %v2100, %v2096
  %v3661 = vpack.c.bf16 %v2101, %v2097
  %v3662 = vpack.c.bf16 %v2102, %v2098
  %v3663 = vpack.c.bf16 %v2107, %v2103
  %v3664 = vpack.c.bf16 %v2108, %v2104
  %v3665 = vpack.c.bf16 %v2109, %v2105
  %v3666 = vpack.c.bf16 %v2110, %v2106
  %v3667 = vpack.c.bf16 %v2115, %v2111
  %v3668 = vpack.c.bf16 %v2116, %v2112
  %v3669 = vpack.c.bf16 %v2117, %v2113
  %v3670 = vpack.c.bf16 %v2118, %v2114
  %v3671 = vpack.c.bf16 %v2123, %v2119
  %v3672 = vpack.c.bf16 %v2124, %v2120
  %v3673 = vpack.c.bf16 %v2125, %v2121
  %v3674 = vpack.c.bf16 %v2126, %v2122
  %v3675 = vpack.c.bf16 %v2131, %v2127
  %v3676 = vpack.c.bf16 %v2132, %v2128
  %v3677 = vpack.c.bf16 %v2133, %v2129
  %v3678 = vpack.c.bf16 %v2134, %v2130
  %v3679 = vpack.c.bf16 %v2139, %v2135
  %v3680 = vpack.c.bf16 %v2140, %v2136
  %v3681 = vpack.c.bf16 %v2141, %v2137
  %v3682 = vpack.c.bf16 %v2142, %v2138
  %v3683 = vpack.c.bf16 %v2147, %v2143
  %v3684 = vpack.c.bf16 %v2148, %v2144
  %v3685 = vpack.c.bf16 %v2149, %v2145
  %v3686 = vpack.c.bf16 %v2150, %v2146
  %v3687 = vpack.c.bf16 %v2155, %v2151
  %v3688 = vpack.c.bf16 %v2156, %v2152
  %v3689 = vpack.c.bf16 %v2157, %v2153
  %v3690 = vpack.c.bf16 %v2158, %v2154
  %v3691 = vpack.c.bf16 %v2163, %v2159
  %v3692 = vpack.c.bf16 %v2164, %v2160
  %v3693 = vpack.c.bf16 %v2165, %v2161
  %v3694 = vpack.c.bf16 %v2166, %v2162
  %v3695 = vpack.c.bf16 %v2171, %v2167
  %v3696 = vpack.c.bf16 %v2172, %v2168
  %v3697 = vpack.c.bf16 %v2173, %v2169
  %v3698 = vpack.c.bf16 %v2174, %v2170
  %v3699 = vpack.c.bf16 %v2179, %v2175
  %v3700 = vpack.c.bf16 %v2180, %v2176
  %v3701 = vpack.c.bf16 %v2181, %v2177
  %v3702 = vpack.c.bf16 %v2182, %v2178
  %v3703 = vpack.c.bf16 %v2187, %v2183
  %v3704 = vpack.c.bf16 %v2188, %v2184
  %v3705 = vpack.c.bf16 %v2189, %v2185
  %v3706 = vpack.c.bf16 %v2190, %v2186
  %v3707 = vpack.c.bf16 %v2195, %v2191
  %v3708 = vpack.c.bf16 %v2196, %v2192
  %v3709 = vpack.c.bf16 %v2197, %v2193
  %v3710 = vpack.c.bf16 %v2198, %v2194
  %v3711 = vpack.c.bf16 %v2203, %v2199
  %v3712 = vpack.c.bf16 %v2204, %v2200
  %v3713 = vpack.c.bf16 %v2205, %v2201
  %v3714 = vpack.c.bf16 %v2206, %v2202
  %v3715 = vpack.c.bf16 %v2211, %v2207
  %v3716 = vpack.c.bf16 %v2212, %v2208
  %v3717 = vpack.c.bf16 %v2213, %v2209
  %v3718 = vpack.c.bf16 %v2214, %v2210
  %v3719 = vpack.c.bf16 %v2219, %v2215
  %v3720 = vpack.c.bf16 %v2220, %v2216
  %v3721 = vpack.c.bf16 %v2221, %v2217
  %v3722 = vpack.c.bf16 %v2222, %v2218
  %v3723 = vpack.c.bf16 %v2227, %v2223
  %v3724 = vpack.c.bf16 %v2228, %v2224
  %v3725 = vpack.c.bf16 %v2229, %v2225
  %v3726 = vpack.c.bf16 %v2230, %v2226
  %v3727 = vpack.c.bf16 %v2235, %v2231
  %v3728 = vpack.c.bf16 %v2236, %v2232
  %v3729 = vpack.c.bf16 %v2237, %v2233
  %v3730 = vpack.c.bf16 %v2238, %v2234
  %v3731 = vpack.c.bf16 %v2243, %v2239
  %v3732 = vpack.c.bf16 %v2244, %v2240
  %v3733 = vpack.c.bf16 %v2245, %v2241
  %v3734 = vpack.c.bf16 %v2246, %v2242
  %v3735 = vpack.c.bf16 %v2251, %v2247
  %v3736 = vpack.c.bf16 %v2252, %v2248
  %v3737 = vpack.c.bf16 %v2253, %v2249
  %v3738 = vpack.c.bf16 %v2254, %v2250
  %v3739 = vpack.c.bf16 %v2259, %v2255
  %v3740 = vpack.c.bf16 %v2260, %v2256
  %v3741 = vpack.c.bf16 %v2261, %v2257
  %v3742 = vpack.c.bf16 %v2262, %v2258
  %v3743 = vpack.c.bf16 %v2267, %v2263
  %v3744 = vpack.c.bf16 %v2268, %v2264
  %v3745 = vpack.c.bf16 %v2269, %v2265
  %v3746 = vpack.c.bf16 %v2270, %v2266
  %v3747 = vpack.c.bf16 %v2275, %v2271
  %v3748 = vpack.c.bf16 %v2276, %v2272
  %v3749 = vpack.c.bf16 %v2277, %v2273
  %v3750 = vpack.c.bf16 %v2278, %v2274
  %v3751 = vpack.c.bf16 %v2283, %v2279
  %v3752 = vpack.c.bf16 %v2284, %v2280
  %v3753 = vpack.c.bf16 %v2285, %v2281
  %v3754 = vpack.c.bf16 %v2286, %v2282
  %v3755 = vpack.c.bf16 %v2291, %v2287
  %v3756 = vpack.c.bf16 %v2292, %v2288
  %v3757 = vpack.c.bf16 %v2293, %v2289
  %v3758 = vpack.c.bf16 %v2294, %v2290
  %v3759 = vpack.c.bf16 %v2299, %v2295
  %v3760 = vpack.c.bf16 %v2300, %v2296
  %v3761 = vpack.c.bf16 %v2301, %v2297
  %v3762 = vpack.c.bf16 %v2302, %v2298
  %v3763 = vpack.c.bf16 %v2307, %v2303
  %v3764 = vpack.c.bf16 %v2308, %v2304
  %v3765 = vpack.c.bf16 %v2309, %v2305
  %v3766 = vpack.c.bf16 %v2310, %v2306
  %v3767 = vpack.c.bf16 %v2315, %v2311
  %v3768 = vpack.c.bf16 %v2316, %v2312
  %v3769 = vpack.c.bf16 %v2317, %v2313
  %v3770 = vpack.c.bf16 %v2318, %v2314
  %v3771 = vpack.c.bf16 %v2323, %v2319
  %v3772 = vpack.c.bf16 %v2324, %v2320
  %v3773 = vpack.c.bf16 %v2325, %v2321
  %v3774 = vpack.c.bf16 %v2326, %v2322
  %v3775 = vpack.c.bf16 %v2331, %v2327
  %v3776 = vpack.c.bf16 %v2332, %v2328
  %v3777 = vpack.c.bf16 %v2333, %v2329
  %v3778 = vpack.c.bf16 %v2334, %v2330
  %v3779 = vpack.c.bf16 %v2339, %v2335
  %v3780 = vpack.c.bf16 %v2340, %v2336
  %v3781 = vpack.c.bf16 %v2341, %v2337
  %v3782 = vpack.c.bf16 %v2342, %v2338
  %v3783 = vpack.c.bf16 %v2347, %v2343
  %v3784 = vpack.c.bf16 %v2348, %v2344
  %v3785 = vpack.c.bf16 %v2349, %v2345
  %v3786 = vpack.c.bf16 %v2350, %v2346
  %v3787 = vpack.c.bf16 %v2355, %v2351
  %v3788 = vpack.c.bf16 %v2356, %v2352
  %v3789 = vpack.c.bf16 %v2357, %v2353
  %v3790 = vpack.c.bf16 %v2358, %v2354
  %v3791 = vpack.c.bf16 %v2363, %v2359
  %v3792 = vpack.c.bf16 %v2364, %v2360
  %v3793 = vpack.c.bf16 %v2365, %v2361
  %v3794 = vpack.c.bf16 %v2366, %v2362
  %v3795 = vpack.c.bf16 %v2371, %v2367
  %v3796 = vpack.c.bf16 %v2372, %v2368
  %v3797 = vpack.c.bf16 %v2373, %v2369
  %v3798 = vpack.c.bf16 %v2374, %v2370
  %v3799 = vpack.c.bf16 %v2379, %v2375
  %v3800 = vpack.c.bf16 %v2380, %v2376
  %v3801 = vpack.c.bf16 %v2381, %v2377
  %v3802 = vpack.c.bf16 %v2382, %v2378
  %v3803 = vpack.c.bf16 %v2387, %v2383
  %v3804 = vpack.c.bf16 %v2388, %v2384
  %v3805 = vpack.c.bf16 %v2389, %v2385
  %v3806 = vpack.c.bf16 %v2390, %v2386
  %v3807 = vpack.c.bf16 %v2395, %v2391
  %v3808 = vpack.c.bf16 %v2396, %v2392
  %v3809 = vpack.c.bf16 %v2397, %v2393
  %v3810 = vpack.c.bf16 %v2398, %v2394
  %v3811 = vpack.c.bf16 %v2403, %v2399
  %v3812 = vpack.c.bf16 %v2404, %v2400
  %v3813 = vpack.c.bf16 %v2405, %v2401
  %v3814 = vpack.c.bf16 %v2406, %v2402
  %v3815 = vpack.c.bf16 %v2411, %v2407
  %v3816 = vpack.c.bf16 %v2412, %v2408
  %v3817 = vpack.c.bf16 %v2413, %v2409
  %v3818 = vpack.c.bf16 %v2414, %v2410
  %v3819 = vpack.c.bf16 %v2419, %v2415
  %v3820 = vpack.c.bf16 %v2420, %v2416
  %v3821 = vpack.c.bf16 %v2421, %v2417
  %v3822 = vpack.c.bf16 %v2422, %v2418
  %v3823 = vpack.c.bf16 %v2427, %v2423
  %v3824 = vpack.c.bf16 %v2428, %v2424
  %v3825 = vpack.c.bf16 %v2429, %v2425
  %v3826 = vpack.c.bf16 %v2430, %v2426
  %v3827 = vpack.c.bf16 %v2435, %v2431
  %v3828 = vpack.c.bf16 %v2436, %v2432
  %v3829 = vpack.c.bf16 %v2437, %v2433
  %v3830 = vpack.c.bf16 %v2438, %v2434
  %v3831 = vpack.c.bf16 %v2443, %v2439
  %v3832 = vpack.c.bf16 %v2444, %v2440
  %v3833 = vpack.c.bf16 %v2445, %v2441
  %v3834 = vpack.c.bf16 %v2446, %v2442
  %v3835 = vpack.c.bf16 %v2451, %v2447
  %v3836 = vpack.c.bf16 %v2452, %v2448
  %v3837 = vpack.c.bf16 %v2453, %v2449
  %v3838 = vpack.c.bf16 %v2454, %v2450
  %v3839 = vpack.c.bf16 %v2459, %v2455
  %v3840 = vpack.c.bf16 %v2460, %v2456
  %v3841 = vpack.c.bf16 %v2461, %v2457
  %v3842 = vpack.c.bf16 %v2462, %v2458
  %v3843 = vpack.c.bf16 %v2467, %v2463
  %v3844 = vpack.c.bf16 %v2468, %v2464
  %v3845 = vpack.c.bf16 %v2469, %v2465
  %v3846 = vpack.c.bf16 %v2470, %v2466
  %v3847 = vpack.c.bf16 %v2475, %v2471
  %v3848 = vpack.c.bf16 %v2476, %v2472
  %v3849 = vpack.c.bf16 %v2477, %v2473
  %v3850 = vpack.c.bf16 %v2478, %v2474
  %v3851 = vpack.c.bf16 %v2483, %v2479
  %v3852 = vpack.c.bf16 %v2484, %v2480
  %v3853 = vpack.c.bf16 %v2485, %v2481
  %v3854 = vpack.c.bf16 %v2486, %v2482
  %v3855 = vpack.c.bf16 %v2491, %v2487
  %v3856 = vpack.c.bf16 %v2492, %v2488
  %v3857 = vpack.c.bf16 %v2493, %v2489
  %v3858 = vpack.c.bf16 %v2494, %v2490
  %v3859 = vpack.c.bf16 %v2499, %v2495
  %v3860 = vpack.c.bf16 %v2500, %v2496
  %v3861 = vpack.c.bf16 %v2501, %v2497
  %v3862 = vpack.c.bf16 %v2502, %v2498
  %v3863 = vpack.c.bf16 %v2507, %v2503
  %v3864 = vpack.c.bf16 %v2508, %v2504
  %v3865 = vpack.c.bf16 %v2509, %v2505
  %v3866 = vpack.c.bf16 %v2510, %v2506
  %v3867 = vpack.c.bf16 %v2515, %v2511
  %v3868 = vpack.c.bf16 %v2516, %v2512
  %v3869 = vpack.c.bf16 %v2517, %v2513
  %v3870 = vpack.c.bf16 %v2518, %v2514
  %v3871 = vpack.c.bf16 %v2523, %v2519
  %v3872 = vpack.c.bf16 %v2524, %v2520
  %v3873 = vpack.c.bf16 %v2525, %v2521
  %v3874 = vpack.c.bf16 %v2526, %v2522
  %v3875 = vpack.c.bf16 %v2531, %v2527
  %v3876 = vpack.c.bf16 %v2532, %v2528
  %v3877 = vpack.c.bf16 %v2533, %v2529
  %v3878 = vpack.c.bf16 %v2534, %v2530
  %v3879 = vpack.c.bf16 %v2539, %v2535
  %v3880 = vpack.c.bf16 %v2540, %v2536
  %v3881 = vpack.c.bf16 %v2541, %v2537
  %v3882 = vpack.c.bf16 %v2542, %v2538
  %v3883 = vpack.c.bf16 %v2547, %v2543
  %v3884 = vpack.c.bf16 %v2548, %v2544
  %v3885 = vpack.c.bf16 %v2549, %v2545
  %v3886 = vpack.c.bf16 %v2550, %v2546
  %v3887 = vpack.c.bf16 %v2555, %v2551
  %v3888 = vpack.c.bf16 %v2556, %v2552
  %v3889 = vpack.c.bf16 %v2557, %v2553
  %v3890 = vpack.c.bf16 %v2558, %v2554
  %v3891 = vpack.c.bf16 %v2563, %v2559
  %v3892 = vpack.c.bf16 %v2564, %v2560
  %v3893 = vpack.c.bf16 %v2565, %v2561
  %v3894 = vpack.c.bf16 %v2566, %v2562
  %v3895 = vpack.c.bf16 %v2571, %v2567
  %v3896 = vpack.c.bf16 %v2572, %v2568
  %v3897 = vpack.c.bf16 %v2573, %v2569
  %v3898 = vpack.c.bf16 %v2574, %v2570
  %v3899 = vpack.c.bf16 %v2579, %v2575
  %v3900 = vpack.c.bf16 %v2580, %v2576
  %v3901 = vpack.c.bf16 %v2581, %v2577
  %v3902 = vpack.c.bf16 %v2582, %v2578
  %v3903 = vpack.c.bf16 %v2587, %v2583
  %v3904 = vpack.c.bf16 %v2588, %v2584
  %v3905 = vpack.c.bf16 %v2589, %v2585
  %v3906 = vpack.c.bf16 %v2590, %v2586
  %v3907 = vpack.c.bf16 %v2595, %v2591
  %v3908 = vpack.c.bf16 %v2596, %v2592
  %v3909 = vpack.c.bf16 %v2597, %v2593
  %v3910 = vpack.c.bf16 %v2598, %v2594
  %v3911 = vpack.c.bf16 %v2603, %v2599
  %v3912 = vpack.c.bf16 %v2604, %v2600
  %v3913 = vpack.c.bf16 %v2605, %v2601
  %v3914 = vpack.c.bf16 %v2606, %v2602
  %v3915 = vpack.c.bf16 %v2611, %v2607
  %v3916 = vpack.c.bf16 %v2612, %v2608
  %v3917 = vpack.c.bf16 %v2613, %v2609
  %v3918 = vpack.c.bf16 %v2614, %v2610
  %v3919 = vpack.c.bf16 %v2619, %v2615
  %v3920 = vpack.c.bf16 %v2620, %v2616
  %v3921 = vpack.c.bf16 %v2621, %v2617
  %v3922 = vpack.c.bf16 %v2622, %v2618
  %v3923 = vpack.c.bf16 %v2627, %v2623
  %v3924 = vpack.c.bf16 %v2628, %v2624
  %v3925 = vpack.c.bf16 %v2629, %v2625
  %v3926 = vpack.c.bf16 %v2630, %v2626
  %v3927 = vpack.c.bf16 %v2635, %v2631
  %v3928 = vpack.c.bf16 %v2636, %v2632
  %v3929 = vpack.c.bf16 %v2637, %v2633
  %v3930 = vpack.c.bf16 %v2638, %v2634
  %v3931 = vpack.c.bf16 %v2643, %v2639
  %v3932 = vpack.c.bf16 %v2644, %v2640
  %v3933 = vpack.c.bf16 %v2645, %v2641
  %v3934 = vpack.c.bf16 %v2646, %v2642
  %v3935 = vpack.c.bf16 %v2651, %v2647
  %v3936 = vpack.c.bf16 %v2652, %v2648
  %v3937 = vpack.c.bf16 %v2653, %v2649
  %v3938 = vpack.c.bf16 %v2654, %v2650
  %v3939 = vpack.c.bf16 %v2659, %v2655
  %v3940 = vpack.c.bf16 %v2660, %v2656
  %v3941 = vpack.c.bf16 %v2661, %v2657
  %v3942 = vpack.c.bf16 %v2662, %v2658
  %v3943 = vpack.c.bf16 %v2667, %v2663
  %v3944 = vpack.c.bf16 %v2668, %v2664
  %v3945 = vpack.c.bf16 %v2669, %v2665
  %v3946 = vpack.c.bf16 %v2670, %v2666
  %v3947 = vpack.c.bf16 %v2675, %v2671
  %v3948 = vpack.c.bf16 %v2676, %v2672
  %v3949 = vpack.c.bf16 %v2677, %v2673
  %v3950 = vpack.c.bf16 %v2678, %v2674
  %v3951 = vpack.c.bf16 %v2683, %v2679
  %v3952 = vpack.c.bf16 %v2684, %v2680
  %v3953 = vpack.c.bf16 %v2685, %v2681
  %v3954 = vpack.c.bf16 %v2686, %v2682
  %v3955 = vpack.c.bf16 %v2691, %v2687
  %v3956 = vpack.c.bf16 %v2692, %v2688
  %v3957 = vpack.c.bf16 %v2693, %v2689
  %v3958 = vpack.c.bf16 %v2694, %v2690
  %v3959 = vpack.c.bf16 %v2699, %v2695
  %v3960 = vpack.c.bf16 %v2700, %v2696
  %v3961 = vpack.c.bf16 %v2701, %v2697
  %v3962 = vpack.c.bf16 %v2702, %v2698
  %v3963 = vpack.c.bf16 %v2707, %v2703
  %v3964 = vpack.c.bf16 %v2708, %v2704
  %v3965 = vpack.c.bf16 %v2709, %v2705
  %v3966 = vpack.c.bf16 %v2710, %v2706
  %v3967 = vpack.c.bf16 %v2715, %v2711
  %v3968 = vpack.c.bf16 %v2716, %v2712
  %v3969 = vpack.c.bf16 %v2717, %v2713
  %v3970 = vpack.c.bf16 %v2718, %v2714
  %v3971 = vpack.c.bf16 %v2723, %v2719
  %v3972 = vpack.c.bf16 %v2724, %v2720
  %v3973 = vpack.c.bf16 %v2725, %v2721
  %v3974 = vpack.c.bf16 %v2726, %v2722
  %v3975 = vpack.c.bf16 %v2731, %v2727
  %v3976 = vpack.c.bf16 %v2732, %v2728
  %v3977 = vpack.c.bf16 %v2733, %v2729
  %v3978 = vpack.c.bf16 %v2734, %v2730
  %v3979 = vpack.c.bf16 %v2739, %v2735
  %v3980 = vpack.c.bf16 %v2740, %v2736
  %v3981 = vpack.c.bf16 %v2741, %v2737
  %v3982 = vpack.c.bf16 %v2742, %v2738
  %v3983 = vpack.c.bf16 %v2747, %v2743
  %v3984 = vpack.c.bf16 %v2748, %v2744
  %v3985 = vpack.c.bf16 %v2749, %v2745
  %v3986 = vpack.c.bf16 %v2750, %v2746
  %v3987 = vpack.c.bf16 %v2755, %v2751
  %v3988 = vpack.c.bf16 %v2756, %v2752
  %v3989 = vpack.c.bf16 %v2757, %v2753
  %v3990 = vpack.c.bf16 %v2758, %v2754
  %v3991 = vpack.c.bf16 %v2763, %v2759
  %v3992 = vpack.c.bf16 %v2764, %v2760
  %v3993 = vpack.c.bf16 %v2765, %v2761
  %v3994 = vpack.c.bf16 %v2766, %v2762
  %v3995 = vpack.c.bf16 %v2771, %v2767
  %v3996 = vpack.c.bf16 %v2772, %v2768
  %v3997 = vpack.c.bf16 %v2773, %v2769
  %v3998 = vpack.c.bf16 %v2774, %v2770
  %v3999 = vpack.c.bf16 %v2779, %v2775
  %v4000 = vpack.c.bf16 %v2780, %v2776
  %v4001 = vpack.c.bf16 %v2781, %v2777
  %v4002 = vpack.c.bf16 %v2782, %v2778
  %v4003 = vpack.c.bf16 %v2787, %v2783
  %v4004 = vpack.c.bf16 %v2788, %v2784
  %v4005 = vpack.c.bf16 %v2789, %v2785
  %v4006 = vpack.c.bf16 %v2790, %v2786
  %v4007 = vpack.c.bf16 %v2795, %v2791
  %v4008 = vpack.c.bf16 %v2796, %v2792
  %v4009 = vpack.c.bf16 %v2797, %v2793
  %v4010 = vpack.c.bf16 %v2798, %v2794
  %v4011 = vpack.c.bf16 %v2803, %v2799
  %v4012 = vpack.c.bf16 %v2804, %v2800
  %v4013 = vpack.c.bf16 %v2805, %v2801
  %v4014 = vpack.c.bf16 %v2806, %v2802
  %v4015 = vpack.c.bf16 %v2811, %v2807
  %v4016 = vpack.c.bf16 %v2812, %v2808
  %v4017 = vpack.c.bf16 %v2813, %v2809
  %v4018 = vpack.c.bf16 %v2814, %v2810
  %v4019 = vpack.c.bf16 %v2819, %v2815
  %v4020 = vpack.c.bf16 %v2820, %v2816
  %v4021 = vpack.c.bf16 %v2821, %v2817
  %v4022 = vpack.c.bf16 %v2822, %v2818
  %v4023 = vpack.c.bf16 %v2827, %v2823
  %v4024 = vpack.c.bf16 %v2828, %v2824
  %v4025 = vpack.c.bf16 %v2829, %v2825
  %v4026 = vpack.c.bf16 %v2830, %v2826
  %v4027 = vpack.c.bf16 %v2835, %v2831
  %v4028 = vpack.c.bf16 %v2836, %v2832
  %v4029 = vpack.c.bf16 %v2837, %v2833
  %v4030 = vpack.c.bf16 %v2838, %v2834
  %v4031 = vpack.c.bf16 %v2843, %v2839
  %v4032 = vpack.c.bf16 %v2844, %v2840
  %v4033 = vpack.c.bf16 %v2845, %v2841
  %v4034 = vpack.c.bf16 %v2846, %v2842
  %v4035 = vpack.c.bf16 %v2851, %v2847
  %v4036 = vpack.c.bf16 %v2852, %v2848
  %v4037 = vpack.c.bf16 %v2853, %v2849
  %v4038 = vpack.c.bf16 %v2854, %v2850
  %v4039 = vpack.c.bf16 %v2859, %v2855
  %v4040 = vpack.c.bf16 %v2860, %v2856
  %v4041 = vpack.c.bf16 %v2861, %v2857
  %v4042 = vpack.c.bf16 %v2862, %v2858
  %v4043 = vpack.c.bf16 %v2867, %v2863
  %v4044 = vpack.c.bf16 %v2868, %v2864
  %v4045 = vpack.c.bf16 %v2869, %v2865
  %v4046 = vpack.c.bf16 %v2870, %v2866
  %v4047 = vpack.c.bf16 %v2875, %v2871
  %v4048 = vpack.c.bf16 %v2876, %v2872
  %v4049 = vpack.c.bf16 %v2877, %v2873
  %v4050 = vpack.c.bf16 %v2878, %v2874
  %v4051 = vpack.c.bf16 %v2883, %v2879
  %v4052 = vpack.c.bf16 %v2884, %v2880
  %v4053 = vpack.c.bf16 %v2885, %v2881
  %v4054 = vpack.c.bf16 %v2886, %v2882
  %v4055 = vpack.c.bf16 %v2891, %v2887
  %v4056 = vpack.c.bf16 %v2892, %v2888
  %v4057 = vpack.c.bf16 %v2893, %v2889
  %v4058 = vpack.c.bf16 %v2894, %v2890
  %v4059 = vpack.c.bf16 %v2899, %v2895
  %v4060 = vpack.c.bf16 %v2900, %v2896
  %v4061 = vpack.c.bf16 %v2901, %v2897
  %v4062 = vpack.c.bf16 %v2902, %v2898
  %v4063 = vpack.c.bf16 %v2907, %v2903
  %v4064 = vpack.c.bf16 %v2908, %v2904
  %v4065 = vpack.c.bf16 %v2909, %v2905
  %v4066 = vpack.c.bf16 %v2910, %v2906
  %v4067 = vpack.c.bf16 %v2915, %v2911
  %v4068 = vpack.c.bf16 %v2916, %v2912
  %v4069 = vpack.c.bf16 %v2917, %v2913
  %v4070 = vpack.c.bf16 %v2918, %v2914
  %v4071 = vpack.c.bf16 %v2923, %v2919
  %v4072 = vpack.c.bf16 %v2924, %v2920
  %v4073 = vpack.c.bf16 %v2925, %v2921
  %v4074 = vpack.c.bf16 %v2926, %v2922
  %v4075 = vpack.c.bf16 %v2931, %v2927
  %v4076 = vpack.c.bf16 %v2932, %v2928
  %v4077 = vpack.c.bf16 %v2933, %v2929
  %v4078 = vpack.c.bf16 %v2934, %v2930
  %v4079 = vpack.c.bf16 %v2939, %v2935
  %v4080 = vpack.c.bf16 %v2940, %v2936
  %v4081 = vpack.c.bf16 %v2941, %v2937
  %v4082 = vpack.c.bf16 %v2942, %v2938
  %v4083 = vpack.c.bf16 %v2947, %v2943
  %v4084 = vpack.c.bf16 %v2948, %v2944
  %v4085 = vpack.c.bf16 %v2949, %v2945
  %v4086 = vpack.c.bf16 %v2950, %v2946
  %v4087 = vpack.c.bf16 %v2955, %v2951
  %v4088 = vpack.c.bf16 %v2956, %v2952
  %v4089 = vpack.c.bf16 %v2957, %v2953
  %v4090 = vpack.c.bf16 %v2958, %v2954
  %v4091 = vpack.c.bf16 %v2963, %v2959
  %v4092 = vpack.c.bf16 %v2964, %v2960
  %v4093 = vpack.c.bf16 %v2965, %v2961
  %v4094 = vpack.c.bf16 %v2966, %v2962
  %v4095 = vpack.c.bf16 %v2971, %v2967
  %v4096 = vpack.c.bf16 %v2972, %v2968
  %v4097 = vpack.c.bf16 %v2973, %v2969
  %v4098 = vpack.c.bf16 %v2974, %v2970
  %v4099 = vpack.c.bf16 %v2979, %v2975
  %v4100 = vpack.c.bf16 %v2980, %v2976
  %v4101 = vpack.c.bf16 %v2981, %v2977
  %v4102 = vpack.c.bf16 %v2982, %v2978
  %v4103 = vpack.c.bf16 %v2987, %v2983
  %v4104 = vpack.c.bf16 %v2988, %v2984
  %v4105 = vpack.c.bf16 %v2989, %v2985
  %v4106 = vpack.c.bf16 %v2990, %v2986
  %v4107 = vpack.c.bf16 %v2995, %v2991
  %v4108 = vpack.c.bf16 %v2996, %v2992
  %v4109 = vpack.c.bf16 %v2997, %v2993
  %v4110 = vpack.c.bf16 %v2998, %v2994
  %v4111 = vpack.c.bf16 %v3003, %v2999
  %v4112 = vpack.c.bf16 %v3004, %v3000
  %v4113 = vpack.c.bf16 %v3005, %v3001
  %v4114 = vpack.c.bf16 %v3006, %v3002
  %v4115 = vpack.c.bf16 %v3011, %v3007
  %v4116 = vpack.c.bf16 %v3012, %v3008
  %v4117 = vpack.c.bf16 %v3013, %v3009
  %v4118 = vpack.c.bf16 %v3014, %v3010
  %v4119 = vpack.c.bf16 %v3019, %v3015
  %v4120 = vpack.c.bf16 %v3020, %v3016
  %v4121 = vpack.c.bf16 %v3021, %v3017
  %v4122 = vpack.c.bf16 %v3022, %v3018
  %v4123 = vpack.c.bf16 %v3027, %v3023
  %v4124 = vpack.c.bf16 %v3028, %v3024
  %v4125 = vpack.c.bf16 %v3029, %v3025
  %v4126 = vpack.c.bf16 %v3030, %v3026
  %v4127 = vpack.c.bf16 %v3035, %v3031
  %v4128 = vpack.c.bf16 %v3036, %v3032
  %v4129 = vpack.c.bf16 %v3037, %v3033
  %v4130 = vpack.c.bf16 %v3038, %v3034
  %v4131 = vpack.c.bf16 %v3043, %v3039
  %v4132 = vpack.c.bf16 %v3044, %v3040
  %v4133 = vpack.c.bf16 %v3045, %v3041
  %v4134 = vpack.c.bf16 %v3046, %v3042
  %v4135 = vpack.c.bf16 %v3051, %v3047
  %v4136 = vpack.c.bf16 %v3052, %v3048
  %v4137 = vpack.c.bf16 %v3053, %v3049
  %v4138 = vpack.c.bf16 %v3054, %v3050
  %v4139 = vpack.c.bf16 %v3059, %v3055
  %v4140 = vpack.c.bf16 %v3060, %v3056
  %v4141 = vpack.c.bf16 %v3061, %v3057
  %v4142 = vpack.c.bf16 %v3062, %v3058
  %v4143 = vpack.c.bf16 %v3067, %v3063
  %v4144 = vpack.c.bf16 %v3068, %v3064
  %v4145 = vpack.c.bf16 %v3069, %v3065
  %v4146 = vpack.c.bf16 %v3070, %v3066
  %v4147 = vpack.c.bf16 %v3075, %v3071
  %v4148 = vpack.c.bf16 %v3076, %v3072
  %v4149 = vpack.c.bf16 %v3077, %v3073
  %v4150 = vpack.c.bf16 %v3078, %v3074
  %v4151 = vpack.c.bf16 %v3083, %v3079
  %v4152 = vpack.c.bf16 %v3084, %v3080
  %v4153 = vpack.c.bf16 %v3085, %v3081
  %v4154 = vpack.c.bf16 %v3086, %v3082
  %v4155 = vpack.c.bf16 %v3091, %v3087
  %v4156 = vpack.c.bf16 %v3092, %v3088
  %v4157 = vpack.c.bf16 %v3093, %v3089
  %v4158 = vpack.c.bf16 %v3094, %v3090
  %v4159 = vpack.c.bf16 %v3099, %v3095
  %v4160 = vpack.c.bf16 %v3100, %v3096
  %v4161 = vpack.c.bf16 %v3101, %v3097
  %v4162 = vpack.c.bf16 %v3102, %v3098
  %v4163 = vpack.c.bf16 %v3107, %v3103
  %v4164 = vpack.c.bf16 %v3108, %v3104
  %v4165 = vpack.c.bf16 %v3109, %v3105
  %v4166 = vpack.c.bf16 %v3110, %v3106
  %v4167 = vpack.c.bf16 %v3115, %v3111
  %v4168 = vpack.c.bf16 %v3116, %v3112
  %v4169 = vpack.c.bf16 %v3117, %v3113
  %v4170 = vpack.c.bf16 %v3118, %v3114
  %v4171 = vpack.c.bf16 %v3123, %v3119
  %v4172 = vpack.c.bf16 %v3124, %v3120
  %v4173 = vpack.c.bf16 %v3125, %v3121
  %v4174 = vpack.c.bf16 %v3126, %v3122
  %v4175 = vpack.c.bf16 %v3131, %v3127
  %v4176 = vpack.c.bf16 %v3132, %v3128
  %v4177 = vpack.c.bf16 %v3133, %v3129
  %v4178 = vpack.c.bf16 %v3134, %v3130
  %v4179 = vpack.c.bf16 %v3139, %v3135
  %v4180 = vpack.c.bf16 %v3140, %v3136
  %v4181 = vpack.c.bf16 %v3141, %v3137
  %v4182 = vpack.c.bf16 %v3142, %v3138
  %v4183 = vpack.c.bf16 %v3147, %v3143
  %v4184 = vpack.c.bf16 %v3148, %v3144
  %v4185 = vpack.c.bf16 %v3149, %v3145
  %v4186 = vpack.c.bf16 %v3150, %v3146
  %v4187 = vpack.c.bf16 %v3155, %v3151
  %v4188 = vpack.c.bf16 %v3156, %v3152
  %v4189 = vpack.c.bf16 %v3157, %v3153
  %v4190 = vpack.c.bf16 %v3158, %v3154
  %v4191 = vpack.c.bf16 %v3163, %v3159
  %v4192 = vpack.c.bf16 %v3164, %v3160
  %v4193 = vpack.c.bf16 %v3165, %v3161
  %v4194 = vpack.c.bf16 %v3166, %v3162
  %v4195 = vpack.c.bf16 %v3171, %v3167
  %v4196 = vpack.c.bf16 %v3172, %v3168
  %v4197 = vpack.c.bf16 %v3173, %v3169
  %v4198 = vpack.c.bf16 %v3174, %v3170
  %v4199 = vpack.c.bf16 %v3179, %v3175
  %v4200 = vpack.c.bf16 %v3180, %v3176
  %v4201 = vpack.c.bf16 %v3181, %v3177
  %v4202 = vpack.c.bf16 %v3182, %v3178
  %v4203 = vpack.c.bf16 %v3187, %v3183
  %v4204 = vpack.c.bf16 %v3188, %v3184
  %v4205 = vpack.c.bf16 %v3189, %v3185
  %v4206 = vpack.c.bf16 %v3190, %v3186
  %v4207 = vpack.c.bf16 %v3195, %v3191
  %v4208 = vpack.c.bf16 %v3196, %v3192
  %v4209 = vpack.c.bf16 %v3197, %v3193
  %v4210 = vpack.c.bf16 %v3198, %v3194
  %v4211 = vpack.c.bf16 %v3203, %v3199
  %v4212 = vpack.c.bf16 %v3204, %v3200
  %v4213 = vpack.c.bf16 %v3205, %v3201
  %v4214 = vpack.c.bf16 %v3206, %v3202
  %v4215 = vpack.c.bf16 %v3211, %v3207
  %v4216 = vpack.c.bf16 %v3212, %v3208
  %v4217 = vpack.c.bf16 %v3213, %v3209
  %v4218 = vpack.c.bf16 %v3214, %v3210
  %v4219 = vpack.c.bf16 %v3219, %v3215
  %v4220 = vpack.c.bf16 %v3220, %v3216
  %v4221 = vpack.c.bf16 %v3221, %v3217
  %v4222 = vpack.c.bf16 %v3222, %v3218
  %v4223 = vpack.c.bf16 %v3227, %v3223
  %v4224 = vpack.c.bf16 %v3228, %v3224
  %v4225 = vpack.c.bf16 %v3229, %v3225
  %v4226 = vpack.c.bf16 %v3230, %v3226
  %v4227 = vpack.c.bf16 %v3235, %v3231
  %v4228 = vpack.c.bf16 %v3236, %v3232
  %v4229 = vpack.c.bf16 %v3237, %v3233
  %v4230 = vpack.c.bf16 %v3238, %v3234
  %v4231 = vpack.c.bf16 %v3243, %v3239
  %v4232 = vpack.c.bf16 %v3244, %v3240
  %v4233 = vpack.c.bf16 %v3245, %v3241
  %v4234 = vpack.c.bf16 %v3246, %v3242
  %v4235 = vpack.c.bf16 %v3251, %v3247
  %v4236 = vpack.c.bf16 %v3252, %v3248
  %v4237 = vpack.c.bf16 %v3253, %v3249
  %v4238 = vpack.c.bf16 %v3254, %v3250
  %v4239 = vpack.c.bf16 %v3259, %v3255
  %v4240 = vpack.c.bf16 %v3260, %v3256
  %v4241 = vpack.c.bf16 %v3261, %v3257
  %v4242 = vpack.c.bf16 %v3262, %v3258
  %v4243 = vpack.c.bf16 %v3267, %v3263
  %v4244 = vpack.c.bf16 %v3268, %v3264
  %v4245 = vpack.c.bf16 %v3269, %v3265
  %v4246 = vpack.c.bf16 %v3270, %v3266
  %v4247 = vpack.c.bf16 %v3275, %v3271
  %v4248 = vpack.c.bf16 %v3276, %v3272
  %v4249 = vpack.c.bf16 %v3277, %v3273
  %v4250 = vpack.c.bf16 %v3278, %v3274
  %v4251 = vpack.c.bf16 %v3283, %v3279
  %v4252 = vpack.c.bf16 %v3284, %v3280
  %v4253 = vpack.c.bf16 %v3285, %v3281
  %v4254 = vpack.c.bf16 %v3286, %v3282
  %v4255 = vpack.c.bf16 %v3291, %v3287
  %v4256 = vpack.c.bf16 %v3292, %v3288
  %v4257 = vpack.c.bf16 %v3293, %v3289
  %v4258 = vpack.c.bf16 %v3294, %v3290
  %v4259 = vpack.c.bf16 %v3299, %v3295
  %v4260 = vpack.c.bf16 %v3300, %v3296
  %v4261 = vpack.c.bf16 %v3301, %v3297
  %v4262 = vpack.c.bf16 %v3302, %v3298
  %v4263 = vpack.c.bf16 %v3307, %v3303
  %v4264 = vpack.c.bf16 %v3308, %v3304
  %v4265 = vpack.c.bf16 %v3309, %v3305
  %v4266 = vpack.c.bf16 %v3310, %v3306
  %v4267 = vpack.c.bf16 %v3315, %v3311
  %v4268 = vpack.c.bf16 %v3316, %v3312
  %v4269 = vpack.c.bf16 %v3317, %v3313
  %v4270 = vpack.c.bf16 %v3318, %v3314
  %v4271 = vpack.c.bf16 %v3323, %v3319
  %v4272 = vpack.c.bf16 %v3324, %v3320
  %v4273 = vpack.c.bf16 %v3325, %v3321
  %v4274 = vpack.c.bf16 %v3326, %v3322
  %v4275 = vpack.c.bf16 %v3331, %v3327
  %v4276 = vpack.c.bf16 %v3332, %v3328
  %v4277 = vpack.c.bf16 %v3333, %v3329
  %v4278 = vpack.c.bf16 %v3334, %v3330
  %v4279 = vpack.c.bf16 %v3339, %v3335
  %v4280 = vpack.c.bf16 %v3340, %v3336
  %v4281 = vpack.c.bf16 %v3341, %v3337
  %v4282 = vpack.c.bf16 %v3342, %v3338
  %v4283 = vpack.c.bf16 %v3347, %v3343
  %v4284 = vpack.c.bf16 %v3348, %v3344
  %v4285 = vpack.c.bf16 %v3349, %v3345
  %v4286 = vpack.c.bf16 %v3350, %v3346
  %v4287 = vpack.c.bf16 %v3355, %v3351
  %v4288 = vpack.c.bf16 %v3356, %v3352
  %v4289 = vpack.c.bf16 %v3357, %v3353
  %v4290 = vpack.c.bf16 %v3358, %v3354
  %v4291 = vpack.c.bf16 %v3363, %v3359
  %v4292 = vpack.c.bf16 %v3364, %v3360
  %v4293 = vpack.c.bf16 %v3365, %v3361
  %v4294 = vpack.c.bf16 %v3366, %v3362
  %v4295 = vpack.c.bf16 %v3371, %v3367
  %v4296 = vpack.c.bf16 %v3372, %v3368
  %v4297 = vpack.c.bf16 %v3373, %v3369
  %v4298 = vpack.c.bf16 %v3374, %v3370
  %v4299 = vpack.c.bf16 %v3379, %v3375
  %v4300 = vpack.c.bf16 %v3380, %v3376
  %v4301 = vpack.c.bf16 %v3381, %v3377
  %v4302 = vpack.c.bf16 %v3382, %v3378
  %v4303 = vpack.c.bf16 %v3387, %v3383
  %v4304 = vpack.c.bf16 %v3388, %v3384
  %v4305 = vpack.c.bf16 %v3389, %v3385
  %v4306 = vpack.c.bf16 %v3390, %v3386
  %v4307 = vpack.c.bf16 %v3395, %v3391
  %v4308 = vpack.c.bf16 %v3396, %v3392
  %v4309 = vpack.c.bf16 %v3397, %v3393
  %v4310 = vpack.c.bf16 %v3398, %v3394
  %v4311 = vpack.c.bf16 %v3403, %v3399
  %v4312 = vpack.c.bf16 %v3404, %v3400
  %v4313 = vpack.c.bf16 %v3405, %v3401
  %v4314 = vpack.c.bf16 %v3406, %v3402
  %v4315 = vpack.c.bf16 %v3411, %v3407
  %v4316 = vpack.c.bf16 %v3412, %v3408
  %v4317 = vpack.c.bf16 %v3413, %v3409
  %v4318 = vpack.c.bf16 %v3414, %v3410
  %v4319 = vpack.c.bf16 %v3419, %v3415
  %v4320 = vpack.c.bf16 %v3420, %v3416
  %v4321 = vpack.c.bf16 %v3421, %v3417
  %v4322 = vpack.c.bf16 %v3422, %v3418
  %v4323 = vpack.c.bf16 %v3427, %v3423
  %v4324 = vpack.c.bf16 %v3428, %v3424
  %v4325 = vpack.c.bf16 %v3429, %v3425
  %v4326 = vpack.c.bf16 %v3430, %v3426
  %v4327 = vpack.c.bf16 %v3435, %v3431
  %v4328 = vpack.c.bf16 %v3436, %v3432
  %v4329 = vpack.c.bf16 %v3437, %v3433
  %v4330 = vpack.c.bf16 %v3438, %v3434
  %v4331 = vpack.c.bf16 %v3443, %v3439
  %v4332 = vpack.c.bf16 %v3444, %v3440
  %v4333 = vpack.c.bf16 %v3445, %v3441
  %v4334 = vpack.c.bf16 %v3446, %v3442
  %v4335 = vpack.c.bf16 %v3451, %v3447
  %v4336 = vpack.c.bf16 %v3452, %v3448
  %v4337 = vpack.c.bf16 %v3453, %v3449
  %v4338 = vpack.c.bf16 %v3454, %v3450
  %v4339 = vpack.c.bf16 %v3459, %v3455
  %v4340 = vpack.c.bf16 %v3460, %v3456
  %v4341 = vpack.c.bf16 %v3461, %v3457
  %v4342 = vpack.c.bf16 %v3462, %v3458
  %v4343 = vpack.c.bf16 %v3467, %v3463
  %v4344 = vpack.c.bf16 %v3468, %v3464
  %v4345 = vpack.c.bf16 %v3469, %v3465
  %v4346 = vpack.c.bf16 %v3470, %v3466
  %v4347 = vpack.c.bf16 %v3475, %v3471
  %v4348 = vpack.c.bf16 %v3476, %v3472
  %v4349 = vpack.c.bf16 %v3477, %v3473
  %v4350 = vpack.c.bf16 %v3478, %v3474
  %v4351 = vpack.c.bf16 %v3483, %v3479
  %v4352 = vpack.c.bf16 %v3484, %v3480
  %v4353 = vpack.c.bf16 %v3485, %v3481
  %v4354 = vpack.c.bf16 %v3486, %v3482
  %v4355 = vpack.c.bf16 %v3491, %v3487
  %v4356 = vpack.c.bf16 %v3492, %v3488
  %v4357 = vpack.c.bf16 %v3493, %v3489
  %v4358 = vpack.c.bf16 %v3494, %v3490
  %v4359 = vpack.c.bf16 %v3499, %v3495
  %v4360 = vpack.c.bf16 %v3500, %v3496
  %v4361 = vpack.c.bf16 %v3501, %v3497
  %v4362 = vpack.c.bf16 %v3502, %v3498
  %v4363 = vpack.c.bf16 %v3507, %v3503
  %v4364 = vpack.c.bf16 %v3508, %v3504
  %v4365 = vpack.c.bf16 %v3509, %v3505
  %v4366 = vpack.c.bf16 %v3510, %v3506
  %v4367 = vpack.c.bf16 %v3515, %v3511
  %v4368 = vpack.c.bf16 %v3516, %v3512
  %v4369 = vpack.c.bf16 %v3517, %v3513
  %v4370 = vpack.c.bf16 %v3518, %v3514
  %v4371 = vpack.c.bf16 %v3523, %v3519
  %v4372 = vpack.c.bf16 %v3524, %v3520
  %v4373 = vpack.c.bf16 %v3525, %v3521
  %v4374 = vpack.c.bf16 %v3526, %v3522
  %v4375 = vpack.c.bf16 %v3531, %v3527
  %v4376 = vpack.c.bf16 %v3532, %v3528
  %v4377 = vpack.c.bf16 %v3533, %v3529
  %v4378 = vpack.c.bf16 %v3534, %v3530
  %v4379 = vpack.c.bf16 %v3539, %v3535
  %v4380 = vpack.c.bf16 %v3540, %v3536
  %v4381 = vpack.c.bf16 %v3541, %v3537
  %v4382 = vpack.c.bf16 %v3542, %v3538
  %v4383 = vpack.c.bf16 %v3547, %v3543
  %v4384 = vpack.c.bf16 %v3548, %v3544
  %v4385 = vpack.c.bf16 %v3549, %v3545
  %v4386 = vpack.c.bf16 %v3550, %v3546
  %v4387 = vpack.c.bf16 %v3555, %v3551
  %v4388 = vpack.c.bf16 %v3556, %v3552
  %v4389 = vpack.c.bf16 %v3557, %v3553
  %v4390 = vpack.c.bf16 %v3558, %v3554
  %v4391 = vpack.c.bf16 %v3563, %v3559
  %v4392 = vpack.c.bf16 %v3564, %v3560
  %v4393 = vpack.c.bf16 %v3565, %v3561
  %v4394 = vpack.c.bf16 %v3566, %v3562
  %v4395 = vpack.c.bf16 %v3571, %v3567
  %v4396 = vpack.c.bf16 %v3572, %v3568
  %v4397 = vpack.c.bf16 %v3573, %v3569
  %v4398 = vpack.c.bf16 %v3574, %v3570
  %v4399 = vpack.c.bf16 %v3579, %v3575
  %v4400 = vpack.c.bf16 %v3580, %v3576
  %v4401 = vpack.c.bf16 %v3581, %v3577
  %v4402 = vpack.c.bf16 %v3582, %v3578
  %v4403 = vpack.c.bf16 %v3587, %v3583
  %v4404 = vpack.c.bf16 %v3588, %v3584
  %v4405 = vpack.c.bf16 %v3589, %v3585
  %v4406 = vpack.c.bf16 %v3590, %v3586
  %v4407 = vpack.c.bf16 %v3595, %v3591
  %v4408 = vpack.c.bf16 %v3596, %v3592
  %v4409 = vpack.c.bf16 %v3597, %v3593
  %v4410 = vpack.c.bf16 %v3598, %v3594
  %v4411 = vpack.c.bf16 %v3603, %v3599
  %v4412 = vpack.c.bf16 %v3604, %v3600
  %v4413 = vpack.c.bf16 %v3605, %v3601
  %v4414 = vpack.c.bf16 %v3606, %v3602
  %v4415 = vpack.c.bf16 %v3611, %v3607
  %v4416 = vpack.c.bf16 %v3612, %v3608
  %v4417 = vpack.c.bf16 %v3613, %v3609
  %v4418 = vpack.c.bf16 %v3614, %v3610
  %v4419 = vpack.c.bf16 %v3619, %v3615
  %v4420 = vpack.c.bf16 %v3620, %v3616
  %v4421 = vpack.c.bf16 %v3621, %v3617
  %v4422 = vpack.c.bf16 %v3622, %v3618
  %v4423 = vld [vmem:[%s0] sm:$0xff]
  %v4424 = vld [vmem:[%s0 + $0x8] sm:$0xff]
  %v4425 = vld [vmem:[%s0 + $0x10] sm:$0xff]
  %v4426 = vld [vmem:[%s0 + $0x18] sm:$0xff]
  %v4427 = vld [vmem:[%s0 + $0x20] sm:$0xff]
  %v4428 = vld [vmem:[%s0 + $0x28] sm:$0xff]
  %v4429 = vld [vmem:[%s0 + $0x30] sm:$0xff]
  %v4430 = vld [vmem:[%s0 + $0x38] sm:$0xff]
  %v4431 = vld [vmem:[%s0 + $0x40] sm:$0xff]
  %v4432 = vld [vmem:[%s0 + $0x48] sm:$0xff]
  %v4433 = vld [vmem:[%s0 + $0x50] sm:$0xff]
  %v4434 = vld [vmem:[%s0 + $0x58] sm:$0xff]
  %v4435 = vld [vmem:[%s0 + $0x60] sm:$0xf]
  %v4436 = vld [vmem:[%s0 + $0x64] sm:$0xff]
  %v4437 = vld [vmem:[%s0 + $0x6c] sm:$0xff]
  %v4438 = vld [vmem:[%s0 + $0x74] sm:$0xff]
  %v4439 = vld [vmem:[%s0 + $0x7c] sm:$0xff]
  %v4440 = vld [vmem:[%s0 + $0x84] sm:$0xff]
  %v4441 = vld [vmem:[%s0 + $0x8c] sm:$0xff]
  %v4442 = vld [vmem:[%s0 + $0x94] sm:$0xff]
  %v4443 = vld [vmem:[%s0 + $0x9c] sm:$0xff]
  %v4444 = vld [vmem:[%s0 + $0xa4] sm:$0xff]
  %v4445 = vld [vmem:[%s0 + $0xac] sm:$0xff]
  %v4446 = vld [vmem:[%s0 + $0xb4] sm:$0xff]
  %v4447 = vld [vmem:[%s0 + $0xbc] sm:$0xff]
  %v4448 = vld [vmem:[%s0 + $0xc4] sm:$0xf]
  %v4475 = vunpack.c.l.b16 %v4423
  %v4476 = vunpack.c.h.b16 %v4423
  %v4477 = vunpack.c.l.b16 %v4424
  %v4478 = vunpack.c.h.b16 %v4424
  %v4479 = vunpack.c.l.b16 %v4425
  %v4480 = vunpack.c.h.b16 %v4425
  %v4481 = vunpack.c.l.b16 %v4426
  %v4482 = vunpack.c.h.b16 %v4426
  %v4483 = vunpack.c.l.b16 %v4427
  %v4484 = vunpack.c.h.b16 %v4427
  %v4485 = vunpack.c.l.b16 %v4428
  %v4486 = vunpack.c.h.b16 %v4428
  %v4487 = vunpack.c.l.b16 %v4429
  %v4488 = vunpack.c.h.b16 %v4429
  %v4489 = vunpack.c.l.b16 %v4430
  %v4490 = vunpack.c.h.b16 %v4430
  %v4491 = vunpack.c.l.b16 %v4431
  %v4492 = vunpack.c.h.b16 %v4431
  %v4493 = vunpack.c.l.b16 %v4432
  %v4494 = vunpack.c.h.b16 %v4432
  %v4495 = vunpack.c.l.b16 %v4433
  %v4496 = vunpack.c.h.b16 %v4433
  %v4497 = vunpack.c.l.b16 %v4434
  %v4498 = vunpack.c.h.b16 %v4434
  %v4499 = vunpack.c.l.b16 %v4435
  %v4500 = vunpack.c.l.b16 %v4436
  %v4501 = vunpack.c.h.b16 %v4436
  %v4502 = vunpack.c.l.b16 %v4437
  %v4503 = vunpack.c.h.b16 %v4437
  %v4504 = vunpack.c.l.b16 %v4438
  %v4505 = vunpack.c.h.b16 %v4438
  %v4506 = vunpack.c.l.b16 %v4439
  %v4507 = vunpack.c.h.b16 %v4439
  %v4508 = vunpack.c.l.b16 %v4440
  %v4509 = vunpack.c.h.b16 %v4440
  %v4510 = vunpack.c.l.b16 %v4441
  %v4511 = vunpack.c.h.b16 %v4441
  %v4512 = vunpack.c.l.b16 %v4442
  %v4513 = vunpack.c.h.b16 %v4442
  %v4514 = vunpack.c.l.b16 %v4443
  %v4515 = vunpack.c.h.b16 %v4443
  %v4516 = vunpack.c.l.b16 %v4444
  %v4517 = vunpack.c.h.b16 %v4444
  %v4518 = vunpack.c.l.b16 %v4445
  %v4519 = vunpack.c.h.b16 %v4445
  %v4520 = vunpack.c.l.b16 %v4446
  %v4521 = vunpack.c.h.b16 %v4446
  %v4522 = vunpack.c.l.b16 %v4447
  %v4523 = vunpack.c.h.b16 %v4447
  %v4524 = vunpack.c.l.b16 %v4448
  %v4525 = vpack.c.b16 %v4500, %v4475
  %v4526 = vpack.c.b16 %v4501, %v4476
  %v4527 = vpack.c.b16 %v4502, %v4477
  %v4528 = vpack.c.b16 %v4503, %v4478
  %v4529 = vpack.c.b16 %v4504, %v4479
  %v4530 = vpack.c.b16 %v4505, %v4480
  %v4531 = vpack.c.b16 %v4506, %v4481
  %v4532 = vpack.c.b16 %v4507, %v4482
  %v4533 = vpack.c.b16 %v4508, %v4483
  %v4534 = vpack.c.b16 %v4509, %v4484
  %v4535 = vpack.c.b16 %v4510, %v4485
  %v4536 = vpack.c.b16 %v4511, %v4486
  %v4537 = vpack.c.b16 %v4512, %v4487
  %v4538 = vpack.c.b16 %v4513, %v4488
  %v4539 = vpack.c.b16 %v4514, %v4489
  %v4540 = vpack.c.b16 %v4515, %v4490
  %v4541 = vpack.c.b16 %v4516, %v4491
  %v4542 = vpack.c.b16 %v4517, %v4492
  %v4543 = vpack.c.b16 %v4518, %v4493
  %v4544 = vpack.c.b16 %v4519, %v4494
  %v4545 = vpack.c.b16 %v4520, %v4495
  %v4546 = vpack.c.b16 %v4521, %v4496
  %v4547 = vpack.c.b16 %v4522, %v4497
  %v4548 = vpack.c.b16 %v4523, %v4498
  %v4549 = vpack.c.b16 %v4524, %v4499
  %4575 = vmatpush.bf16.msra.mxu0 %v3651
  %4576 = vmatpush.bf16.msra.mxu0 %v3647
  %4577 = vmatpush.bf16.msra.mxu0 %v3643
  %4578 = vmatpush.bf16.msra.mxu0 %v3639
  %4579 = vmatpush.bf16.msra.mxu0 %v3635
  %4580 = vmatpush.bf16.msra.mxu0 %v3631
  %4581 = vmatpush.bf16.msra.mxu0 %v3627
  %4582 = vmatpush.bf16.msra.mxu0 %v3623
  %4583 = vmatmul.bf16.gmra.mxu0 %v4525
  %v4584 = vpop.f32.mrf.mxu0
  %v4585 = vadd.f32 0.0, %v4584
  %v4586 = vpop.f32.mrf.mxu0
  %v4587 = vadd.f32 0.0, %v4586
  %4588 = vdwg.mxu0
  %4589 = vmatpush.bf16.msra.mxu0 %v3683
  %4590 = vmatpush.bf16.msra.mxu0 %v3679
  %4591 = vmatpush.bf16.msra.mxu0 %v3675
  %4592 = vmatpush.bf16.msra.mxu0 %v3671
  %4593 = vmatpush.bf16.msra.mxu0 %v3667
  %4594 = vmatpush.bf16.msra.mxu0 %v3663
  %4595 = vmatpush.bf16.msra.mxu0 %v3659
  %4596 = vmatpush.bf16.msra.mxu0 %v3655
  %4597 = vmatmul.bf16.gmra.mxu0 %v4526
  %v4598 = vpop.f32.mrf.mxu0
  %v4599 = vadd.f32 %v4585, %v4598
  %v4600 = vpop.f32.mrf.mxu0
  %v4601 = vadd.f32 %v4587, %v4600
  %4602 = vdwg.mxu0
  %4603 = vmatpush.bf16.msra.mxu0 %v3715
  %4604 = vmatpush.bf16.msra.mxu0 %v3711
  %4605 = vmatpush.bf16.msra.mxu0 %v3707
  %4606 = vmatpush.bf16.msra.mxu0 %v3703
  %4607 = vmatpush.bf16.msra.mxu0 %v3699
  %4608 = vmatpush.bf16.msra.mxu0 %v3695
  %4609 = vmatpush.bf16.msra.mxu0 %v3691
  %4610 = vmatpush.bf16.msra.mxu0 %v3687
  %4611 = vmatmul.bf16.gmra.mxu0 %v4527
  %v4612 = vpop.f32.mrf.mxu0
  %v4613 = vadd.f32 %v4599, %v4612
  %v4614 = vpop.f32.mrf.mxu0
  %v4615 = vadd.f32 %v4601, %v4614
  %4616 = vdwg.mxu0
  %4617 = vmatpush.bf16.msra.mxu0 %v3747
  %4618 = vmatpush.bf16.msra.mxu0 %v3743
  %4619 = vmatpush.bf16.msra.mxu0 %v3739
  %4620 = vmatpush.bf16.msra.mxu0 %v3735
  %4621 = vmatpush.bf16.msra.mxu0 %v3731
  %4622 = vmatpush.bf16.msra.mxu0 %v3727
  %4623 = vmatpush.bf16.msra.mxu0 %v3723
  %4624 = vmatpush.bf16.msra.mxu0 %v3719
  %4625 = vmatmul.bf16.gmra.mxu0 %v4528
  %v4626 = vpop.f32.mrf.mxu0
  %v4627 = vadd.f32 %v4613, %v4626
  %v4628 = vpop.f32.mrf.mxu0
  %v4629 = vadd.f32 %v4615, %v4628
  %4630 = vdwg.mxu0
  %4631 = vmatpush.bf16.msra.mxu0 %v3779
  %4632 = vmatpush.bf16.msra.mxu0 %v3775
  %4633 = vmatpush.bf16.msra.mxu0 %v3771
  %4634 = vmatpush.bf16.msra.mxu0 %v3767
  %4635 = vmatpush.bf16.msra.mxu0 %v3763
  %4636 = vmatpush.bf16.msra.mxu0 %v3759
  %4637 = vmatpush.bf16.msra.mxu0 %v3755
  %4638 = vmatpush.bf16.msra.mxu0 %v3751
  %4639 = vmatmul.bf16.gmra.mxu0 %v4529
  %v4640 = vpop.f32.mrf.mxu0
  %v4641 = vadd.f32 %v4627, %v4640
  %v4642 = vpop.f32.mrf.mxu0
  %v4643 = vadd.f32 %v4629, %v4642
  %4644 = vdwg.mxu0
  %4645 = vmatpush.bf16.msra.mxu0 %v3811
  %4646 = vmatpush.bf16.msra.mxu0 %v3807
  %4647 = vmatpush.bf16.msra.mxu0 %v3803
  %4648 = vmatpush.bf16.msra.mxu0 %v3799
  %4649 = vmatpush.bf16.msra.mxu0 %v3795
  %4650 = vmatpush.bf16.msra.mxu0 %v3791
  %4651 = vmatpush.bf16.msra.mxu0 %v3787
  %4652 = vmatpush.bf16.msra.mxu0 %v3783
  %4653 = vmatmul.bf16.gmra.mxu0 %v4530
  %v4654 = vpop.f32.mrf.mxu0
  %v4655 = vadd.f32 %v4641, %v4654
  %v4656 = vpop.f32.mrf.mxu0
  %v4657 = vadd.f32 %v4643, %v4656
  %4658 = vdwg.mxu0
  %4659 = vmatpush.bf16.msra.mxu0 %v3843
  %4660 = vmatpush.bf16.msra.mxu0 %v3839
  %4661 = vmatpush.bf16.msra.mxu0 %v3835
  %4662 = vmatpush.bf16.msra.mxu0 %v3831
  %4663 = vmatpush.bf16.msra.mxu0 %v3827
  %4664 = vmatpush.bf16.msra.mxu0 %v3823
  %4665 = vmatpush.bf16.msra.mxu0 %v3819
  %4666 = vmatpush.bf16.msra.mxu0 %v3815
  %4667 = vmatmul.bf16.gmra.mxu0 %v4531
  %v4668 = vpop.f32.mrf.mxu0
  %v4669 = vadd.f32 %v4655, %v4668
  %v4670 = vpop.f32.mrf.mxu0
  %v4671 = vadd.f32 %v4657, %v4670
  %4672 = vdwg.mxu0
  %4673 = vmatpush.bf16.msra.mxu0 %v3875
  %4674 = vmatpush.bf16.msra.mxu0 %v3871
  %4675 = vmatpush.bf16.msra.mxu0 %v3867
  %4676 = vmatpush.bf16.msra.mxu0 %v3863
  %4677 = vmatpush.bf16.msra.mxu0 %v3859
  %4678 = vmatpush.bf16.msra.mxu0 %v3855
  %4679 = vmatpush.bf16.msra.mxu0 %v3851
  %4680 = vmatpush.bf16.msra.mxu0 %v3847
  %4681 = vmatmul.bf16.gmra.mxu0 %v4532
  %v4682 = vpop.f32.mrf.mxu0
  %v4683 = vadd.f32 %v4669, %v4682
  %v4684 = vpop.f32.mrf.mxu0
  %v4685 = vadd.f32 %v4671, %v4684
  %4686 = vdwg.mxu0
  %4687 = vmatpush.bf16.msra.mxu0 %v3907
  %4688 = vmatpush.bf16.msra.mxu0 %v3903
  %4689 = vmatpush.bf16.msra.mxu0 %v3899
  %4690 = vmatpush.bf16.msra.mxu0 %v3895
  %4691 = vmatpush.bf16.msra.mxu0 %v3891
  %4692 = vmatpush.bf16.msra.mxu0 %v3887
  %4693 = vmatpush.bf16.msra.mxu0 %v3883
  %4694 = vmatpush.bf16.msra.mxu0 %v3879
  %4695 = vmatmul.bf16.gmra.mxu0 %v4533
  %v4696 = vpop.f32.mrf.mxu0
  %v4697 = vadd.f32 %v4683, %v4696
  %v4698 = vpop.f32.mrf.mxu0
  %v4699 = vadd.f32 %v4685, %v4698
  %4700 = vdwg.mxu0
  %4701 = vmatpush.bf16.msra.mxu0 %v3939
  %4702 = vmatpush.bf16.msra.mxu0 %v3935
  %4703 = vmatpush.bf16.msra.mxu0 %v3931
  %4704 = vmatpush.bf16.msra.mxu0 %v3927
  %4705 = vmatpush.bf16.msra.mxu0 %v3923
  %4706 = vmatpush.bf16.msra.mxu0 %v3919
  %4707 = vmatpush.bf16.msra.mxu0 %v3915
  %4708 = vmatpush.bf16.msra.mxu0 %v3911
  %4709 = vmatmul.bf16.gmra.mxu0 %v4534
  %v4710 = vpop.f32.mrf.mxu0
  %v4711 = vadd.f32 %v4697, %v4710
  %v4712 = vpop.f32.mrf.mxu0
  %v4713 = vadd.f32 %v4699, %v4712
  %4714 = vdwg.mxu0
  %4715 = vmatpush.bf16.msra.mxu0 %v3971
  %4716 = vmatpush.bf16.msra.mxu0 %v3967
  %4717 = vmatpush.bf16.msra.mxu0 %v3963
  %4718 = vmatpush.bf16.msra.mxu0 %v3959
  %4719 = vmatpush.bf16.msra.mxu0 %v3955
  %4720 = vmatpush.bf16.msra.mxu0 %v3951
  %4721 = vmatpush.bf16.msra.mxu0 %v3947
  %4722 = vmatpush.bf16.msra.mxu0 %v3943
  %4723 = vmatmul.bf16.gmra.mxu0 %v4535
  %v4724 = vpop.f32.mrf.mxu0
  %v4725 = vadd.f32 %v4711, %v4724
  %v4726 = vpop.f32.mrf.mxu0
  %v4727 = vadd.f32 %v4713, %v4726
  %4728 = vdwg.mxu0
  %4729 = vmatpush.bf16.msra.mxu0 %v4003
  %4730 = vmatpush.bf16.msra.mxu0 %v3999
  %4731 = vmatpush.bf16.msra.mxu0 %v3995
  %4732 = vmatpush.bf16.msra.mxu0 %v3991
  %4733 = vmatpush.bf16.msra.mxu0 %v3987
  %4734 = vmatpush.bf16.msra.mxu0 %v3983
  %4735 = vmatpush.bf16.msra.mxu0 %v3979
  %4736 = vmatpush.bf16.msra.mxu0 %v3975
  %4737 = vmatmul.bf16.gmra.mxu0 %v4536
  %v4738 = vpop.f32.mrf.mxu0
  %v4739 = vadd.f32 %v4725, %v4738
  %v4740 = vpop.f32.mrf.mxu0
  %v4741 = vadd.f32 %v4727, %v4740
  %4742 = vdwg.mxu0
  %4743 = vmatpush.bf16.msra.mxu0 %v4035
  %4744 = vmatpush.bf16.msra.mxu0 %v4031
  %4745 = vmatpush.bf16.msra.mxu0 %v4027
  %4746 = vmatpush.bf16.msra.mxu0 %v4023
  %4747 = vmatpush.bf16.msra.mxu0 %v4019
  %4748 = vmatpush.bf16.msra.mxu0 %v4015
  %4749 = vmatpush.bf16.msra.mxu0 %v4011
  %4750 = vmatpush.bf16.msra.mxu0 %v4007
  %4751 = vmatmul.bf16.gmra.mxu0 %v4537
  %v4752 = vpop.f32.mrf.mxu0
  %v4753 = vadd.f32 %v4739, %v4752
  %v4754 = vpop.f32.mrf.mxu0
  %v4755 = vadd.f32 %v4741, %v4754
  %4756 = vdwg.mxu0
  %4757 = vmatpush.bf16.msra.mxu0 %v4067
  %4758 = vmatpush.bf16.msra.mxu0 %v4063
  %4759 = vmatpush.bf16.msra.mxu0 %v4059
  %4760 = vmatpush.bf16.msra.mxu0 %v4055
  %4761 = vmatpush.bf16.msra.mxu0 %v4051
  %4762 = vmatpush.bf16.msra.mxu0 %v4047
  %4763 = vmatpush.bf16.msra.mxu0 %v4043
  %4764 = vmatpush.bf16.msra.mxu0 %v4039
  %4765 = vmatmul.bf16.gmra.mxu0 %v4538
  %v4766 = vpop.f32.mrf.mxu0
  %v4767 = vadd.f32 %v4753, %v4766
  %v4768 = vpop.f32.mrf.mxu0
  %v4769 = vadd.f32 %v4755, %v4768
  %4770 = vdwg.mxu0
  %4771 = vmatpush.bf16.msra.mxu0 %v4099
  %4772 = vmatpush.bf16.msra.mxu0 %v4095
  %4773 = vmatpush.bf16.msra.mxu0 %v4091
  %4774 = vmatpush.bf16.msra.mxu0 %v4087
  %4775 = vmatpush.bf16.msra.mxu0 %v4083
  %4776 = vmatpush.bf16.msra.mxu0 %v4079
  %4777 = vmatpush.bf16.msra.mxu0 %v4075
  %4778 = vmatpush.bf16.msra.mxu0 %v4071
  %4779 = vmatmul.bf16.gmra.mxu0 %v4539
  %v4780 = vpop.f32.mrf.mxu0
  %v4781 = vadd.f32 %v4767, %v4780
  %v4782 = vpop.f32.mrf.mxu0
  %v4783 = vadd.f32 %v4769, %v4782
  %4784 = vdwg.mxu0
  %4785 = vmatpush.bf16.msra.mxu0 %v4131
  %4786 = vmatpush.bf16.msra.mxu0 %v4127
  %4787 = vmatpush.bf16.msra.mxu0 %v4123
  %4788 = vmatpush.bf16.msra.mxu0 %v4119
  %4789 = vmatpush.bf16.msra.mxu0 %v4115
  %4790 = vmatpush.bf16.msra.mxu0 %v4111
  %4791 = vmatpush.bf16.msra.mxu0 %v4107
  %4792 = vmatpush.bf16.msra.mxu0 %v4103
  %4793 = vmatmul.bf16.gmra.mxu0 %v4540
  %v4794 = vpop.f32.mrf.mxu0
  %v4795 = vadd.f32 %v4781, %v4794
  %v4796 = vpop.f32.mrf.mxu0
  %v4797 = vadd.f32 %v4783, %v4796
  %4798 = vdwg.mxu0
  %4799 = vmatpush.bf16.msra.mxu0 %v4163
  %4800 = vmatpush.bf16.msra.mxu0 %v4159
  %4801 = vmatpush.bf16.msra.mxu0 %v4155
  %4802 = vmatpush.bf16.msra.mxu0 %v4151
  %4803 = vmatpush.bf16.msra.mxu0 %v4147
  %4804 = vmatpush.bf16.msra.mxu0 %v4143
  %4805 = vmatpush.bf16.msra.mxu0 %v4139
  %4806 = vmatpush.bf16.msra.mxu0 %v4135
  %4807 = vmatmul.bf16.gmra.mxu0 %v4541
  %v4808 = vpop.f32.mrf.mxu0
  %v4809 = vadd.f32 %v4795, %v4808
  %v4810 = vpop.f32.mrf.mxu0
  %v4811 = vadd.f32 %v4797, %v4810
  %4812 = vdwg.mxu0
  %4813 = vmatpush.bf16.msra.mxu0 %v4195
  %4814 = vmatpush.bf16.msra.mxu0 %v4191
  %4815 = vmatpush.bf16.msra.mxu0 %v4187
  %4816 = vmatpush.bf16.msra.mxu0 %v4183
  %4817 = vmatpush.bf16.msra.mxu0 %v4179
  %4818 = vmatpush.bf16.msra.mxu0 %v4175
  %4819 = vmatpush.bf16.msra.mxu0 %v4171
  %4820 = vmatpush.bf16.msra.mxu0 %v4167
  %4821 = vmatmul.bf16.gmra.mxu0 %v4542
  %v4822 = vpop.f32.mrf.mxu0
  %v4823 = vadd.f32 %v4809, %v4822
  %v4824 = vpop.f32.mrf.mxu0
  %v4825 = vadd.f32 %v4811, %v4824
  %4826 = vdwg.mxu0
  %4827 = vmatpush.bf16.msra.mxu0 %v4227
  %4828 = vmatpush.bf16.msra.mxu0 %v4223
  %4829 = vmatpush.bf16.msra.mxu0 %v4219
  %4830 = vmatpush.bf16.msra.mxu0 %v4215
  %4831 = vmatpush.bf16.msra.mxu0 %v4211
  %4832 = vmatpush.bf16.msra.mxu0 %v4207
  %4833 = vmatpush.bf16.msra.mxu0 %v4203
  %4834 = vmatpush.bf16.msra.mxu0 %v4199
  %4835 = vmatmul.bf16.gmra.mxu0 %v4543
  %v4836 = vpop.f32.mrf.mxu0
  %v4837 = vadd.f32 %v4823, %v4836
  %v4838 = vpop.f32.mrf.mxu0
  %v4839 = vadd.f32 %v4825, %v4838
  %4840 = vdwg.mxu0
  %4841 = vmatpush.bf16.msra.mxu0 %v4259
  %4842 = vmatpush.bf16.msra.mxu0 %v4255
  %4843 = vmatpush.bf16.msra.mxu0 %v4251
  %4844 = vmatpush.bf16.msra.mxu0 %v4247
  %4845 = vmatpush.bf16.msra.mxu0 %v4243
  %4846 = vmatpush.bf16.msra.mxu0 %v4239
  %4847 = vmatpush.bf16.msra.mxu0 %v4235
  %4848 = vmatpush.bf16.msra.mxu0 %v4231
  %4849 = vmatmul.bf16.gmra.mxu0 %v4544
  %v4850 = vpop.f32.mrf.mxu0
  %v4851 = vadd.f32 %v4837, %v4850
  %v4852 = vpop.f32.mrf.mxu0
  %v4853 = vadd.f32 %v4839, %v4852
  %4854 = vdwg.mxu0
  %4855 = vmatpush.bf16.msra.mxu0 %v4291
  %4856 = vmatpush.bf16.msra.mxu0 %v4287
  %4857 = vmatpush.bf16.msra.mxu0 %v4283
  %4858 = vmatpush.bf16.msra.mxu0 %v4279
  %4859 = vmatpush.bf16.msra.mxu0 %v4275
  %4860 = vmatpush.bf16.msra.mxu0 %v4271
  %4861 = vmatpush.bf16.msra.mxu0 %v4267
  %4862 = vmatpush.bf16.msra.mxu0 %v4263
  %4863 = vmatmul.bf16.gmra.mxu0 %v4545
  %v4864 = vpop.f32.mrf.mxu0
  %v4865 = vadd.f32 %v4851, %v4864
  %v4866 = vpop.f32.mrf.mxu0
  %v4867 = vadd.f32 %v4853, %v4866
  %4868 = vdwg.mxu0
  %4869 = vmatpush.bf16.msra.mxu0 %v4323
  %4870 = vmatpush.bf16.msra.mxu0 %v4319
  %4871 = vmatpush.bf16.msra.mxu0 %v4315
  %4872 = vmatpush.bf16.msra.mxu0 %v4311
  %4873 = vmatpush.bf16.msra.mxu0 %v4307
  %4874 = vmatpush.bf16.msra.mxu0 %v4303
  %4875 = vmatpush.bf16.msra.mxu0 %v4299
  %4876 = vmatpush.bf16.msra.mxu0 %v4295
  %4877 = vmatmul.bf16.gmra.mxu0 %v4546
  %v4878 = vpop.f32.mrf.mxu0
  %v4879 = vadd.f32 %v4865, %v4878
  %v4880 = vpop.f32.mrf.mxu0
  %v4881 = vadd.f32 %v4867, %v4880
  %4882 = vdwg.mxu0
  %4883 = vmatpush.bf16.msra.mxu0 %v4355
  %4884 = vmatpush.bf16.msra.mxu0 %v4351
  %4885 = vmatpush.bf16.msra.mxu0 %v4347
  %4886 = vmatpush.bf16.msra.mxu0 %v4343
  %4887 = vmatpush.bf16.msra.mxu0 %v4339
  %4888 = vmatpush.bf16.msra.mxu0 %v4335
  %4889 = vmatpush.bf16.msra.mxu0 %v4331
  %4890 = vmatpush.bf16.msra.mxu0 %v4327
  %4891 = vmatmul.bf16.gmra.mxu0 %v4547
  %v4892 = vpop.f32.mrf.mxu0
  %v4893 = vadd.f32 %v4879, %v4892
  %v4894 = vpop.f32.mrf.mxu0
  %v4895 = vadd.f32 %v4881, %v4894
  %4896 = vdwg.mxu0
  %4897 = vmatpush.bf16.msra.mxu0 %v4387
  %4898 = vmatpush.bf16.msra.mxu0 %v4383
  %4899 = vmatpush.bf16.msra.mxu0 %v4379
  %4900 = vmatpush.bf16.msra.mxu0 %v4375
  %4901 = vmatpush.bf16.msra.mxu0 %v4371
  %4902 = vmatpush.bf16.msra.mxu0 %v4367
  %4903 = vmatpush.bf16.msra.mxu0 %v4363
  %4904 = vmatpush.bf16.msra.mxu0 %v4359
  %4905 = vmatmul.bf16.gmra.mxu0 %v4548
  %v4906 = vpop.f32.mrf.mxu0
  %v4907 = vadd.f32 %v4893, %v4906
  %v4908 = vpop.f32.mrf.mxu0
  %v4909 = vadd.f32 %v4895, %v4908
  %4910 = vdwg.mxu0
  %4911 = vmatpush.bf16.msra.mxu0 %v4419
  %4912 = vmatpush.bf16.msra.mxu0 %v4415
  %4913 = vmatpush.bf16.msra.mxu0 %v4411
  %4914 = vmatpush.bf16.msra.mxu0 %v4407
  %4915 = vmatpush.bf16.msra.mxu0 %v4403
  %4916 = vmatpush.bf16.msra.mxu0 %v4399
  %4917 = vmatpush.bf16.msra.mxu0 %v4395
  %4918 = vmatpush.bf16.msra.mxu0 %v4391
  %4919 = vmatmul.bf16.gmra.mxu0 %v4549
  %v4920 = vpop.f32.mrf.mxu0
  %v4921 = vadd.f32 %v4907, %v4920
  %v4922 = vpop.f32.mrf.mxu0
  %v4923 = vadd.f32 %v4909, %v4922
  %4924 = vdwg.mxu0
  %4925 = vmatpush.bf16.msra.mxu0 %v3652
  %4926 = vmatpush.bf16.msra.mxu0 %v3648
  %4927 = vmatpush.bf16.msra.mxu0 %v3644
  %4928 = vmatpush.bf16.msra.mxu0 %v3640
  %4929 = vmatpush.bf16.msra.mxu0 %v3636
  %4930 = vmatpush.bf16.msra.mxu0 %v3632
  %4931 = vmatpush.bf16.msra.mxu0 %v3628
  %4932 = vmatpush.bf16.msra.mxu0 %v3624
  %4933 = vmatmul.bf16.gmra.mxu0 %v4525
  %v4934 = vpop.f32.mrf.mxu0
  %v4935 = vadd.f32 0.0, %v4934
  %v4936 = vpop.f32.mrf.mxu0
  %v4937 = vadd.f32 0.0, %v4936
  %4938 = vdwg.mxu0
  %4939 = vmatpush.bf16.msra.mxu0 %v3684
  %4940 = vmatpush.bf16.msra.mxu0 %v3680
  %4941 = vmatpush.bf16.msra.mxu0 %v3676
  %4942 = vmatpush.bf16.msra.mxu0 %v3672
  %4943 = vmatpush.bf16.msra.mxu0 %v3668
  %4944 = vmatpush.bf16.msra.mxu0 %v3664
  %4945 = vmatpush.bf16.msra.mxu0 %v3660
  %4946 = vmatpush.bf16.msra.mxu0 %v3656
  %4947 = vmatmul.bf16.gmra.mxu0 %v4526
  %v4948 = vpop.f32.mrf.mxu0
  %v4949 = vadd.f32 %v4935, %v4948
  %v4950 = vpop.f32.mrf.mxu0
  %v4951 = vadd.f32 %v4937, %v4950
  %4952 = vdwg.mxu0
  %4953 = vmatpush.bf16.msra.mxu0 %v3716
  %4954 = vmatpush.bf16.msra.mxu0 %v3712
  %4955 = vmatpush.bf16.msra.mxu0 %v3708
  %4956 = vmatpush.bf16.msra.mxu0 %v3704
  %4957 = vmatpush.bf16.msra.mxu0 %v3700
  %4958 = vmatpush.bf16.msra.mxu0 %v3696
  %4959 = vmatpush.bf16.msra.mxu0 %v3692
  %4960 = vmatpush.bf16.msra.mxu0 %v3688
  %4961 = vmatmul.bf16.gmra.mxu0 %v4527
  %v4962 = vpop.f32.mrf.mxu0
  %v4963 = vadd.f32 %v4949, %v4962
  %v4964 = vpop.f32.mrf.mxu0
  %v4965 = vadd.f32 %v4951, %v4964
  %4966 = vdwg.mxu0
  %4967 = vmatpush.bf16.msra.mxu0 %v3748
  %4968 = vmatpush.bf16.msra.mxu0 %v3744
  %4969 = vmatpush.bf16.msra.mxu0 %v3740
  %4970 = vmatpush.bf16.msra.mxu0 %v3736
  %4971 = vmatpush.bf16.msra.mxu0 %v3732
  %4972 = vmatpush.bf16.msra.mxu0 %v3728
  %4973 = vmatpush.bf16.msra.mxu0 %v3724
  %4974 = vmatpush.bf16.msra.mxu0 %v3720
  %4975 = vmatmul.bf16.gmra.mxu0 %v4528
  %v4976 = vpop.f32.mrf.mxu0
  %v4977 = vadd.f32 %v4963, %v4976
  %v4978 = vpop.f32.mrf.mxu0
  %v4979 = vadd.f32 %v4965, %v4978
  %4980 = vdwg.mxu0
  %4981 = vmatpush.bf16.msra.mxu0 %v3780
  %4982 = vmatpush.bf16.msra.mxu0 %v3776
  %4983 = vmatpush.bf16.msra.mxu0 %v3772
  %4984 = vmatpush.bf16.msra.mxu0 %v3768
  %4985 = vmatpush.bf16.msra.mxu0 %v3764
  %4986 = vmatpush.bf16.msra.mxu0 %v3760
  %4987 = vmatpush.bf16.msra.mxu0 %v3756
  %4988 = vmatpush.bf16.msra.mxu0 %v3752
  %4989 = vmatmul.bf16.gmra.mxu0 %v4529
  %v4990 = vpop.f32.mrf.mxu0
  %v4991 = vadd.f32 %v4977, %v4990
  %v4992 = vpop.f32.mrf.mxu0
  %v4993 = vadd.f32 %v4979, %v4992
  %4994 = vdwg.mxu0
  %4995 = vmatpush.bf16.msra.mxu0 %v3812
  %4996 = vmatpush.bf16.msra.mxu0 %v3808
  %4997 = vmatpush.bf16.msra.mxu0 %v3804
  %4998 = vmatpush.bf16.msra.mxu0 %v3800
  %4999 = vmatpush.bf16.msra.mxu0 %v3796
  %5000 = vmatpush.bf16.msra.mxu0 %v3792
  %5001 = vmatpush.bf16.msra.mxu0 %v3788
  %5002 = vmatpush.bf16.msra.mxu0 %v3784
  %5003 = vmatmul.bf16.gmra.mxu0 %v4530
  %v5004 = vpop.f32.mrf.mxu0
  %v5005 = vadd.f32 %v4991, %v5004
  %v5006 = vpop.f32.mrf.mxu0
  %v5007 = vadd.f32 %v4993, %v5006
  %5008 = vdwg.mxu0
  %5009 = vmatpush.bf16.msra.mxu0 %v3844
  %5010 = vmatpush.bf16.msra.mxu0 %v3840
  %5011 = vmatpush.bf16.msra.mxu0 %v3836
  %5012 = vmatpush.bf16.msra.mxu0 %v3832
  %5013 = vmatpush.bf16.msra.mxu0 %v3828
  %5014 = vmatpush.bf16.msra.mxu0 %v3824
  %5015 = vmatpush.bf16.msra.mxu0 %v3820
  %5016 = vmatpush.bf16.msra.mxu0 %v3816
  %5017 = vmatmul.bf16.gmra.mxu0 %v4531
  %v5018 = vpop.f32.mrf.mxu0
  %v5019 = vadd.f32 %v5005, %v5018
  %v5020 = vpop.f32.mrf.mxu0
  %v5021 = vadd.f32 %v5007, %v5020
  %5022 = vdwg.mxu0
  %5023 = vmatpush.bf16.msra.mxu0 %v3876
  %5024 = vmatpush.bf16.msra.mxu0 %v3872
  %5025 = vmatpush.bf16.msra.mxu0 %v3868
  %5026 = vmatpush.bf16.msra.mxu0 %v3864
  %5027 = vmatpush.bf16.msra.mxu0 %v3860
  %5028 = vmatpush.bf16.msra.mxu0 %v3856
  %5029 = vmatpush.bf16.msra.mxu0 %v3852
  %5030 = vmatpush.bf16.msra.mxu0 %v3848
  %5031 = vmatmul.bf16.gmra.mxu0 %v4532
  %v5032 = vpop.f32.mrf.mxu0
  %v5033 = vadd.f32 %v5019, %v5032
  %v5034 = vpop.f32.mrf.mxu0
  %v5035 = vadd.f32 %v5021, %v5034
  %5036 = vdwg.mxu0
  %5037 = vmatpush.bf16.msra.mxu0 %v3908
  %5038 = vmatpush.bf16.msra.mxu0 %v3904
  %5039 = vmatpush.bf16.msra.mxu0 %v3900
  %5040 = vmatpush.bf16.msra.mxu0 %v3896
  %5041 = vmatpush.bf16.msra.mxu0 %v3892
  %5042 = vmatpush.bf16.msra.mxu0 %v3888
  %5043 = vmatpush.bf16.msra.mxu0 %v3884
  %5044 = vmatpush.bf16.msra.mxu0 %v3880
  %5045 = vmatmul.bf16.gmra.mxu0 %v4533
  %v5046 = vpop.f32.mrf.mxu0
  %v5047 = vadd.f32 %v5033, %v5046
  %v5048 = vpop.f32.mrf.mxu0
  %v5049 = vadd.f32 %v5035, %v5048
  %5050 = vdwg.mxu0
  %5051 = vmatpush.bf16.msra.mxu0 %v3940
  %5052 = vmatpush.bf16.msra.mxu0 %v3936
  %5053 = vmatpush.bf16.msra.mxu0 %v3932
  %5054 = vmatpush.bf16.msra.mxu0 %v3928
  %5055 = vmatpush.bf16.msra.mxu0 %v3924
  %5056 = vmatpush.bf16.msra.mxu0 %v3920
  %5057 = vmatpush.bf16.msra.mxu0 %v3916
  %5058 = vmatpush.bf16.msra.mxu0 %v3912
  %5059 = vmatmul.bf16.gmra.mxu0 %v4534
  %v5060 = vpop.f32.mrf.mxu0
  %v5061 = vadd.f32 %v5047, %v5060
  %v5062 = vpop.f32.mrf.mxu0
  %v5063 = vadd.f32 %v5049, %v5062
  %5064 = vdwg.mxu0
  %5065 = vmatpush.bf16.msra.mxu0 %v3972
  %5066 = vmatpush.bf16.msra.mxu0 %v3968
  %5067 = vmatpush.bf16.msra.mxu0 %v3964
  %5068 = vmatpush.bf16.msra.mxu0 %v3960
  %5069 = vmatpush.bf16.msra.mxu0 %v3956
  %5070 = vmatpush.bf16.msra.mxu0 %v3952
  %5071 = vmatpush.bf16.msra.mxu0 %v3948
  %5072 = vmatpush.bf16.msra.mxu0 %v3944
  %5073 = vmatmul.bf16.gmra.mxu0 %v4535
  %v5074 = vpop.f32.mrf.mxu0
  %v5075 = vadd.f32 %v5061, %v5074
  %v5076 = vpop.f32.mrf.mxu0
  %v5077 = vadd.f32 %v5063, %v5076
  %5078 = vdwg.mxu0
  %5079 = vmatpush.bf16.msra.mxu0 %v4004
  %5080 = vmatpush.bf16.msra.mxu0 %v4000
  %5081 = vmatpush.bf16.msra.mxu0 %v3996
  %5082 = vmatpush.bf16.msra.mxu0 %v3992
  %5083 = vmatpush.bf16.msra.mxu0 %v3988
  %5084 = vmatpush.bf16.msra.mxu0 %v3984
  %5085 = vmatpush.bf16.msra.mxu0 %v3980
  %5086 = vmatpush.bf16.msra.mxu0 %v3976
  %5087 = vmatmul.bf16.gmra.mxu0 %v4536
  %v5088 = vpop.f32.mrf.mxu0
  %v5089 = vadd.f32 %v5075, %v5088
  %v5090 = vpop.f32.mrf.mxu0
  %v5091 = vadd.f32 %v5077, %v5090
  %5092 = vdwg.mxu0
  %5093 = vmatpush.bf16.msra.mxu0 %v4036
  %5094 = vmatpush.bf16.msra.mxu0 %v4032
  %5095 = vmatpush.bf16.msra.mxu0 %v4028
  %5096 = vmatpush.bf16.msra.mxu0 %v4024
  %5097 = vmatpush.bf16.msra.mxu0 %v4020
  %5098 = vmatpush.bf16.msra.mxu0 %v4016
  %5099 = vmatpush.bf16.msra.mxu0 %v4012
  %5100 = vmatpush.bf16.msra.mxu0 %v4008
  %5101 = vmatmul.bf16.gmra.mxu0 %v4537
  %v5102 = vpop.f32.mrf.mxu0
  %v5103 = vadd.f32 %v5089, %v5102
  %v5104 = vpop.f32.mrf.mxu0
  %v5105 = vadd.f32 %v5091, %v5104
  %5106 = vdwg.mxu0
  %5107 = vmatpush.bf16.msra.mxu0 %v4068
  %5108 = vmatpush.bf16.msra.mxu0 %v4064
  %5109 = vmatpush.bf16.msra.mxu0 %v4060
  %5110 = vmatpush.bf16.msra.mxu0 %v4056
  %5111 = vmatpush.bf16.msra.mxu0 %v4052
  %5112 = vmatpush.bf16.msra.mxu0 %v4048
  %5113 = vmatpush.bf16.msra.mxu0 %v4044
  %5114 = vmatpush.bf16.msra.mxu0 %v4040
  %5115 = vmatmul.bf16.gmra.mxu0 %v4538
  %v5116 = vpop.f32.mrf.mxu0
  %v5117 = vadd.f32 %v5103, %v5116
  %v5118 = vpop.f32.mrf.mxu0
  %v5119 = vadd.f32 %v5105, %v5118
  %5120 = vdwg.mxu0
  %5121 = vmatpush.bf16.msra.mxu0 %v4100
  %5122 = vmatpush.bf16.msra.mxu0 %v4096
  %5123 = vmatpush.bf16.msra.mxu0 %v4092
  %5124 = vmatpush.bf16.msra.mxu0 %v4088
  %5125 = vmatpush.bf16.msra.mxu0 %v4084
  %5126 = vmatpush.bf16.msra.mxu0 %v4080
  %5127 = vmatpush.bf16.msra.mxu0 %v4076
  %5128 = vmatpush.bf16.msra.mxu0 %v4072
  %5129 = vmatmul.bf16.gmra.mxu0 %v4539
  %v5130 = vpop.f32.mrf.mxu0
  %v5131 = vadd.f32 %v5117, %v5130
  %v5132 = vpop.f32.mrf.mxu0
  %v5133 = vadd.f32 %v5119, %v5132
  %5134 = vdwg.mxu0
  %5135 = vmatpush.bf16.msra.mxu0 %v4132
  %5136 = vmatpush.bf16.msra.mxu0 %v4128
  %5137 = vmatpush.bf16.msra.mxu0 %v4124
  %5138 = vmatpush.bf16.msra.mxu0 %v4120
  %5139 = vmatpush.bf16.msra.mxu0 %v4116
  %5140 = vmatpush.bf16.msra.mxu0 %v4112
  %5141 = vmatpush.bf16.msra.mxu0 %v4108
  %5142 = vmatpush.bf16.msra.mxu0 %v4104
  %5143 = vmatmul.bf16.gmra.mxu0 %v4540
  %v5144 = vpop.f32.mrf.mxu0
  %v5145 = vadd.f32 %v5131, %v5144
  %v5146 = vpop.f32.mrf.mxu0
  %v5147 = vadd.f32 %v5133, %v5146
  %5148 = vdwg.mxu0
  %5149 = vmatpush.bf16.msra.mxu0 %v4164
  %5150 = vmatpush.bf16.msra.mxu0 %v4160
  %5151 = vmatpush.bf16.msra.mxu0 %v4156
  %5152 = vmatpush.bf16.msra.mxu0 %v4152
  %5153 = vmatpush.bf16.msra.mxu0 %v4148
  %5154 = vmatpush.bf16.msra.mxu0 %v4144
  %5155 = vmatpush.bf16.msra.mxu0 %v4140
  %5156 = vmatpush.bf16.msra.mxu0 %v4136
  %5157 = vmatmul.bf16.gmra.mxu0 %v4541
  %v5158 = vpop.f32.mrf.mxu0
  %v5159 = vadd.f32 %v5145, %v5158
  %v5160 = vpop.f32.mrf.mxu0
  %v5161 = vadd.f32 %v5147, %v5160
  %5162 = vdwg.mxu0
  %5163 = vmatpush.bf16.msra.mxu0 %v4196
  %5164 = vmatpush.bf16.msra.mxu0 %v4192
  %5165 = vmatpush.bf16.msra.mxu0 %v4188
  %5166 = vmatpush.bf16.msra.mxu0 %v4184
  %5167 = vmatpush.bf16.msra.mxu0 %v4180
  %5168 = vmatpush.bf16.msra.mxu0 %v4176
  %5169 = vmatpush.bf16.msra.mxu0 %v4172
  %5170 = vmatpush.bf16.msra.mxu0 %v4168
  %5171 = vmatmul.bf16.gmra.mxu0 %v4542
  %v5172 = vpop.f32.mrf.mxu0
  %v5173 = vadd.f32 %v5159, %v5172
  %v5174 = vpop.f32.mrf.mxu0
  %v5175 = vadd.f32 %v5161, %v5174
  %5176 = vdwg.mxu0
  %5177 = vmatpush.bf16.msra.mxu0 %v4228
  %5178 = vmatpush.bf16.msra.mxu0 %v4224
  %5179 = vmatpush.bf16.msra.mxu0 %v4220
  %5180 = vmatpush.bf16.msra.mxu0 %v4216
  %5181 = vmatpush.bf16.msra.mxu0 %v4212
  %5182 = vmatpush.bf16.msra.mxu0 %v4208
  %5183 = vmatpush.bf16.msra.mxu0 %v4204
  %5184 = vmatpush.bf16.msra.mxu0 %v4200
  %5185 = vmatmul.bf16.gmra.mxu0 %v4543
  %v5186 = vpop.f32.mrf.mxu0
  %v5187 = vadd.f32 %v5173, %v5186
  %v5188 = vpop.f32.mrf.mxu0
  %v5189 = vadd.f32 %v5175, %v5188
  %5190 = vdwg.mxu0
  %5191 = vmatpush.bf16.msra.mxu0 %v4260
  %5192 = vmatpush.bf16.msra.mxu0 %v4256
  %5193 = vmatpush.bf16.msra.mxu0 %v4252
  %5194 = vmatpush.bf16.msra.mxu0 %v4248
  %5195 = vmatpush.bf16.msra.mxu0 %v4244
  %5196 = vmatpush.bf16.msra.mxu0 %v4240
  %5197 = vmatpush.bf16.msra.mxu0 %v4236
  %5198 = vmatpush.bf16.msra.mxu0 %v4232
  %5199 = vmatmul.bf16.gmra.mxu0 %v4544
  %v5200 = vpop.f32.mrf.mxu0
  %v5201 = vadd.f32 %v5187, %v5200
  %v5202 = vpop.f32.mrf.mxu0
  %v5203 = vadd.f32 %v5189, %v5202
  %5204 = vdwg.mxu0
  %5205 = vmatpush.bf16.msra.mxu0 %v4292
  %5206 = vmatpush.bf16.msra.mxu0 %v4288
  %5207 = vmatpush.bf16.msra.mxu0 %v4284
  %5208 = vmatpush.bf16.msra.mxu0 %v4280
  %5209 = vmatpush.bf16.msra.mxu0 %v4276
  %5210 = vmatpush.bf16.msra.mxu0 %v4272
  %5211 = vmatpush.bf16.msra.mxu0 %v4268
  %5212 = vmatpush.bf16.msra.mxu0 %v4264
  %5213 = vmatmul.bf16.gmra.mxu0 %v4545
  %v5214 = vpop.f32.mrf.mxu0
  %v5215 = vadd.f32 %v5201, %v5214
  %v5216 = vpop.f32.mrf.mxu0
  %v5217 = vadd.f32 %v5203, %v5216
  %5218 = vdwg.mxu0
  %5219 = vmatpush.bf16.msra.mxu0 %v4324
  %5220 = vmatpush.bf16.msra.mxu0 %v4320
  %5221 = vmatpush.bf16.msra.mxu0 %v4316
  %5222 = vmatpush.bf16.msra.mxu0 %v4312
  %5223 = vmatpush.bf16.msra.mxu0 %v4308
  %5224 = vmatpush.bf16.msra.mxu0 %v4304
  %5225 = vmatpush.bf16.msra.mxu0 %v4300
  %5226 = vmatpush.bf16.msra.mxu0 %v4296
  %5227 = vmatmul.bf16.gmra.mxu0 %v4546
  %v5228 = vpop.f32.mrf.mxu0
  %v5229 = vadd.f32 %v5215, %v5228
  %v5230 = vpop.f32.mrf.mxu0
  %v5231 = vadd.f32 %v5217, %v5230
  %5232 = vdwg.mxu0
  %5233 = vmatpush.bf16.msra.mxu0 %v4356
  %5234 = vmatpush.bf16.msra.mxu0 %v4352
  %5235 = vmatpush.bf16.msra.mxu0 %v4348
  %5236 = vmatpush.bf16.msra.mxu0 %v4344
  %5237 = vmatpush.bf16.msra.mxu0 %v4340
  %5238 = vmatpush.bf16.msra.mxu0 %v4336
  %5239 = vmatpush.bf16.msra.mxu0 %v4332
  %5240 = vmatpush.bf16.msra.mxu0 %v4328
  %5241 = vmatmul.bf16.gmra.mxu0 %v4547
  %v5242 = vpop.f32.mrf.mxu0
  %v5243 = vadd.f32 %v5229, %v5242
  %v5244 = vpop.f32.mrf.mxu0
  %v5245 = vadd.f32 %v5231, %v5244
  %5246 = vdwg.mxu0
  %5247 = vmatpush.bf16.msra.mxu0 %v4388
  %5248 = vmatpush.bf16.msra.mxu0 %v4384
  %5249 = vmatpush.bf16.msra.mxu0 %v4380
  %5250 = vmatpush.bf16.msra.mxu0 %v4376
  %5251 = vmatpush.bf16.msra.mxu0 %v4372
  %5252 = vmatpush.bf16.msra.mxu0 %v4368
  %5253 = vmatpush.bf16.msra.mxu0 %v4364
  %5254 = vmatpush.bf16.msra.mxu0 %v4360
  %5255 = vmatmul.bf16.gmra.mxu0 %v4548
  %v5256 = vpop.f32.mrf.mxu0
  %v5257 = vadd.f32 %v5243, %v5256
  %v5258 = vpop.f32.mrf.mxu0
  %v5259 = vadd.f32 %v5245, %v5258
  %5260 = vdwg.mxu0
  %5261 = vmatpush.bf16.msra.mxu0 %v4420
  %5262 = vmatpush.bf16.msra.mxu0 %v4416
  %5263 = vmatpush.bf16.msra.mxu0 %v4412
  %5264 = vmatpush.bf16.msra.mxu0 %v4408
  %5265 = vmatpush.bf16.msra.mxu0 %v4404
  %5266 = vmatpush.bf16.msra.mxu0 %v4400
  %5267 = vmatpush.bf16.msra.mxu0 %v4396
  %5268 = vmatpush.bf16.msra.mxu0 %v4392
  %5269 = vmatmul.bf16.gmra.mxu0 %v4549
  %v5270 = vpop.f32.mrf.mxu0
  %v5271 = vadd.f32 %v5257, %v5270
  %v5272 = vpop.f32.mrf.mxu0
  %v5273 = vadd.f32 %v5259, %v5272
  %5274 = vdwg.mxu0
  %5275 = vmatpush.bf16.msra.mxu0 %v3653
  %5276 = vmatpush.bf16.msra.mxu0 %v3649
  %5277 = vmatpush.bf16.msra.mxu0 %v3645
  %5278 = vmatpush.bf16.msra.mxu0 %v3641
  %5279 = vmatpush.bf16.msra.mxu0 %v3637
  %5280 = vmatpush.bf16.msra.mxu0 %v3633
  %5281 = vmatpush.bf16.msra.mxu0 %v3629
  %5282 = vmatpush.bf16.msra.mxu0 %v3625
  %5283 = vmatmul.bf16.gmra.mxu0 %v4525
  %v5284 = vpop.f32.mrf.mxu0
  %v5285 = vadd.f32 0.0, %v5284
  %v5286 = vpop.f32.mrf.mxu0
  %v5287 = vadd.f32 0.0, %v5286
  %5288 = vdwg.mxu0
  %5289 = vmatpush.bf16.msra.mxu0 %v3685
  %5290 = vmatpush.bf16.msra.mxu0 %v3681
  %5291 = vmatpush.bf16.msra.mxu0 %v3677
  %5292 = vmatpush.bf16.msra.mxu0 %v3673
  %5293 = vmatpush.bf16.msra.mxu0 %v3669
  %5294 = vmatpush.bf16.msra.mxu0 %v3665
  %5295 = vmatpush.bf16.msra.mxu0 %v3661
  %5296 = vmatpush.bf16.msra.mxu0 %v3657
  %5297 = vmatmul.bf16.gmra.mxu0 %v4526
  %v5298 = vpop.f32.mrf.mxu0
  %v5299 = vadd.f32 %v5285, %v5298
  %v5300 = vpop.f32.mrf.mxu0
  %v5301 = vadd.f32 %v5287, %v5300
  %5302 = vdwg.mxu0
  %5303 = vmatpush.bf16.msra.mxu0 %v3717
  %5304 = vmatpush.bf16.msra.mxu0 %v3713
  %5305 = vmatpush.bf16.msra.mxu0 %v3709
  %5306 = vmatpush.bf16.msra.mxu0 %v3705
  %5307 = vmatpush.bf16.msra.mxu0 %v3701
  %5308 = vmatpush.bf16.msra.mxu0 %v3697
  %5309 = vmatpush.bf16.msra.mxu0 %v3693
  %5310 = vmatpush.bf16.msra.mxu0 %v3689
  %5311 = vmatmul.bf16.gmra.mxu0 %v4527
  %v5312 = vpop.f32.mrf.mxu0
  %v5313 = vadd.f32 %v5299, %v5312
  %v5314 = vpop.f32.mrf.mxu0
  %v5315 = vadd.f32 %v5301, %v5314
  %5316 = vdwg.mxu0
  %5317 = vmatpush.bf16.msra.mxu0 %v3749
  %5318 = vmatpush.bf16.msra.mxu0 %v3745
  %5319 = vmatpush.bf16.msra.mxu0 %v3741
  %5320 = vmatpush.bf16.msra.mxu0 %v3737
  %5321 = vmatpush.bf16.msra.mxu0 %v3733
  %5322 = vmatpush.bf16.msra.mxu0 %v3729
  %5323 = vmatpush.bf16.msra.mxu0 %v3725
  %5324 = vmatpush.bf16.msra.mxu0 %v3721
  %5325 = vmatmul.bf16.gmra.mxu0 %v4528
  %v5326 = vpop.f32.mrf.mxu0
  %v5327 = vadd.f32 %v5313, %v5326
  %v5328 = vpop.f32.mrf.mxu0
  %v5329 = vadd.f32 %v5315, %v5328
  %5330 = vdwg.mxu0
  %5331 = vmatpush.bf16.msra.mxu0 %v3781
  %5332 = vmatpush.bf16.msra.mxu0 %v3777
  %5333 = vmatpush.bf16.msra.mxu0 %v3773
  %5334 = vmatpush.bf16.msra.mxu0 %v3769
  %5335 = vmatpush.bf16.msra.mxu0 %v3765
  %5336 = vmatpush.bf16.msra.mxu0 %v3761
  %5337 = vmatpush.bf16.msra.mxu0 %v3757
  %5338 = vmatpush.bf16.msra.mxu0 %v3753
  %5339 = vmatmul.bf16.gmra.mxu0 %v4529
  %v5340 = vpop.f32.mrf.mxu0
  %v5341 = vadd.f32 %v5327, %v5340
  %v5342 = vpop.f32.mrf.mxu0
  %v5343 = vadd.f32 %v5329, %v5342
  %5344 = vdwg.mxu0
  %5345 = vmatpush.bf16.msra.mxu0 %v3813
  %5346 = vmatpush.bf16.msra.mxu0 %v3809
  %5347 = vmatpush.bf16.msra.mxu0 %v3805
  %5348 = vmatpush.bf16.msra.mxu0 %v3801
  %5349 = vmatpush.bf16.msra.mxu0 %v3797
  %5350 = vmatpush.bf16.msra.mxu0 %v3793
  %5351 = vmatpush.bf16.msra.mxu0 %v3789
  %5352 = vmatpush.bf16.msra.mxu0 %v3785
  %5353 = vmatmul.bf16.gmra.mxu0 %v4530
  %v5354 = vpop.f32.mrf.mxu0
  %v5355 = vadd.f32 %v5341, %v5354
  %v5356 = vpop.f32.mrf.mxu0
  %v5357 = vadd.f32 %v5343, %v5356
  %5358 = vdwg.mxu0
  %5359 = vmatpush.bf16.msra.mxu0 %v3845
  %5360 = vmatpush.bf16.msra.mxu0 %v3841
  %5361 = vmatpush.bf16.msra.mxu0 %v3837
  %5362 = vmatpush.bf16.msra.mxu0 %v3833
  %5363 = vmatpush.bf16.msra.mxu0 %v3829
  %5364 = vmatpush.bf16.msra.mxu0 %v3825
  %5365 = vmatpush.bf16.msra.mxu0 %v3821
  %5366 = vmatpush.bf16.msra.mxu0 %v3817
  %5367 = vmatmul.bf16.gmra.mxu0 %v4531
  %v5368 = vpop.f32.mrf.mxu0
  %v5369 = vadd.f32 %v5355, %v5368
  %v5370 = vpop.f32.mrf.mxu0
  %v5371 = vadd.f32 %v5357, %v5370
  %5372 = vdwg.mxu0
  %5373 = vmatpush.bf16.msra.mxu0 %v3877
  %5374 = vmatpush.bf16.msra.mxu0 %v3873
  %5375 = vmatpush.bf16.msra.mxu0 %v3869
  %5376 = vmatpush.bf16.msra.mxu0 %v3865
  %5377 = vmatpush.bf16.msra.mxu0 %v3861
  %5378 = vmatpush.bf16.msra.mxu0 %v3857
  %5379 = vmatpush.bf16.msra.mxu0 %v3853
  %5380 = vmatpush.bf16.msra.mxu0 %v3849
  %5381 = vmatmul.bf16.gmra.mxu0 %v4532
  %v5382 = vpop.f32.mrf.mxu0
  %v5383 = vadd.f32 %v5369, %v5382
  %v5384 = vpop.f32.mrf.mxu0
  %v5385 = vadd.f32 %v5371, %v5384
  %5386 = vdwg.mxu0
  %5387 = vmatpush.bf16.msra.mxu0 %v3909
  %5388 = vmatpush.bf16.msra.mxu0 %v3905
  %5389 = vmatpush.bf16.msra.mxu0 %v3901
  %5390 = vmatpush.bf16.msra.mxu0 %v3897
  %5391 = vmatpush.bf16.msra.mxu0 %v3893
  %5392 = vmatpush.bf16.msra.mxu0 %v3889
  %5393 = vmatpush.bf16.msra.mxu0 %v3885
  %5394 = vmatpush.bf16.msra.mxu0 %v3881
  %5395 = vmatmul.bf16.gmra.mxu0 %v4533
  %v5396 = vpop.f32.mrf.mxu0
  %v5397 = vadd.f32 %v5383, %v5396
  %v5398 = vpop.f32.mrf.mxu0
  %v5399 = vadd.f32 %v5385, %v5398
  %5400 = vdwg.mxu0
  %5401 = vmatpush.bf16.msra.mxu0 %v3941
  %5402 = vmatpush.bf16.msra.mxu0 %v3937
  %5403 = vmatpush.bf16.msra.mxu0 %v3933
  %5404 = vmatpush.bf16.msra.mxu0 %v3929
  %5405 = vmatpush.bf16.msra.mxu0 %v3925
  %5406 = vmatpush.bf16.msra.mxu0 %v3921
  %5407 = vmatpush.bf16.msra.mxu0 %v3917
  %5408 = vmatpush.bf16.msra.mxu0 %v3913
  %5409 = vmatmul.bf16.gmra.mxu0 %v4534
  %v5410 = vpop.f32.mrf.mxu0
  %v5411 = vadd.f32 %v5397, %v5410
  %v5412 = vpop.f32.mrf.mxu0
  %v5413 = vadd.f32 %v5399, %v5412
  %5414 = vdwg.mxu0
  %5415 = vmatpush.bf16.msra.mxu0 %v3973
  %5416 = vmatpush.bf16.msra.mxu0 %v3969
  %5417 = vmatpush.bf16.msra.mxu0 %v3965
  %5418 = vmatpush.bf16.msra.mxu0 %v3961
  %5419 = vmatpush.bf16.msra.mxu0 %v3957
  %5420 = vmatpush.bf16.msra.mxu0 %v3953
  %5421 = vmatpush.bf16.msra.mxu0 %v3949
  %5422 = vmatpush.bf16.msra.mxu0 %v3945
  %5423 = vmatmul.bf16.gmra.mxu0 %v4535
  %v5424 = vpop.f32.mrf.mxu0
  %v5425 = vadd.f32 %v5411, %v5424
  %v5426 = vpop.f32.mrf.mxu0
  %v5427 = vadd.f32 %v5413, %v5426
  %5428 = vdwg.mxu0
  %5429 = vmatpush.bf16.msra.mxu0 %v4005
  %5430 = vmatpush.bf16.msra.mxu0 %v4001
  %5431 = vmatpush.bf16.msra.mxu0 %v3997
  %5432 = vmatpush.bf16.msra.mxu0 %v3993
  %5433 = vmatpush.bf16.msra.mxu0 %v3989
  %5434 = vmatpush.bf16.msra.mxu0 %v3985
  %5435 = vmatpush.bf16.msra.mxu0 %v3981
  %5436 = vmatpush.bf16.msra.mxu0 %v3977
  %5437 = vmatmul.bf16.gmra.mxu0 %v4536
  %v5438 = vpop.f32.mrf.mxu0
  %v5439 = vadd.f32 %v5425, %v5438
  %v5440 = vpop.f32.mrf.mxu0
  %v5441 = vadd.f32 %v5427, %v5440
  %5442 = vdwg.mxu0
  %5443 = vmatpush.bf16.msra.mxu0 %v4037
  %5444 = vmatpush.bf16.msra.mxu0 %v4033
  %5445 = vmatpush.bf16.msra.mxu0 %v4029
  %5446 = vmatpush.bf16.msra.mxu0 %v4025
  %5447 = vmatpush.bf16.msra.mxu0 %v4021
  %5448 = vmatpush.bf16.msra.mxu0 %v4017
  %5449 = vmatpush.bf16.msra.mxu0 %v4013
  %5450 = vmatpush.bf16.msra.mxu0 %v4009
  %5451 = vmatmul.bf16.gmra.mxu0 %v4537
  %v5452 = vpop.f32.mrf.mxu0
  %v5453 = vadd.f32 %v5439, %v5452
  %v5454 = vpop.f32.mrf.mxu0
  %v5455 = vadd.f32 %v5441, %v5454
  %5456 = vdwg.mxu0
  %5457 = vmatpush.bf16.msra.mxu0 %v4069
  %5458 = vmatpush.bf16.msra.mxu0 %v4065
  %5459 = vmatpush.bf16.msra.mxu0 %v4061
  %5460 = vmatpush.bf16.msra.mxu0 %v4057
  %5461 = vmatpush.bf16.msra.mxu0 %v4053
  %5462 = vmatpush.bf16.msra.mxu0 %v4049
  %5463 = vmatpush.bf16.msra.mxu0 %v4045
  %5464 = vmatpush.bf16.msra.mxu0 %v4041
  %5465 = vmatmul.bf16.gmra.mxu0 %v4538
  %v5466 = vpop.f32.mrf.mxu0
  %v5467 = vadd.f32 %v5453, %v5466
  %v5468 = vpop.f32.mrf.mxu0
  %v5469 = vadd.f32 %v5455, %v5468
  %5470 = vdwg.mxu0
  %5471 = vmatpush.bf16.msra.mxu0 %v4101
  %5472 = vmatpush.bf16.msra.mxu0 %v4097
  %5473 = vmatpush.bf16.msra.mxu0 %v4093
  %5474 = vmatpush.bf16.msra.mxu0 %v4089
  %5475 = vmatpush.bf16.msra.mxu0 %v4085
  %5476 = vmatpush.bf16.msra.mxu0 %v4081
  %5477 = vmatpush.bf16.msra.mxu0 %v4077
  %5478 = vmatpush.bf16.msra.mxu0 %v4073
  %5479 = vmatmul.bf16.gmra.mxu0 %v4539
  %v5480 = vpop.f32.mrf.mxu0
  %v5481 = vadd.f32 %v5467, %v5480
  %v5482 = vpop.f32.mrf.mxu0
  %v5483 = vadd.f32 %v5469, %v5482
  %5484 = vdwg.mxu0
  %5485 = vmatpush.bf16.msra.mxu0 %v4133
  %5486 = vmatpush.bf16.msra.mxu0 %v4129
  %5487 = vmatpush.bf16.msra.mxu0 %v4125
  %5488 = vmatpush.bf16.msra.mxu0 %v4121
  %5489 = vmatpush.bf16.msra.mxu0 %v4117
  %5490 = vmatpush.bf16.msra.mxu0 %v4113
  %5491 = vmatpush.bf16.msra.mxu0 %v4109
  %5492 = vmatpush.bf16.msra.mxu0 %v4105
  %5493 = vmatmul.bf16.gmra.mxu0 %v4540
  %v5494 = vpop.f32.mrf.mxu0
  %v5495 = vadd.f32 %v5481, %v5494
  %v5496 = vpop.f32.mrf.mxu0
  %v5497 = vadd.f32 %v5483, %v5496
  %5498 = vdwg.mxu0
  %5499 = vmatpush.bf16.msra.mxu0 %v4165
  %5500 = vmatpush.bf16.msra.mxu0 %v4161
  %5501 = vmatpush.bf16.msra.mxu0 %v4157
  %5502 = vmatpush.bf16.msra.mxu0 %v4153
  %5503 = vmatpush.bf16.msra.mxu0 %v4149
  %5504 = vmatpush.bf16.msra.mxu0 %v4145
  %5505 = vmatpush.bf16.msra.mxu0 %v4141
  %5506 = vmatpush.bf16.msra.mxu0 %v4137
  %5507 = vmatmul.bf16.gmra.mxu0 %v4541
  %v5508 = vpop.f32.mrf.mxu0
  %v5509 = vadd.f32 %v5495, %v5508
  %v5510 = vpop.f32.mrf.mxu0
  %v5511 = vadd.f32 %v5497, %v5510
  %5512 = vdwg.mxu0
  %5513 = vmatpush.bf16.msra.mxu0 %v4197
  %5514 = vmatpush.bf16.msra.mxu0 %v4193
  %5515 = vmatpush.bf16.msra.mxu0 %v4189
  %5516 = vmatpush.bf16.msra.mxu0 %v4185
  %5517 = vmatpush.bf16.msra.mxu0 %v4181
  %5518 = vmatpush.bf16.msra.mxu0 %v4177
  %5519 = vmatpush.bf16.msra.mxu0 %v4173
  %5520 = vmatpush.bf16.msra.mxu0 %v4169
  %5521 = vmatmul.bf16.gmra.mxu0 %v4542
  %v5522 = vpop.f32.mrf.mxu0
  %v5523 = vadd.f32 %v5509, %v5522
  %v5524 = vpop.f32.mrf.mxu0
  %v5525 = vadd.f32 %v5511, %v5524
  %5526 = vdwg.mxu0
  %5527 = vmatpush.bf16.msra.mxu0 %v4229
  %5528 = vmatpush.bf16.msra.mxu0 %v4225
  %5529 = vmatpush.bf16.msra.mxu0 %v4221
  %5530 = vmatpush.bf16.msra.mxu0 %v4217
  %5531 = vmatpush.bf16.msra.mxu0 %v4213
  %5532 = vmatpush.bf16.msra.mxu0 %v4209
  %5533 = vmatpush.bf16.msra.mxu0 %v4205
  %5534 = vmatpush.bf16.msra.mxu0 %v4201
  %5535 = vmatmul.bf16.gmra.mxu0 %v4543
  %v5536 = vpop.f32.mrf.mxu0
  %v5537 = vadd.f32 %v5523, %v5536
  %v5538 = vpop.f32.mrf.mxu0
  %v5539 = vadd.f32 %v5525, %v5538
  %5540 = vdwg.mxu0
  %5541 = vmatpush.bf16.msra.mxu0 %v4261
  %5542 = vmatpush.bf16.msra.mxu0 %v4257
  %5543 = vmatpush.bf16.msra.mxu0 %v4253
  %5544 = vmatpush.bf16.msra.mxu0 %v4249
  %5545 = vmatpush.bf16.msra.mxu0 %v4245
  %5546 = vmatpush.bf16.msra.mxu0 %v4241
  %5547 = vmatpush.bf16.msra.mxu0 %v4237
  %5548 = vmatpush.bf16.msra.mxu0 %v4233
  %5549 = vmatmul.bf16.gmra.mxu0 %v4544
  %v5550 = vpop.f32.mrf.mxu0
  %v5551 = vadd.f32 %v5537, %v5550
  %v5552 = vpop.f32.mrf.mxu0
  %v5553 = vadd.f32 %v5539, %v5552
  %5554 = vdwg.mxu0
  %5555 = vmatpush.bf16.msra.mxu0 %v4293
  %5556 = vmatpush.bf16.msra.mxu0 %v4289
  %5557 = vmatpush.bf16.msra.mxu0 %v4285
  %5558 = vmatpush.bf16.msra.mxu0 %v4281
  %5559 = vmatpush.bf16.msra.mxu0 %v4277
  %5560 = vmatpush.bf16.msra.mxu0 %v4273
  %5561 = vmatpush.bf16.msra.mxu0 %v4269
  %5562 = vmatpush.bf16.msra.mxu0 %v4265
  %5563 = vmatmul.bf16.gmra.mxu0 %v4545
  %v5564 = vpop.f32.mrf.mxu0
  %v5565 = vadd.f32 %v5551, %v5564
  %v5566 = vpop.f32.mrf.mxu0
  %v5567 = vadd.f32 %v5553, %v5566
  %5568 = vdwg.mxu0
  %5569 = vmatpush.bf16.msra.mxu0 %v4325
  %5570 = vmatpush.bf16.msra.mxu0 %v4321
  %5571 = vmatpush.bf16.msra.mxu0 %v4317
  %5572 = vmatpush.bf16.msra.mxu0 %v4313
  %5573 = vmatpush.bf16.msra.mxu0 %v4309
  %5574 = vmatpush.bf16.msra.mxu0 %v4305
  %5575 = vmatpush.bf16.msra.mxu0 %v4301
  %5576 = vmatpush.bf16.msra.mxu0 %v4297
  %5577 = vmatmul.bf16.gmra.mxu0 %v4546
  %v5578 = vpop.f32.mrf.mxu0
  %v5579 = vadd.f32 %v5565, %v5578
  %v5580 = vpop.f32.mrf.mxu0
  %v5581 = vadd.f32 %v5567, %v5580
  %5582 = vdwg.mxu0
  %5583 = vmatpush.bf16.msra.mxu0 %v4357
  %5584 = vmatpush.bf16.msra.mxu0 %v4353
  %5585 = vmatpush.bf16.msra.mxu0 %v4349
  %5586 = vmatpush.bf16.msra.mxu0 %v4345
  %5587 = vmatpush.bf16.msra.mxu0 %v4341
  %5588 = vmatpush.bf16.msra.mxu0 %v4337
  %5589 = vmatpush.bf16.msra.mxu0 %v4333
  %5590 = vmatpush.bf16.msra.mxu0 %v4329
  %5591 = vmatmul.bf16.gmra.mxu0 %v4547
  %v5592 = vpop.f32.mrf.mxu0
  %v5593 = vadd.f32 %v5579, %v5592
  %v5594 = vpop.f32.mrf.mxu0
  %v5595 = vadd.f32 %v5581, %v5594
  %5596 = vdwg.mxu0
  %5597 = vmatpush.bf16.msra.mxu0 %v4389
  %5598 = vmatpush.bf16.msra.mxu0 %v4385
  %5599 = vmatpush.bf16.msra.mxu0 %v4381
  %5600 = vmatpush.bf16.msra.mxu0 %v4377
  %5601 = vmatpush.bf16.msra.mxu0 %v4373
  %5602 = vmatpush.bf16.msra.mxu0 %v4369
  %5603 = vmatpush.bf16.msra.mxu0 %v4365
  %5604 = vmatpush.bf16.msra.mxu0 %v4361
  %5605 = vmatmul.bf16.gmra.mxu0 %v4548
  %v5606 = vpop.f32.mrf.mxu0
  %v5607 = vadd.f32 %v5593, %v5606
  %v5608 = vpop.f32.mrf.mxu0
  %v5609 = vadd.f32 %v5595, %v5608
  %5610 = vdwg.mxu0
  %5611 = vmatpush.bf16.msra.mxu0 %v4421
  %5612 = vmatpush.bf16.msra.mxu0 %v4417
  %5613 = vmatpush.bf16.msra.mxu0 %v4413
  %5614 = vmatpush.bf16.msra.mxu0 %v4409
  %5615 = vmatpush.bf16.msra.mxu0 %v4405
  %5616 = vmatpush.bf16.msra.mxu0 %v4401
  %5617 = vmatpush.bf16.msra.mxu0 %v4397
  %5618 = vmatpush.bf16.msra.mxu0 %v4393
  %5619 = vmatmul.bf16.gmra.mxu0 %v4549
  %v5620 = vpop.f32.mrf.mxu0
  %v5621 = vadd.f32 %v5607, %v5620
  %v5622 = vpop.f32.mrf.mxu0
  %v5623 = vadd.f32 %v5609, %v5622
  %5624 = vdwg.mxu0
  %5625 = vmatpush.bf16.msra.mxu0 %v3654
  %5626 = vmatpush.bf16.msra.mxu0 %v3650
  %5627 = vmatpush.bf16.msra.mxu0 %v3646
  %5628 = vmatpush.bf16.msra.mxu0 %v3642
  %5629 = vmatpush.bf16.msra.mxu0 %v3638
  %5630 = vmatpush.bf16.msra.mxu0 %v3634
  %5631 = vmatpush.bf16.msra.mxu0 %v3630
  %5632 = vmatpush.bf16.msra.mxu0 %v3626
  %5633 = vmatmul.bf16.gmra.mxu0 %v4525
  %v5634 = vpop.f32.mrf.mxu0
  %v5635 = vadd.f32 0.0, %v5634
  %v5636 = vpop.f32.mrf.mxu0
  %v5637 = vadd.f32 0.0, %v5636
  %5638 = vdwg.mxu0
  %5639 = vmatpush.bf16.msra.mxu0 %v3686
  %5640 = vmatpush.bf16.msra.mxu0 %v3682
  %5641 = vmatpush.bf16.msra.mxu0 %v3678
  %5642 = vmatpush.bf16.msra.mxu0 %v3674
  %5643 = vmatpush.bf16.msra.mxu0 %v3670
  %5644 = vmatpush.bf16.msra.mxu0 %v3666
  %5645 = vmatpush.bf16.msra.mxu0 %v3662
  %5646 = vmatpush.bf16.msra.mxu0 %v3658
  %5647 = vmatmul.bf16.gmra.mxu0 %v4526
  %v5648 = vpop.f32.mrf.mxu0
  %v5649 = vadd.f32 %v5635, %v5648
  %v5650 = vpop.f32.mrf.mxu0
  %v5651 = vadd.f32 %v5637, %v5650
  %5652 = vdwg.mxu0
  %5653 = vmatpush.bf16.msra.mxu0 %v3718
  %5654 = vmatpush.bf16.msra.mxu0 %v3714
  %5655 = vmatpush.bf16.msra.mxu0 %v3710
  %5656 = vmatpush.bf16.msra.mxu0 %v3706
  %5657 = vmatpush.bf16.msra.mxu0 %v3702
  %5658 = vmatpush.bf16.msra.mxu0 %v3698
  %5659 = vmatpush.bf16.msra.mxu0 %v3694
  %5660 = vmatpush.bf16.msra.mxu0 %v3690
  %5661 = vmatmul.bf16.gmra.mxu0 %v4527
  %v5662 = vpop.f32.mrf.mxu0
  %v5663 = vadd.f32 %v5649, %v5662
  %v5664 = vpop.f32.mrf.mxu0
  %v5665 = vadd.f32 %v5651, %v5664
  %5666 = vdwg.mxu0
  %5667 = vmatpush.bf16.msra.mxu0 %v3750
  %5668 = vmatpush.bf16.msra.mxu0 %v3746
  %5669 = vmatpush.bf16.msra.mxu0 %v3742
  %5670 = vmatpush.bf16.msra.mxu0 %v3738
  %5671 = vmatpush.bf16.msra.mxu0 %v3734
  %5672 = vmatpush.bf16.msra.mxu0 %v3730
  %5673 = vmatpush.bf16.msra.mxu0 %v3726
  %5674 = vmatpush.bf16.msra.mxu0 %v3722
  %5675 = vmatmul.bf16.gmra.mxu0 %v4528
  %v5676 = vpop.f32.mrf.mxu0
  %v5677 = vadd.f32 %v5663, %v5676
  %v5678 = vpop.f32.mrf.mxu0
  %v5679 = vadd.f32 %v5665, %v5678
  %5680 = vdwg.mxu0
  %5681 = vmatpush.bf16.msra.mxu0 %v3782
  %5682 = vmatpush.bf16.msra.mxu0 %v3778
  %5683 = vmatpush.bf16.msra.mxu0 %v3774
  %5684 = vmatpush.bf16.msra.mxu0 %v3770
  %5685 = vmatpush.bf16.msra.mxu0 %v3766
  %5686 = vmatpush.bf16.msra.mxu0 %v3762
  %5687 = vmatpush.bf16.msra.mxu0 %v3758
  %5688 = vmatpush.bf16.msra.mxu0 %v3754
  %5689 = vmatmul.bf16.gmra.mxu0 %v4529
  %v5690 = vpop.f32.mrf.mxu0
  %v5691 = vadd.f32 %v5677, %v5690
  %v5692 = vpop.f32.mrf.mxu0
  %v5693 = vadd.f32 %v5679, %v5692
  %5694 = vdwg.mxu0
  %5695 = vmatpush.bf16.msra.mxu0 %v3814
  %5696 = vmatpush.bf16.msra.mxu0 %v3810
  %5697 = vmatpush.bf16.msra.mxu0 %v3806
  %5698 = vmatpush.bf16.msra.mxu0 %v3802
  %5699 = vmatpush.bf16.msra.mxu0 %v3798
  %5700 = vmatpush.bf16.msra.mxu0 %v3794
  %5701 = vmatpush.bf16.msra.mxu0 %v3790
  %5702 = vmatpush.bf16.msra.mxu0 %v3786
  %5703 = vmatmul.bf16.gmra.mxu0 %v4530
  %v5704 = vpop.f32.mrf.mxu0
  %v5705 = vadd.f32 %v5691, %v5704
  %v5706 = vpop.f32.mrf.mxu0
  %v5707 = vadd.f32 %v5693, %v5706
  %5708 = vdwg.mxu0
  %5709 = vmatpush.bf16.msra.mxu0 %v3846
  %5710 = vmatpush.bf16.msra.mxu0 %v3842
  %5711 = vmatpush.bf16.msra.mxu0 %v3838
  %5712 = vmatpush.bf16.msra.mxu0 %v3834
  %5713 = vmatpush.bf16.msra.mxu0 %v3830
  %5714 = vmatpush.bf16.msra.mxu0 %v3826
  %5715 = vmatpush.bf16.msra.mxu0 %v3822
  %5716 = vmatpush.bf16.msra.mxu0 %v3818
  %5717 = vmatmul.bf16.gmra.mxu0 %v4531
  %v5718 = vpop.f32.mrf.mxu0
  %v5719 = vadd.f32 %v5705, %v5718
  %v5720 = vpop.f32.mrf.mxu0
  %v5721 = vadd.f32 %v5707, %v5720
  %5722 = vdwg.mxu0
  %5723 = vmatpush.bf16.msra.mxu0 %v3878
  %5724 = vmatpush.bf16.msra.mxu0 %v3874
  %5725 = vmatpush.bf16.msra.mxu0 %v3870
  %5726 = vmatpush.bf16.msra.mxu0 %v3866
  %5727 = vmatpush.bf16.msra.mxu0 %v3862
  %5728 = vmatpush.bf16.msra.mxu0 %v3858
  %5729 = vmatpush.bf16.msra.mxu0 %v3854
  %5730 = vmatpush.bf16.msra.mxu0 %v3850
  %5731 = vmatmul.bf16.gmra.mxu0 %v4532
  %v5732 = vpop.f32.mrf.mxu0
  %v5733 = vadd.f32 %v5719, %v5732
  %v5734 = vpop.f32.mrf.mxu0
  %v5735 = vadd.f32 %v5721, %v5734
  %5736 = vdwg.mxu0
  %5737 = vmatpush.bf16.msra.mxu0 %v3910
  %5738 = vmatpush.bf16.msra.mxu0 %v3906
  %5739 = vmatpush.bf16.msra.mxu0 %v3902
  %5740 = vmatpush.bf16.msra.mxu0 %v3898
  %5741 = vmatpush.bf16.msra.mxu0 %v3894
  %5742 = vmatpush.bf16.msra.mxu0 %v3890
  %5743 = vmatpush.bf16.msra.mxu0 %v3886
  %5744 = vmatpush.bf16.msra.mxu0 %v3882
  %5745 = vmatmul.bf16.gmra.mxu0 %v4533
  %v5746 = vpop.f32.mrf.mxu0
  %v5747 = vadd.f32 %v5733, %v5746
  %v5748 = vpop.f32.mrf.mxu0
  %v5749 = vadd.f32 %v5735, %v5748
  %5750 = vdwg.mxu0
  %5751 = vmatpush.bf16.msra.mxu0 %v3942
  %5752 = vmatpush.bf16.msra.mxu0 %v3938
  %5753 = vmatpush.bf16.msra.mxu0 %v3934
  %5754 = vmatpush.bf16.msra.mxu0 %v3930
  %5755 = vmatpush.bf16.msra.mxu0 %v3926
  %5756 = vmatpush.bf16.msra.mxu0 %v3922
  %5757 = vmatpush.bf16.msra.mxu0 %v3918
  %5758 = vmatpush.bf16.msra.mxu0 %v3914
  %5759 = vmatmul.bf16.gmra.mxu0 %v4534
  %v5760 = vpop.f32.mrf.mxu0
  %v5761 = vadd.f32 %v5747, %v5760
  %v5762 = vpop.f32.mrf.mxu0
  %v5763 = vadd.f32 %v5749, %v5762
  %5764 = vdwg.mxu0
  %5765 = vmatpush.bf16.msra.mxu0 %v3974
  %5766 = vmatpush.bf16.msra.mxu0 %v3970
  %5767 = vmatpush.bf16.msra.mxu0 %v3966
  %5768 = vmatpush.bf16.msra.mxu0 %v3962
  %5769 = vmatpush.bf16.msra.mxu0 %v3958
  %5770 = vmatpush.bf16.msra.mxu0 %v3954
  %5771 = vmatpush.bf16.msra.mxu0 %v3950
  %5772 = vmatpush.bf16.msra.mxu0 %v3946
  %5773 = vmatmul.bf16.gmra.mxu0 %v4535
  %v5774 = vpop.f32.mrf.mxu0
  %v5775 = vadd.f32 %v5761, %v5774
  %v5776 = vpop.f32.mrf.mxu0
  %v5777 = vadd.f32 %v5763, %v5776
  %5778 = vdwg.mxu0
  %5779 = vmatpush.bf16.msra.mxu0 %v4006
  %5780 = vmatpush.bf16.msra.mxu0 %v4002
  %5781 = vmatpush.bf16.msra.mxu0 %v3998
  %5782 = vmatpush.bf16.msra.mxu0 %v3994
  %5783 = vmatpush.bf16.msra.mxu0 %v3990
  %5784 = vmatpush.bf16.msra.mxu0 %v3986
  %5785 = vmatpush.bf16.msra.mxu0 %v3982
  %5786 = vmatpush.bf16.msra.mxu0 %v3978
  %5787 = vmatmul.bf16.gmra.mxu0 %v4536
  %v5788 = vpop.f32.mrf.mxu0
  %v5789 = vadd.f32 %v5775, %v5788
  %v5790 = vpop.f32.mrf.mxu0
  %v5791 = vadd.f32 %v5777, %v5790
  %5792 = vdwg.mxu0
  %5793 = vmatpush.bf16.msra.mxu0 %v4038
  %5794 = vmatpush.bf16.msra.mxu0 %v4034
  %5795 = vmatpush.bf16.msra.mxu0 %v4030
  %5796 = vmatpush.bf16.msra.mxu0 %v4026
  %5797 = vmatpush.bf16.msra.mxu0 %v4022
  %5798 = vmatpush.bf16.msra.mxu0 %v4018
  %5799 = vmatpush.bf16.msra.mxu0 %v4014
  %5800 = vmatpush.bf16.msra.mxu0 %v4010
  %5801 = vmatmul.bf16.gmra.mxu0 %v4537
  %v5802 = vpop.f32.mrf.mxu0
  %v5803 = vadd.f32 %v5789, %v5802
  %v5804 = vpop.f32.mrf.mxu0
  %v5805 = vadd.f32 %v5791, %v5804
  %5806 = vdwg.mxu0
  %5807 = vmatpush.bf16.msra.mxu0 %v4070
  %5808 = vmatpush.bf16.msra.mxu0 %v4066
  %5809 = vmatpush.bf16.msra.mxu0 %v4062
  %5810 = vmatpush.bf16.msra.mxu0 %v4058
  %5811 = vmatpush.bf16.msra.mxu0 %v4054
  %5812 = vmatpush.bf16.msra.mxu0 %v4050
  %5813 = vmatpush.bf16.msra.mxu0 %v4046
  %5814 = vmatpush.bf16.msra.mxu0 %v4042
  %5815 = vmatmul.bf16.gmra.mxu0 %v4538
  %v5816 = vpop.f32.mrf.mxu0
  %v5817 = vadd.f32 %v5803, %v5816
  %v5818 = vpop.f32.mrf.mxu0
  %v5819 = vadd.f32 %v5805, %v5818
  %5820 = vdwg.mxu0
  %5821 = vmatpush.bf16.msra.mxu0 %v4102
  %5822 = vmatpush.bf16.msra.mxu0 %v4098
  %5823 = vmatpush.bf16.msra.mxu0 %v4094
  %5824 = vmatpush.bf16.msra.mxu0 %v4090
  %5825 = vmatpush.bf16.msra.mxu0 %v4086
  %5826 = vmatpush.bf16.msra.mxu0 %v4082
  %5827 = vmatpush.bf16.msra.mxu0 %v4078
  %5828 = vmatpush.bf16.msra.mxu0 %v4074
  %5829 = vmatmul.bf16.gmra.mxu0 %v4539
  %v5830 = vpop.f32.mrf.mxu0
  %v5831 = vadd.f32 %v5817, %v5830
  %v5832 = vpop.f32.mrf.mxu0
  %v5833 = vadd.f32 %v5819, %v5832
  %5834 = vdwg.mxu0
  %5835 = vmatpush.bf16.msra.mxu0 %v4134
  %5836 = vmatpush.bf16.msra.mxu0 %v4130
  %5837 = vmatpush.bf16.msra.mxu0 %v4126
  %5838 = vmatpush.bf16.msra.mxu0 %v4122
  %5839 = vmatpush.bf16.msra.mxu0 %v4118
  %5840 = vmatpush.bf16.msra.mxu0 %v4114
  %5841 = vmatpush.bf16.msra.mxu0 %v4110
  %5842 = vmatpush.bf16.msra.mxu0 %v4106
  %5843 = vmatmul.bf16.gmra.mxu0 %v4540
  %v5844 = vpop.f32.mrf.mxu0
  %v5845 = vadd.f32 %v5831, %v5844
  %v5846 = vpop.f32.mrf.mxu0
  %v5847 = vadd.f32 %v5833, %v5846
  %5848 = vdwg.mxu0
  %5849 = vmatpush.bf16.msra.mxu0 %v4166
  %5850 = vmatpush.bf16.msra.mxu0 %v4162
  %5851 = vmatpush.bf16.msra.mxu0 %v4158
  %5852 = vmatpush.bf16.msra.mxu0 %v4154
  %5853 = vmatpush.bf16.msra.mxu0 %v4150
  %5854 = vmatpush.bf16.msra.mxu0 %v4146
  %5855 = vmatpush.bf16.msra.mxu0 %v4142
  %5856 = vmatpush.bf16.msra.mxu0 %v4138
  %5857 = vmatmul.bf16.gmra.mxu0 %v4541
  %v5858 = vpop.f32.mrf.mxu0
  %v5859 = vadd.f32 %v5845, %v5858
  %v5860 = vpop.f32.mrf.mxu0
  %v5861 = vadd.f32 %v5847, %v5860
  %5862 = vdwg.mxu0
  %5863 = vmatpush.bf16.msra.mxu0 %v4198
  %5864 = vmatpush.bf16.msra.mxu0 %v4194
  %5865 = vmatpush.bf16.msra.mxu0 %v4190
  %5866 = vmatpush.bf16.msra.mxu0 %v4186
  %5867 = vmatpush.bf16.msra.mxu0 %v4182
  %5868 = vmatpush.bf16.msra.mxu0 %v4178
  %5869 = vmatpush.bf16.msra.mxu0 %v4174
  %5870 = vmatpush.bf16.msra.mxu0 %v4170
  %5871 = vmatmul.bf16.gmra.mxu0 %v4542
  %v5872 = vpop.f32.mrf.mxu0
  %v5873 = vadd.f32 %v5859, %v5872
  %v5874 = vpop.f32.mrf.mxu0
  %v5875 = vadd.f32 %v5861, %v5874
  %5876 = vdwg.mxu0
  %5877 = vmatpush.bf16.msra.mxu0 %v4230
  %5878 = vmatpush.bf16.msra.mxu0 %v4226
  %5879 = vmatpush.bf16.msra.mxu0 %v4222
  %5880 = vmatpush.bf16.msra.mxu0 %v4218
  %5881 = vmatpush.bf16.msra.mxu0 %v4214
  %5882 = vmatpush.bf16.msra.mxu0 %v4210
  %5883 = vmatpush.bf16.msra.mxu0 %v4206
  %5884 = vmatpush.bf16.msra.mxu0 %v4202
  %5885 = vmatmul.bf16.gmra.mxu0 %v4543
  %v5886 = vpop.f32.mrf.mxu0
  %v5887 = vadd.f32 %v5873, %v5886
  %v5888 = vpop.f32.mrf.mxu0
  %v5889 = vadd.f32 %v5875, %v5888
  %5890 = vdwg.mxu0
  %5891 = vmatpush.bf16.msra.mxu0 %v4262
  %5892 = vmatpush.bf16.msra.mxu0 %v4258
  %5893 = vmatpush.bf16.msra.mxu0 %v4254
  %5894 = vmatpush.bf16.msra.mxu0 %v4250
  %5895 = vmatpush.bf16.msra.mxu0 %v4246
  %5896 = vmatpush.bf16.msra.mxu0 %v4242
  %5897 = vmatpush.bf16.msra.mxu0 %v4238
  %5898 = vmatpush.bf16.msra.mxu0 %v4234
  %5899 = vmatmul.bf16.gmra.mxu0 %v4544
  %v5900 = vpop.f32.mrf.mxu0
  %v5901 = vadd.f32 %v5887, %v5900
  %v5902 = vpop.f32.mrf.mxu0
  %v5903 = vadd.f32 %v5889, %v5902
  %5904 = vdwg.mxu0
  %5905 = vmatpush.bf16.msra.mxu0 %v4294
  %5906 = vmatpush.bf16.msra.mxu0 %v4290
  %5907 = vmatpush.bf16.msra.mxu0 %v4286
  %5908 = vmatpush.bf16.msra.mxu0 %v4282
  %5909 = vmatpush.bf16.msra.mxu0 %v4278
  %5910 = vmatpush.bf16.msra.mxu0 %v4274
  %5911 = vmatpush.bf16.msra.mxu0 %v4270
  %5912 = vmatpush.bf16.msra.mxu0 %v4266
  %5913 = vmatmul.bf16.gmra.mxu0 %v4545
  %v5914 = vpop.f32.mrf.mxu0
  %v5915 = vadd.f32 %v5901, %v5914
  %v5916 = vpop.f32.mrf.mxu0
  %v5917 = vadd.f32 %v5903, %v5916
  %5918 = vdwg.mxu0
  %5919 = vmatpush.bf16.msra.mxu0 %v4326
  %5920 = vmatpush.bf16.msra.mxu0 %v4322
  %5921 = vmatpush.bf16.msra.mxu0 %v4318
  %5922 = vmatpush.bf16.msra.mxu0 %v4314
  %5923 = vmatpush.bf16.msra.mxu0 %v4310
  %5924 = vmatpush.bf16.msra.mxu0 %v4306
  %5925 = vmatpush.bf16.msra.mxu0 %v4302
  %5926 = vmatpush.bf16.msra.mxu0 %v4298
  %5927 = vmatmul.bf16.gmra.mxu0 %v4546
  %v5928 = vpop.f32.mrf.mxu0
  %v5929 = vadd.f32 %v5915, %v5928
  %v5930 = vpop.f32.mrf.mxu0
  %v5931 = vadd.f32 %v5917, %v5930
  %5932 = vdwg.mxu0
  %5933 = vmatpush.bf16.msra.mxu0 %v4358
  %5934 = vmatpush.bf16.msra.mxu0 %v4354
  %5935 = vmatpush.bf16.msra.mxu0 %v4350
  %5936 = vmatpush.bf16.msra.mxu0 %v4346
  %5937 = vmatpush.bf16.msra.mxu0 %v4342
  %5938 = vmatpush.bf16.msra.mxu0 %v4338
  %5939 = vmatpush.bf16.msra.mxu0 %v4334
  %5940 = vmatpush.bf16.msra.mxu0 %v4330
  %5941 = vmatmul.bf16.gmra.mxu0 %v4547
  %v5942 = vpop.f32.mrf.mxu0
  %v5943 = vadd.f32 %v5929, %v5942
  %v5944 = vpop.f32.mrf.mxu0
  %v5945 = vadd.f32 %v5931, %v5944
  %5946 = vdwg.mxu0
  %5947 = vmatpush.bf16.msra.mxu0 %v4390
  %5948 = vmatpush.bf16.msra.mxu0 %v4386
  %5949 = vmatpush.bf16.msra.mxu0 %v4382
  %5950 = vmatpush.bf16.msra.mxu0 %v4378
  %5951 = vmatpush.bf16.msra.mxu0 %v4374
  %5952 = vmatpush.bf16.msra.mxu0 %v4370
  %5953 = vmatpush.bf16.msra.mxu0 %v4366
  %5954 = vmatpush.bf16.msra.mxu0 %v4362
  %5955 = vmatmul.bf16.gmra.mxu0 %v4548
  %v5956 = vpop.f32.mrf.mxu0
  %v5957 = vadd.f32 %v5943, %v5956
  %v5958 = vpop.f32.mrf.mxu0
  %v5959 = vadd.f32 %v5945, %v5958
  %5960 = vdwg.mxu0
  %5961 = vmatpush.bf16.msra.mxu0 %v4422
  %5962 = vmatpush.bf16.msra.mxu0 %v4418
  %5963 = vmatpush.bf16.msra.mxu0 %v4414
  %5964 = vmatpush.bf16.msra.mxu0 %v4410
  %5965 = vmatpush.bf16.msra.mxu0 %v4406
  %5966 = vmatpush.bf16.msra.mxu0 %v4402
  %5967 = vmatpush.bf16.msra.mxu0 %v4398
  %5968 = vmatpush.bf16.msra.mxu0 %v4394
  %5969 = vmatmul.bf16.gmra.mxu0 %v4549
  %v5970 = vpop.f32.mrf.mxu0
  %v5971 = vadd.f32 %v5957, %v5970
  %v5972 = vpop.f32.mrf.mxu0
  %v5973 = vadd.f32 %v5959, %v5972
  %5974 = vdwg.mxu0
  %v5975 = vld [vmem:[%s2] sm:$0xf]
  %v5977 = vperm.slane %v5975, 0
  %v5978 = vperm.slane %v5975, 1
  %v5979 = vperm.slane %v5975, 2
  %v5980 = vperm.slane %v5975, 3
  %v5985 = vmul.f32 %v4921, %v5977
  %v5986 = vmul.f32 %v5271, %v5978
  %v5987 = vmul.f32 %v5621, %v5979
  %v5988 = vmul.f32 %v5971, %v5980
  %v5989 = vmul.f32 %v4923, %v5977
  %v5990 = vmul.f32 %v5273, %v5978
  %v5991 = vmul.f32 %v5623, %v5979
  %v5992 = vmul.f32 %v5973, %v5980
  %v5993 = vld [vmem:[%s3] sm:$0xf]
  %v5995 = vperm.slane %v5993, 0
  %v5996 = vperm.slane %v5993, 1
  %v5997 = vperm.slane %v5993, 2
  %v5998 = vperm.slane %v5993, 3
  %v6003 = vadd.f32 %v5985, %v5995
  %v6004 = vadd.f32 %v5986, %v5996
  %v6005 = vadd.f32 %v5987, %v5997
  %v6006 = vadd.f32 %v5988, %v5998
  %v6007 = vadd.f32 %v5989, %v5995
  %v6008 = vadd.f32 %v5990, %v5996
  %v6009 = vadd.f32 %v5991, %v5997
  %v6010 = vadd.f32 %v5992, %v5998
  %v6011 = vmax.f32 %v6003, 0.0
  %v6012 = vmax.f32 %v6004, 0.0
  %v6013 = vmax.f32 %v6005, 0.0
  %v6014 = vmax.f32 %v6006, 0.0
  %v6015 = vmax.f32 %v6007, 0.0
  %v6016 = vmax.f32 %v6008, 0.0
  %v6017 = vmax.f32 %v6009, 0.0
  %v6018 = vmax.f32 %v6010, 0.0
  %v6019 = vpack.c.bf16 %v6015, %v6011
  %v6020 = vpack.c.bf16 %v6016, %v6012
  %v6021 = vpack.c.bf16 %v6017, %v6013
  %v6022 = vpack.c.bf16 %v6018, %v6014
  %v6023 = vld [vmem:[%s4] sm:$0xf]
  %v6024 = vld [vmem:[%s4 + $0x4] sm:$0xf]
  %v6025 = vld [vmem:[%s4 + $0x8] sm:$0xf]
  %v6026 = vld [vmem:[%s4 + $0xc] sm:$0xf]
  %v6027 = vld [vmem:[%s4 + $0x10] sm:$0xf]
  %v6028 = vld [vmem:[%s4 + $0x14] sm:$0xf]
  %v6029 = vld [vmem:[%s4 + $0x18] sm:$0xf]
  %v6030 = vld [vmem:[%s4 + $0x1c] sm:$0xf]
  %v6031 = vld [vmem:[%s4 + $0x20] sm:$0xf]
  %v6032 = vld [vmem:[%s4 + $0x24] sm:$0xf]
  %v6033 = vld [vmem:[%s4 + $0x28] sm:$0xf]
  %v6034 = vld [vmem:[%s4 + $0x2c] sm:$0xf]
  %v6035 = vld [vmem:[%s4 + $0x30] sm:$0xf]
  %v6036 = vld [vmem:[%s4 + $0x34] sm:$0xf]
  %v6037 = vld [vmem:[%s4 + $0x38] sm:$0xf]
  %v6038 = vld [vmem:[%s4 + $0x3c] sm:$0xf]
  %v6039 = vld [vmem:[%s4 + $0x40] sm:$0xf]
  %v6040 = vld [vmem:[%s4 + $0x44] sm:$0xf]
  %v6041 = vld [vmem:[%s4 + $0x48] sm:$0xf]
  %v6042 = vld [vmem:[%s4 + $0x4c] sm:$0xf]
  %v6043 = vld [vmem:[%s4 + $0x50] sm:$0xf]
  %v6044 = vld [vmem:[%s4 + $0x54] sm:$0xf]
  %v6045 = vld [vmem:[%s4 + $0x58] sm:$0xf]
  %v6046 = vld [vmem:[%s4 + $0x5c] sm:$0xf]
  %v6047 = vld [vmem:[%s4 + $0x60] sm:$0xf]
  %v6048 = vld [vmem:[%s4 + $0x64] sm:$0xf]
  %v6049 = vld [vmem:[%s4 + $0x68] sm:$0xf]
  %v6050 = vld [vmem:[%s4 + $0x6c] sm:$0xf]
  %v6051 = vld [vmem:[%s4 + $0x70] sm:$0xf]
  %v6052 = vld [vmem:[%s4 + $0x74] sm:$0xf]
  %v6053 = vld [vmem:[%s4 + $0x78] sm:$0xf]
  %v6054 = vld [vmem:[%s4 + $0x7c] sm:$0xf]
  %v6055 = vld [vmem:[%s4 + $0x80] sm:$0xf]
  %v6056 = vld [vmem:[%s4 + $0x84] sm:$0xf]
  %v6057 = vld [vmem:[%s4 + $0x88] sm:$0xf]
  %v6058 = vld [vmem:[%s4 + $0x8c] sm:$0xf]
  %v6059 = vld [vmem:[%s4 + $0x90] sm:$0xf]
  %v6060 = vld [vmem:[%s4 + $0x94] sm:$0xf]
  %v6061 = vld [vmem:[%s4 + $0x98] sm:$0xf]
  %v6062 = vld [vmem:[%s4 + $0x9c] sm:$0xf]
  %v6063 = vld [vmem:[%s4 + $0xa0] sm:$0xf]
  %v6064 = vld [vmem:[%s4 + $0xa4] sm:$0xf]
  %v6065 = vld [vmem:[%s4 + $0xa8] sm:$0xf]
  %v6066 = vld [vmem:[%s4 + $0xac] sm:$0xf]
  %v6067 = vld [vmem:[%s4 + $0xb0] sm:$0xf]
  %v6068 = vld [vmem:[%s4 + $0xb4] sm:$0xf]
  %v6069 = vld [vmem:[%s4 + $0xb8] sm:$0xf]
  %v6070 = vld [vmem:[%s4 + $0xbc] sm:$0xf]
  %v6071 = vld [vmem:[%s4 + $0xc0] sm:$0xf]
  %v6072 = vld [vmem:[%s4 + $0xc4] sm:$0xf]
  %v6073 = vld [vmem:[%s4 + $0xc8] sm:$0xf]
  %v6074 = vld [vmem:[%s4 + $0xcc] sm:$0xf]
  %v6075 = vld [vmem:[%s4 + $0xd0] sm:$0xf]
  %v6076 = vld [vmem:[%s4 + $0xd4] sm:$0xf]
  %v6077 = vld [vmem:[%s4 + $0xd8] sm:$0xf]
  %v6078 = vld [vmem:[%s4 + $0xdc] sm:$0xf]
  %v6079 = vld [vmem:[%s4 + $0xe0] sm:$0xf]
  %v6080 = vld [vmem:[%s4 + $0xe4] sm:$0xf]
  %v6081 = vld [vmem:[%s4 + $0xe8] sm:$0xf]
  %v6082 = vld [vmem:[%s4 + $0xec] sm:$0xf]
  %v6083 = vld [vmem:[%s4 + $0xf0] sm:$0xf]
  %v6084 = vld [vmem:[%s4 + $0xf4] sm:$0xf]
  %v6085 = vld [vmem:[%s4 + $0xf8] sm:$0xf]
  %v6086 = vld [vmem:[%s4 + $0xfc] sm:$0xf]
  %v6087 = vld [vmem:[%s5] sm:$0x1]
  %v6089 = vperm.slane %v6087, 0
  %v6155 = vunpack.c.l.b16 %v6023
  %v6156 = vunpack.c.l.b16 %v6024
  %v6157 = vunpack.c.l.b16 %v6025
  %v6158 = vunpack.c.l.b16 %v6026
  %v6159 = vunpack.c.l.b16 %v6027
  %v6160 = vunpack.c.l.b16 %v6028
  %v6161 = vunpack.c.l.b16 %v6029
  %v6162 = vunpack.c.l.b16 %v6030
  %v6163 = vunpack.c.l.b16 %v6031
  %v6164 = vunpack.c.l.b16 %v6032
  %v6165 = vunpack.c.l.b16 %v6033
  %v6166 = vunpack.c.l.b16 %v6034
  %v6167 = vunpack.c.l.b16 %v6035
  %v6168 = vunpack.c.l.b16 %v6036
  %v6169 = vunpack.c.l.b16 %v6037
  %v6170 = vunpack.c.l.b16 %v6038
  %v6171 = vunpack.c.l.b16 %v6039
  %v6172 = vunpack.c.l.b16 %v6040
  %v6173 = vunpack.c.l.b16 %v6041
  %v6174 = vunpack.c.l.b16 %v6042
  %v6175 = vunpack.c.l.b16 %v6043
  %v6176 = vunpack.c.l.b16 %v6044
  %v6177 = vunpack.c.l.b16 %v6045
  %v6178 = vunpack.c.l.b16 %v6046
  %v6179 = vunpack.c.l.b16 %v6047
  %v6180 = vunpack.c.l.b16 %v6048
  %v6181 = vunpack.c.l.b16 %v6049
  %v6182 = vunpack.c.l.b16 %v6050
  %v6183 = vunpack.c.l.b16 %v6051
  %v6184 = vunpack.c.l.b16 %v6052
  %v6185 = vunpack.c.l.b16 %v6053
  %v6186 = vunpack.c.l.b16 %v6054
  %v6187 = vunpack.c.l.b16 %v6055
  %v6188 = vunpack.c.l.b16 %v6056
  %v6189 = vunpack.c.l.b16 %v6057
  %v6190 = vunpack.c.l.b16 %v6058
  %v6191 = vunpack.c.l.b16 %v6059
  %v6192 = vunpack.c.l.b16 %v6060
  %v6193 = vunpack.c.l.b16 %v6061
  %v6194 = vunpack.c.l.b16 %v6062
  %v6195 = vunpack.c.l.b16 %v6063
  %v6196 = vunpack.c.l.b16 %v6064
  %v6197 = vunpack.c.l.b16 %v6065
  %v6198 = vunpack.c.l.b16 %v6066
  %v6199 = vunpack.c.l.b16 %v6067
  %v6200 = vunpack.c.l.b16 %v6068
  %v6201 = vunpack.c.l.b16 %v6069
  %v6202 = vunpack.c.l.b16 %v6070
  %v6203 = vunpack.c.l.b16 %v6071
  %v6204 = vunpack.c.l.b16 %v6072
  %v6205 = vunpack.c.l.b16 %v6073
  %v6206 = vunpack.c.l.b16 %v6074
  %v6207 = vunpack.c.l.b16 %v6075
  %v6208 = vunpack.c.l.b16 %v6076
  %v6209 = vunpack.c.l.b16 %v6077
  %v6210 = vunpack.c.l.b16 %v6078
  %v6211 = vunpack.c.l.b16 %v6079
  %v6212 = vunpack.c.l.b16 %v6080
  %v6213 = vunpack.c.l.b16 %v6081
  %v6214 = vunpack.c.l.b16 %v6082
  %v6215 = vunpack.c.l.b16 %v6083
  %v6216 = vunpack.c.l.b16 %v6084
  %v6217 = vunpack.c.l.b16 %v6085
  %v6218 = vunpack.c.l.b16 %v6086
  %v6219 = vpack.c.b16 %v6156, %v6155
  %v6220 = vpack.c.b16 %v6158, %v6157
  %v6221 = vpack.c.b16 %v6160, %v6159
  %v6222 = vpack.c.b16 %v6162, %v6161
  %v6223 = vpack.c.b16 %v6164, %v6163
  %v6224 = vpack.c.b16 %v6166, %v6165
  %v6225 = vpack.c.b16 %v6168, %v6167
  %v6226 = vpack.c.b16 %v6170, %v6169
  %v6227 = vpack.c.b16 %v6172, %v6171
  %v6228 = vpack.c.b16 %v6174, %v6173
  %v6229 = vpack.c.b16 %v6176, %v6175
  %v6230 = vpack.c.b16 %v6178, %v6177
  %v6231 = vpack.c.b16 %v6180, %v6179
  %v6232 = vpack.c.b16 %v6182, %v6181
  %v6233 = vpack.c.b16 %v6184, %v6183
  %v6234 = vpack.c.b16 %v6186, %v6185
  %v6235 = vpack.c.b16 %v6188, %v6187
  %v6236 = vpack.c.b16 %v6190, %v6189
  %v6237 = vpack.c.b16 %v6192, %v6191
  %v6238 = vpack.c.b16 %v6194, %v6193
  %v6239 = vpack.c.b16 %v6196, %v6195
  %v6240 = vpack.c.b16 %v6198, %v6197
  %v6241 = vpack.c.b16 %v6200, %v6199
  %v6242 = vpack.c.b16 %v6202, %v6201
  %v6243 = vpack.c.b16 %v6204, %v6203
  %v6244 = vpack.c.b16 %v6206, %v6205
  %v6245 = vpack.c.b16 %v6208, %v6207
  %v6246 = vpack.c.b16 %v6210, %v6209
  %v6247 = vpack.c.b16 %v6212, %v6211
  %v6248 = vpack.c.b16 %v6214, %v6213
  %v6249 = vpack.c.b16 %v6216, %v6215
  %v6250 = vpack.c.b16 %v6218, %v6217
  %6283 = vmatpush.bf16.msra.mxu0 %v6226
  %6284 = vmatpush.bf16.msra.mxu0 %v6225
  %6285 = vmatpush.bf16.msra.mxu0 %v6224
  %6286 = vmatpush.bf16.msra.mxu0 %v6223
  %6287 = vmatpush.bf16.msra.mxu0 %v6222
  %6288 = vmatpush.bf16.msra.mxu0 %v6221
  %6289 = vmatpush.bf16.msra.mxu0 %v6220
  %6290 = vmatpush.bf16.msra.mxu0 %v6219
  %6291 = vmatmul.bf16.gmra.mxu0 %v6019
  %v6292 = vpop.f32.mrf.mxu0
  %v6293 = vadd.f32 %v6089, %v6292
  %v6294 = vpop.f32.mrf.mxu0
  %v6295 = vadd.f32 %v6089, %v6294
  %6296 = vdwg.mxu0
  %6297 = vmatpush.bf16.msra.mxu0 %v6234
  %6298 = vmatpush.bf16.msra.mxu0 %v6233
  %6299 = vmatpush.bf16.msra.mxu0 %v6232
  %6300 = vmatpush.bf16.msra.mxu0 %v6231
  %6301 = vmatpush.bf16.msra.mxu0 %v6230
  %6302 = vmatpush.bf16.msra.mxu0 %v6229
  %6303 = vmatpush.bf16.msra.mxu0 %v6228
  %6304 = vmatpush.bf16.msra.mxu0 %v6227
  %6305 = vmatmul.bf16.gmra.mxu0 %v6020
  %v6306 = vpop.f32.mrf.mxu0
  %v6307 = vadd.f32 %v6293, %v6306
  %v6308 = vpop.f32.mrf.mxu0
  %v6309 = vadd.f32 %v6295, %v6308
  %6310 = vdwg.mxu0
  %6311 = vmatpush.bf16.msra.mxu0 %v6242
  %6312 = vmatpush.bf16.msra.mxu0 %v6241
  %6313 = vmatpush.bf16.msra.mxu0 %v6240
  %6314 = vmatpush.bf16.msra.mxu0 %v6239
  %6315 = vmatpush.bf16.msra.mxu0 %v6238
  %6316 = vmatpush.bf16.msra.mxu0 %v6237
  %6317 = vmatpush.bf16.msra.mxu0 %v6236
  %6318 = vmatpush.bf16.msra.mxu0 %v6235
  %6319 = vmatmul.bf16.gmra.mxu0 %v6021
  %v6320 = vpop.f32.mrf.mxu0
  %v6321 = vadd.f32 %v6307, %v6320
  %v6322 = vpop.f32.mrf.mxu0
  %v6323 = vadd.f32 %v6309, %v6322
  %6324 = vdwg.mxu0
  %6325 = vmatpush.bf16.msra.mxu0 %v6250
  %6326 = vmatpush.bf16.msra.mxu0 %v6249
  %6327 = vmatpush.bf16.msra.mxu0 %v6248
  %6328 = vmatpush.bf16.msra.mxu0 %v6247
  %6329 = vmatpush.bf16.msra.mxu0 %v6246
  %6330 = vmatpush.bf16.msra.mxu0 %v6245
  %6331 = vmatpush.bf16.msra.mxu0 %v6244
  %6332 = vmatpush.bf16.msra.mxu0 %v6243
  %6333 = vmatmul.bf16.gmra.mxu0 %v6022
  %v6334 = vpop.f32.mrf.mxu0
  %v6335 = vadd.f32 %v6321, %v6334
  %v6336 = vpop.f32.mrf.mxu0
  %v6337 = vadd.f32 %v6323, %v6336
  %6338 = vdwg.mxu0
  %6339 = vst [vmem:[%s6] sm:$0xff] %v6335
  %6340 = vst [vmem:[%s6 + $0x8] sm:$0xff] %v6337
  // Predicated region
  $region26: #{agent_forward.7} parent=0 // pred_check
    _
  $region27: #{agent_forward.7} parent=0 // pred_check_branch
    %6342 = sbr.rel (0) target = $region29
  $region28: #{agent_forward.7} parent=0 // pred_region
    _
  $region29: #{agent_forward.7} parent=0 // pred_fallthru
    _
  // Predicated region
  $region30: #{agent_forward.7} parent=0 // pred_check
    _
  $region31: #{agent_forward.7} parent=0 // pred_check_branch
    %6344 = sbr.rel (0) target = $region33
  $region32: #{agent_forward.7} parent=0 // pred_region
    _
  $region33: #{agent_forward.7} parent=0 // pred_fallthru
    _

</llo_original>
